<compile_context>
chip_gen: v5e
topology: v5e:2x2
jax: 0.10.0
libtpu: 0.0.40
codegen_flags: <defaults>
</compile_context>

<pallas_src>
import jax
import jax.numpy as jnp
import numpy as np
from jax.experimental import pallas as pl
from jax.experimental.pallas import tpu as pltpu


def _round_up(x, m):
    return (x + m - 1) // m * m


def gdc_kernel(x_ref, w_ref, bias_ref, out_ref):
    # x_ref:    (TN, K)  flattened NCHW activations, K = C*H*W (K % 128 == 0)
    # w_ref:    (K, E)   depthwise-conv * BN2d * Linear * BN1d fused weight
    # bias_ref: (1, E)   fused bias (f32)
    # out_ref:  (TN, E)
    acc = jnp.dot(x_ref[...], w_ref[...], preferred_element_type=jnp.float32)
    out_ref[...] = (acc + bias_ref[...]).astype(out_ref.dtype)


def gdc_forward(x_nchw, params, *, eps=1e-5, tile_n=256, weight_dtype=None):
    """Fused GDC forward. x is streamed in its own dtype (never copied/cast in
    the wrapper); pass bf16 activations from the producer to halve HBM traffic
    on this bandwidth-bound head. weight_dtype defaults to x.dtype."""
    N, C, H, W = x_nchw.shape
    assert (H, W) == (7, 7), "GDC uses a full 7x7 depthwise kernel -> 7x7 input map"
    K = C * H * W
    E = params["w_lin"].shape[0]
    x_dtype = x_nchw.dtype
    out_dtype = x_nchw.dtype
    w_dtype = x_dtype if weight_dtype is None else weight_dtype

    # ---- fold depthwise conv + both eval-mode BatchNorms into (K, E) + bias ----
    s2 = params["bn2_gamma"] / jnp.sqrt(params["bn2_var"] + eps)        # (C,)
    b2 = params["bn2_beta"] - params["bn2_mean"] * s2                   # (C,)
    s1 = params["bn1_gamma"] / jnp.sqrt(params["bn1_var"] + eps)        # (E,)
    b1 = params["bn1_beta"] - params["bn1_mean"] * s1                   # (E,)

    wlin = params["w_lin"].T.astype(jnp.float32)                        # (C, E)
    wlin_f = (s2[:, None] * wlin) * s1[None, :]                         # (C, E)
    bias = ((b2 @ wlin) * s1 + b1).reshape(1, E).astype(jnp.float32)    # (1, E)

    wdw = params["w_dw"].reshape(C, H * W).astype(jnp.float32)          # (C, HW)
    # (C,HW,E) outer product -> (K,E). Weights are constants in practice; fold
    # once / cache outside the step function to avoid redoing this per call.
    w_big = (wdw[:, :, None] * wlin_f[:, None, :]).reshape(K, E).astype(w_dtype)

    # ---- x: free contiguous reshape only (no transpose / pad / cast) ----
    x = x_nchw.reshape(N, K)

    # ---- batch tile: per-generation VMEM budget, multiple of 8, >=2 steps ----
    x_isz = jnp.dtype(x_dtype).itemsize
    w_isz = jnp.dtype(w_dtype).itemsize
    o_isz = jnp.dtype(out_dtype).itemsize
    try:
        vmem_cap = int(pltpu.get_tpu_info().vmem_capacity_bytes)
    except Exception:
        vmem_cap = 64 << 20                      # v7x per-core VMEM (most restrictive)
    budget = min(vmem_cap, 128 << 20) - (16 << 20)     # headroom for internal scratch
    fixed = 2 * K * E * w_isz + E * 4 + (1 << 20)      # resident fused weight + bias
    per_row = 2 * K * x_isz + 2 * E * o_isz            # dbl-buffered x row + out row
    tile_n = _round_up(int(tile_n), 8)
    tn = min(tile_n, max((budget - fixed) // per_row, 8) // 8 * 8)
    if N > 8:                                    # >=2 grid steps -> both v7x TCs busy
        tn = min(tn, _round_up(-(-N // 2), 8))
    tn = max(min(tn, _round_up(N, 8)), 8)
    grid = (pl.cdiv(N, tn),)

    cost = pl.CostEstimate(
        flops=2 * N * K * E,
        transcendentals=0,
        bytes_accessed=(N * K * x_isz            # streamed x (dominant)
                        + K * E * w_isz + E * 4  # fused weight + bias (one load)
                        + N * E * o_isz),        # output
    )

    vmem_need = (2 * tn * K * x_isz              # double-buffered x tile
                 + 2 * K * E * w_isz             # fused weight (buffer-count 2)
                 + 2 * tn * E * o_isz            # double-buffered output tile
                 + E * 4 + (6 << 20))            # bias + headroom
    vmem_limit = max(int(vmem_need), 32 << 20)
    vmem_limit = min(vmem_limit, vmem_cap - (2 << 20))

    out = pl.pallas_call(
        gdc_kernel,
        out_shape=jax.ShapeDtypeStruct((N, E), out_dtype),
        grid=grid,
        in_specs=[
            pl.BlockSpec((tn, K), lambda i: (i, 0)),   # streamed x batch tile
            pl.BlockSpec((K, E), lambda i: (0, 0)),    # fused weight, VMEM-resident
            pl.BlockSpec((1, E), lambda i: (0, 0)),    # fused bias, VMEM-resident
        ],
        out_specs=pl.BlockSpec((tn, E), lambda i: (i, 0)),
        compiler_params=pltpu.CompilerParams(
            dimension_semantics=("parallel",),   # megacore split of the batch axis
            vmem_limit_bytes=int(vmem_limit),
        ),
        cost_estimate=cost,
    )(x, w_big, bias)

    return out


def gdc_reference(x, p, eps=1e-5):
    # numpy float64 reference of the same eval-mode forward (independent of TPU
    # matmul precision defaults).
    x = np.asarray(x, np.float64)
    f = lambda k: np.asarray(p[k], np.float64)
    N, C, H, W = x.shape
    dw = np.sum(x * f("w_dw").reshape(1, C, H, W), axis=(2, 3))                 # (N, C)
    y = (dw - f("bn2_mean")) / np.sqrt(f("bn2_var") + eps) * f("bn2_gamma") + f("bn2_beta")
    z = y @ f("w_lin").T                                                        # (N, E)
    return (z - f("bn1_mean")) / np.sqrt(f("bn1_var") + eps) * f("bn1_gamma") + f("bn1_beta")


if __name__ == "__main__":
    # Module hardcodes 512 channels and a 7x7 depthwise kernel -> (N,512,7,7).
    N, C, H, W = 2, 512, 7, 7
    E = 128  # embedding_size

    key = jax.random.PRNGKey(0)
    ks = jax.random.split(key, 12)

    x = jax.random.normal(ks[0], (N, C, H, W), jnp.float32)

    params = {
        # Conv2d(512, 512, (7,7), groups=512, bias=False).weight : (512, 1, 7, 7)
        "w_dw": jax.random.normal(ks[1], (C, 1, H, W), jnp.float32) * 0.05,
        # BatchNorm2d(512) params + running stats (eval mode)
        "bn2_gamma": 1.0 + 0.1 * jax.random.normal(ks[2], (C,), jnp.float32),
        "bn2_beta": 0.1 * jax.random.normal(ks[3], (C,), jnp.float32),
        "bn2_mean": 0.1 * jax.random.normal(ks[4], (C,), jnp.float32),
        "bn2_var": jax.nn.softplus(jax.random.normal(ks[5], (C,), jnp.float32)) + 0.5,
        # Linear(512, E, bias=False).weight : (E, 512)
        "w_lin": jax.random.normal(ks[6], (E, C), jnp.float32) * 0.05,
        # BatchNorm1d(E) params + running stats (eval mode)
        "bn1_gamma": 1.0 + 0.1 * jax.random.normal(ks[7], (E,), jnp.float32),
        "bn1_beta": 0.1 * jax.random.normal(ks[8], (E,), jnp.float32),
        "bn1_mean": 0.1 * jax.random.normal(ks[9], (E,), jnp.float32),
        "bn1_var": jax.nn.softplus(jax.random.normal(ks[10], (E,), jnp.float32)) + 0.5,
    }

    ref = gdc_reference(jax.device_get(x), {k: jax.device_get(v) for k, v in params.items()})

    # f32 activations (weights matched to f32).
    out = jax.block_until_ready(gdc_forward(x, params))
    assert out.shape == (N, E), out.shape
    np.testing.assert_allclose(np.asarray(out).astype(np.float64), ref, rtol=1e-2, atol=1e-2)

    # Recommended production path: bf16 activations streamed straight from the
    # producer (halves HBM bytes of the dominant input); f32 MXU accumulation.
    out_bf16 = jax.block_until_ready(gdc_forward(x.astype(jnp.bfloat16), params))
    np.testing.assert_allclose(np.asarray(out_bf16.astype(jnp.float32)).astype(np.float64),
                               ref, rtol=5e-2, atol=5e-2)

    print("KERNEL_OK")
</pallas_src>

<mosaic_0001>
module attributes {stable_mosaic.version = 11 : i64} {
  func.func @gdc_kernel(%arg0: i32, %arg1: memref<8x25088xf32, #tpu.memory_space<vmem>>, %arg2: memref<25088x128xf32, #tpu.memory_space<vmem>>, %arg3: memref<1x128xf32, #tpu.memory_space<vmem>>, %arg4: memref<8x128xf32, #tpu.memory_space<vmem>>) attributes {dimension_semantics = [#tpu.dimension_semantics<parallel>], iteration_bounds = array<i64: 1>, scalar_prefetch = 0 : i64, scratch_operands = 0 : i64, tpu.core_type = #tpu.core_type<tc>, window_params = [{transform_indices = @transform_0, window_bounds = array<i64: 8, 25088>}, {pipeline_mode = #tpu.pipeline_mode<synchronous>, transform_indices = @transform_1, window_bounds = array<i64: 25088, 128>}, {pipeline_mode = #tpu.pipeline_mode<synchronous>, transform_indices = @transform_2, window_bounds = array<i64: 1, 128>}, {transform_indices = @transform_3, window_bounds = array<i64: 8, 128>}]} {
    %c0 = arith.constant 0 : index
    %c0_0 = arith.constant 0 : index
    %0 = vector.load %arg1[%c0, %c0_0] : memref<8x25088xf32, #tpu.memory_space<vmem>>, vector<8x25088xf32>
    %c0_1 = arith.constant 0 : index
    %c0_2 = arith.constant 0 : index
    %1 = vector.load %arg2[%c0_1, %c0_2] : memref<25088x128xf32, #tpu.memory_space<vmem>>, vector<25088x128xf32>
    %cst = arith.constant dense<0.000000e+00> : vector<8x128xf32>
    %2 = tpu.matmul %0, %1, %cst {dimension_numbers = #tpu.dot_dimension_numbers<[1], [0], [0], [1], [0, 0, 1, 1], [], []>} : vector<8x25088xf32>, vector<25088x128xf32>, vector<8x128xf32> -> vector<8x128xf32>
    %c0_3 = arith.constant 0 : index
    %c0_4 = arith.constant 0 : index
    %3 = vector.load %arg3[%c0_3, %c0_4] : memref<1x128xf32, #tpu.memory_space<vmem>>, vector<1x128xf32>
    %4 = vector.broadcast %3 : vector<1x128xf32> to vector<8x128xf32>
    %5 = arith.addf %2, %4 : vector<8x128xf32>
    %c0_5 = arith.constant 0 : index
    %c0_6 = arith.constant 0 : index
    %6 = vector.load %arg4[%c0_5, %c0_6] : memref<8x128xf32, #tpu.memory_space<vmem>>, vector<8x128xf32>
    tpu.vector_store %arg4[%c0_5, %c0_6], %5 {strides = array<i32>} : memref<8x128xf32, #tpu.memory_space<vmem>>, vector<8x128xf32>,
    return
  }
  func.func @transform_0(%arg0: i32) -> (i32, i32) {
    %c0_i32 = arith.constant 0 : i32
    %c0_i32_0 = arith.constant 0 : i32
    return %arg0, %c0_i32 : i32, i32
  }
  func.func @transform_1(%arg0: i32) -> (i32, i32) {
    %c0_i32 = arith.constant 0 : i32
    %c0_i32_0 = arith.constant 0 : i32
    %c0_i32_1 = arith.constant 0 : i32
    return %c0_i32, %c0_i32_0 : i32, i32
  }
  func.func @transform_2(%arg0: i32) -> (i32, i32) {
    %c0_i32 = arith.constant 0 : i32
    %c0_i32_0 = arith.constant 0 : i32
    %c0_i32_1 = arith.constant 0 : i32
    return %c0_i32, %c0_i32_0 : i32, i32
  }
  func.func @transform_3(%arg0: i32) -> (i32, i32) {
    %c0_i32 = arith.constant 0 : i32
    %c0_i32_0 = arith.constant 0 : i32
    return %arg0, %c0_i32 : i32, i32
  }
}

</mosaic_0001>

<llo_original>
// kernel: tpu_custom_call.1
$region0: #{tpu_custom_call.1}
  #allocation0 [shape = 'u32[]', space=smem, size = 0x4, offset = 0x4, fixed_abs, tag = 'smem constant byte address 0x4 - core index']
  #allocation1 [shape = 'u32[72,128]{1,0:T(1,128)}', space=vmem, size = 0x9000, scoped, tag = 'internal scratch']
  %s0 = inlined_call_operand.hbm [shape: f32[2,25088], index: 0, kind: input, shape index: {}]
  %s1 = inlined_call_operand.hbm [shape: f32[25088,128], index: 1, kind: input, shape index: {}]
  %s2 = inlined_call_operand.hbm [shape: f32[1,128], index: 2, kind: input, shape index: {}]
  %s3 = inlined_call_operand.hbm [shape: f32[2,128], index: 3, kind: output, shape index: {}]
  %s4 = sld [smem:[#allocation0]]
  $region34: #{tpu_custom_call.1} parent=0
    _
  %s6 = ssub.s32 1, %s4
  %s7 = scalar_select 0, %s6, %s4
  $region1: #{tpu_custom_call.1} parent=0
    #allocation2 [shape = 'u8[802816]{0}', space=vmem, size = 0xc4000, scoped, tag = 'input window, operand 0, single buffered']
    #allocation3 [shape = 's32[1]{0}', space=sflag, size = 0x4, scoped, tag = 'scoped memory for tpu_custom_call.1']
    #allocation4 [shape = 's32[1]{0}', space=sflag, size = 0x4, scoped, tag = 'scoped memory for tpu_custom_call.1']
    #allocation5 [shape = 'u8[12845056]{0}', space=vmem, size = 0xc40000, scoped, tag = 'input window, operand 1, single buffered']
    #allocation6 [shape = 's32[1]{0}', space=sflag, size = 0x4, scoped, tag = 'scoped memory for tpu_custom_call.1']
    #allocation7 [shape = 'u8[512]{0}', space=vmem, size = 0x400, scoped, tag = 'input window, operand 2, single buffered']
    #allocation8 [shape = 'u8[4096]{0}', space=vmem, size = 0x1000, scoped, tag = 'output window, operand 0, single buffered']
    %8 = vsyncpa [#allocation3], 0
    %9 = vsyncpa [#allocation6], 0
    %10 = vsyncpa [#allocation4], 0
    // Predicated region
    $region2: #{tpu_custom_call.1} parent=1 // pred_check
      _
    $region3: #{tpu_custom_call.1} parent=1 // pred_check_branch
      %12 = sbr.rel (0) target = $region5
    $region4: #{tpu_custom_call.1} parent=1 // pred_region
      %14 = vsyncadd [#allocation3], 18816
      %s15 = sshll.u32 %s0, 4
      %s16 = int_to_ptr.hbm [resolvable:$true] %s15
      %s17 = sshll.u32 [#allocation2], 4
      %s18 = int_to_ptr.vmem [resolvable:$true] %s17
      %23 = dma.hbm_to_vmem [thread:$0]  %s16, 6272, %s18, [#allocation3], 6272, 6272, 392
    $region5: #{tpu_custom_call.1} parent=1 // pred_fallthru
      _
    // Predicated region
    $region6: #{tpu_custom_call.1} parent=1 // pred_check
      _
    $region7: #{tpu_custom_call.1} parent=1 // pred_check_branch
      %25 = sbr.rel (0) target = $region9
    $region8: #{tpu_custom_call.1} parent=1 // pred_region
      %27 = vsyncadd [#allocation6], 0
      %s28 = sshll.u32 %s1, 4
      %s29 = int_to_ptr.hbm [resolvable:$true] %s28
      %s30 = sshll.u32 [#allocation5], 4
      %s31 = int_to_ptr.vmem [resolvable:$true] %s30
      %36 = dma.hbm_to_vmem [thread:$0]  %s29, 401408, %s31, [#allocation6], 128, 128, 8
    $region9: #{tpu_custom_call.1} parent=1 // pred_fallthru
      _
    // Predicated region
    $region10: #{tpu_custom_call.1} parent=1 // pred_check
      _
    $region11: #{tpu_custom_call.1} parent=1 // pred_check_branch
      %38 = sbr.rel (0) target = $region13
    $region12: #{tpu_custom_call.1} parent=1 // pred_region
      %40 = vsyncadd [#allocation6], 0
      %s42 = sshll.u32 %s2, 4
      %s43 = int_to_ptr.hbm [resolvable:$true] %s42
      %s44 = sshll.u32 [#allocation7], 4
      %s45 = int_to_ptr.vmem [resolvable:$true] %s44
      %47 = dma.hbm_to_vmem [thread:$0]  %s43, 16, %s45, [#allocation6]
    $region13: #{tpu_custom_call.1} parent=1 // pred_fallthru
      _
    // Predicated region
    $region14: #{tpu_custom_call.1} parent=1 // pred_check
      _
    $region15: #{tpu_custom_call.1} parent=1 // pred_check_branch
      %49 = sbr.rel (0) target = $region17
    $region16: #{tpu_custom_call.1} parent=1 // pred_region
      %51 = dma.done [#allocation3], 25088
    $region17: #{tpu_custom_call.1} parent=1 // pred_fallthru
      _
    // Predicated region
    $region18: #{tpu_custom_call.1} parent=1 // pred_check
      _
    $region19: #{tpu_custom_call.1} parent=1 // pred_check_branch
      %53 = sbr.rel (0) target = $region21
    $region20: #{tpu_custom_call.1} parent=1 // pred_region
      %55 = dma.done [#allocation6], 401408
    $region21: #{tpu_custom_call.1} parent=1 // pred_fallthru
      _
    // Predicated region
    $region22: #{tpu_custom_call.1} parent=1 // pred_check
      _
    $region23: #{tpu_custom_call.1} parent=1 // pred_check_branch
      %57 = sbr.rel (0) target = $region25
    $region24: #{tpu_custom_call.1} parent=1 // pred_region
      %59 = dma.done [#allocation6], 16
    $region25: #{tpu_custom_call.1} parent=1 // pred_fallthru
      _
    %v60 = vld [vmem:[#allocation2] sm:$0xff]
    %v61 = vld [vmem:[#allocation2 + $0x8] sm:$0xff]
    %v62 = vld [vmem:[#allocation2 + $0x10] sm:$0xff]
    %v63 = vld [vmem:[#allocation2 + $0x18] sm:$0xff]
    %v64 = vld [vmem:[#allocation2 + $0x20] sm:$0xff]
    %v65 = vld [vmem:[#allocation2 + $0x28] sm:$0xff]
    %v66 = vld [vmem:[#allocation2 + $0x30] sm:$0xff]
    %v67 = vld [vmem:[#allocation2 + $0x38] sm:$0xff]
    %v68 = vld [vmem:[#allocation2 + $0x40] sm:$0xff]
    %v69 = vld [vmem:[#allocation2 + $0x48] sm:$0xff]
    %v70 = vld [vmem:[#allocation2 + $0x50] sm:$0xff]
    %v71 = vld [vmem:[#allocation2 + $0x58] sm:$0xff]
    %v72 = vld [vmem:[#allocation2 + $0x60] sm:$0xff]
    %v73 = vld [vmem:[#allocation2 + $0x68] sm:$0xff]
    %v74 = vld [vmem:[#allocation2 + $0x70] sm:$0xff]
    %v75 = vld [vmem:[#allocation2 + $0x78] sm:$0xff]
    %v76 = vld [vmem:[#allocation2 + $0x80] sm:$0xff]
    %v77 = vld [vmem:[#allocation2 + $0x88] sm:$0xff]
    %v78 = vld [vmem:[#allocation2 + $0x90] sm:$0xff]
    %v79 = vld [vmem:[#allocation2 + $0x98] sm:$0xff]
    %v80 = vld [vmem:[#allocation2 + $0xa0] sm:$0xff]
    %v81 = vld [vmem:[#allocation2 + $0xa8] sm:$0xff]
    %v82 = vld [vmem:[#allocation2 + $0xb0] sm:$0xff]
    %v83 = vld [vmem:[#allocation2 + $0xb8] sm:$0xff]
    %v84 = vld [vmem:[#allocation2 + $0xc0] sm:$0xff]
    %v85 = vld [vmem:[#allocation2 + $0xc8] sm:$0xff]
    %v86 = vld [vmem:[#allocation2 + $0xd0] sm:$0xff]
    %v87 = vld [vmem:[#allocation2 + $0xd8] sm:$0xff]
    %v88 = vld [vmem:[#allocation2 + $0xe0] sm:$0xff]
    %v89 = vld [vmem:[#allocation2 + $0xe8] sm:$0xff]
    %v90 = vld [vmem:[#allocation2 + $0xf0] sm:$0xff]
    %v91 = vld [vmem:[#allocation2 + $0xf8] sm:$0xff]
    %v92 = vld [vmem:[#allocation2 + $0x100] sm:$0xff]
    %v93 = vld [vmem:[#allocation2 + $0x108] sm:$0xff]
    %v94 = vld [vmem:[#allocation2 + $0x110] sm:$0xff]
    %v95 = vld [vmem:[#allocation2 + $0x118] sm:$0xff]
    %v96 = vld [vmem:[#allocation2 + $0x120] sm:$0xff]
    %v97 = vld [vmem:[#allocation2 + $0x128] sm:$0xff]
    %v98 = vld [vmem:[#allocation2 + $0x130] sm:$0xff]
    %v99 = vld [vmem:[#allocation2 + $0x138] sm:$0xff]
    %v100 = vld [vmem:[#allocation2 + $0x140] sm:$0xff]
    %v101 = vld [vmem:[#allocation2 + $0x148] sm:$0xff]
    %v102 = vld [vmem:[#allocation2 + $0x150] sm:$0xff]
    %v103 = vld [vmem:[#allocation2 + $0x158] sm:$0xff]
    %v104 = vld [vmem:[#allocation2 + $0x160] sm:$0xff]
    %v105 = vld [vmem:[#allocation2 + $0x168] sm:$0xff]
    %v106 = vld [vmem:[#allocation2 + $0x170] sm:$0xff]
    %v107 = vld [vmem:[#allocation2 + $0x178] sm:$0xff]
    %v108 = vld [vmem:[#allocation2 + $0x180] sm:$0xff]
    %v109 = vld [vmem:[#allocation2 + $0x188] sm:$0xff]
    %v110 = vld [vmem:[#allocation2 + $0x190] sm:$0xff]
    %v111 = vld [vmem:[#allocation2 + $0x198] sm:$0xff]
    %v112 = vld [vmem:[#allocation2 + $0x1a0] sm:$0xff]
    %v113 = vld [vmem:[#allocation2 + $0x1a8] sm:$0xff]
    %v114 = vld [vmem:[#allocation2 + $0x1b0] sm:$0xff]
    %v115 = vld [vmem:[#allocation2 + $0x1b8] sm:$0xff]
    %v116 = vld [vmem:[#allocation2 + $0x1c0] sm:$0xff]
    %v117 = vld [vmem:[#allocation2 + $0x1c8] sm:$0xff]
    %v118 = vld [vmem:[#allocation2 + $0x1d0] sm:$0xff]
    %v119 = vld [vmem:[#allocation2 + $0x1d8] sm:$0xff]
    %v120 = vld [vmem:[#allocation2 + $0x1e0] sm:$0xff]
    %v121 = vld [vmem:[#allocation2 + $0x1e8] sm:$0xff]
    %v122 = vld [vmem:[#allocation2 + $0x1f0] sm:$0xff]
    %v123 = vld [vmem:[#allocation2 + $0x1f8] sm:$0xff]
    %v124 = vld [vmem:[#allocation2 + $0x200] sm:$0xff]
    %v125 = vld [vmem:[#allocation2 + $0x208] sm:$0xff]
    %v126 = vld [vmem:[#allocation2 + $0x210] sm:$0xff]
    %v127 = vld [vmem:[#allocation2 + $0x218] sm:$0xff]
    %v128 = vld [vmem:[#allocation2 + $0x220] sm:$0xff]
    %v129 = vld [vmem:[#allocation2 + $0x228] sm:$0xff]
    %v130 = vld [vmem:[#allocation2 + $0x230] sm:$0xff]
    %v131 = vld [vmem:[#allocation2 + $0x238] sm:$0xff]
    %v132 = vld [vmem:[#allocation2 + $0x240] sm:$0xff]
    %v133 = vld [vmem:[#allocation2 + $0x248] sm:$0xff]
    %v134 = vld [vmem:[#allocation2 + $0x250] sm:$0xff]
    %v135 = vld [vmem:[#allocation2 + $0x258] sm:$0xff]
    %v136 = vld [vmem:[#allocation2 + $0x260] sm:$0xff]
    %v137 = vld [vmem:[#allocation2 + $0x268] sm:$0xff]
    %v138 = vld [vmem:[#allocation2 + $0x270] sm:$0xff]
    %v139 = vld [vmem:[#allocation2 + $0x278] sm:$0xff]
    %v140 = vld [vmem:[#allocation2 + $0x280] sm:$0xff]
    %v141 = vld [vmem:[#allocation2 + $0x288] sm:$0xff]
    %v142 = vld [vmem:[#allocation2 + $0x290] sm:$0xff]
    %v143 = vld [vmem:[#allocation2 + $0x298] sm:$0xff]
    %v144 = vld [vmem:[#allocation2 + $0x2a0] sm:$0xff]
    %v145 = vld [vmem:[#allocation2 + $0x2a8] sm:$0xff]
    %v146 = vld [vmem:[#allocation2 + $0x2b0] sm:$0xff]
    %v147 = vld [vmem:[#allocation2 + $0x2b8] sm:$0xff]
    %v148 = vld [vmem:[#allocation2 + $0x2c0] sm:$0xff]
    %v149 = vld [vmem:[#allocation2 + $0x2c8] sm:$0xff]
    %v150 = vld [vmem:[#allocation2 + $0x2d0] sm:$0xff]
    %v151 = vld [vmem:[#allocation2 + $0x2d8] sm:$0xff]
    %v152 = vld [vmem:[#allocation2 + $0x2e0] sm:$0xff]
    %v153 = vld [vmem:[#allocation2 + $0x2e8] sm:$0xff]
    %v154 = vld [vmem:[#allocation2 + $0x2f0] sm:$0xff]
    %v155 = vld [vmem:[#allocation2 + $0x2f8] sm:$0xff]
    %v156 = vld [vmem:[#allocation2 + $0x300] sm:$0xff]
    %v157 = vld [vmem:[#allocation2 + $0x308] sm:$0xff]
    %v158 = vld [vmem:[#allocation2 + $0x310] sm:$0xff]
    %v159 = vld [vmem:[#allocation2 + $0x318] sm:$0xff]
    %v160 = vld [vmem:[#allocation2 + $0x320] sm:$0xff]
    %v161 = vld [vmem:[#allocation2 + $0x328] sm:$0xff]
    %v162 = vld [vmem:[#allocation2 + $0x330] sm:$0xff]
    %v163 = vld [vmem:[#allocation2 + $0x338] sm:$0xff]
    %v164 = vld [vmem:[#allocation2 + $0x340] sm:$0xff]
    %v165 = vld [vmem:[#allocation2 + $0x348] sm:$0xff]
    %v166 = vld [vmem:[#allocation2 + $0x350] sm:$0xff]
    %v167 = vld [vmem:[#allocation2 + $0x358] sm:$0xff]
    %v168 = vld [vmem:[#allocation2 + $0x360] sm:$0xff]
    %v169 = vld [vmem:[#allocation2 + $0x368] sm:$0xff]
    %v170 = vld [vmem:[#allocation2 + $0x370] sm:$0xff]
    %v171 = vld [vmem:[#allocation2 + $0x378] sm:$0xff]
    %v172 = vld [vmem:[#allocation2 + $0x380] sm:$0xff]
    %v173 = vld [vmem:[#allocation2 + $0x388] sm:$0xff]
    %v174 = vld [vmem:[#allocation2 + $0x390] sm:$0xff]
    %v175 = vld [vmem:[#allocation2 + $0x398] sm:$0xff]
    %v176 = vld [vmem:[#allocation2 + $0x3a0] sm:$0xff]
    %v177 = vld [vmem:[#allocation2 + $0x3a8] sm:$0xff]
    %v178 = vld [vmem:[#allocation2 + $0x3b0] sm:$0xff]
    %v179 = vld [vmem:[#allocation2 + $0x3b8] sm:$0xff]
    %v180 = vld [vmem:[#allocation2 + $0x3c0] sm:$0xff]
    %v181 = vld [vmem:[#allocation2 + $0x3c8] sm:$0xff]
    %v182 = vld [vmem:[#allocation2 + $0x3d0] sm:$0xff]
    %v183 = vld [vmem:[#allocation2 + $0x3d8] sm:$0xff]
    %v184 = vld [vmem:[#allocation2 + $0x3e0] sm:$0xff]
    %v185 = vld [vmem:[#allocation2 + $0x3e8] sm:$0xff]
    %v186 = vld [vmem:[#allocation2 + $0x3f0] sm:$0xff]
    %v187 = vld [vmem:[#allocation2 + $0x3f8] sm:$0xff]
    %v188 = vld [vmem:[#allocation2 + $0x400] sm:$0xff]
    %v189 = vld [vmem:[#allocation2 + $0x408] sm:$0xff]
    %v190 = vld [vmem:[#allocation2 + $0x410] sm:$0xff]
    %v191 = vld [vmem:[#allocation2 + $0x418] sm:$0xff]
    %v192 = vld [vmem:[#allocation2 + $0x420] sm:$0xff]
    %v193 = vld [vmem:[#allocation2 + $0x428] sm:$0xff]
    %v194 = vld [vmem:[#allocation2 + $0x430] sm:$0xff]
    %v195 = vld [vmem:[#allocation2 + $0x438] sm:$0xff]
    %v196 = vld [vmem:[#allocation2 + $0x440] sm:$0xff]
    %v197 = vld [vmem:[#allocation2 + $0x448] sm:$0xff]
    %v198 = vld [vmem:[#allocation2 + $0x450] sm:$0xff]
    %v199 = vld [vmem:[#allocation2 + $0x458] sm:$0xff]
    %v200 = vld [vmem:[#allocation2 + $0x460] sm:$0xff]
    %v201 = vld [vmem:[#allocation2 + $0x468] sm:$0xff]
    %v202 = vld [vmem:[#allocation2 + $0x470] sm:$0xff]
    %v203 = vld [vmem:[#allocation2 + $0x478] sm:$0xff]
    %v204 = vld [vmem:[#allocation2 + $0x480] sm:$0xff]
    %v205 = vld [vmem:[#allocation2 + $0x488] sm:$0xff]
    %v206 = vld [vmem:[#allocation2 + $0x490] sm:$0xff]
    %v207 = vld [vmem:[#allocation2 + $0x498] sm:$0xff]
    %v208 = vld [vmem:[#allocation2 + $0x4a0] sm:$0xff]
    %v209 = vld [vmem:[#allocation2 + $0x4a8] sm:$0xff]
    %v210 = vld [vmem:[#allocation2 + $0x4b0] sm:$0xff]
    %v211 = vld [vmem:[#allocation2 + $0x4b8] sm:$0xff]
    %v212 = vld [vmem:[#allocation2 + $0x4c0] sm:$0xff]
    %v213 = vld [vmem:[#allocation2 + $0x4c8] sm:$0xff]
    %v214 = vld [vmem:[#allocation2 + $0x4d0] sm:$0xff]
    %v215 = vld [vmem:[#allocation2 + $0x4d8] sm:$0xff]
    %v216 = vld [vmem:[#allocation2 + $0x4e0] sm:$0xff]
    %v217 = vld [vmem:[#allocation2 + $0x4e8] sm:$0xff]
    %v218 = vld [vmem:[#allocation2 + $0x4f0] sm:$0xff]
    %v219 = vld [vmem:[#allocation2 + $0x4f8] sm:$0xff]
    %v220 = vld [vmem:[#allocation2 + $0x500] sm:$0xff]
    %v221 = vld [vmem:[#allocation2 + $0x508] sm:$0xff]
    %v222 = vld [vmem:[#allocation2 + $0x510] sm:$0xff]
    %v223 = vld [vmem:[#allocation2 + $0x518] sm:$0xff]
    %v224 = vld [vmem:[#allocation2 + $0x520] sm:$0xff]
    %v225 = vld [vmem:[#allocation2 + $0x528] sm:$0xff]
    %v226 = vld [vmem:[#allocation2 + $0x530] sm:$0xff]
    %v227 = vld [vmem:[#allocation2 + $0x538] sm:$0xff]
    %v228 = vld [vmem:[#allocation2 + $0x540] sm:$0xff]
    %v229 = vld [vmem:[#allocation2 + $0x548] sm:$0xff]
    %v230 = vld [vmem:[#allocation2 + $0x550] sm:$0xff]
    %v231 = vld [vmem:[#allocation2 + $0x558] sm:$0xff]
    %v232 = vld [vmem:[#allocation2 + $0x560] sm:$0xff]
    %v233 = vld [vmem:[#allocation2 + $0x568] sm:$0xff]
    %v234 = vld [vmem:[#allocation2 + $0x570] sm:$0xff]
    %v235 = vld [vmem:[#allocation2 + $0x578] sm:$0xff]
    %v236 = vld [vmem:[#allocation2 + $0x580] sm:$0xff]
    %v237 = vld [vmem:[#allocation2 + $0x588] sm:$0xff]
    %v238 = vld [vmem:[#allocation2 + $0x590] sm:$0xff]
    %v239 = vld [vmem:[#allocation2 + $0x598] sm:$0xff]
    %v240 = vld [vmem:[#allocation2 + $0x5a0] sm:$0xff]
    %v241 = vld [vmem:[#allocation2 + $0x5a8] sm:$0xff]
    %v242 = vld [vmem:[#allocation2 + $0x5b0] sm:$0xff]
    %v243 = vld [vmem:[#allocation2 + $0x5b8] sm:$0xff]
    %v244 = vld [vmem:[#allocation2 + $0x5c0] sm:$0xff]
    %v245 = vld [vmem:[#allocation2 + $0x5c8] sm:$0xff]
    %v246 = vld [vmem:[#allocation2 + $0x5d0] sm:$0xff]
    %v247 = vld [vmem:[#allocation2 + $0x5d8] sm:$0xff]
    %v248 = vld [vmem:[#allocation2 + $0x5e0] sm:$0xff]
    %v249 = vld [vmem:[#allocation2 + $0x5e8] sm:$0xff]
    %v250 = vld [vmem:[#allocation2 + $0x5f0] sm:$0xff]
    %v251 = vld [vmem:[#allocation2 + $0x5f8] sm:$0xff]
    %v252 = vld [vmem:[#allocation2 + $0x600] sm:$0xff]
    %v253 = vld [vmem:[#allocation2 + $0x608] sm:$0xff]
    %v254 = vld [vmem:[#allocation2 + $0x610] sm:$0xff]
    %v255 = vld [vmem:[#allocation2 + $0x618] sm:$0xff]
    %v256 = vld [vmem:[#allocation5] sm:$0xff]
    %v257 = vld [vmem:[#allocation5 + $0x8] sm:$0xff]
    %v258 = vld [vmem:[#allocation5 + $0x10] sm:$0xff]
    %v259 = vld [vmem:[#allocation5 + $0x18] sm:$0xff]
    %v260 = vld [vmem:[#allocation5 + $0x20] sm:$0xff]
    %v261 = vld [vmem:[#allocation5 + $0x28] sm:$0xff]
    %v262 = vld [vmem:[#allocation5 + $0x30] sm:$0xff]
    %v263 = vld [vmem:[#allocation5 + $0x38] sm:$0xff]
    %v264 = vld [vmem:[#allocation5 + $0x40] sm:$0xff]
    %v265 = vld [vmem:[#allocation5 + $0x48] sm:$0xff]
    %v266 = vld [vmem:[#allocation5 + $0x50] sm:$0xff]
    %v267 = vld [vmem:[#allocation5 + $0x58] sm:$0xff]
    %v268 = vld [vmem:[#allocation5 + $0x60] sm:$0xff]
    %v269 = vld [vmem:[#allocation5 + $0x68] sm:$0xff]
    %v270 = vld [vmem:[#allocation5 + $0x70] sm:$0xff]
    %v271 = vld [vmem:[#allocation5 + $0x78] sm:$0xff]
    %v272 = vld [vmem:[#allocation5 + $0x80] sm:$0xff]
    %v273 = vld [vmem:[#allocation5 + $0x88] sm:$0xff]
    %v274 = vld [vmem:[#allocation5 + $0x90] sm:$0xff]
    %v275 = vld [vmem:[#allocation5 + $0x98] sm:$0xff]
    %v276 = vld [vmem:[#allocation5 + $0xa0] sm:$0xff]
    %v277 = vld [vmem:[#allocation5 + $0xa8] sm:$0xff]
    %v278 = vld [vmem:[#allocation5 + $0xb0] sm:$0xff]
    %v279 = vld [vmem:[#allocation5 + $0xb8] sm:$0xff]
    %v280 = vld [vmem:[#allocation5 + $0xc0] sm:$0xff]
    %v281 = vld [vmem:[#allocation5 + $0xc8] sm:$0xff]
    %v282 = vld [vmem:[#allocation5 + $0xd0] sm:$0xff]
    %v283 = vld [vmem:[#allocation5 + $0xd8] sm:$0xff]
    %v284 = vld [vmem:[#allocation5 + $0xe0] sm:$0xff]
    %v285 = vld [vmem:[#allocation5 + $0xe8] sm:$0xff]
    %v286 = vld [vmem:[#allocation5 + $0xf0] sm:$0xff]
    %v287 = vld [vmem:[#allocation5 + $0xf8] sm:$0xff]
    %v288 = vld [vmem:[#allocation5 + $0x100] sm:$0xff]
    %v289 = vld [vmem:[#allocation5 + $0x108] sm:$0xff]
    %v290 = vld [vmem:[#allocation5 + $0x110] sm:$0xff]
    %v291 = vld [vmem:[#allocation5 + $0x118] sm:$0xff]
    %v292 = vld [vmem:[#allocation5 + $0x120] sm:$0xff]
    %v293 = vld [vmem:[#allocation5 + $0x128] sm:$0xff]
    %v294 = vld [vmem:[#allocation5 + $0x130] sm:$0xff]
    %v295 = vld [vmem:[#allocation5 + $0x138] sm:$0xff]
    %v296 = vld [vmem:[#allocation5 + $0x140] sm:$0xff]
    %v297 = vld [vmem:[#allocation5 + $0x148] sm:$0xff]
    %v298 = vld [vmem:[#allocation5 + $0x150] sm:$0xff]
    %v299 = vld [vmem:[#allocation5 + $0x158] sm:$0xff]
    %v300 = vld [vmem:[#allocation5 + $0x160] sm:$0xff]
    %v301 = vld [vmem:[#allocation5 + $0x168] sm:$0xff]
    %v302 = vld [vmem:[#allocation5 + $0x170] sm:$0xff]
    %v303 = vld [vmem:[#allocation5 + $0x178] sm:$0xff]
    %v304 = vld [vmem:[#allocation5 + $0x180] sm:$0xff]
    %v305 = vld [vmem:[#allocation5 + $0x188] sm:$0xff]
    %v306 = vld [vmem:[#allocation5 + $0x190] sm:$0xff]
    %v307 = vld [vmem:[#allocation5 + $0x198] sm:$0xff]
    %v308 = vld [vmem:[#allocation5 + $0x1a0] sm:$0xff]
    %v309 = vld [vmem:[#allocation5 + $0x1a8] sm:$0xff]
    %v310 = vld [vmem:[#allocation5 + $0x1b0] sm:$0xff]
    %v311 = vld [vmem:[#allocation5 + $0x1b8] sm:$0xff]
    %v312 = vld [vmem:[#allocation5 + $0x1c0] sm:$0xff]
    %v313 = vld [vmem:[#allocation5 + $0x1c8] sm:$0xff]
    %v314 = vld [vmem:[#allocation5 + $0x1d0] sm:$0xff]
    %v315 = vld [vmem:[#allocation5 + $0x1d8] sm:$0xff]
    %v316 = vld [vmem:[#allocation5 + $0x1e0] sm:$0xff]
    %v317 = vld [vmem:[#allocation5 + $0x1e8] sm:$0xff]
    %v318 = vld [vmem:[#allocation5 + $0x1f0] sm:$0xff]
    %v319 = vld [vmem:[#allocation5 + $0x1f8] sm:$0xff]
    %v320 = vld [vmem:[#allocation5 + $0x200] sm:$0xff]
    %v321 = vld [vmem:[#allocation5 + $0x208] sm:$0xff]
    %v322 = vld [vmem:[#allocation5 + $0x210] sm:$0xff]
    %v323 = vld [vmem:[#allocation5 + $0x218] sm:$0xff]
    %v324 = vld [vmem:[#allocation5 + $0x220] sm:$0xff]
    %v325 = vld [vmem:[#allocation5 + $0x228] sm:$0xff]
    %v326 = vld [vmem:[#allocation5 + $0x230] sm:$0xff]
    %v327 = vld [vmem:[#allocation5 + $0x238] sm:$0xff]
    %v328 = vld [vmem:[#allocation5 + $0x240] sm:$0xff]
    %v329 = vld [vmem:[#allocation5 + $0x248] sm:$0xff]
    %v330 = vld [vmem:[#allocation5 + $0x250] sm:$0xff]
    %v331 = vld [vmem:[#allocation5 + $0x258] sm:$0xff]
    %v332 = vld [vmem:[#allocation5 + $0x260] sm:$0xff]
    %v333 = vld [vmem:[#allocation5 + $0x268] sm:$0xff]
    %v334 = vld [vmem:[#allocation5 + $0x270] sm:$0xff]
    %v335 = vld [vmem:[#allocation5 + $0x278] sm:$0xff]
    %v336 = vld [vmem:[#allocation5 + $0x280] sm:$0xff]
    %v337 = vld [vmem:[#allocation5 + $0x288] sm:$0xff]
    %v338 = vld [vmem:[#allocation5 + $0x290] sm:$0xff]
    %v339 = vld [vmem:[#allocation5 + $0x298] sm:$0xff]
    %v340 = vld [vmem:[#allocation5 + $0x2a0] sm:$0xff]
    %v341 = vld [vmem:[#allocation5 + $0x2a8] sm:$0xff]
    %v342 = vld [vmem:[#allocation5 + $0x2b0] sm:$0xff]
    %v343 = vld [vmem:[#allocation5 + $0x2b8] sm:$0xff]
    %v344 = vld [vmem:[#allocation5 + $0x2c0] sm:$0xff]
    %v345 = vld [vmem:[#allocation5 + $0x2c8] sm:$0xff]
    %v346 = vld [vmem:[#allocation5 + $0x2d0] sm:$0xff]
    %v347 = vld [vmem:[#allocation5 + $0x2d8] sm:$0xff]
    %v348 = vld [vmem:[#allocation5 + $0x2e0] sm:$0xff]
    %v349 = vld [vmem:[#allocation5 + $0x2e8] sm:$0xff]
    %v350 = vld [vmem:[#allocation5 + $0x2f0] sm:$0xff]
    %v351 = vld [vmem:[#allocation5 + $0x2f8] sm:$0xff]
    %v352 = vld [vmem:[#allocation5 + $0x300] sm:$0xff]
    %v353 = vld [vmem:[#allocation5 + $0x308] sm:$0xff]
    %v354 = vld [vmem:[#allocation5 + $0x310] sm:$0xff]
    %v355 = vld [vmem:[#allocation5 + $0x318] sm:$0xff]
    %v356 = vld [vmem:[#allocation5 + $0x320] sm:$0xff]
    %v357 = vld [vmem:[#allocation5 + $0x328] sm:$0xff]
    %v358 = vld [vmem:[#allocation5 + $0x330] sm:$0xff]
    %v359 = vld [vmem:[#allocation5 + $0x338] sm:$0xff]
    %v360 = vld [vmem:[#allocation5 + $0x340] sm:$0xff]
    %v361 = vld [vmem:[#allocation5 + $0x348] sm:$0xff]
    %v362 = vld [vmem:[#allocation5 + $0x350] sm:$0xff]
    %v363 = vld [vmem:[#allocation5 + $0x358] sm:$0xff]
    %v364 = vld [vmem:[#allocation5 + $0x360] sm:$0xff]
    %v365 = vld [vmem:[#allocation5 + $0x368] sm:$0xff]
    %v366 = vld [vmem:[#allocation5 + $0x370] sm:$0xff]
    %v367 = vld [vmem:[#allocation5 + $0x378] sm:$0xff]
    %v368 = vld [vmem:[#allocation5 + $0x380] sm:$0xff]
    %v369 = vld [vmem:[#allocation5 + $0x388] sm:$0xff]
    %v370 = vld [vmem:[#allocation5 + $0x390] sm:$0xff]
    %v371 = vld [vmem:[#allocation5 + $0x398] sm:$0xff]
    %v372 = vld [vmem:[#allocation5 + $0x3a0] sm:$0xff]
    %v373 = vld [vmem:[#allocation5 + $0x3a8] sm:$0xff]
    %v374 = vld [vmem:[#allocation5 + $0x3b0] sm:$0xff]
    %v375 = vld [vmem:[#allocation5 + $0x3b8] sm:$0xff]
    %v376 = vld [vmem:[#allocation5 + $0x3c0] sm:$0xff]
    %v377 = vld [vmem:[#allocation5 + $0x3c8] sm:$0xff]
    %v378 = vld [vmem:[#allocation5 + $0x3d0] sm:$0xff]
    %v379 = vld [vmem:[#allocation5 + $0x3d8] sm:$0xff]
    %v380 = vld [vmem:[#allocation5 + $0x3e0] sm:$0xff]
    %v381 = vld [vmem:[#allocation5 + $0x3e8] sm:$0xff]
    %v382 = vld [vmem:[#allocation5 + $0x3f0] sm:$0xff]
    %v383 = vld [vmem:[#allocation5 + $0x3f8] sm:$0xff]
    %v384 = vld [vmem:[#allocation5 + $0x400] sm:$0xff]
    %v385 = vld [vmem:[#allocation5 + $0x408] sm:$0xff]
    %v386 = vld [vmem:[#allocation5 + $0x410] sm:$0xff]
    %v387 = vld [vmem:[#allocation5 + $0x418] sm:$0xff]
    %v388 = vld [vmem:[#allocation5 + $0x420] sm:$0xff]
    %v389 = vld [vmem:[#allocation5 + $0x428] sm:$0xff]
    %v390 = vld [vmem:[#allocation5 + $0x430] sm:$0xff]
    %v391 = vld [vmem:[#allocation5 + $0x438] sm:$0xff]
    %v392 = vld [vmem:[#allocation5 + $0x440] sm:$0xff]
    %v393 = vld [vmem:[#allocation5 + $0x448] sm:$0xff]
    %v394 = vld [vmem:[#allocation5 + $0x450] sm:$0xff]
    %v395 = vld [vmem:[#allocation5 + $0x458] sm:$0xff]
    %v396 = vld [vmem:[#allocation5 + $0x460] sm:$0xff]
    %v397 = vld [vmem:[#allocation5 + $0x468] sm:$0xff]
    %v398 = vld [vmem:[#allocation5 + $0x470] sm:$0xff]
    %v399 = vld [vmem:[#allocation5 + $0x478] sm:$0xff]
    %v400 = vld [vmem:[#allocation5 + $0x480] sm:$0xff]
    %v401 = vld [vmem:[#allocation5 + $0x488] sm:$0xff]
    %v402 = vld [vmem:[#allocation5 + $0x490] sm:$0xff]
    %v403 = vld [vmem:[#allocation5 + $0x498] sm:$0xff]
    %v404 = vld [vmem:[#allocation5 + $0x4a0] sm:$0xff]
    %v405 = vld [vmem:[#allocation5 + $0x4a8] sm:$0xff]
    %v406 = vld [vmem:[#allocation5 + $0x4b0] sm:$0xff]
    %v407 = vld [vmem:[#allocation5 + $0x4b8] sm:$0xff]
    %v408 = vld [vmem:[#allocation5 + $0x4c0] sm:$0xff]
    %v409 = vld [vmem:[#allocation5 + $0x4c8] sm:$0xff]
    %v410 = vld [vmem:[#allocation5 + $0x4d0] sm:$0xff]
    %v411 = vld [vmem:[#allocation5 + $0x4d8] sm:$0xff]
    %v412 = vld [vmem:[#allocation5 + $0x4e0] sm:$0xff]
    %v413 = vld [vmem:[#allocation5 + $0x4e8] sm:$0xff]
    %v414 = vld [vmem:[#allocation5 + $0x4f0] sm:$0xff]
    %v415 = vld [vmem:[#allocation5 + $0x4f8] sm:$0xff]
    %v416 = vld [vmem:[#allocation5 + $0x500] sm:$0xff]
    %v417 = vld [vmem:[#allocation5 + $0x508] sm:$0xff]
    %v418 = vld [vmem:[#allocation5 + $0x510] sm:$0xff]
    %v419 = vld [vmem:[#allocation5 + $0x518] sm:$0xff]
    %v420 = vld [vmem:[#allocation5 + $0x520] sm:$0xff]
    %v421 = vld [vmem:[#allocation5 + $0x528] sm:$0xff]
    %v422 = vld [vmem:[#allocation5 + $0x530] sm:$0xff]
    %v423 = vld [vmem:[#allocation5 + $0x538] sm:$0xff]
    %v424 = vld [vmem:[#allocation5 + $0x540] sm:$0xff]
    %v425 = vld [vmem:[#allocation5 + $0x548] sm:$0xff]
    %v426 = vld [vmem:[#allocation5 + $0x550] sm:$0xff]
    %v427 = vld [vmem:[#allocation5 + $0x558] sm:$0xff]
    %v428 = vld [vmem:[#allocation5 + $0x560] sm:$0xff]
    %v429 = vld [vmem:[#allocation5 + $0x568] sm:$0xff]
    %v430 = vld [vmem:[#allocation5 + $0x570] sm:$0xff]
    %v431 = vld [vmem:[#allocation5 + $0x578] sm:$0xff]
    %v432 = vld [vmem:[#allocation5 + $0x580] sm:$0xff]
    %v433 = vld [vmem:[#allocation5 + $0x588] sm:$0xff]
    %v434 = vld [vmem:[#allocation5 + $0x590] sm:$0xff]
    %v435 = vld [vmem:[#allocation5 + $0x598] sm:$0xff]
    %v436 = vld [vmem:[#allocation5 + $0x5a0] sm:$0xff]
    %v437 = vld [vmem:[#allocation5 + $0x5a8] sm:$0xff]
    %v438 = vld [vmem:[#allocation5 + $0x5b0] sm:$0xff]
    %v439 = vld [vmem:[#allocation5 + $0x5b8] sm:$0xff]
    %v440 = vld [vmem:[#allocation5 + $0x5c0] sm:$0xff]
    %v441 = vld [vmem:[#allocation5 + $0x5c8] sm:$0xff]
    %v442 = vld [vmem:[#allocation5 + $0x5d0] sm:$0xff]
    %v443 = vld [vmem:[#allocation5 + $0x5d8] sm:$0xff]
    %v444 = vld [vmem:[#allocation5 + $0x5e0] sm:$0xff]
    %v445 = vld [vmem:[#allocation5 + $0x5e8] sm:$0xff]
    %v446 = vld [vmem:[#allocation5 + $0x5f0] sm:$0xff]
    %v447 = vld [vmem:[#allocation5 + $0x5f8] sm:$0xff]
    %v448 = vld [vmem:[#allocation5 + $0x600] sm:$0xff]
    %v449 = vld [vmem:[#allocation5 + $0x608] sm:$0xff]
    %v450 = vld [vmem:[#allocation5 + $0x610] sm:$0xff]
    %v451 = vld [vmem:[#allocation5 + $0x618] sm:$0xff]
    %v452 = vld [vmem:[#allocation5 + $0x620] sm:$0xff]
    %v453 = vld [vmem:[#allocation5 + $0x628] sm:$0xff]
    %v454 = vld [vmem:[#allocation5 + $0x630] sm:$0xff]
    %v455 = vld [vmem:[#allocation5 + $0x638] sm:$0xff]
    %v456 = vld [vmem:[#allocation5 + $0x640] sm:$0xff]
    %v457 = vld [vmem:[#allocation5 + $0x648] sm:$0xff]
    %v458 = vld [vmem:[#allocation5 + $0x650] sm:$0xff]
    %v459 = vld [vmem:[#allocation5 + $0x658] sm:$0xff]
    %v460 = vld [vmem:[#allocation5 + $0x660] sm:$0xff]
    %v461 = vld [vmem:[#allocation5 + $0x668] sm:$0xff]
    %v462 = vld [vmem:[#allocation5 + $0x670] sm:$0xff]
    %v463 = vld [vmem:[#allocation5 + $0x678] sm:$0xff]
    %v464 = vld [vmem:[#allocation5 + $0x680] sm:$0xff]
    %v465 = vld [vmem:[#allocation5 + $0x688] sm:$0xff]
    %v466 = vld [vmem:[#allocation5 + $0x690] sm:$0xff]
    %v467 = vld [vmem:[#allocation5 + $0x698] sm:$0xff]
    %v468 = vld [vmem:[#allocation5 + $0x6a0] sm:$0xff]
    %v469 = vld [vmem:[#allocation5 + $0x6a8] sm:$0xff]
    %v470 = vld [vmem:[#allocation5 + $0x6b0] sm:$0xff]
    %v471 = vld [vmem:[#allocation5 + $0x6b8] sm:$0xff]
    %v472 = vld [vmem:[#allocation5 + $0x6c0] sm:$0xff]
    %v473 = vld [vmem:[#allocation5 + $0x6c8] sm:$0xff]
    %v474 = vld [vmem:[#allocation5 + $0x6d0] sm:$0xff]
    %v475 = vld [vmem:[#allocation5 + $0x6d8] sm:$0xff]
    %v476 = vld [vmem:[#allocation5 + $0x6e0] sm:$0xff]
    %v477 = vld [vmem:[#allocation5 + $0x6e8] sm:$0xff]
    %v478 = vld [vmem:[#allocation5 + $0x6f0] sm:$0xff]
    %v479 = vld [vmem:[#allocation5 + $0x6f8] sm:$0xff]
    %v480 = vld [vmem:[#allocation5 + $0x700] sm:$0xff]
    %v481 = vld [vmem:[#allocation5 + $0x708] sm:$0xff]
    %v482 = vld [vmem:[#allocation5 + $0x710] sm:$0xff]
    %v483 = vld [vmem:[#allocation5 + $0x718] sm:$0xff]
    %v484 = vld [vmem:[#allocation5 + $0x720] sm:$0xff]
    %v485 = vld [vmem:[#allocation5 + $0x728] sm:$0xff]
    %v486 = vld [vmem:[#allocation5 + $0x730] sm:$0xff]
    %v487 = vld [vmem:[#allocation5 + $0x738] sm:$0xff]
    %v488 = vld [vmem:[#allocation5 + $0x740] sm:$0xff]
    %v489 = vld [vmem:[#allocation5 + $0x748] sm:$0xff]
    %v490 = vld [vmem:[#allocation5 + $0x750] sm:$0xff]
    %v491 = vld [vmem:[#allocation5 + $0x758] sm:$0xff]
    %v492 = vld [vmem:[#allocation5 + $0x760] sm:$0xff]
    %v493 = vld [vmem:[#allocation5 + $0x768] sm:$0xff]
    %v494 = vld [vmem:[#allocation5 + $0x770] sm:$0xff]
    %v495 = vld [vmem:[#allocation5 + $0x778] sm:$0xff]
    %v496 = vld [vmem:[#allocation5 + $0x780] sm:$0xff]
    %v497 = vld [vmem:[#allocation5 + $0x788] sm:$0xff]
    %v498 = vld [vmem:[#allocation5 + $0x790] sm:$0xff]
    %v499 = vld [vmem:[#allocation5 + $0x798] sm:$0xff]
    %v500 = vld [vmem:[#allocation5 + $0x7a0] sm:$0xff]
    %v501 = vld [vmem:[#allocation5 + $0x7a8] sm:$0xff]
    %v502 = vld [vmem:[#allocation5 + $0x7b0] sm:$0xff]
    %v503 = vld [vmem:[#allocation5 + $0x7b8] sm:$0xff]
    %v504 = vld [vmem:[#allocation5 + $0x7c0] sm:$0xff]
    %v505 = vld [vmem:[#allocation5 + $0x7c8] sm:$0xff]
    %v506 = vld [vmem:[#allocation5 + $0x7d0] sm:$0xff]
    %v507 = vld [vmem:[#allocation5 + $0x7d8] sm:$0xff]
    %v508 = vld [vmem:[#allocation5 + $0x7e0] sm:$0xff]
    %v509 = vld [vmem:[#allocation5 + $0x7e8] sm:$0xff]
    %v510 = vld [vmem:[#allocation5 + $0x7f0] sm:$0xff]
    %v511 = vld [vmem:[#allocation5 + $0x7f8] sm:$0xff]
    %v512 = vld [vmem:[#allocation5 + $0x800] sm:$0xff]
    %v513 = vld [vmem:[#allocation5 + $0x808] sm:$0xff]
    %v514 = vld [vmem:[#allocation5 + $0x810] sm:$0xff]
    %v515 = vld [vmem:[#allocation5 + $0x818] sm:$0xff]
    %v516 = vld [vmem:[#allocation5 + $0x820] sm:$0xff]
    %v517 = vld [vmem:[#allocation5 + $0x828] sm:$0xff]
    %v518 = vld [vmem:[#allocation5 + $0x830] sm:$0xff]
    %v519 = vld [vmem:[#allocation5 + $0x838] sm:$0xff]
    %v520 = vld [vmem:[#allocation5 + $0x840] sm:$0xff]
    %v521 = vld [vmem:[#allocation5 + $0x848] sm:$0xff]
    %v522 = vld [vmem:[#allocation5 + $0x850] sm:$0xff]
    %v523 = vld [vmem:[#allocation5 + $0x858] sm:$0xff]
    %v524 = vld [vmem:[#allocation5 + $0x860] sm:$0xff]
    %v525 = vld [vmem:[#allocation5 + $0x868] sm:$0xff]
    %v526 = vld [vmem:[#allocation5 + $0x870] sm:$0xff]
    %v527 = vld [vmem:[#allocation5 + $0x878] sm:$0xff]
    %v528 = vld [vmem:[#allocation5 + $0x880] sm:$0xff]
    %v529 = vld [vmem:[#allocation5 + $0x888] sm:$0xff]
    %v530 = vld [vmem:[#allocation5 + $0x890] sm:$0xff]
    %v531 = vld [vmem:[#allocation5 + $0x898] sm:$0xff]
    %v532 = vld [vmem:[#allocation5 + $0x8a0] sm:$0xff]
    %v533 = vld [vmem:[#allocation5 + $0x8a8] sm:$0xff]
    %v534 = vld [vmem:[#allocation5 + $0x8b0] sm:$0xff]
    %v535 = vld [vmem:[#allocation5 + $0x8b8] sm:$0xff]
    %v536 = vld [vmem:[#allocation5 + $0x8c0] sm:$0xff]
    %v537 = vld [vmem:[#allocation5 + $0x8c8] sm:$0xff]
    %v538 = vld [vmem:[#allocation5 + $0x8d0] sm:$0xff]
    %v539 = vld [vmem:[#allocation5 + $0x8d8] sm:$0xff]
    %v540 = vld [vmem:[#allocation5 + $0x8e0] sm:$0xff]
    %v541 = vld [vmem:[#allocation5 + $0x8e8] sm:$0xff]
    %v542 = vld [vmem:[#allocation5 + $0x8f0] sm:$0xff]
    %v543 = vld [vmem:[#allocation5 + $0x8f8] sm:$0xff]
    %v544 = vld [vmem:[#allocation5 + $0x900] sm:$0xff]
    %v545 = vld [vmem:[#allocation5 + $0x908] sm:$0xff]
    %v546 = vld [vmem:[#allocation5 + $0x910] sm:$0xff]
    %v547 = vld [vmem:[#allocation5 + $0x918] sm:$0xff]
    %v548 = vld [vmem:[#allocation5 + $0x920] sm:$0xff]
    %v549 = vld [vmem:[#allocation5 + $0x928] sm:$0xff]
    %v550 = vld [vmem:[#allocation5 + $0x930] sm:$0xff]
    %v551 = vld [vmem:[#allocation5 + $0x938] sm:$0xff]
    %v552 = vld [vmem:[#allocation5 + $0x940] sm:$0xff]
    %v553 = vld [vmem:[#allocation5 + $0x948] sm:$0xff]
    %v554 = vld [vmem:[#allocation5 + $0x950] sm:$0xff]
    %v555 = vld [vmem:[#allocation5 + $0x958] sm:$0xff]
    %v556 = vld [vmem:[#allocation5 + $0x960] sm:$0xff]
    %v557 = vld [vmem:[#allocation5 + $0x968] sm:$0xff]
    %v558 = vld [vmem:[#allocation5 + $0x970] sm:$0xff]
    %v559 = vld [vmem:[#allocation5 + $0x978] sm:$0xff]
    %v560 = vld [vmem:[#allocation5 + $0x980] sm:$0xff]
    %v561 = vld [vmem:[#allocation5 + $0x988] sm:$0xff]
    %v562 = vld [vmem:[#allocation5 + $0x990] sm:$0xff]
    %v563 = vld [vmem:[#allocation5 + $0x998] sm:$0xff]
    %v564 = vld [vmem:[#allocation5 + $0x9a0] sm:$0xff]
    %v565 = vld [vmem:[#allocation5 + $0x9a8] sm:$0xff]
    %v566 = vld [vmem:[#allocation5 + $0x9b0] sm:$0xff]
    %v567 = vld [vmem:[#allocation5 + $0x9b8] sm:$0xff]
    %v568 = vld [vmem:[#allocation5 + $0x9c0] sm:$0xff]
    %v569 = vld [vmem:[#allocation5 + $0x9c8] sm:$0xff]
    %v570 = vld [vmem:[#allocation5 + $0x9d0] sm:$0xff]
    %v571 = vld [vmem:[#allocation5 + $0x9d8] sm:$0xff]
    %v572 = vld [vmem:[#allocation5 + $0x9e0] sm:$0xff]
    %v573 = vld [vmem:[#allocation5 + $0x9e8] sm:$0xff]
    %v574 = vld [vmem:[#allocation5 + $0x9f0] sm:$0xff]
    %v575 = vld [vmem:[#allocation5 + $0x9f8] sm:$0xff]
    %v576 = vld [vmem:[#allocation5 + $0xa00] sm:$0xff]
    %v577 = vld [vmem:[#allocation5 + $0xa08] sm:$0xff]
    %v578 = vld [vmem:[#allocation5 + $0xa10] sm:$0xff]
    %v579 = vld [vmem:[#allocation5 + $0xa18] sm:$0xff]
    %v580 = vld [vmem:[#allocation5 + $0xa20] sm:$0xff]
    %v581 = vld [vmem:[#allocation5 + $0xa28] sm:$0xff]
    %v582 = vld [vmem:[#allocation5 + $0xa30] sm:$0xff]
    %v583 = vld [vmem:[#allocation5 + $0xa38] sm:$0xff]
    %v584 = vld [vmem:[#allocation5 + $0xa40] sm:$0xff]
    %v585 = vld [vmem:[#allocation5 + $0xa48] sm:$0xff]
    %v586 = vld [vmem:[#allocation5 + $0xa50] sm:$0xff]
    %v587 = vld [vmem:[#allocation5 + $0xa58] sm:$0xff]
    %v588 = vld [vmem:[#allocation5 + $0xa60] sm:$0xff]
    %v589 = vld [vmem:[#allocation5 + $0xa68] sm:$0xff]
    %v590 = vld [vmem:[#allocation5 + $0xa70] sm:$0xff]
    %v591 = vld [vmem:[#allocation5 + $0xa78] sm:$0xff]
    %v592 = vld [vmem:[#allocation5 + $0xa80] sm:$0xff]
    %v593 = vld [vmem:[#allocation5 + $0xa88] sm:$0xff]
    %v594 = vld [vmem:[#allocation5 + $0xa90] sm:$0xff]
    %v595 = vld [vmem:[#allocation5 + $0xa98] sm:$0xff]
    %v596 = vld [vmem:[#allocation5 + $0xaa0] sm:$0xff]
    %v597 = vld [vmem:[#allocation5 + $0xaa8] sm:$0xff]
    %v598 = vld [vmem:[#allocation5 + $0xab0] sm:$0xff]
    %v599 = vld [vmem:[#allocation5 + $0xab8] sm:$0xff]
    %v600 = vld [vmem:[#allocation5 + $0xac0] sm:$0xff]
    %v601 = vld [vmem:[#allocation5 + $0xac8] sm:$0xff]
    %v602 = vld [vmem:[#allocation5 + $0xad0] sm:$0xff]
    %v603 = vld [vmem:[#allocation5 + $0xad8] sm:$0xff]
    %v604 = vld [vmem:[#allocation5 + $0xae0] sm:$0xff]
    %v605 = vld [vmem:[#allocation5 + $0xae8] sm:$0xff]
    %v606 = vld [vmem:[#allocation5 + $0xaf0] sm:$0xff]
    %v607 = vld [vmem:[#allocation5 + $0xaf8] sm:$0xff]
    %v608 = vld [vmem:[#allocation5 + $0xb00] sm:$0xff]
    %v609 = vld [vmem:[#allocation5 + $0xb08] sm:$0xff]
    %v610 = vld [vmem:[#allocation5 + $0xb10] sm:$0xff]
    %v611 = vld [vmem:[#allocation5 + $0xb18] sm:$0xff]
    %v612 = vld [vmem:[#allocation5 + $0xb20] sm:$0xff]
    %v613 = vld [vmem:[#allocation5 + $0xb28] sm:$0xff]
    %v614 = vld [vmem:[#allocation5 + $0xb30] sm:$0xff]
    %v615 = vld [vmem:[#allocation5 + $0xb38] sm:$0xff]
    %v616 = vld [vmem:[#allocation5 + $0xb40] sm:$0xff]
    %v617 = vld [vmem:[#allocation5 + $0xb48] sm:$0xff]
    %v618 = vld [vmem:[#allocation5 + $0xb50] sm:$0xff]
    %v619 = vld [vmem:[#allocation5 + $0xb58] sm:$0xff]
    %v620 = vld [vmem:[#allocation5 + $0xb60] sm:$0xff]
    %v621 = vld [vmem:[#allocation5 + $0xb68] sm:$0xff]
    %v622 = vld [vmem:[#allocation5 + $0xb70] sm:$0xff]
    %v623 = vld [vmem:[#allocation5 + $0xb78] sm:$0xff]
    %v624 = vld [vmem:[#allocation5 + $0xb80] sm:$0xff]
    %v625 = vld [vmem:[#allocation5 + $0xb88] sm:$0xff]
    %v626 = vld [vmem:[#allocation5 + $0xb90] sm:$0xff]
    %v627 = vld [vmem:[#allocation5 + $0xb98] sm:$0xff]
    %v628 = vld [vmem:[#allocation5 + $0xba0] sm:$0xff]
    %v629 = vld [vmem:[#allocation5 + $0xba8] sm:$0xff]
    %v630 = vld [vmem:[#allocation5 + $0xbb0] sm:$0xff]
    %v631 = vld [vmem:[#allocation5 + $0xbb8] sm:$0xff]
    %v632 = vld [vmem:[#allocation5 + $0xbc0] sm:$0xff]
    %v633 = vld [vmem:[#allocation5 + $0xbc8] sm:$0xff]
    %v634 = vld [vmem:[#allocation5 + $0xbd0] sm:$0xff]
    %v635 = vld [vmem:[#allocation5 + $0xbd8] sm:$0xff]
    %v636 = vld [vmem:[#allocation5 + $0xbe0] sm:$0xff]
    %v637 = vld [vmem:[#allocation5 + $0xbe8] sm:$0xff]
    %v638 = vld [vmem:[#allocation5 + $0xbf0] sm:$0xff]
    %v639 = vld [vmem:[#allocation5 + $0xbf8] sm:$0xff]
    %v640 = vld [vmem:[#allocation5 + $0xc00] sm:$0xff]
    %v641 = vld [vmem:[#allocation5 + $0xc08] sm:$0xff]
    %v642 = vld [vmem:[#allocation5 + $0xc10] sm:$0xff]
    %v643 = vld [vmem:[#allocation5 + $0xc18] sm:$0xff]
    %v644 = vld [vmem:[#allocation5 + $0xc20] sm:$0xff]
    %v645 = vld [vmem:[#allocation5 + $0xc28] sm:$0xff]
    %v646 = vld [vmem:[#allocation5 + $0xc30] sm:$0xff]
    %v647 = vld [vmem:[#allocation5 + $0xc38] sm:$0xff]
    %v648 = vld [vmem:[#allocation5 + $0xc40] sm:$0xff]
    %v649 = vld [vmem:[#allocation5 + $0xc48] sm:$0xff]
    %v650 = vld [vmem:[#allocation5 + $0xc50] sm:$0xff]
    %v651 = vld [vmem:[#allocation5 + $0xc58] sm:$0xff]
    %v652 = vld [vmem:[#allocation5 + $0xc60] sm:$0xff]
    %v653 = vld [vmem:[#allocation5 + $0xc68] sm:$0xff]
    %v654 = vld [vmem:[#allocation5 + $0xc70] sm:$0xff]
    %v655 = vld [vmem:[#allocation5 + $0xc78] sm:$0xff]
    %v656 = vld [vmem:[#allocation5 + $0xc80] sm:$0xff]
    %v657 = vld [vmem:[#allocation5 + $0xc88] sm:$0xff]
    %v658 = vld [vmem:[#allocation5 + $0xc90] sm:$0xff]
    %v659 = vld [vmem:[#allocation5 + $0xc98] sm:$0xff]
    %v660 = vld [vmem:[#allocation5 + $0xca0] sm:$0xff]
    %v661 = vld [vmem:[#allocation5 + $0xca8] sm:$0xff]
    %v662 = vld [vmem:[#allocation5 + $0xcb0] sm:$0xff]
    %v663 = vld [vmem:[#allocation5 + $0xcb8] sm:$0xff]
    %v664 = vld [vmem:[#allocation5 + $0xcc0] sm:$0xff]
    %v665 = vld [vmem:[#allocation5 + $0xcc8] sm:$0xff]
    %v666 = vld [vmem:[#allocation5 + $0xcd0] sm:$0xff]
    %v667 = vld [vmem:[#allocation5 + $0xcd8] sm:$0xff]
    %v668 = vld [vmem:[#allocation5 + $0xce0] sm:$0xff]
    %v669 = vld [vmem:[#allocation5 + $0xce8] sm:$0xff]
    %v670 = vld [vmem:[#allocation5 + $0xcf0] sm:$0xff]
    %v671 = vld [vmem:[#allocation5 + $0xcf8] sm:$0xff]
    %v672 = vld [vmem:[#allocation5 + $0xd00] sm:$0xff]
    %v673 = vld [vmem:[#allocation5 + $0xd08] sm:$0xff]
    %v674 = vld [vmem:[#allocation5 + $0xd10] sm:$0xff]
    %v675 = vld [vmem:[#allocation5 + $0xd18] sm:$0xff]
    %v676 = vld [vmem:[#allocation5 + $0xd20] sm:$0xff]
    %v677 = vld [vmem:[#allocation5 + $0xd28] sm:$0xff]
    %v678 = vld [vmem:[#allocation5 + $0xd30] sm:$0xff]
    %v679 = vld [vmem:[#allocation5 + $0xd38] sm:$0xff]
    %v680 = vld [vmem:[#allocation5 + $0xd40] sm:$0xff]
    %v681 = vld [vmem:[#allocation5 + $0xd48] sm:$0xff]
    %v682 = vld [vmem:[#allocation5 + $0xd50] sm:$0xff]
    %v683 = vld [vmem:[#allocation5 + $0xd58] sm:$0xff]
    %v684 = vld [vmem:[#allocation5 + $0xd60] sm:$0xff]
    %v685 = vld [vmem:[#allocation5 + $0xd68] sm:$0xff]
    %v686 = vld [vmem:[#allocation5 + $0xd70] sm:$0xff]
    %v687 = vld [vmem:[#allocation5 + $0xd78] sm:$0xff]
    %v688 = vld [vmem:[#allocation5 + $0xd80] sm:$0xff]
    %v689 = vld [vmem:[#allocation5 + $0xd88] sm:$0xff]
    %v690 = vld [vmem:[#allocation5 + $0xd90] sm:$0xff]
    %v691 = vld [vmem:[#allocation5 + $0xd98] sm:$0xff]
    %v692 = vld [vmem:[#allocation5 + $0xda0] sm:$0xff]
    %v693 = vld [vmem:[#allocation5 + $0xda8] sm:$0xff]
    %v694 = vld [vmem:[#allocation5 + $0xdb0] sm:$0xff]
    %v695 = vld [vmem:[#allocation5 + $0xdb8] sm:$0xff]
    %v696 = vld [vmem:[#allocation5 + $0xdc0] sm:$0xff]
    %v697 = vld [vmem:[#allocation5 + $0xdc8] sm:$0xff]
    %v698 = vld [vmem:[#allocation5 + $0xdd0] sm:$0xff]
    %v699 = vld [vmem:[#allocation5 + $0xdd8] sm:$0xff]
    %v700 = vld [vmem:[#allocation5 + $0xde0] sm:$0xff]
    %v701 = vld [vmem:[#allocation5 + $0xde8] sm:$0xff]
    %v702 = vld [vmem:[#allocation5 + $0xdf0] sm:$0xff]
    %v703 = vld [vmem:[#allocation5 + $0xdf8] sm:$0xff]
    %v704 = vld [vmem:[#allocation5 + $0xe00] sm:$0xff]
    %v705 = vld [vmem:[#allocation5 + $0xe08] sm:$0xff]
    %v706 = vld [vmem:[#allocation5 + $0xe10] sm:$0xff]
    %v707 = vld [vmem:[#allocation5 + $0xe18] sm:$0xff]
    %v708 = vld [vmem:[#allocation5 + $0xe20] sm:$0xff]
    %v709 = vld [vmem:[#allocation5 + $0xe28] sm:$0xff]
    %v710 = vld [vmem:[#allocation5 + $0xe30] sm:$0xff]
    %v711 = vld [vmem:[#allocation5 + $0xe38] sm:$0xff]
    %v712 = vld [vmem:[#allocation5 + $0xe40] sm:$0xff]
    %v713 = vld [vmem:[#allocation5 + $0xe48] sm:$0xff]
    %v714 = vld [vmem:[#allocation5 + $0xe50] sm:$0xff]
    %v715 = vld [vmem:[#allocation5 + $0xe58] sm:$0xff]
    %v716 = vld [vmem:[#allocation5 + $0xe60] sm:$0xff]
    %v717 = vld [vmem:[#allocation5 + $0xe68] sm:$0xff]
    %v718 = vld [vmem:[#allocation5 + $0xe70] sm:$0xff]
    %v719 = vld [vmem:[#allocation5 + $0xe78] sm:$0xff]
    %v720 = vld [vmem:[#allocation5 + $0xe80] sm:$0xff]
    %v721 = vld [vmem:[#allocation5 + $0xe88] sm:$0xff]
    %v722 = vld [vmem:[#allocation5 + $0xe90] sm:$0xff]
    %v723 = vld [vmem:[#allocation5 + $0xe98] sm:$0xff]
    %v724 = vld [vmem:[#allocation5 + $0xea0] sm:$0xff]
    %v725 = vld [vmem:[#allocation5 + $0xea8] sm:$0xff]
    %v726 = vld [vmem:[#allocation5 + $0xeb0] sm:$0xff]
    %v727 = vld [vmem:[#allocation5 + $0xeb8] sm:$0xff]
    %v728 = vld [vmem:[#allocation5 + $0xec0] sm:$0xff]
    %v729 = vld [vmem:[#allocation5 + $0xec8] sm:$0xff]
    %v730 = vld [vmem:[#allocation5 + $0xed0] sm:$0xff]
    %v731 = vld [vmem:[#allocation5 + $0xed8] sm:$0xff]
    %v732 = vld [vmem:[#allocation5 + $0xee0] sm:$0xff]
    %v733 = vld [vmem:[#allocation5 + $0xee8] sm:$0xff]
    %v734 = vld [vmem:[#allocation5 + $0xef0] sm:$0xff]
    %v735 = vld [vmem:[#allocation5 + $0xef8] sm:$0xff]
    %v736 = vld [vmem:[#allocation5 + $0xf00] sm:$0xff]
    %v737 = vld [vmem:[#allocation5 + $0xf08] sm:$0xff]
    %v738 = vld [vmem:[#allocation5 + $0xf10] sm:$0xff]
    %v739 = vld [vmem:[#allocation5 + $0xf18] sm:$0xff]
    %v740 = vld [vmem:[#allocation5 + $0xf20] sm:$0xff]
    %v741 = vld [vmem:[#allocation5 + $0xf28] sm:$0xff]
    %v742 = vld [vmem:[#allocation5 + $0xf30] sm:$0xff]
    %v743 = vld [vmem:[#allocation5 + $0xf38] sm:$0xff]
    %v744 = vld [vmem:[#allocation5 + $0xf40] sm:$0xff]
    %v745 = vld [vmem:[#allocation5 + $0xf48] sm:$0xff]
    %v746 = vld [vmem:[#allocation5 + $0xf50] sm:$0xff]
    %v747 = vld [vmem:[#allocation5 + $0xf58] sm:$0xff]
    %v748 = vld [vmem:[#allocation5 + $0xf60] sm:$0xff]
    %v749 = vld [vmem:[#allocation5 + $0xf68] sm:$0xff]
    %v750 = vld [vmem:[#allocation5 + $0xf70] sm:$0xff]
    %v751 = vld [vmem:[#allocation5 + $0xf78] sm:$0xff]
    %v752 = vld [vmem:[#allocation5 + $0xf80] sm:$0xff]
    %v753 = vld [vmem:[#allocation5 + $0xf88] sm:$0xff]
    %v754 = vld [vmem:[#allocation5 + $0xf90] sm:$0xff]
    %v755 = vld [vmem:[#allocation5 + $0xf98] sm:$0xff]
    %v756 = vld [vmem:[#allocation5 + $0xfa0] sm:$0xff]
    %v757 = vld [vmem:[#allocation5 + $0xfa8] sm:$0xff]
    %v758 = vld [vmem:[#allocation5 + $0xfb0] sm:$0xff]
    %v759 = vld [vmem:[#allocation5 + $0xfb8] sm:$0xff]
    %v760 = vld [vmem:[#allocation5 + $0xfc0] sm:$0xff]
    %v761 = vld [vmem:[#allocation5 + $0xfc8] sm:$0xff]
    %v762 = vld [vmem:[#allocation5 + $0xfd0] sm:$0xff]
    %v763 = vld [vmem:[#allocation5 + $0xfd8] sm:$0xff]
    %v764 = vld [vmem:[#allocation5 + $0xfe0] sm:$0xff]
    %v765 = vld [vmem:[#allocation5 + $0xfe8] sm:$0xff]
    %v766 = vld [vmem:[#allocation5 + $0xff0] sm:$0xff]
    %v767 = vld [vmem:[#allocation5 + $0xff8] sm:$0xff]
    %v768 = vld [vmem:[#allocation5 + $0x1000] sm:$0xff]
    %v769 = vld [vmem:[#allocation5 + $0x1008] sm:$0xff]
    %v770 = vld [vmem:[#allocation5 + $0x1010] sm:$0xff]
    %v771 = vld [vmem:[#allocation5 + $0x1018] sm:$0xff]
    %v772 = vld [vmem:[#allocation5 + $0x1020] sm:$0xff]
    %v773 = vld [vmem:[#allocation5 + $0x1028] sm:$0xff]
    %v774 = vld [vmem:[#allocation5 + $0x1030] sm:$0xff]
    %v775 = vld [vmem:[#allocation5 + $0x1038] sm:$0xff]
    %v776 = vld [vmem:[#allocation5 + $0x1040] sm:$0xff]
    %v777 = vld [vmem:[#allocation5 + $0x1048] sm:$0xff]
    %v778 = vld [vmem:[#allocation5 + $0x1050] sm:$0xff]
    %v779 = vld [vmem:[#allocation5 + $0x1058] sm:$0xff]
    %v780 = vld [vmem:[#allocation5 + $0x1060] sm:$0xff]
    %v781 = vld [vmem:[#allocation5 + $0x1068] sm:$0xff]
    %v782 = vld [vmem:[#allocation5 + $0x1070] sm:$0xff]
    %v783 = vld [vmem:[#allocation5 + $0x1078] sm:$0xff]
    %v784 = vld [vmem:[#allocation5 + $0x1080] sm:$0xff]
    %v785 = vld [vmem:[#allocation5 + $0x1088] sm:$0xff]
    %v786 = vld [vmem:[#allocation5 + $0x1090] sm:$0xff]
    %v787 = vld [vmem:[#allocation5 + $0x1098] sm:$0xff]
    %v788 = vld [vmem:[#allocation5 + $0x10a0] sm:$0xff]
    %v789 = vld [vmem:[#allocation5 + $0x10a8] sm:$0xff]
    %v790 = vld [vmem:[#allocation5 + $0x10b0] sm:$0xff]
    %v791 = vld [vmem:[#allocation5 + $0x10b8] sm:$0xff]
    %v792 = vld [vmem:[#allocation5 + $0x10c0] sm:$0xff]
    %v793 = vld [vmem:[#allocation5 + $0x10c8] sm:$0xff]
    %v794 = vld [vmem:[#allocation5 + $0x10d0] sm:$0xff]
    %v795 = vld [vmem:[#allocation5 + $0x10d8] sm:$0xff]
    %v796 = vld [vmem:[#allocation5 + $0x10e0] sm:$0xff]
    %v797 = vld [vmem:[#allocation5 + $0x10e8] sm:$0xff]
    %v798 = vld [vmem:[#allocation5 + $0x10f0] sm:$0xff]
    %v799 = vld [vmem:[#allocation5 + $0x10f8] sm:$0xff]
    %v800 = vld [vmem:[#allocation5 + $0x1100] sm:$0xff]
    %v801 = vld [vmem:[#allocation5 + $0x1108] sm:$0xff]
    %v802 = vld [vmem:[#allocation5 + $0x1110] sm:$0xff]
    %v803 = vld [vmem:[#allocation5 + $0x1118] sm:$0xff]
    %v804 = vld [vmem:[#allocation5 + $0x1120] sm:$0xff]
    %v805 = vld [vmem:[#allocation5 + $0x1128] sm:$0xff]
    %v806 = vld [vmem:[#allocation5 + $0x1130] sm:$0xff]
    %v807 = vld [vmem:[#allocation5 + $0x1138] sm:$0xff]
    %v808 = vld [vmem:[#allocation5 + $0x1140] sm:$0xff]
    %v809 = vld [vmem:[#allocation5 + $0x1148] sm:$0xff]
    %v810 = vld [vmem:[#allocation5 + $0x1150] sm:$0xff]
    %v811 = vld [vmem:[#allocation5 + $0x1158] sm:$0xff]
    %v812 = vld [vmem:[#allocation5 + $0x1160] sm:$0xff]
    %v813 = vld [vmem:[#allocation5 + $0x1168] sm:$0xff]
    %v814 = vld [vmem:[#allocation5 + $0x1170] sm:$0xff]
    %v815 = vld [vmem:[#allocation5 + $0x1178] sm:$0xff]
    %v816 = vld [vmem:[#allocation5 + $0x1180] sm:$0xff]
    %v817 = vld [vmem:[#allocation5 + $0x1188] sm:$0xff]
    %v818 = vld [vmem:[#allocation5 + $0x1190] sm:$0xff]
    %v819 = vld [vmem:[#allocation5 + $0x1198] sm:$0xff]
    %v820 = vld [vmem:[#allocation5 + $0x11a0] sm:$0xff]
    %v821 = vld [vmem:[#allocation5 + $0x11a8] sm:$0xff]
    %v822 = vld [vmem:[#allocation5 + $0x11b0] sm:$0xff]
    %v823 = vld [vmem:[#allocation5 + $0x11b8] sm:$0xff]
    %v824 = vld [vmem:[#allocation5 + $0x11c0] sm:$0xff]
    %v825 = vld [vmem:[#allocation5 + $0x11c8] sm:$0xff]
    %v826 = vld [vmem:[#allocation5 + $0x11d0] sm:$0xff]
    %v827 = vld [vmem:[#allocation5 + $0x11d8] sm:$0xff]
    %v828 = vld [vmem:[#allocation5 + $0x11e0] sm:$0xff]
    %v829 = vld [vmem:[#allocation5 + $0x11e8] sm:$0xff]
    %v830 = vld [vmem:[#allocation5 + $0x11f0] sm:$0xff]
    %v831 = vld [vmem:[#allocation5 + $0x11f8] sm:$0xff]
    %v832 = vld [vmem:[#allocation5 + $0x1200] sm:$0xff]
    %v833 = vld [vmem:[#allocation5 + $0x1208] sm:$0xff]
    %v834 = vld [vmem:[#allocation5 + $0x1210] sm:$0xff]
    %v835 = vld [vmem:[#allocation5 + $0x1218] sm:$0xff]
    %v836 = vld [vmem:[#allocation5 + $0x1220] sm:$0xff]
    %v837 = vld [vmem:[#allocation5 + $0x1228] sm:$0xff]
    %v838 = vld [vmem:[#allocation5 + $0x1230] sm:$0xff]
    %v839 = vld [vmem:[#allocation5 + $0x1238] sm:$0xff]
    %v840 = vld [vmem:[#allocation5 + $0x1240] sm:$0xff]
    %v841 = vld [vmem:[#allocation5 + $0x1248] sm:$0xff]
    %v842 = vld [vmem:[#allocation5 + $0x1250] sm:$0xff]
    %v843 = vld [vmem:[#allocation5 + $0x1258] sm:$0xff]
    %v844 = vld [vmem:[#allocation5 + $0x1260] sm:$0xff]
    %v845 = vld [vmem:[#allocation5 + $0x1268] sm:$0xff]
    %v846 = vld [vmem:[#allocation5 + $0x1270] sm:$0xff]
    %v847 = vld [vmem:[#allocation5 + $0x1278] sm:$0xff]
    %v848 = vld [vmem:[#allocation5 + $0x1280] sm:$0xff]
    %v849 = vld [vmem:[#allocation5 + $0x1288] sm:$0xff]
    %v850 = vld [vmem:[#allocation5 + $0x1290] sm:$0xff]
    %v851 = vld [vmem:[#allocation5 + $0x1298] sm:$0xff]
    %v852 = vld [vmem:[#allocation5 + $0x12a0] sm:$0xff]
    %v853 = vld [vmem:[#allocation5 + $0x12a8] sm:$0xff]
    %v854 = vld [vmem:[#allocation5 + $0x12b0] sm:$0xff]
    %v855 = vld [vmem:[#allocation5 + $0x12b8] sm:$0xff]
    %v856 = vld [vmem:[#allocation5 + $0x12c0] sm:$0xff]
    %v857 = vld [vmem:[#allocation5 + $0x12c8] sm:$0xff]
    %v858 = vld [vmem:[#allocation5 + $0x12d0] sm:$0xff]
    %v859 = vld [vmem:[#allocation5 + $0x12d8] sm:$0xff]
    %v860 = vld [vmem:[#allocation5 + $0x12e0] sm:$0xff]
    %v861 = vld [vmem:[#allocation5 + $0x12e8] sm:$0xff]
    %v862 = vld [vmem:[#allocation5 + $0x12f0] sm:$0xff]
    %v863 = vld [vmem:[#allocation5 + $0x12f8] sm:$0xff]
    %v864 = vld [vmem:[#allocation5 + $0x1300] sm:$0xff]
    %v865 = vld [vmem:[#allocation5 + $0x1308] sm:$0xff]
    %v866 = vld [vmem:[#allocation5 + $0x1310] sm:$0xff]
    %v867 = vld [vmem:[#allocation5 + $0x1318] sm:$0xff]
    %v868 = vld [vmem:[#allocation5 + $0x1320] sm:$0xff]
    %v869 = vld [vmem:[#allocation5 + $0x1328] sm:$0xff]
    %v870 = vld [vmem:[#allocation5 + $0x1330] sm:$0xff]
    %v871 = vld [vmem:[#allocation5 + $0x1338] sm:$0xff]
    %v872 = vld [vmem:[#allocation5 + $0x1340] sm:$0xff]
    %v873 = vld [vmem:[#allocation5 + $0x1348] sm:$0xff]
    %v874 = vld [vmem:[#allocation5 + $0x1350] sm:$0xff]
    %v875 = vld [vmem:[#allocation5 + $0x1358] sm:$0xff]
    %v876 = vld [vmem:[#allocation5 + $0x1360] sm:$0xff]
    %v877 = vld [vmem:[#allocation5 + $0x1368] sm:$0xff]
    %v878 = vld [vmem:[#allocation5 + $0x1370] sm:$0xff]
    %v879 = vld [vmem:[#allocation5 + $0x1378] sm:$0xff]
    %v880 = vld [vmem:[#allocation5 + $0x1380] sm:$0xff]
    %v881 = vld [vmem:[#allocation5 + $0x1388] sm:$0xff]
    %v882 = vld [vmem:[#allocation5 + $0x1390] sm:$0xff]
    %v883 = vld [vmem:[#allocation5 + $0x1398] sm:$0xff]
    %v884 = vld [vmem:[#allocation5 + $0x13a0] sm:$0xff]
    %v885 = vld [vmem:[#allocation5 + $0x13a8] sm:$0xff]
    %v886 = vld [vmem:[#allocation5 + $0x13b0] sm:$0xff]
    %v887 = vld [vmem:[#allocation5 + $0x13b8] sm:$0xff]
    %v888 = vld [vmem:[#allocation5 + $0x13c0] sm:$0xff]
    %v889 = vld [vmem:[#allocation5 + $0x13c8] sm:$0xff]
    %v890 = vld [vmem:[#allocation5 + $0x13d0] sm:$0xff]
    %v891 = vld [vmem:[#allocation5 + $0x13d8] sm:$0xff]
    %v892 = vld [vmem:[#allocation5 + $0x13e0] sm:$0xff]
    %v893 = vld [vmem:[#allocation5 + $0x13e8] sm:$0xff]
    %v894 = vld [vmem:[#allocation5 + $0x13f0] sm:$0xff]
    %v895 = vld [vmem:[#allocation5 + $0x13f8] sm:$0xff]
    %v896 = vld [vmem:[#allocation5 + $0x1400] sm:$0xff]
    %v897 = vld [vmem:[#allocation5 + $0x1408] sm:$0xff]
    %v898 = vld [vmem:[#allocation5 + $0x1410] sm:$0xff]
    %v899 = vld [vmem:[#allocation5 + $0x1418] sm:$0xff]
    %v900 = vld [vmem:[#allocation5 + $0x1420] sm:$0xff]
    %v901 = vld [vmem:[#allocation5 + $0x1428] sm:$0xff]
    %v902 = vld [vmem:[#allocation5 + $0x1430] sm:$0xff]
    %v903 = vld [vmem:[#allocation5 + $0x1438] sm:$0xff]
    %v904 = vld [vmem:[#allocation5 + $0x1440] sm:$0xff]
    %v905 = vld [vmem:[#allocation5 + $0x1448] sm:$0xff]
    %v906 = vld [vmem:[#allocation5 + $0x1450] sm:$0xff]
    %v907 = vld [vmem:[#allocation5 + $0x1458] sm:$0xff]
    %v908 = vld [vmem:[#allocation5 + $0x1460] sm:$0xff]
    %v909 = vld [vmem:[#allocation5 + $0x1468] sm:$0xff]
    %v910 = vld [vmem:[#allocation5 + $0x1470] sm:$0xff]
    %v911 = vld [vmem:[#allocation5 + $0x1478] sm:$0xff]
    %v912 = vld [vmem:[#allocation5 + $0x1480] sm:$0xff]
    %v913 = vld [vmem:[#allocation5 + $0x1488] sm:$0xff]
    %v914 = vld [vmem:[#allocation5 + $0x1490] sm:$0xff]
    %v915 = vld [vmem:[#allocation5 + $0x1498] sm:$0xff]
    %v916 = vld [vmem:[#allocation5 + $0x14a0] sm:$0xff]
    %v917 = vld [vmem:[#allocation5 + $0x14a8] sm:$0xff]
    %v918 = vld [vmem:[#allocation5 + $0x14b0] sm:$0xff]
    %v919 = vld [vmem:[#allocation5 + $0x14b8] sm:$0xff]
    %v920 = vld [vmem:[#allocation5 + $0x14c0] sm:$0xff]
    %v921 = vld [vmem:[#allocation5 + $0x14c8] sm:$0xff]
    %v922 = vld [vmem:[#allocation5 + $0x14d0] sm:$0xff]
    %v923 = vld [vmem:[#allocation5 + $0x14d8] sm:$0xff]
    %v924 = vld [vmem:[#allocation5 + $0x14e0] sm:$0xff]
    %v925 = vld [vmem:[#allocation5 + $0x14e8] sm:$0xff]
    %v926 = vld [vmem:[#allocation5 + $0x14f0] sm:$0xff]
    %v927 = vld [vmem:[#allocation5 + $0x14f8] sm:$0xff]
    %v928 = vld [vmem:[#allocation5 + $0x1500] sm:$0xff]
    %v929 = vld [vmem:[#allocation5 + $0x1508] sm:$0xff]
    %v930 = vld [vmem:[#allocation5 + $0x1510] sm:$0xff]
    %v931 = vld [vmem:[#allocation5 + $0x1518] sm:$0xff]
    %v932 = vld [vmem:[#allocation5 + $0x1520] sm:$0xff]
    %v933 = vld [vmem:[#allocation5 + $0x1528] sm:$0xff]
    %v934 = vld [vmem:[#allocation5 + $0x1530] sm:$0xff]
    %v935 = vld [vmem:[#allocation5 + $0x1538] sm:$0xff]
    %v936 = vld [vmem:[#allocation5 + $0x1540] sm:$0xff]
    %v937 = vld [vmem:[#allocation5 + $0x1548] sm:$0xff]
    %v938 = vld [vmem:[#allocation5 + $0x1550] sm:$0xff]
    %v939 = vld [vmem:[#allocation5 + $0x1558] sm:$0xff]
    %v940 = vld [vmem:[#allocation5 + $0x1560] sm:$0xff]
    %v941 = vld [vmem:[#allocation5 + $0x1568] sm:$0xff]
    %v942 = vld [vmem:[#allocation5 + $0x1570] sm:$0xff]
    %v943 = vld [vmem:[#allocation5 + $0x1578] sm:$0xff]
    %v944 = vld [vmem:[#allocation5 + $0x1580] sm:$0xff]
    %v945 = vld [vmem:[#allocation5 + $0x1588] sm:$0xff]
    %v946 = vld [vmem:[#allocation5 + $0x1590] sm:$0xff]
    %v947 = vld [vmem:[#allocation5 + $0x1598] sm:$0xff]
    %v948 = vld [vmem:[#allocation5 + $0x15a0] sm:$0xff]
    %v949 = vld [vmem:[#allocation5 + $0x15a8] sm:$0xff]
    %v950 = vld [vmem:[#allocation5 + $0x15b0] sm:$0xff]
    %v951 = vld [vmem:[#allocation5 + $0x15b8] sm:$0xff]
    %v952 = vld [vmem:[#allocation5 + $0x15c0] sm:$0xff]
    %v953 = vld [vmem:[#allocation5 + $0x15c8] sm:$0xff]
    %v954 = vld [vmem:[#allocation5 + $0x15d0] sm:$0xff]
    %v955 = vld [vmem:[#allocation5 + $0x15d8] sm:$0xff]
    %v956 = vld [vmem:[#allocation5 + $0x15e0] sm:$0xff]
    %v957 = vld [vmem:[#allocation5 + $0x15e8] sm:$0xff]
    %v958 = vld [vmem:[#allocation5 + $0x15f0] sm:$0xff]
    %v959 = vld [vmem:[#allocation5 + $0x15f8] sm:$0xff]
    %v960 = vld [vmem:[#allocation5 + $0x1600] sm:$0xff]
    %v961 = vld [vmem:[#allocation5 + $0x1608] sm:$0xff]
    %v962 = vld [vmem:[#allocation5 + $0x1610] sm:$0xff]
    %v963 = vld [vmem:[#allocation5 + $0x1618] sm:$0xff]
    %v964 = vld [vmem:[#allocation5 + $0x1620] sm:$0xff]
    %v965 = vld [vmem:[#allocation5 + $0x1628] sm:$0xff]
    %v966 = vld [vmem:[#allocation5 + $0x1630] sm:$0xff]
    %v967 = vld [vmem:[#allocation5 + $0x1638] sm:$0xff]
    %v968 = vld [vmem:[#allocation5 + $0x1640] sm:$0xff]
    %v969 = vld [vmem:[#allocation5 + $0x1648] sm:$0xff]
    %v970 = vld [vmem:[#allocation5 + $0x1650] sm:$0xff]
    %v971 = vld [vmem:[#allocation5 + $0x1658] sm:$0xff]
    %v972 = vld [vmem:[#allocation5 + $0x1660] sm:$0xff]
    %v973 = vld [vmem:[#allocation5 + $0x1668] sm:$0xff]
    %v974 = vld [vmem:[#allocation5 + $0x1670] sm:$0xff]
    %v975 = vld [vmem:[#allocation5 + $0x1678] sm:$0xff]
    %v976 = vld [vmem:[#allocation5 + $0x1680] sm:$0xff]
    %v977 = vld [vmem:[#allocation5 + $0x1688] sm:$0xff]
    %v978 = vld [vmem:[#allocation5 + $0x1690] sm:$0xff]
    %v979 = vld [vmem:[#allocation5 + $0x1698] sm:$0xff]
    %v980 = vld [vmem:[#allocation5 + $0x16a0] sm:$0xff]
    %v981 = vld [vmem:[#allocation5 + $0x16a8] sm:$0xff]
    %v982 = vld [vmem:[#allocation5 + $0x16b0] sm:$0xff]
    %v983 = vld [vmem:[#allocation5 + $0x16b8] sm:$0xff]
    %v984 = vld [vmem:[#allocation5 + $0x16c0] sm:$0xff]
    %v985 = vld [vmem:[#allocation5 + $0x16c8] sm:$0xff]
    %v986 = vld [vmem:[#allocation5 + $0x16d0] sm:$0xff]
    %v987 = vld [vmem:[#allocation5 + $0x16d8] sm:$0xff]
    %v988 = vld [vmem:[#allocation5 + $0x16e0] sm:$0xff]
    %v989 = vld [vmem:[#allocation5 + $0x16e8] sm:$0xff]
    %v990 = vld [vmem:[#allocation5 + $0x16f0] sm:$0xff]
    %v991 = vld [vmem:[#allocation5 + $0x16f8] sm:$0xff]
    %v992 = vld [vmem:[#allocation5 + $0x1700] sm:$0xff]
    %v993 = vld [vmem:[#allocation5 + $0x1708] sm:$0xff]
    %v994 = vld [vmem:[#allocation5 + $0x1710] sm:$0xff]
    %v995 = vld [vmem:[#allocation5 + $0x1718] sm:$0xff]
    %v996 = vld [vmem:[#allocation5 + $0x1720] sm:$0xff]
    %v997 = vld [vmem:[#allocation5 + $0x1728] sm:$0xff]
    %v998 = vld [vmem:[#allocation5 + $0x1730] sm:$0xff]
    %v999 = vld [vmem:[#allocation5 + $0x1738] sm:$0xff]
    %v1000 = vld [vmem:[#allocation5 + $0x1740] sm:$0xff]
    %v1001 = vld [vmem:[#allocation5 + $0x1748] sm:$0xff]
    %v1002 = vld [vmem:[#allocation5 + $0x1750] sm:$0xff]
    %v1003 = vld [vmem:[#allocation5 + $0x1758] sm:$0xff]
    %v1004 = vld [vmem:[#allocation5 + $0x1760] sm:$0xff]
    %v1005 = vld [vmem:[#allocation5 + $0x1768] sm:$0xff]
    %v1006 = vld [vmem:[#allocation5 + $0x1770] sm:$0xff]
    %v1007 = vld [vmem:[#allocation5 + $0x1778] sm:$0xff]
    %v1008 = vld [vmem:[#allocation5 + $0x1780] sm:$0xff]
    %v1009 = vld [vmem:[#allocation5 + $0x1788] sm:$0xff]
    %v1010 = vld [vmem:[#allocation5 + $0x1790] sm:$0xff]
    %v1011 = vld [vmem:[#allocation5 + $0x1798] sm:$0xff]
    %v1012 = vld [vmem:[#allocation5 + $0x17a0] sm:$0xff]
    %v1013 = vld [vmem:[#allocation5 + $0x17a8] sm:$0xff]
    %v1014 = vld [vmem:[#allocation5 + $0x17b0] sm:$0xff]
    %v1015 = vld [vmem:[#allocation5 + $0x17b8] sm:$0xff]
    %v1016 = vld [vmem:[#allocation5 + $0x17c0] sm:$0xff]
    %v1017 = vld [vmem:[#allocation5 + $0x17c8] sm:$0xff]
    %v1018 = vld [vmem:[#allocation5 + $0x17d0] sm:$0xff]
    %v1019 = vld [vmem:[#allocation5 + $0x17d8] sm:$0xff]
    %v1020 = vld [vmem:[#allocation5 + $0x17e0] sm:$0xff]
    %v1021 = vld [vmem:[#allocation5 + $0x17e8] sm:$0xff]
    %v1022 = vld [vmem:[#allocation5 + $0x17f0] sm:$0xff]
    %v1023 = vld [vmem:[#allocation5 + $0x17f8] sm:$0xff]
    %v1024 = vld [vmem:[#allocation5 + $0x1800] sm:$0xff]
    %v1025 = vld [vmem:[#allocation5 + $0x1808] sm:$0xff]
    %v1026 = vld [vmem:[#allocation5 + $0x1810] sm:$0xff]
    %v1027 = vld [vmem:[#allocation5 + $0x1818] sm:$0xff]
    %v1028 = vld [vmem:[#allocation5 + $0x1820] sm:$0xff]
    %v1029 = vld [vmem:[#allocation5 + $0x1828] sm:$0xff]
    %v1030 = vld [vmem:[#allocation5 + $0x1830] sm:$0xff]
    %v1031 = vld [vmem:[#allocation5 + $0x1838] sm:$0xff]
    %v1032 = vld [vmem:[#allocation5 + $0x1840] sm:$0xff]
    %v1033 = vld [vmem:[#allocation5 + $0x1848] sm:$0xff]
    %v1034 = vld [vmem:[#allocation5 + $0x1850] sm:$0xff]
    %v1035 = vld [vmem:[#allocation5 + $0x1858] sm:$0xff]
    %v1036 = vld [vmem:[#allocation5 + $0x1860] sm:$0xff]
    %v1037 = vld [vmem:[#allocation5 + $0x1868] sm:$0xff]
    %v1038 = vld [vmem:[#allocation5 + $0x1870] sm:$0xff]
    %v1039 = vld [vmem:[#allocation5 + $0x1878] sm:$0xff]
    %v1040 = vld [vmem:[#allocation5 + $0x1880] sm:$0xff]
    %v1041 = vld [vmem:[#allocation5 + $0x1888] sm:$0xff]
    %v1042 = vld [vmem:[#allocation5 + $0x1890] sm:$0xff]
    %v1043 = vld [vmem:[#allocation5 + $0x1898] sm:$0xff]
    %v1044 = vld [vmem:[#allocation5 + $0x18a0] sm:$0xff]
    %v1045 = vld [vmem:[#allocation5 + $0x18a8] sm:$0xff]
    %v1046 = vld [vmem:[#allocation5 + $0x18b0] sm:$0xff]
    %v1047 = vld [vmem:[#allocation5 + $0x18b8] sm:$0xff]
    %v1048 = vld [vmem:[#allocation5 + $0x18c0] sm:$0xff]
    %v1049 = vld [vmem:[#allocation5 + $0x18c8] sm:$0xff]
    %v1050 = vld [vmem:[#allocation5 + $0x18d0] sm:$0xff]
    %v1051 = vld [vmem:[#allocation5 + $0x18d8] sm:$0xff]
    %v1052 = vld [vmem:[#allocation5 + $0x18e0] sm:$0xff]
    %v1053 = vld [vmem:[#allocation5 + $0x18e8] sm:$0xff]
    %v1054 = vld [vmem:[#allocation5 + $0x18f0] sm:$0xff]
    %v1055 = vld [vmem:[#allocation5 + $0x18f8] sm:$0xff]
    %v1056 = vld [vmem:[#allocation5 + $0x1900] sm:$0xff]
    %v1057 = vld [vmem:[#allocation5 + $0x1908] sm:$0xff]
    %v1058 = vld [vmem:[#allocation5 + $0x1910] sm:$0xff]
    %v1059 = vld [vmem:[#allocation5 + $0x1918] sm:$0xff]
    %v1060 = vld [vmem:[#allocation5 + $0x1920] sm:$0xff]
    %v1061 = vld [vmem:[#allocation5 + $0x1928] sm:$0xff]
    %v1062 = vld [vmem:[#allocation5 + $0x1930] sm:$0xff]
    %v1063 = vld [vmem:[#allocation5 + $0x1938] sm:$0xff]
    %v1064 = vld [vmem:[#allocation5 + $0x1940] sm:$0xff]
    %v1065 = vld [vmem:[#allocation5 + $0x1948] sm:$0xff]
    %v1066 = vld [vmem:[#allocation5 + $0x1950] sm:$0xff]
    %v1067 = vld [vmem:[#allocation5 + $0x1958] sm:$0xff]
    %v1068 = vld [vmem:[#allocation5 + $0x1960] sm:$0xff]
    %v1069 = vld [vmem:[#allocation5 + $0x1968] sm:$0xff]
    %v1070 = vld [vmem:[#allocation5 + $0x1970] sm:$0xff]
    %v1071 = vld [vmem:[#allocation5 + $0x1978] sm:$0xff]
    %v1072 = vld [vmem:[#allocation5 + $0x1980] sm:$0xff]
    %v1073 = vld [vmem:[#allocation5 + $0x1988] sm:$0xff]
    %v1074 = vld [vmem:[#allocation5 + $0x1990] sm:$0xff]
    %v1075 = vld [vmem:[#allocation5 + $0x1998] sm:$0xff]
    %v1076 = vld [vmem:[#allocation5 + $0x19a0] sm:$0xff]
    %v1077 = vld [vmem:[#allocation5 + $0x19a8] sm:$0xff]
    %v1078 = vld [vmem:[#allocation5 + $0x19b0] sm:$0xff]
    %v1079 = vld [vmem:[#allocation5 + $0x19b8] sm:$0xff]
    %v1080 = vld [vmem:[#allocation5 + $0x19c0] sm:$0xff]
    %v1081 = vld [vmem:[#allocation5 + $0x19c8] sm:$0xff]
    %v1082 = vld [vmem:[#allocation5 + $0x19d0] sm:$0xff]
    %v1083 = vld [vmem:[#allocation5 + $0x19d8] sm:$0xff]
    %v1084 = vld [vmem:[#allocation5 + $0x19e0] sm:$0xff]
    %v1085 = vld [vmem:[#allocation5 + $0x19e8] sm:$0xff]
    %v1086 = vld [vmem:[#allocation5 + $0x19f0] sm:$0xff]
    %v1087 = vld [vmem:[#allocation5 + $0x19f8] sm:$0xff]
    %v1088 = vld [vmem:[#allocation5 + $0x1a00] sm:$0xff]
    %v1089 = vld [vmem:[#allocation5 + $0x1a08] sm:$0xff]
    %v1090 = vld [vmem:[#allocation5 + $0x1a10] sm:$0xff]
    %v1091 = vld [vmem:[#allocation5 + $0x1a18] sm:$0xff]
    %v1092 = vld [vmem:[#allocation5 + $0x1a20] sm:$0xff]
    %v1093 = vld [vmem:[#allocation5 + $0x1a28] sm:$0xff]
    %v1094 = vld [vmem:[#allocation5 + $0x1a30] sm:$0xff]
    %v1095 = vld [vmem:[#allocation5 + $0x1a38] sm:$0xff]
    %v1096 = vld [vmem:[#allocation5 + $0x1a40] sm:$0xff]
    %v1097 = vld [vmem:[#allocation5 + $0x1a48] sm:$0xff]
    %v1098 = vld [vmem:[#allocation5 + $0x1a50] sm:$0xff]
    %v1099 = vld [vmem:[#allocation5 + $0x1a58] sm:$0xff]
    %v1100 = vld [vmem:[#allocation5 + $0x1a60] sm:$0xff]
    %v1101 = vld [vmem:[#allocation5 + $0x1a68] sm:$0xff]
    %v1102 = vld [vmem:[#allocation5 + $0x1a70] sm:$0xff]
    %v1103 = vld [vmem:[#allocation5 + $0x1a78] sm:$0xff]
    %v1104 = vld [vmem:[#allocation5 + $0x1a80] sm:$0xff]
    %v1105 = vld [vmem:[#allocation5 + $0x1a88] sm:$0xff]
    %v1106 = vld [vmem:[#allocation5 + $0x1a90] sm:$0xff]
    %v1107 = vld [vmem:[#allocation5 + $0x1a98] sm:$0xff]
    %v1108 = vld [vmem:[#allocation5 + $0x1aa0] sm:$0xff]
    %v1109 = vld [vmem:[#allocation5 + $0x1aa8] sm:$0xff]
    %v1110 = vld [vmem:[#allocation5 + $0x1ab0] sm:$0xff]
    %v1111 = vld [vmem:[#allocation5 + $0x1ab8] sm:$0xff]
    %v1112 = vld [vmem:[#allocation5 + $0x1ac0] sm:$0xff]
    %v1113 = vld [vmem:[#allocation5 + $0x1ac8] sm:$0xff]
    %v1114 = vld [vmem:[#allocation5 + $0x1ad0] sm:$0xff]
    %v1115 = vld [vmem:[#allocation5 + $0x1ad8] sm:$0xff]
    %v1116 = vld [vmem:[#allocation5 + $0x1ae0] sm:$0xff]
    %v1117 = vld [vmem:[#allocation5 + $0x1ae8] sm:$0xff]
    %v1118 = vld [vmem:[#allocation5 + $0x1af0] sm:$0xff]
    %v1119 = vld [vmem:[#allocation5 + $0x1af8] sm:$0xff]
    %v1120 = vld [vmem:[#allocation5 + $0x1b00] sm:$0xff]
    %v1121 = vld [vmem:[#allocation5 + $0x1b08] sm:$0xff]
    %v1122 = vld [vmem:[#allocation5 + $0x1b10] sm:$0xff]
    %v1123 = vld [vmem:[#allocation5 + $0x1b18] sm:$0xff]
    %v1124 = vld [vmem:[#allocation5 + $0x1b20] sm:$0xff]
    %v1125 = vld [vmem:[#allocation5 + $0x1b28] sm:$0xff]
    %v1126 = vld [vmem:[#allocation5 + $0x1b30] sm:$0xff]
    %v1127 = vld [vmem:[#allocation5 + $0x1b38] sm:$0xff]
    %v1128 = vld [vmem:[#allocation5 + $0x1b40] sm:$0xff]
    %v1129 = vld [vmem:[#allocation5 + $0x1b48] sm:$0xff]
    %v1130 = vld [vmem:[#allocation5 + $0x1b50] sm:$0xff]
    %v1131 = vld [vmem:[#allocation5 + $0x1b58] sm:$0xff]
    %v1132 = vld [vmem:[#allocation5 + $0x1b60] sm:$0xff]
    %v1133 = vld [vmem:[#allocation5 + $0x1b68] sm:$0xff]
    %v1134 = vld [vmem:[#allocation5 + $0x1b70] sm:$0xff]
    %v1135 = vld [vmem:[#allocation5 + $0x1b78] sm:$0xff]
    %v1136 = vld [vmem:[#allocation5 + $0x1b80] sm:$0xff]
    %v1137 = vld [vmem:[#allocation5 + $0x1b88] sm:$0xff]
    %v1138 = vld [vmem:[#allocation5 + $0x1b90] sm:$0xff]
    %v1139 = vld [vmem:[#allocation5 + $0x1b98] sm:$0xff]
    %v1140 = vld [vmem:[#allocation5 + $0x1ba0] sm:$0xff]
    %v1141 = vld [vmem:[#allocation5 + $0x1ba8] sm:$0xff]
    %v1142 = vld [vmem:[#allocation5 + $0x1bb0] sm:$0xff]
    %v1143 = vld [vmem:[#allocation5 + $0x1bb8] sm:$0xff]
    %v1144 = vld [vmem:[#allocation5 + $0x1bc0] sm:$0xff]
    %v1145 = vld [vmem:[#allocation5 + $0x1bc8] sm:$0xff]
    %v1146 = vld [vmem:[#allocation5 + $0x1bd0] sm:$0xff]
    %v1147 = vld [vmem:[#allocation5 + $0x1bd8] sm:$0xff]
    %v1148 = vld [vmem:[#allocation5 + $0x1be0] sm:$0xff]
    %v1149 = vld [vmem:[#allocation5 + $0x1be8] sm:$0xff]
    %v1150 = vld [vmem:[#allocation5 + $0x1bf0] sm:$0xff]
    %v1151 = vld [vmem:[#allocation5 + $0x1bf8] sm:$0xff]
    %v1152 = vld [vmem:[#allocation5 + $0x1c00] sm:$0xff]
    %v1153 = vld [vmem:[#allocation5 + $0x1c08] sm:$0xff]
    %v1154 = vld [vmem:[#allocation5 + $0x1c10] sm:$0xff]
    %v1155 = vld [vmem:[#allocation5 + $0x1c18] sm:$0xff]
    %v1156 = vld [vmem:[#allocation5 + $0x1c20] sm:$0xff]
    %v1157 = vld [vmem:[#allocation5 + $0x1c28] sm:$0xff]
    %v1158 = vld [vmem:[#allocation5 + $0x1c30] sm:$0xff]
    %v1159 = vld [vmem:[#allocation5 + $0x1c38] sm:$0xff]
    %v1160 = vld [vmem:[#allocation5 + $0x1c40] sm:$0xff]
    %v1161 = vld [vmem:[#allocation5 + $0x1c48] sm:$0xff]
    %v1162 = vld [vmem:[#allocation5 + $0x1c50] sm:$0xff]
    %v1163 = vld [vmem:[#allocation5 + $0x1c58] sm:$0xff]
    %v1164 = vld [vmem:[#allocation5 + $0x1c60] sm:$0xff]
    %v1165 = vld [vmem:[#allocation5 + $0x1c68] sm:$0xff]
    %v1166 = vld [vmem:[#allocation5 + $0x1c70] sm:$0xff]
    %v1167 = vld [vmem:[#allocation5 + $0x1c78] sm:$0xff]
    %v1168 = vld [vmem:[#allocation5 + $0x1c80] sm:$0xff]
    %v1169 = vld [vmem:[#allocation5 + $0x1c88] sm:$0xff]
    %v1170 = vld [vmem:[#allocation5 + $0x1c90] sm:$0xff]
    %v1171 = vld [vmem:[#allocation5 + $0x1c98] sm:$0xff]
    %v1172 = vld [vmem:[#allocation5 + $0x1ca0] sm:$0xff]
    %v1173 = vld [vmem:[#allocation5 + $0x1ca8] sm:$0xff]
    %v1174 = vld [vmem:[#allocation5 + $0x1cb0] sm:$0xff]
    %v1175 = vld [vmem:[#allocation5 + $0x1cb8] sm:$0xff]
    %v1176 = vld [vmem:[#allocation5 + $0x1cc0] sm:$0xff]
    %v1177 = vld [vmem:[#allocation5 + $0x1cc8] sm:$0xff]
    %v1178 = vld [vmem:[#allocation5 + $0x1cd0] sm:$0xff]
    %v1179 = vld [vmem:[#allocation5 + $0x1cd8] sm:$0xff]
    %v1180 = vld [vmem:[#allocation5 + $0x1ce0] sm:$0xff]
    %v1181 = vld [vmem:[#allocation5 + $0x1ce8] sm:$0xff]
    %v1182 = vld [vmem:[#allocation5 + $0x1cf0] sm:$0xff]
    %v1183 = vld [vmem:[#allocation5 + $0x1cf8] sm:$0xff]
    %v1184 = vld [vmem:[#allocation5 + $0x1d00] sm:$0xff]
    %v1185 = vld [vmem:[#allocation5 + $0x1d08] sm:$0xff]
    %v1186 = vld [vmem:[#allocation5 + $0x1d10] sm:$0xff]
    %v1187 = vld [vmem:[#allocation5 + $0x1d18] sm:$0xff]
    %v1188 = vld [vmem:[#allocation5 + $0x1d20] sm:$0xff]
    %v1189 = vld [vmem:[#allocation5 + $0x1d28] sm:$0xff]
    %v1190 = vld [vmem:[#allocation5 + $0x1d30] sm:$0xff]
    %v1191 = vld [vmem:[#allocation5 + $0x1d38] sm:$0xff]
    %v1192 = vld [vmem:[#allocation5 + $0x1d40] sm:$0xff]
    %v1193 = vld [vmem:[#allocation5 + $0x1d48] sm:$0xff]
    %v1194 = vld [vmem:[#allocation5 + $0x1d50] sm:$0xff]
    %v1195 = vld [vmem:[#allocation5 + $0x1d58] sm:$0xff]
    %v1196 = vld [vmem:[#allocation5 + $0x1d60] sm:$0xff]
    %v1197 = vld [vmem:[#allocation5 + $0x1d68] sm:$0xff]
    %v1198 = vld [vmem:[#allocation5 + $0x1d70] sm:$0xff]
    %v1199 = vld [vmem:[#allocation5 + $0x1d78] sm:$0xff]
    %v1200 = vld [vmem:[#allocation5 + $0x1d80] sm:$0xff]
    %v1201 = vld [vmem:[#allocation5 + $0x1d88] sm:$0xff]
    %v1202 = vld [vmem:[#allocation5 + $0x1d90] sm:$0xff]
    %v1203 = vld [vmem:[#allocation5 + $0x1d98] sm:$0xff]
    %v1204 = vld [vmem:[#allocation5 + $0x1da0] sm:$0xff]
    %v1205 = vld [vmem:[#allocation5 + $0x1da8] sm:$0xff]
    %v1206 = vld [vmem:[#allocation5 + $0x1db0] sm:$0xff]
    %v1207 = vld [vmem:[#allocation5 + $0x1db8] sm:$0xff]
    %v1208 = vld [vmem:[#allocation5 + $0x1dc0] sm:$0xff]
    %v1209 = vld [vmem:[#allocation5 + $0x1dc8] sm:$0xff]
    %v1210 = vld [vmem:[#allocation5 + $0x1dd0] sm:$0xff]
    %v1211 = vld [vmem:[#allocation5 + $0x1dd8] sm:$0xff]
    %v1212 = vld [vmem:[#allocation5 + $0x1de0] sm:$0xff]
    %v1213 = vld [vmem:[#allocation5 + $0x1de8] sm:$0xff]
    %v1214 = vld [vmem:[#allocation5 + $0x1df0] sm:$0xff]
    %v1215 = vld [vmem:[#allocation5 + $0x1df8] sm:$0xff]
    %v1216 = vld [vmem:[#allocation5 + $0x1e00] sm:$0xff]
    %v1217 = vld [vmem:[#allocation5 + $0x1e08] sm:$0xff]
    %v1218 = vld [vmem:[#allocation5 + $0x1e10] sm:$0xff]
    %v1219 = vld [vmem:[#allocation5 + $0x1e18] sm:$0xff]
    %v1220 = vld [vmem:[#allocation5 + $0x1e20] sm:$0xff]
    %v1221 = vld [vmem:[#allocation5 + $0x1e28] sm:$0xff]
    %v1222 = vld [vmem:[#allocation5 + $0x1e30] sm:$0xff]
    %v1223 = vld [vmem:[#allocation5 + $0x1e38] sm:$0xff]
    %v1224 = vld [vmem:[#allocation5 + $0x1e40] sm:$0xff]
    %v1225 = vld [vmem:[#allocation5 + $0x1e48] sm:$0xff]
    %v1226 = vld [vmem:[#allocation5 + $0x1e50] sm:$0xff]
    %v1227 = vld [vmem:[#allocation5 + $0x1e58] sm:$0xff]
    %v1228 = vld [vmem:[#allocation5 + $0x1e60] sm:$0xff]
    %v1229 = vld [vmem:[#allocation5 + $0x1e68] sm:$0xff]
    %v1230 = vld [vmem:[#allocation5 + $0x1e70] sm:$0xff]
    %v1231 = vld [vmem:[#allocation5 + $0x1e78] sm:$0xff]
    %v1232 = vld [vmem:[#allocation5 + $0x1e80] sm:$0xff]
    %v1233 = vld [vmem:[#allocation5 + $0x1e88] sm:$0xff]
    %v1234 = vld [vmem:[#allocation5 + $0x1e90] sm:$0xff]
    %v1235 = vld [vmem:[#allocation5 + $0x1e98] sm:$0xff]
    %v1236 = vld [vmem:[#allocation5 + $0x1ea0] sm:$0xff]
    %v1237 = vld [vmem:[#allocation5 + $0x1ea8] sm:$0xff]
    %v1238 = vld [vmem:[#allocation5 + $0x1eb0] sm:$0xff]
    %v1239 = vld [vmem:[#allocation5 + $0x1eb8] sm:$0xff]
    %v1240 = vld [vmem:[#allocation5 + $0x1ec0] sm:$0xff]
    %v1241 = vld [vmem:[#allocation5 + $0x1ec8] sm:$0xff]
    %v1242 = vld [vmem:[#allocation5 + $0x1ed0] sm:$0xff]
    %v1243 = vld [vmem:[#allocation5 + $0x1ed8] sm:$0xff]
    %v1244 = vld [vmem:[#allocation5 + $0x1ee0] sm:$0xff]
    %v1245 = vld [vmem:[#allocation5 + $0x1ee8] sm:$0xff]
    %v1246 = vld [vmem:[#allocation5 + $0x1ef0] sm:$0xff]
    %v1247 = vld [vmem:[#allocation5 + $0x1ef8] sm:$0xff]
    %v1248 = vld [vmem:[#allocation5 + $0x1f00] sm:$0xff]
    %v1249 = vld [vmem:[#allocation5 + $0x1f08] sm:$0xff]
    %v1250 = vld [vmem:[#allocation5 + $0x1f10] sm:$0xff]
    %v1251 = vld [vmem:[#allocation5 + $0x1f18] sm:$0xff]
    %v1252 = vld [vmem:[#allocation5 + $0x1f20] sm:$0xff]
    %v1253 = vld [vmem:[#allocation5 + $0x1f28] sm:$0xff]
    %v1254 = vld [vmem:[#allocation5 + $0x1f30] sm:$0xff]
    %v1255 = vld [vmem:[#allocation5 + $0x1f38] sm:$0xff]
    %v1256 = vld [vmem:[#allocation5 + $0x1f40] sm:$0xff]
    %v1257 = vld [vmem:[#allocation5 + $0x1f48] sm:$0xff]
    %v1258 = vld [vmem:[#allocation5 + $0x1f50] sm:$0xff]
    %v1259 = vld [vmem:[#allocation5 + $0x1f58] sm:$0xff]
    %v1260 = vld [vmem:[#allocation5 + $0x1f60] sm:$0xff]
    %v1261 = vld [vmem:[#allocation5 + $0x1f68] sm:$0xff]
    %v1262 = vld [vmem:[#allocation5 + $0x1f70] sm:$0xff]
    %v1263 = vld [vmem:[#allocation5 + $0x1f78] sm:$0xff]
    %v1264 = vld [vmem:[#allocation5 + $0x1f80] sm:$0xff]
    %v1265 = vld [vmem:[#allocation5 + $0x1f88] sm:$0xff]
    %v1266 = vld [vmem:[#allocation5 + $0x1f90] sm:$0xff]
    %v1267 = vld [vmem:[#allocation5 + $0x1f98] sm:$0xff]
    %v1268 = vld [vmem:[#allocation5 + $0x1fa0] sm:$0xff]
    %v1269 = vld [vmem:[#allocation5 + $0x1fa8] sm:$0xff]
    %v1270 = vld [vmem:[#allocation5 + $0x1fb0] sm:$0xff]
    %v1271 = vld [vmem:[#allocation5 + $0x1fb8] sm:$0xff]
    %v1272 = vld [vmem:[#allocation5 + $0x1fc0] sm:$0xff]
    %v1273 = vld [vmem:[#allocation5 + $0x1fc8] sm:$0xff]
    %v1274 = vld [vmem:[#allocation5 + $0x1fd0] sm:$0xff]
    %v1275 = vld [vmem:[#allocation5 + $0x1fd8] sm:$0xff]
    %v1276 = vld [vmem:[#allocation5 + $0x1fe0] sm:$0xff]
    %v1277 = vld [vmem:[#allocation5 + $0x1fe8] sm:$0xff]
    %v1278 = vld [vmem:[#allocation5 + $0x1ff0] sm:$0xff]
    %v1279 = vld [vmem:[#allocation5 + $0x1ff8] sm:$0xff]
    %v1280 = vld [vmem:[#allocation5 + $0x2000] sm:$0xff]
    %v1281 = vld [vmem:[#allocation5 + $0x2008] sm:$0xff]
    %v1282 = vld [vmem:[#allocation5 + $0x2010] sm:$0xff]
    %v1283 = vld [vmem:[#allocation5 + $0x2018] sm:$0xff]
    %v1284 = vld [vmem:[#allocation5 + $0x2020] sm:$0xff]
    %v1285 = vld [vmem:[#allocation5 + $0x2028] sm:$0xff]
    %v1286 = vld [vmem:[#allocation5 + $0x2030] sm:$0xff]
    %v1287 = vld [vmem:[#allocation5 + $0x2038] sm:$0xff]
    %v1288 = vld [vmem:[#allocation5 + $0x2040] sm:$0xff]
    %v1289 = vld [vmem:[#allocation5 + $0x2048] sm:$0xff]
    %v1290 = vld [vmem:[#allocation5 + $0x2050] sm:$0xff]
    %v1291 = vld [vmem:[#allocation5 + $0x2058] sm:$0xff]
    %v1292 = vld [vmem:[#allocation5 + $0x2060] sm:$0xff]
    %v1293 = vld [vmem:[#allocation5 + $0x2068] sm:$0xff]
    %v1294 = vld [vmem:[#allocation5 + $0x2070] sm:$0xff]
    %v1295 = vld [vmem:[#allocation5 + $0x2078] sm:$0xff]
    %v1296 = vld [vmem:[#allocation5 + $0x2080] sm:$0xff]
    %v1297 = vld [vmem:[#allocation5 + $0x2088] sm:$0xff]
    %v1298 = vld [vmem:[#allocation5 + $0x2090] sm:$0xff]
    %v1299 = vld [vmem:[#allocation5 + $0x2098] sm:$0xff]
    %v1300 = vld [vmem:[#allocation5 + $0x20a0] sm:$0xff]
    %v1301 = vld [vmem:[#allocation5 + $0x20a8] sm:$0xff]
    %v1302 = vld [vmem:[#allocation5 + $0x20b0] sm:$0xff]
    %v1303 = vld [vmem:[#allocation5 + $0x20b8] sm:$0xff]
    %v1304 = vld [vmem:[#allocation5 + $0x20c0] sm:$0xff]
    %v1305 = vld [vmem:[#allocation5 + $0x20c8] sm:$0xff]
    %v1306 = vld [vmem:[#allocation5 + $0x20d0] sm:$0xff]
    %v1307 = vld [vmem:[#allocation5 + $0x20d8] sm:$0xff]
    %v1308 = vld [vmem:[#allocation5 + $0x20e0] sm:$0xff]
    %v1309 = vld [vmem:[#allocation5 + $0x20e8] sm:$0xff]
    %v1310 = vld [vmem:[#allocation5 + $0x20f0] sm:$0xff]
    %v1311 = vld [vmem:[#allocation5 + $0x20f8] sm:$0xff]
    %v1312 = vld [vmem:[#allocation5 + $0x2100] sm:$0xff]
    %v1313 = vld [vmem:[#allocation5 + $0x2108] sm:$0xff]
    %v1314 = vld [vmem:[#allocation5 + $0x2110] sm:$0xff]
    %v1315 = vld [vmem:[#allocation5 + $0x2118] sm:$0xff]
    %v1316 = vld [vmem:[#allocation5 + $0x2120] sm:$0xff]
    %v1317 = vld [vmem:[#allocation5 + $0x2128] sm:$0xff]
    %v1318 = vld [vmem:[#allocation5 + $0x2130] sm:$0xff]
    %v1319 = vld [vmem:[#allocation5 + $0x2138] sm:$0xff]
    %v1320 = vld [vmem:[#allocation5 + $0x2140] sm:$0xff]
    %v1321 = vld [vmem:[#allocation5 + $0x2148] sm:$0xff]
    %v1322 = vld [vmem:[#allocation5 + $0x2150] sm:$0xff]
    %v1323 = vld [vmem:[#allocation5 + $0x2158] sm:$0xff]
    %v1324 = vld [vmem:[#allocation5 + $0x2160] sm:$0xff]
    %v1325 = vld [vmem:[#allocation5 + $0x2168] sm:$0xff]
    %v1326 = vld [vmem:[#allocation5 + $0x2170] sm:$0xff]
    %v1327 = vld [vmem:[#allocation5 + $0x2178] sm:$0xff]
    %v1328 = vld [vmem:[#allocation5 + $0x2180] sm:$0xff]
    %v1329 = vld [vmem:[#allocation5 + $0x2188] sm:$0xff]
    %v1330 = vld [vmem:[#allocation5 + $0x2190] sm:$0xff]
    %v1331 = vld [vmem:[#allocation5 + $0x2198] sm:$0xff]
    %v1332 = vld [vmem:[#allocation5 + $0x21a0] sm:$0xff]
    %v1333 = vld [vmem:[#allocation5 + $0x21a8] sm:$0xff]
    %v1334 = vld [vmem:[#allocation5 + $0x21b0] sm:$0xff]
    %v1335 = vld [vmem:[#allocation5 + $0x21b8] sm:$0xff]
    %v1336 = vld [vmem:[#allocation5 + $0x21c0] sm:$0xff]
    %v1337 = vld [vmem:[#allocation5 + $0x21c8] sm:$0xff]
    %v1338 = vld [vmem:[#allocation5 + $0x21d0] sm:$0xff]
    %v1339 = vld [vmem:[#allocation5 + $0x21d8] sm:$0xff]
    %v1340 = vld [vmem:[#allocation5 + $0x21e0] sm:$0xff]
    %v1341 = vld [vmem:[#allocation5 + $0x21e8] sm:$0xff]
    %v1342 = vld [vmem:[#allocation5 + $0x21f0] sm:$0xff]
    %v1343 = vld [vmem:[#allocation5 + $0x21f8] sm:$0xff]
    %v1344 = vld [vmem:[#allocation5 + $0x2200] sm:$0xff]
    %v1345 = vld [vmem:[#allocation5 + $0x2208] sm:$0xff]
    %v1346 = vld [vmem:[#allocation5 + $0x2210] sm:$0xff]
    %v1347 = vld [vmem:[#allocation5 + $0x2218] sm:$0xff]
    %v1348 = vld [vmem:[#allocation5 + $0x2220] sm:$0xff]
    %v1349 = vld [vmem:[#allocation5 + $0x2228] sm:$0xff]
    %v1350 = vld [vmem:[#allocation5 + $0x2230] sm:$0xff]
    %v1351 = vld [vmem:[#allocation5 + $0x2238] sm:$0xff]
    %v1352 = vld [vmem:[#allocation5 + $0x2240] sm:$0xff]
    %v1353 = vld [vmem:[#allocation5 + $0x2248] sm:$0xff]
    %v1354 = vld [vmem:[#allocation5 + $0x2250] sm:$0xff]
    %v1355 = vld [vmem:[#allocation5 + $0x2258] sm:$0xff]
    %v1356 = vld [vmem:[#allocation5 + $0x2260] sm:$0xff]
    %v1357 = vld [vmem:[#allocation5 + $0x2268] sm:$0xff]
    %v1358 = vld [vmem:[#allocation5 + $0x2270] sm:$0xff]
    %v1359 = vld [vmem:[#allocation5 + $0x2278] sm:$0xff]
    %v1360 = vld [vmem:[#allocation5 + $0x2280] sm:$0xff]
    %v1361 = vld [vmem:[#allocation5 + $0x2288] sm:$0xff]
    %v1362 = vld [vmem:[#allocation5 + $0x2290] sm:$0xff]
    %v1363 = vld [vmem:[#allocation5 + $0x2298] sm:$0xff]
    %v1364 = vld [vmem:[#allocation5 + $0x22a0] sm:$0xff]
    %v1365 = vld [vmem:[#allocation5 + $0x22a8] sm:$0xff]
    %v1366 = vld [vmem:[#allocation5 + $0x22b0] sm:$0xff]
    %v1367 = vld [vmem:[#allocation5 + $0x22b8] sm:$0xff]
    %v1368 = vld [vmem:[#allocation5 + $0x22c0] sm:$0xff]
    %v1369 = vld [vmem:[#allocation5 + $0x22c8] sm:$0xff]
    %v1370 = vld [vmem:[#allocation5 + $0x22d0] sm:$0xff]
    %v1371 = vld [vmem:[#allocation5 + $0x22d8] sm:$0xff]
    %v1372 = vld [vmem:[#allocation5 + $0x22e0] sm:$0xff]
    %v1373 = vld [vmem:[#allocation5 + $0x22e8] sm:$0xff]
    %v1374 = vld [vmem:[#allocation5 + $0x22f0] sm:$0xff]
    %v1375 = vld [vmem:[#allocation5 + $0x22f8] sm:$0xff]
    %v1376 = vld [vmem:[#allocation5 + $0x2300] sm:$0xff]
    %v1377 = vld [vmem:[#allocation5 + $0x2308] sm:$0xff]
    %v1378 = vld [vmem:[#allocation5 + $0x2310] sm:$0xff]
    %v1379 = vld [vmem:[#allocation5 + $0x2318] sm:$0xff]
    %v1380 = vld [vmem:[#allocation5 + $0x2320] sm:$0xff]
    %v1381 = vld [vmem:[#allocation5 + $0x2328] sm:$0xff]
    %v1382 = vld [vmem:[#allocation5 + $0x2330] sm:$0xff]
    %v1383 = vld [vmem:[#allocation5 + $0x2338] sm:$0xff]
    %v1384 = vld [vmem:[#allocation5 + $0x2340] sm:$0xff]
    %v1385 = vld [vmem:[#allocation5 + $0x2348] sm:$0xff]
    %v1386 = vld [vmem:[#allocation5 + $0x2350] sm:$0xff]
    %v1387 = vld [vmem:[#allocation5 + $0x2358] sm:$0xff]
    %v1388 = vld [vmem:[#allocation5 + $0x2360] sm:$0xff]
    %v1389 = vld [vmem:[#allocation5 + $0x2368] sm:$0xff]
    %v1390 = vld [vmem:[#allocation5 + $0x2370] sm:$0xff]
    %v1391 = vld [vmem:[#allocation5 + $0x2378] sm:$0xff]
    %v1392 = vld [vmem:[#allocation5 + $0x2380] sm:$0xff]
    %v1393 = vld [vmem:[#allocation5 + $0x2388] sm:$0xff]
    %v1394 = vld [vmem:[#allocation5 + $0x2390] sm:$0xff]
    %v1395 = vld [vmem:[#allocation5 + $0x2398] sm:$0xff]
    %v1396 = vld [vmem:[#allocation5 + $0x23a0] sm:$0xff]
    %v1397 = vld [vmem:[#allocation5 + $0x23a8] sm:$0xff]
    %v1398 = vld [vmem:[#allocation5 + $0x23b0] sm:$0xff]
    %v1399 = vld [vmem:[#allocation5 + $0x23b8] sm:$0xff]
    %v1400 = vld [vmem:[#allocation5 + $0x23c0] sm:$0xff]
    %v1401 = vld [vmem:[#allocation5 + $0x23c8] sm:$0xff]
    %v1402 = vld [vmem:[#allocation5 + $0x23d0] sm:$0xff]
    %v1403 = vld [vmem:[#allocation5 + $0x23d8] sm:$0xff]
    %v1404 = vld [vmem:[#allocation5 + $0x23e0] sm:$0xff]
    %v1405 = vld [vmem:[#allocation5 + $0x23e8] sm:$0xff]
    %v1406 = vld [vmem:[#allocation5 + $0x23f0] sm:$0xff]
    %v1407 = vld [vmem:[#allocation5 + $0x23f8] sm:$0xff]
    %v1408 = vld [vmem:[#allocation5 + $0x2400] sm:$0xff]
    %v1409 = vld [vmem:[#allocation5 + $0x2408] sm:$0xff]
    %v1410 = vld [vmem:[#allocation5 + $0x2410] sm:$0xff]
    %v1411 = vld [vmem:[#allocation5 + $0x2418] sm:$0xff]
    %v1412 = vld [vmem:[#allocation5 + $0x2420] sm:$0xff]
    %v1413 = vld [vmem:[#allocation5 + $0x2428] sm:$0xff]
    %v1414 = vld [vmem:[#allocation5 + $0x2430] sm:$0xff]
    %v1415 = vld [vmem:[#allocation5 + $0x2438] sm:$0xff]
    %v1416 = vld [vmem:[#allocation5 + $0x2440] sm:$0xff]
    %v1417 = vld [vmem:[#allocation5 + $0x2448] sm:$0xff]
    %v1418 = vld [vmem:[#allocation5 + $0x2450] sm:$0xff]
    %v1419 = vld [vmem:[#allocation5 + $0x2458] sm:$0xff]
    %v1420 = vld [vmem:[#allocation5 + $0x2460] sm:$0xff]
    %v1421 = vld [vmem:[#allocation5 + $0x2468] sm:$0xff]
    %v1422 = vld [vmem:[#allocation5 + $0x2470] sm:$0xff]
    %v1423 = vld [vmem:[#allocation5 + $0x2478] sm:$0xff]
    %v1424 = vld [vmem:[#allocation5 + $0x2480] sm:$0xff]
    %v1425 = vld [vmem:[#allocation5 + $0x2488] sm:$0xff]
    %v1426 = vld [vmem:[#allocation5 + $0x2490] sm:$0xff]
    %v1427 = vld [vmem:[#allocation5 + $0x2498] sm:$0xff]
    %v1428 = vld [vmem:[#allocation5 + $0x24a0] sm:$0xff]
    %v1429 = vld [vmem:[#allocation5 + $0x24a8] sm:$0xff]
    %v1430 = vld [vmem:[#allocation5 + $0x24b0] sm:$0xff]
    %v1431 = vld [vmem:[#allocation5 + $0x24b8] sm:$0xff]
    %v1432 = vld [vmem:[#allocation5 + $0x24c0] sm:$0xff]
    %v1433 = vld [vmem:[#allocation5 + $0x24c8] sm:$0xff]
    %v1434 = vld [vmem:[#allocation5 + $0x24d0] sm:$0xff]
    %v1435 = vld [vmem:[#allocation5 + $0x24d8] sm:$0xff]
    %v1436 = vld [vmem:[#allocation5 + $0x24e0] sm:$0xff]
    %v1437 = vld [vmem:[#allocation5 + $0x24e8] sm:$0xff]
    %v1438 = vld [vmem:[#allocation5 + $0x24f0] sm:$0xff]
    %v1439 = vld [vmem:[#allocation5 + $0x24f8] sm:$0xff]
    %v1440 = vld [vmem:[#allocation5 + $0x2500] sm:$0xff]
    %v1441 = vld [vmem:[#allocation5 + $0x2508] sm:$0xff]
    %v1442 = vld [vmem:[#allocation5 + $0x2510] sm:$0xff]
    %v1443 = vld [vmem:[#allocation5 + $0x2518] sm:$0xff]
    %v1444 = vld [vmem:[#allocation5 + $0x2520] sm:$0xff]
    %v1445 = vld [vmem:[#allocation5 + $0x2528] sm:$0xff]
    %v1446 = vld [vmem:[#allocation5 + $0x2530] sm:$0xff]
    %v1447 = vld [vmem:[#allocation5 + $0x2538] sm:$0xff]
    %v1448 = vld [vmem:[#allocation5 + $0x2540] sm:$0xff]
    %v1449 = vld [vmem:[#allocation5 + $0x2548] sm:$0xff]
    %v1450 = vld [vmem:[#allocation5 + $0x2550] sm:$0xff]
    %v1451 = vld [vmem:[#allocation5 + $0x2558] sm:$0xff]
    %v1452 = vld [vmem:[#allocation5 + $0x2560] sm:$0xff]
    %v1453 = vld [vmem:[#allocation5 + $0x2568] sm:$0xff]
    %v1454 = vld [vmem:[#allocation5 + $0x2570] sm:$0xff]
    %v1455 = vld [vmem:[#allocation5 + $0x2578] sm:$0xff]
    %v1456 = vld [vmem:[#allocation5 + $0x2580] sm:$0xff]
    %v1457 = vld [vmem:[#allocation5 + $0x2588] sm:$0xff]
    %v1458 = vld [vmem:[#allocation5 + $0x2590] sm:$0xff]
    %v1459 = vld [vmem:[#allocation5 + $0x2598] sm:$0xff]
    %v1460 = vld [vmem:[#allocation5 + $0x25a0] sm:$0xff]
    %v1461 = vld [vmem:[#allocation5 + $0x25a8] sm:$0xff]
    %v1462 = vld [vmem:[#allocation5 + $0x25b0] sm:$0xff]
    %v1463 = vld [vmem:[#allocation5 + $0x25b8] sm:$0xff]
    %v1464 = vld [vmem:[#allocation5 + $0x25c0] sm:$0xff]
    %v1465 = vld [vmem:[#allocation5 + $0x25c8] sm:$0xff]
    %v1466 = vld [vmem:[#allocation5 + $0x25d0] sm:$0xff]
    %v1467 = vld [vmem:[#allocation5 + $0x25d8] sm:$0xff]
    %v1468 = vld [vmem:[#allocation5 + $0x25e0] sm:$0xff]
    %v1469 = vld [vmem:[#allocation5 + $0x25e8] sm:$0xff]
    %v1470 = vld [vmem:[#allocation5 + $0x25f0] sm:$0xff]
    %v1471 = vld [vmem:[#allocation5 + $0x25f8] sm:$0xff]
    %v1472 = vld [vmem:[#allocation5 + $0x2600] sm:$0xff]
    %v1473 = vld [vmem:[#allocation5 + $0x2608] sm:$0xff]
    %v1474 = vld [vmem:[#allocation5 + $0x2610] sm:$0xff]
    %v1475 = vld [vmem:[#allocation5 + $0x2618] sm:$0xff]
    %v1476 = vld [vmem:[#allocation5 + $0x2620] sm:$0xff]
    %v1477 = vld [vmem:[#allocation5 + $0x2628] sm:$0xff]
    %v1478 = vld [vmem:[#allocation5 + $0x2630] sm:$0xff]
    %v1479 = vld [vmem:[#allocation5 + $0x2638] sm:$0xff]
    %v1480 = vld [vmem:[#allocation5 + $0x2640] sm:$0xff]
    %v1481 = vld [vmem:[#allocation5 + $0x2648] sm:$0xff]
    %v1482 = vld [vmem:[#allocation5 + $0x2650] sm:$0xff]
    %v1483 = vld [vmem:[#allocation5 + $0x2658] sm:$0xff]
    %v1484 = vld [vmem:[#allocation5 + $0x2660] sm:$0xff]
    %v1485 = vld [vmem:[#allocation5 + $0x2668] sm:$0xff]
    %v1486 = vld [vmem:[#allocation5 + $0x2670] sm:$0xff]
    %v1487 = vld [vmem:[#allocation5 + $0x2678] sm:$0xff]
    %v1488 = vld [vmem:[#allocation5 + $0x2680] sm:$0xff]
    %v1489 = vld [vmem:[#allocation5 + $0x2688] sm:$0xff]
    %v1490 = vld [vmem:[#allocation5 + $0x2690] sm:$0xff]
    %v1491 = vld [vmem:[#allocation5 + $0x2698] sm:$0xff]
    %v1492 = vld [vmem:[#allocation5 + $0x26a0] sm:$0xff]
    %v1493 = vld [vmem:[#allocation5 + $0x26a8] sm:$0xff]
    %v1494 = vld [vmem:[#allocation5 + $0x26b0] sm:$0xff]
    %v1495 = vld [vmem:[#allocation5 + $0x26b8] sm:$0xff]
    %v1496 = vld [vmem:[#allocation5 + $0x26c0] sm:$0xff]
    %v1497 = vld [vmem:[#allocation5 + $0x26c8] sm:$0xff]
    %v1498 = vld [vmem:[#allocation5 + $0x26d0] sm:$0xff]
    %v1499 = vld [vmem:[#allocation5 + $0x26d8] sm:$0xff]
    %v1500 = vld [vmem:[#allocation5 + $0x26e0] sm:$0xff]
    %v1501 = vld [vmem:[#allocation5 + $0x26e8] sm:$0xff]
    %v1502 = vld [vmem:[#allocation5 + $0x26f0] sm:$0xff]
    %v1503 = vld [vmem:[#allocation5 + $0x26f8] sm:$0xff]
    %v1504 = vld [vmem:[#allocation5 + $0x2700] sm:$0xff]
    %v1505 = vld [vmem:[#allocation5 + $0x2708] sm:$0xff]
    %v1506 = vld [vmem:[#allocation5 + $0x2710] sm:$0xff]
    %v1507 = vld [vmem:[#allocation5 + $0x2718] sm:$0xff]
    %v1508 = vld [vmem:[#allocation5 + $0x2720] sm:$0xff]
    %v1509 = vld [vmem:[#allocation5 + $0x2728] sm:$0xff]
    %v1510 = vld [vmem:[#allocation5 + $0x2730] sm:$0xff]
    %v1511 = vld [vmem:[#allocation5 + $0x2738] sm:$0xff]
    %v1512 = vld [vmem:[#allocation5 + $0x2740] sm:$0xff]
    %v1513 = vld [vmem:[#allocation5 + $0x2748] sm:$0xff]
    %v1514 = vld [vmem:[#allocation5 + $0x2750] sm:$0xff]
    %v1515 = vld [vmem:[#allocation5 + $0x2758] sm:$0xff]
    %v1516 = vld [vmem:[#allocation5 + $0x2760] sm:$0xff]
    %v1517 = vld [vmem:[#allocation5 + $0x2768] sm:$0xff]
    %v1518 = vld [vmem:[#allocation5 + $0x2770] sm:$0xff]
    %v1519 = vld [vmem:[#allocation5 + $0x2778] sm:$0xff]
    %v1520 = vld [vmem:[#allocation5 + $0x2780] sm:$0xff]
    %v1521 = vld [vmem:[#allocation5 + $0x2788] sm:$0xff]
    %v1522 = vld [vmem:[#allocation5 + $0x2790] sm:$0xff]
    %v1523 = vld [vmem:[#allocation5 + $0x2798] sm:$0xff]
    %v1524 = vld [vmem:[#allocation5 + $0x27a0] sm:$0xff]
    %v1525 = vld [vmem:[#allocation5 + $0x27a8] sm:$0xff]
    %v1526 = vld [vmem:[#allocation5 + $0x27b0] sm:$0xff]
    %v1527 = vld [vmem:[#allocation5 + $0x27b8] sm:$0xff]
    %v1528 = vld [vmem:[#allocation5 + $0x27c0] sm:$0xff]
    %v1529 = vld [vmem:[#allocation5 + $0x27c8] sm:$0xff]
    %v1530 = vld [vmem:[#allocation5 + $0x27d0] sm:$0xff]
    %v1531 = vld [vmem:[#allocation5 + $0x27d8] sm:$0xff]
    %v1532 = vld [vmem:[#allocation5 + $0x27e0] sm:$0xff]
    %v1533 = vld [vmem:[#allocation5 + $0x27e8] sm:$0xff]
    %v1534 = vld [vmem:[#allocation5 + $0x27f0] sm:$0xff]
    %v1535 = vld [vmem:[#allocation5 + $0x27f8] sm:$0xff]
    %v1536 = vld [vmem:[#allocation5 + $0x2800] sm:$0xff]
    %v1537 = vld [vmem:[#allocation5 + $0x2808] sm:$0xff]
    %v1538 = vld [vmem:[#allocation5 + $0x2810] sm:$0xff]
    %v1539 = vld [vmem:[#allocation5 + $0x2818] sm:$0xff]
    %v1540 = vld [vmem:[#allocation5 + $0x2820] sm:$0xff]
    %v1541 = vld [vmem:[#allocation5 + $0x2828] sm:$0xff]
    %v1542 = vld [vmem:[#allocation5 + $0x2830] sm:$0xff]
    %v1543 = vld [vmem:[#allocation5 + $0x2838] sm:$0xff]
    %v1544 = vld [vmem:[#allocation5 + $0x2840] sm:$0xff]
    %v1545 = vld [vmem:[#allocation5 + $0x2848] sm:$0xff]
    %v1546 = vld [vmem:[#allocation5 + $0x2850] sm:$0xff]
    %v1547 = vld [vmem:[#allocation5 + $0x2858] sm:$0xff]
    %v1548 = vld [vmem:[#allocation5 + $0x2860] sm:$0xff]
    %v1549 = vld [vmem:[#allocation5 + $0x2868] sm:$0xff]
    %v1550 = vld [vmem:[#allocation5 + $0x2870] sm:$0xff]
    %v1551 = vld [vmem:[#allocation5 + $0x2878] sm:$0xff]
    %v1552 = vld [vmem:[#allocation5 + $0x2880] sm:$0xff]
    %v1553 = vld [vmem:[#allocation5 + $0x2888] sm:$0xff]
    %v1554 = vld [vmem:[#allocation5 + $0x2890] sm:$0xff]
    %v1555 = vld [vmem:[#allocation5 + $0x2898] sm:$0xff]
    %v1556 = vld [vmem:[#allocation5 + $0x28a0] sm:$0xff]
    %v1557 = vld [vmem:[#allocation5 + $0x28a8] sm:$0xff]
    %v1558 = vld [vmem:[#allocation5 + $0x28b0] sm:$0xff]
    %v1559 = vld [vmem:[#allocation5 + $0x28b8] sm:$0xff]
    %v1560 = vld [vmem:[#allocation5 + $0x28c0] sm:$0xff]
    %v1561 = vld [vmem:[#allocation5 + $0x28c8] sm:$0xff]
    %v1562 = vld [vmem:[#allocation5 + $0x28d0] sm:$0xff]
    %v1563 = vld [vmem:[#allocation5 + $0x28d8] sm:$0xff]
    %v1564 = vld [vmem:[#allocation5 + $0x28e0] sm:$0xff]
    %v1565 = vld [vmem:[#allocation5 + $0x28e8] sm:$0xff]
    %v1566 = vld [vmem:[#allocation5 + $0x28f0] sm:$0xff]
    %v1567 = vld [vmem:[#allocation5 + $0x28f8] sm:$0xff]
    %v1568 = vld [vmem:[#allocation5 + $0x2900] sm:$0xff]
    %v1569 = vld [vmem:[#allocation5 + $0x2908] sm:$0xff]
    %v1570 = vld [vmem:[#allocation5 + $0x2910] sm:$0xff]
    %v1571 = vld [vmem:[#allocation5 + $0x2918] sm:$0xff]
    %v1572 = vld [vmem:[#allocation5 + $0x2920] sm:$0xff]
    %v1573 = vld [vmem:[#allocation5 + $0x2928] sm:$0xff]
    %v1574 = vld [vmem:[#allocation5 + $0x2930] sm:$0xff]
    %v1575 = vld [vmem:[#allocation5 + $0x2938] sm:$0xff]
    %v1576 = vld [vmem:[#allocation5 + $0x2940] sm:$0xff]
    %v1577 = vld [vmem:[#allocation5 + $0x2948] sm:$0xff]
    %v1578 = vld [vmem:[#allocation5 + $0x2950] sm:$0xff]
    %v1579 = vld [vmem:[#allocation5 + $0x2958] sm:$0xff]
    %v1580 = vld [vmem:[#allocation5 + $0x2960] sm:$0xff]
    %v1581 = vld [vmem:[#allocation5 + $0x2968] sm:$0xff]
    %v1582 = vld [vmem:[#allocation5 + $0x2970] sm:$0xff]
    %v1583 = vld [vmem:[#allocation5 + $0x2978] sm:$0xff]
    %v1584 = vld [vmem:[#allocation5 + $0x2980] sm:$0xff]
    %v1585 = vld [vmem:[#allocation5 + $0x2988] sm:$0xff]
    %v1586 = vld [vmem:[#allocation5 + $0x2990] sm:$0xff]
    %v1587 = vld [vmem:[#allocation5 + $0x2998] sm:$0xff]
    %v1588 = vld [vmem:[#allocation5 + $0x29a0] sm:$0xff]
    %v1589 = vld [vmem:[#allocation5 + $0x29a8] sm:$0xff]
    %v1590 = vld [vmem:[#allocation5 + $0x29b0] sm:$0xff]
    %v1591 = vld [vmem:[#allocation5 + $0x29b8] sm:$0xff]
    %v1592 = vld [vmem:[#allocation5 + $0x29c0] sm:$0xff]
    %v1593 = vld [vmem:[#allocation5 + $0x29c8] sm:$0xff]
    %v1594 = vld [vmem:[#allocation5 + $0x29d0] sm:$0xff]
    %v1595 = vld [vmem:[#allocation5 + $0x29d8] sm:$0xff]
    %v1596 = vld [vmem:[#allocation5 + $0x29e0] sm:$0xff]
    %v1597 = vld [vmem:[#allocation5 + $0x29e8] sm:$0xff]
    %v1598 = vld [vmem:[#allocation5 + $0x29f0] sm:$0xff]
    %v1599 = vld [vmem:[#allocation5 + $0x29f8] sm:$0xff]
    %v1600 = vld [vmem:[#allocation5 + $0x2a00] sm:$0xff]
    %v1601 = vld [vmem:[#allocation5 + $0x2a08] sm:$0xff]
    %v1602 = vld [vmem:[#allocation5 + $0x2a10] sm:$0xff]
    %v1603 = vld [vmem:[#allocation5 + $0x2a18] sm:$0xff]
    %v1604 = vld [vmem:[#allocation5 + $0x2a20] sm:$0xff]
    %v1605 = vld [vmem:[#allocation5 + $0x2a28] sm:$0xff]
    %v1606 = vld [vmem:[#allocation5 + $0x2a30] sm:$0xff]
    %v1607 = vld [vmem:[#allocation5 + $0x2a38] sm:$0xff]
    %v1608 = vld [vmem:[#allocation5 + $0x2a40] sm:$0xff]
    %v1609 = vld [vmem:[#allocation5 + $0x2a48] sm:$0xff]
    %v1610 = vld [vmem:[#allocation5 + $0x2a50] sm:$0xff]
    %v1611 = vld [vmem:[#allocation5 + $0x2a58] sm:$0xff]
    %v1612 = vld [vmem:[#allocation5 + $0x2a60] sm:$0xff]
    %v1613 = vld [vmem:[#allocation5 + $0x2a68] sm:$0xff]
    %v1614 = vld [vmem:[#allocation5 + $0x2a70] sm:$0xff]
    %v1615 = vld [vmem:[#allocation5 + $0x2a78] sm:$0xff]
    %v1616 = vld [vmem:[#allocation5 + $0x2a80] sm:$0xff]
    %v1617 = vld [vmem:[#allocation5 + $0x2a88] sm:$0xff]
    %v1618 = vld [vmem:[#allocation5 + $0x2a90] sm:$0xff]
    %v1619 = vld [vmem:[#allocation5 + $0x2a98] sm:$0xff]
    %v1620 = vld [vmem:[#allocation5 + $0x2aa0] sm:$0xff]
    %v1621 = vld [vmem:[#allocation5 + $0x2aa8] sm:$0xff]
    %v1622 = vld [vmem:[#allocation5 + $0x2ab0] sm:$0xff]
    %v1623 = vld [vmem:[#allocation5 + $0x2ab8] sm:$0xff]
    %v1624 = vld [vmem:[#allocation5 + $0x2ac0] sm:$0xff]
    %v1625 = vld [vmem:[#allocation5 + $0x2ac8] sm:$0xff]
    %v1626 = vld [vmem:[#allocation5 + $0x2ad0] sm:$0xff]
    %v1627 = vld [vmem:[#allocation5 + $0x2ad8] sm:$0xff]
    %v1628 = vld [vmem:[#allocation5 + $0x2ae0] sm:$0xff]
    %v1629 = vld [vmem:[#allocation5 + $0x2ae8] sm:$0xff]
    %v1630 = vld [vmem:[#allocation5 + $0x2af0] sm:$0xff]
    %v1631 = vld [vmem:[#allocation5 + $0x2af8] sm:$0xff]
    %v1632 = vld [vmem:[#allocation5 + $0x2b00] sm:$0xff]
    %v1633 = vld [vmem:[#allocation5 + $0x2b08] sm:$0xff]
    %v1634 = vld [vmem:[#allocation5 + $0x2b10] sm:$0xff]
    %v1635 = vld [vmem:[#allocation5 + $0x2b18] sm:$0xff]
    %v1636 = vld [vmem:[#allocation5 + $0x2b20] sm:$0xff]
    %v1637 = vld [vmem:[#allocation5 + $0x2b28] sm:$0xff]
    %v1638 = vld [vmem:[#allocation5 + $0x2b30] sm:$0xff]
    %v1639 = vld [vmem:[#allocation5 + $0x2b38] sm:$0xff]
    %v1640 = vld [vmem:[#allocation5 + $0x2b40] sm:$0xff]
    %v1641 = vld [vmem:[#allocation5 + $0x2b48] sm:$0xff]
    %v1642 = vld [vmem:[#allocation5 + $0x2b50] sm:$0xff]
    %v1643 = vld [vmem:[#allocation5 + $0x2b58] sm:$0xff]
    %v1644 = vld [vmem:[#allocation5 + $0x2b60] sm:$0xff]
    %v1645 = vld [vmem:[#allocation5 + $0x2b68] sm:$0xff]
    %v1646 = vld [vmem:[#allocation5 + $0x2b70] sm:$0xff]
    %v1647 = vld [vmem:[#allocation5 + $0x2b78] sm:$0xff]
    %v1648 = vld [vmem:[#allocation5 + $0x2b80] sm:$0xff]
    %v1649 = vld [vmem:[#allocation5 + $0x2b88] sm:$0xff]
    %v1650 = vld [vmem:[#allocation5 + $0x2b90] sm:$0xff]
    %v1651 = vld [vmem:[#allocation5 + $0x2b98] sm:$0xff]
    %v1652 = vld [vmem:[#allocation5 + $0x2ba0] sm:$0xff]
    %v1653 = vld [vmem:[#allocation5 + $0x2ba8] sm:$0xff]
    %v1654 = vld [vmem:[#allocation5 + $0x2bb0] sm:$0xff]
    %v1655 = vld [vmem:[#allocation5 + $0x2bb8] sm:$0xff]
    %v1656 = vld [vmem:[#allocation5 + $0x2bc0] sm:$0xff]
    %v1657 = vld [vmem:[#allocation5 + $0x2bc8] sm:$0xff]
    %v1658 = vld [vmem:[#allocation5 + $0x2bd0] sm:$0xff]
    %v1659 = vld [vmem:[#allocation5 + $0x2bd8] sm:$0xff]
    %v1660 = vld [vmem:[#allocation5 + $0x2be0] sm:$0xff]
    %v1661 = vld [vmem:[#allocation5 + $0x2be8] sm:$0xff]
    %v1662 = vld [vmem:[#allocation5 + $0x2bf0] sm:$0xff]
    %v1663 = vld [vmem:[#allocation5 + $0x2bf8] sm:$0xff]
    %v1664 = vld [vmem:[#allocation5 + $0x2c00] sm:$0xff]
    %v1665 = vld [vmem:[#allocation5 + $0x2c08] sm:$0xff]
    %v1666 = vld [vmem:[#allocation5 + $0x2c10] sm:$0xff]
    %v1667 = vld [vmem:[#allocation5 + $0x2c18] sm:$0xff]
    %v1668 = vld [vmem:[#allocation5 + $0x2c20] sm:$0xff]
    %v1669 = vld [vmem:[#allocation5 + $0x2c28] sm:$0xff]
    %v1670 = vld [vmem:[#allocation5 + $0x2c30] sm:$0xff]
    %v1671 = vld [vmem:[#allocation5 + $0x2c38] sm:$0xff]
    %v1672 = vld [vmem:[#allocation5 + $0x2c40] sm:$0xff]
    %v1673 = vld [vmem:[#allocation5 + $0x2c48] sm:$0xff]
    %v1674 = vld [vmem:[#allocation5 + $0x2c50] sm:$0xff]
    %v1675 = vld [vmem:[#allocation5 + $0x2c58] sm:$0xff]
    %v1676 = vld [vmem:[#allocation5 + $0x2c60] sm:$0xff]
    %v1677 = vld [vmem:[#allocation5 + $0x2c68] sm:$0xff]
    %v1678 = vld [vmem:[#allocation5 + $0x2c70] sm:$0xff]
    %v1679 = vld [vmem:[#allocation5 + $0x2c78] sm:$0xff]
    %v1680 = vld [vmem:[#allocation5 + $0x2c80] sm:$0xff]
    %v1681 = vld [vmem:[#allocation5 + $0x2c88] sm:$0xff]
    %v1682 = vld [vmem:[#allocation5 + $0x2c90] sm:$0xff]
    %v1683 = vld [vmem:[#allocation5 + $0x2c98] sm:$0xff]
    %v1684 = vld [vmem:[#allocation5 + $0x2ca0] sm:$0xff]
    %v1685 = vld [vmem:[#allocation5 + $0x2ca8] sm:$0xff]
    %v1686 = vld [vmem:[#allocation5 + $0x2cb0] sm:$0xff]
    %v1687 = vld [vmem:[#allocation5 + $0x2cb8] sm:$0xff]
    %v1688 = vld [vmem:[#allocation5 + $0x2cc0] sm:$0xff]
    %v1689 = vld [vmem:[#allocation5 + $0x2cc8] sm:$0xff]
    %v1690 = vld [vmem:[#allocation5 + $0x2cd0] sm:$0xff]
    %v1691 = vld [vmem:[#allocation5 + $0x2cd8] sm:$0xff]
    %v1692 = vld [vmem:[#allocation5 + $0x2ce0] sm:$0xff]
    %v1693 = vld [vmem:[#allocation5 + $0x2ce8] sm:$0xff]
    %v1694 = vld [vmem:[#allocation5 + $0x2cf0] sm:$0xff]
    %v1695 = vld [vmem:[#allocation5 + $0x2cf8] sm:$0xff]
    %v1696 = vld [vmem:[#allocation5 + $0x2d00] sm:$0xff]
    %v1697 = vld [vmem:[#allocation5 + $0x2d08] sm:$0xff]
    %v1698 = vld [vmem:[#allocation5 + $0x2d10] sm:$0xff]
    %v1699 = vld [vmem:[#allocation5 + $0x2d18] sm:$0xff]
    %v1700 = vld [vmem:[#allocation5 + $0x2d20] sm:$0xff]
    %v1701 = vld [vmem:[#allocation5 + $0x2d28] sm:$0xff]
    %v1702 = vld [vmem:[#allocation5 + $0x2d30] sm:$0xff]
    %v1703 = vld [vmem:[#allocation5 + $0x2d38] sm:$0xff]
    %v1704 = vld [vmem:[#allocation5 + $0x2d40] sm:$0xff]
    %v1705 = vld [vmem:[#allocation5 + $0x2d48] sm:$0xff]
    %v1706 = vld [vmem:[#allocation5 + $0x2d50] sm:$0xff]
    %v1707 = vld [vmem:[#allocation5 + $0x2d58] sm:$0xff]
    %v1708 = vld [vmem:[#allocation5 + $0x2d60] sm:$0xff]
    %v1709 = vld [vmem:[#allocation5 + $0x2d68] sm:$0xff]
    %v1710 = vld [vmem:[#allocation5 + $0x2d70] sm:$0xff]
    %v1711 = vld [vmem:[#allocation5 + $0x2d78] sm:$0xff]
    %v1712 = vld [vmem:[#allocation5 + $0x2d80] sm:$0xff]
    %v1713 = vld [vmem:[#allocation5 + $0x2d88] sm:$0xff]
    %v1714 = vld [vmem:[#allocation5 + $0x2d90] sm:$0xff]
    %v1715 = vld [vmem:[#allocation5 + $0x2d98] sm:$0xff]
    %v1716 = vld [vmem:[#allocation5 + $0x2da0] sm:$0xff]
    %v1717 = vld [vmem:[#allocation5 + $0x2da8] sm:$0xff]
    %v1718 = vld [vmem:[#allocation5 + $0x2db0] sm:$0xff]
    %v1719 = vld [vmem:[#allocation5 + $0x2db8] sm:$0xff]
    %v1720 = vld [vmem:[#allocation5 + $0x2dc0] sm:$0xff]
    %v1721 = vld [vmem:[#allocation5 + $0x2dc8] sm:$0xff]
    %v1722 = vld [vmem:[#allocation5 + $0x2dd0] sm:$0xff]
    %v1723 = vld [vmem:[#allocation5 + $0x2dd8] sm:$0xff]
    %v1724 = vld [vmem:[#allocation5 + $0x2de0] sm:$0xff]
    %v1725 = vld [vmem:[#allocation5 + $0x2de8] sm:$0xff]
    %v1726 = vld [vmem:[#allocation5 + $0x2df0] sm:$0xff]
    %v1727 = vld [vmem:[#allocation5 + $0x2df8] sm:$0xff]
    %v1728 = vld [vmem:[#allocation5 + $0x2e00] sm:$0xff]
    %v1729 = vld [vmem:[#allocation5 + $0x2e08] sm:$0xff]
    %v1730 = vld [vmem:[#allocation5 + $0x2e10] sm:$0xff]
    %v1731 = vld [vmem:[#allocation5 + $0x2e18] sm:$0xff]
    %v1732 = vld [vmem:[#allocation5 + $0x2e20] sm:$0xff]
    %v1733 = vld [vmem:[#allocation5 + $0x2e28] sm:$0xff]
    %v1734 = vld [vmem:[#allocation5 + $0x2e30] sm:$0xff]
    %v1735 = vld [vmem:[#allocation5 + $0x2e38] sm:$0xff]
    %v1736 = vld [vmem:[#allocation5 + $0x2e40] sm:$0xff]
    %v1737 = vld [vmem:[#allocation5 + $0x2e48] sm:$0xff]
    %v1738 = vld [vmem:[#allocation5 + $0x2e50] sm:$0xff]
    %v1739 = vld [vmem:[#allocation5 + $0x2e58] sm:$0xff]
    %v1740 = vld [vmem:[#allocation5 + $0x2e60] sm:$0xff]
    %v1741 = vld [vmem:[#allocation5 + $0x2e68] sm:$0xff]
    %v1742 = vld [vmem:[#allocation5 + $0x2e70] sm:$0xff]
    %v1743 = vld [vmem:[#allocation5 + $0x2e78] sm:$0xff]
    %v1744 = vld [vmem:[#allocation5 + $0x2e80] sm:$0xff]
    %v1745 = vld [vmem:[#allocation5 + $0x2e88] sm:$0xff]
    %v1746 = vld [vmem:[#allocation5 + $0x2e90] sm:$0xff]
    %v1747 = vld [vmem:[#allocation5 + $0x2e98] sm:$0xff]
    %v1748 = vld [vmem:[#allocation5 + $0x2ea0] sm:$0xff]
    %v1749 = vld [vmem:[#allocation5 + $0x2ea8] sm:$0xff]
    %v1750 = vld [vmem:[#allocation5 + $0x2eb0] sm:$0xff]
    %v1751 = vld [vmem:[#allocation5 + $0x2eb8] sm:$0xff]
    %v1752 = vld [vmem:[#allocation5 + $0x2ec0] sm:$0xff]
    %v1753 = vld [vmem:[#allocation5 + $0x2ec8] sm:$0xff]
    %v1754 = vld [vmem:[#allocation5 + $0x2ed0] sm:$0xff]
    %v1755 = vld [vmem:[#allocation5 + $0x2ed8] sm:$0xff]
    %v1756 = vld [vmem:[#allocation5 + $0x2ee0] sm:$0xff]
    %v1757 = vld [vmem:[#allocation5 + $0x2ee8] sm:$0xff]
    %v1758 = vld [vmem:[#allocation5 + $0x2ef0] sm:$0xff]
    %v1759 = vld [vmem:[#allocation5 + $0x2ef8] sm:$0xff]
    %v1760 = vld [vmem:[#allocation5 + $0x2f00] sm:$0xff]
    %v1761 = vld [vmem:[#allocation5 + $0x2f08] sm:$0xff]
    %v1762 = vld [vmem:[#allocation5 + $0x2f10] sm:$0xff]
    %v1763 = vld [vmem:[#allocation5 + $0x2f18] sm:$0xff]
    %v1764 = vld [vmem:[#allocation5 + $0x2f20] sm:$0xff]
    %v1765 = vld [vmem:[#allocation5 + $0x2f28] sm:$0xff]
    %v1766 = vld [vmem:[#allocation5 + $0x2f30] sm:$0xff]
    %v1767 = vld [vmem:[#allocation5 + $0x2f38] sm:$0xff]
    %v1768 = vld [vmem:[#allocation5 + $0x2f40] sm:$0xff]
    %v1769 = vld [vmem:[#allocation5 + $0x2f48] sm:$0xff]
    %v1770 = vld [vmem:[#allocation5 + $0x2f50] sm:$0xff]
    %v1771 = vld [vmem:[#allocation5 + $0x2f58] sm:$0xff]
    %v1772 = vld [vmem:[#allocation5 + $0x2f60] sm:$0xff]
    %v1773 = vld [vmem:[#allocation5 + $0x2f68] sm:$0xff]
    %v1774 = vld [vmem:[#allocation5 + $0x2f70] sm:$0xff]
    %v1775 = vld [vmem:[#allocation5 + $0x2f78] sm:$0xff]
    %v1776 = vld [vmem:[#allocation5 + $0x2f80] sm:$0xff]
    %v1777 = vld [vmem:[#allocation5 + $0x2f88] sm:$0xff]
    %v1778 = vld [vmem:[#allocation5 + $0x2f90] sm:$0xff]
    %v1779 = vld [vmem:[#allocation5 + $0x2f98] sm:$0xff]
    %v1780 = vld [vmem:[#allocation5 + $0x2fa0] sm:$0xff]
    %v1781 = vld [vmem:[#allocation5 + $0x2fa8] sm:$0xff]
    %v1782 = vld [vmem:[#allocation5 + $0x2fb0] sm:$0xff]
    %v1783 = vld [vmem:[#allocation5 + $0x2fb8] sm:$0xff]
    %v1784 = vld [vmem:[#allocation5 + $0x2fc0] sm:$0xff]
    %v1785 = vld [vmem:[#allocation5 + $0x2fc8] sm:$0xff]
    %v1786 = vld [vmem:[#allocation5 + $0x2fd0] sm:$0xff]
    %v1787 = vld [vmem:[#allocation5 + $0x2fd8] sm:$0xff]
    %v1788 = vld [vmem:[#allocation5 + $0x2fe0] sm:$0xff]
    %v1789 = vld [vmem:[#allocation5 + $0x2fe8] sm:$0xff]
    %v1790 = vld [vmem:[#allocation5 + $0x2ff0] sm:$0xff]
    %v1791 = vld [vmem:[#allocation5 + $0x2ff8] sm:$0xff]
    %v1792 = vld [vmem:[#allocation5 + $0x3000] sm:$0xff]
    %v1793 = vld [vmem:[#allocation5 + $0x3008] sm:$0xff]
    %v1794 = vld [vmem:[#allocation5 + $0x3010] sm:$0xff]
    %v1795 = vld [vmem:[#allocation5 + $0x3018] sm:$0xff]
    %v1796 = vld [vmem:[#allocation5 + $0x3020] sm:$0xff]
    %v1797 = vld [vmem:[#allocation5 + $0x3028] sm:$0xff]
    %v1798 = vld [vmem:[#allocation5 + $0x3030] sm:$0xff]
    %v1799 = vld [vmem:[#allocation5 + $0x3038] sm:$0xff]
    %v1800 = vld [vmem:[#allocation5 + $0x3040] sm:$0xff]
    %v1801 = vld [vmem:[#allocation5 + $0x3048] sm:$0xff]
    %v1802 = vld [vmem:[#allocation5 + $0x3050] sm:$0xff]
    %v1803 = vld [vmem:[#allocation5 + $0x3058] sm:$0xff]
    %v1804 = vld [vmem:[#allocation5 + $0x3060] sm:$0xff]
    %v1805 = vld [vmem:[#allocation5 + $0x3068] sm:$0xff]
    %v1806 = vld [vmem:[#allocation5 + $0x3070] sm:$0xff]
    %v1807 = vld [vmem:[#allocation5 + $0x3078] sm:$0xff]
    %v1808 = vld [vmem:[#allocation5 + $0x3080] sm:$0xff]
    %v1809 = vld [vmem:[#allocation5 + $0x3088] sm:$0xff]
    %v1810 = vld [vmem:[#allocation5 + $0x3090] sm:$0xff]
    %v1811 = vld [vmem:[#allocation5 + $0x3098] sm:$0xff]
    %v1812 = vld [vmem:[#allocation5 + $0x30a0] sm:$0xff]
    %v1813 = vld [vmem:[#allocation5 + $0x30a8] sm:$0xff]
    %v1814 = vld [vmem:[#allocation5 + $0x30b0] sm:$0xff]
    %v1815 = vld [vmem:[#allocation5 + $0x30b8] sm:$0xff]
    %v1816 = vld [vmem:[#allocation5 + $0x30c0] sm:$0xff]
    %v1817 = vld [vmem:[#allocation5 + $0x30c8] sm:$0xff]
    %v1818 = vld [vmem:[#allocation5 + $0x30d0] sm:$0xff]
    %v1819 = vld [vmem:[#allocation5 + $0x30d8] sm:$0xff]
    %v1820 = vld [vmem:[#allocation5 + $0x30e0] sm:$0xff]
    %v1821 = vld [vmem:[#allocation5 + $0x30e8] sm:$0xff]
    %v1822 = vld [vmem:[#allocation5 + $0x30f0] sm:$0xff]
    %v1823 = vld [vmem:[#allocation5 + $0x30f8] sm:$0xff]
    %v1824 = vld [vmem:[#allocation5 + $0x3100] sm:$0xff]
    %v1825 = vld [vmem:[#allocation5 + $0x3108] sm:$0xff]
    %v1826 = vld [vmem:[#allocation5 + $0x3110] sm:$0xff]
    %v1827 = vld [vmem:[#allocation5 + $0x3118] sm:$0xff]
    %v1828 = vld [vmem:[#allocation5 + $0x3120] sm:$0xff]
    %v1829 = vld [vmem:[#allocation5 + $0x3128] sm:$0xff]
    %v1830 = vld [vmem:[#allocation5 + $0x3130] sm:$0xff]
    %v1831 = vld [vmem:[#allocation5 + $0x3138] sm:$0xff]
    %v1832 = vld [vmem:[#allocation5 + $0x3140] sm:$0xff]
    %v1833 = vld [vmem:[#allocation5 + $0x3148] sm:$0xff]
    %v1834 = vld [vmem:[#allocation5 + $0x3150] sm:$0xff]
    %v1835 = vld [vmem:[#allocation5 + $0x3158] sm:$0xff]
    %v1836 = vld [vmem:[#allocation5 + $0x3160] sm:$0xff]
    %v1837 = vld [vmem:[#allocation5 + $0x3168] sm:$0xff]
    %v1838 = vld [vmem:[#allocation5 + $0x3170] sm:$0xff]
    %v1839 = vld [vmem:[#allocation5 + $0x3178] sm:$0xff]
    %v1840 = vld [vmem:[#allocation5 + $0x3180] sm:$0xff]
    %v1841 = vld [vmem:[#allocation5 + $0x3188] sm:$0xff]
    %v1842 = vld [vmem:[#allocation5 + $0x3190] sm:$0xff]
    %v1843 = vld [vmem:[#allocation5 + $0x3198] sm:$0xff]
    %v1844 = vld [vmem:[#allocation5 + $0x31a0] sm:$0xff]
    %v1845 = vld [vmem:[#allocation5 + $0x31a8] sm:$0xff]
    %v1846 = vld [vmem:[#allocation5 + $0x31b0] sm:$0xff]
    %v1847 = vld [vmem:[#allocation5 + $0x31b8] sm:$0xff]
    %v1848 = vld [vmem:[#allocation5 + $0x31c0] sm:$0xff]
    %v1849 = vld [vmem:[#allocation5 + $0x31c8] sm:$0xff]
    %v1850 = vld [vmem:[#allocation5 + $0x31d0] sm:$0xff]
    %v1851 = vld [vmem:[#allocation5 + $0x31d8] sm:$0xff]
    %v1852 = vld [vmem:[#allocation5 + $0x31e0] sm:$0xff]
    %v1853 = vld [vmem:[#allocation5 + $0x31e8] sm:$0xff]
    %v1854 = vld [vmem:[#allocation5 + $0x31f0] sm:$0xff]
    %v1855 = vld [vmem:[#allocation5 + $0x31f8] sm:$0xff]
    %v1856 = vld [vmem:[#allocation5 + $0x3200] sm:$0xff]
    %v1857 = vld [vmem:[#allocation5 + $0x3208] sm:$0xff]
    %v1858 = vld [vmem:[#allocation5 + $0x3210] sm:$0xff]
    %v1859 = vld [vmem:[#allocation5 + $0x3218] sm:$0xff]
    %v1860 = vld [vmem:[#allocation5 + $0x3220] sm:$0xff]
    %v1861 = vld [vmem:[#allocation5 + $0x3228] sm:$0xff]
    %v1862 = vld [vmem:[#allocation5 + $0x3230] sm:$0xff]
    %v1863 = vld [vmem:[#allocation5 + $0x3238] sm:$0xff]
    %v1864 = vld [vmem:[#allocation5 + $0x3240] sm:$0xff]
    %v1865 = vld [vmem:[#allocation5 + $0x3248] sm:$0xff]
    %v1866 = vld [vmem:[#allocation5 + $0x3250] sm:$0xff]
    %v1867 = vld [vmem:[#allocation5 + $0x3258] sm:$0xff]
    %v1868 = vld [vmem:[#allocation5 + $0x3260] sm:$0xff]
    %v1869 = vld [vmem:[#allocation5 + $0x3268] sm:$0xff]
    %v1870 = vld [vmem:[#allocation5 + $0x3270] sm:$0xff]
    %v1871 = vld [vmem:[#allocation5 + $0x3278] sm:$0xff]
    %v1872 = vld [vmem:[#allocation5 + $0x3280] sm:$0xff]
    %v1873 = vld [vmem:[#allocation5 + $0x3288] sm:$0xff]
    %v1874 = vld [vmem:[#allocation5 + $0x3290] sm:$0xff]
    %v1875 = vld [vmem:[#allocation5 + $0x3298] sm:$0xff]
    %v1876 = vld [vmem:[#allocation5 + $0x32a0] sm:$0xff]
    %v1877 = vld [vmem:[#allocation5 + $0x32a8] sm:$0xff]
    %v1878 = vld [vmem:[#allocation5 + $0x32b0] sm:$0xff]
    %v1879 = vld [vmem:[#allocation5 + $0x32b8] sm:$0xff]
    %v1880 = vld [vmem:[#allocation5 + $0x32c0] sm:$0xff]
    %v1881 = vld [vmem:[#allocation5 + $0x32c8] sm:$0xff]
    %v1882 = vld [vmem:[#allocation5 + $0x32d0] sm:$0xff]
    %v1883 = vld [vmem:[#allocation5 + $0x32d8] sm:$0xff]
    %v1884 = vld [vmem:[#allocation5 + $0x32e0] sm:$0xff]
    %v1885 = vld [vmem:[#allocation5 + $0x32e8] sm:$0xff]
    %v1886 = vld [vmem:[#allocation5 + $0x32f0] sm:$0xff]
    %v1887 = vld [vmem:[#allocation5 + $0x32f8] sm:$0xff]
    %v1888 = vld [vmem:[#allocation5 + $0x3300] sm:$0xff]
    %v1889 = vld [vmem:[#allocation5 + $0x3308] sm:$0xff]
    %v1890 = vld [vmem:[#allocation5 + $0x3310] sm:$0xff]
    %v1891 = vld [vmem:[#allocation5 + $0x3318] sm:$0xff]
    %v1892 = vld [vmem:[#allocation5 + $0x3320] sm:$0xff]
    %v1893 = vld [vmem:[#allocation5 + $0x3328] sm:$0xff]
    %v1894 = vld [vmem:[#allocation5 + $0x3330] sm:$0xff]
    %v1895 = vld [vmem:[#allocation5 + $0x3338] sm:$0xff]
    %v1896 = vld [vmem:[#allocation5 + $0x3340] sm:$0xff]
    %v1897 = vld [vmem:[#allocation5 + $0x3348] sm:$0xff]
    %v1898 = vld [vmem:[#allocation5 + $0x3350] sm:$0xff]
    %v1899 = vld [vmem:[#allocation5 + $0x3358] sm:$0xff]
    %v1900 = vld [vmem:[#allocation5 + $0x3360] sm:$0xff]
    %v1901 = vld [vmem:[#allocation5 + $0x3368] sm:$0xff]
    %v1902 = vld [vmem:[#allocation5 + $0x3370] sm:$0xff]
    %v1903 = vld [vmem:[#allocation5 + $0x3378] sm:$0xff]
    %v1904 = vld [vmem:[#allocation5 + $0x3380] sm:$0xff]
    %v1905 = vld [vmem:[#allocation5 + $0x3388] sm:$0xff]
    %v1906 = vld [vmem:[#allocation5 + $0x3390] sm:$0xff]
    %v1907 = vld [vmem:[#allocation5 + $0x3398] sm:$0xff]
    %v1908 = vld [vmem:[#allocation5 + $0x33a0] sm:$0xff]
    %v1909 = vld [vmem:[#allocation5 + $0x33a8] sm:$0xff]
    %v1910 = vld [vmem:[#allocation5 + $0x33b0] sm:$0xff]
    %v1911 = vld [vmem:[#allocation5 + $0x33b8] sm:$0xff]
    %v1912 = vld [vmem:[#allocation5 + $0x33c0] sm:$0xff]
    %v1913 = vld [vmem:[#allocation5 + $0x33c8] sm:$0xff]
    %v1914 = vld [vmem:[#allocation5 + $0x33d0] sm:$0xff]
    %v1915 = vld [vmem:[#allocation5 + $0x33d8] sm:$0xff]
    %v1916 = vld [vmem:[#allocation5 + $0x33e0] sm:$0xff]
    %v1917 = vld [vmem:[#allocation5 + $0x33e8] sm:$0xff]
    %v1918 = vld [vmem:[#allocation5 + $0x33f0] sm:$0xff]
    %v1919 = vld [vmem:[#allocation5 + $0x33f8] sm:$0xff]
    %v1920 = vld [vmem:[#allocation5 + $0x3400] sm:$0xff]
    %v1921 = vld [vmem:[#allocation5 + $0x3408] sm:$0xff]
    %v1922 = vld [vmem:[#allocation5 + $0x3410] sm:$0xff]
    %v1923 = vld [vmem:[#allocation5 + $0x3418] sm:$0xff]
    %v1924 = vld [vmem:[#allocation5 + $0x3420] sm:$0xff]
    %v1925 = vld [vmem:[#allocation5 + $0x3428] sm:$0xff]
    %v1926 = vld [vmem:[#allocation5 + $0x3430] sm:$0xff]
    %v1927 = vld [vmem:[#allocation5 + $0x3438] sm:$0xff]
    %v1928 = vld [vmem:[#allocation5 + $0x3440] sm:$0xff]
    %v1929 = vld [vmem:[#allocation5 + $0x3448] sm:$0xff]
    %v1930 = vld [vmem:[#allocation5 + $0x3450] sm:$0xff]
    %v1931 = vld [vmem:[#allocation5 + $0x3458] sm:$0xff]
    %v1932 = vld [vmem:[#allocation5 + $0x3460] sm:$0xff]
    %v1933 = vld [vmem:[#allocation5 + $0x3468] sm:$0xff]
    %v1934 = vld [vmem:[#allocation5 + $0x3470] sm:$0xff]
    %v1935 = vld [vmem:[#allocation5 + $0x3478] sm:$0xff]
    %v1936 = vld [vmem:[#allocation5 + $0x3480] sm:$0xff]
    %v1937 = vld [vmem:[#allocation5 + $0x3488] sm:$0xff]
    %v1938 = vld [vmem:[#allocation5 + $0x3490] sm:$0xff]
    %v1939 = vld [vmem:[#allocation5 + $0x3498] sm:$0xff]
    %v1940 = vld [vmem:[#allocation5 + $0x34a0] sm:$0xff]
    %v1941 = vld [vmem:[#allocation5 + $0x34a8] sm:$0xff]
    %v1942 = vld [vmem:[#allocation5 + $0x34b0] sm:$0xff]
    %v1943 = vld [vmem:[#allocation5 + $0x34b8] sm:$0xff]
    %v1944 = vld [vmem:[#allocation5 + $0x34c0] sm:$0xff]
    %v1945 = vld [vmem:[#allocation5 + $0x34c8] sm:$0xff]
    %v1946 = vld [vmem:[#allocation5 + $0x34d0] sm:$0xff]
    %v1947 = vld [vmem:[#allocation5 + $0x34d8] sm:$0xff]
    %v1948 = vld [vmem:[#allocation5 + $0x34e0] sm:$0xff]
    %v1949 = vld [vmem:[#allocation5 + $0x34e8] sm:$0xff]
    %v1950 = vld [vmem:[#allocation5 + $0x34f0] sm:$0xff]
    %v1951 = vld [vmem:[#allocation5 + $0x34f8] sm:$0xff]
    %v1952 = vld [vmem:[#allocation5 + $0x3500] sm:$0xff]
    %v1953 = vld [vmem:[#allocation5 + $0x3508] sm:$0xff]
    %v1954 = vld [vmem:[#allocation5 + $0x3510] sm:$0xff]
    %v1955 = vld [vmem:[#allocation5 + $0x3518] sm:$0xff]
    %v1956 = vld [vmem:[#allocation5 + $0x3520] sm:$0xff]
    %v1957 = vld [vmem:[#allocation5 + $0x3528] sm:$0xff]
    %v1958 = vld [vmem:[#allocation5 + $0x3530] sm:$0xff]
    %v1959 = vld [vmem:[#allocation5 + $0x3538] sm:$0xff]
    %v1960 = vld [vmem:[#allocation5 + $0x3540] sm:$0xff]
    %v1961 = vld [vmem:[#allocation5 + $0x3548] sm:$0xff]
    %v1962 = vld [vmem:[#allocation5 + $0x3550] sm:$0xff]
    %v1963 = vld [vmem:[#allocation5 + $0x3558] sm:$0xff]
    %v1964 = vld [vmem:[#allocation5 + $0x3560] sm:$0xff]
    %v1965 = vld [vmem:[#allocation5 + $0x3568] sm:$0xff]
    %v1966 = vld [vmem:[#allocation5 + $0x3570] sm:$0xff]
    %v1967 = vld [vmem:[#allocation5 + $0x3578] sm:$0xff]
    %v1968 = vld [vmem:[#allocation5 + $0x3580] sm:$0xff]
    %v1969 = vld [vmem:[#allocation5 + $0x3588] sm:$0xff]
    %v1970 = vld [vmem:[#allocation5 + $0x3590] sm:$0xff]
    %v1971 = vld [vmem:[#allocation5 + $0x3598] sm:$0xff]
    %v1972 = vld [vmem:[#allocation5 + $0x35a0] sm:$0xff]
    %v1973 = vld [vmem:[#allocation5 + $0x35a8] sm:$0xff]
    %v1974 = vld [vmem:[#allocation5 + $0x35b0] sm:$0xff]
    %v1975 = vld [vmem:[#allocation5 + $0x35b8] sm:$0xff]
    %v1976 = vld [vmem:[#allocation5 + $0x35c0] sm:$0xff]
    %v1977 = vld [vmem:[#allocation5 + $0x35c8] sm:$0xff]
    %v1978 = vld [vmem:[#allocation5 + $0x35d0] sm:$0xff]
    %v1979 = vld [vmem:[#allocation5 + $0x35d8] sm:$0xff]
    %v1980 = vld [vmem:[#allocation5 + $0x35e0] sm:$0xff]
    %v1981 = vld [vmem:[#allocation5 + $0x35e8] sm:$0xff]
    %v1982 = vld [vmem:[#allocation5 + $0x35f0] sm:$0xff]
    %v1983 = vld [vmem:[#allocation5 + $0x35f8] sm:$0xff]
    %v1984 = vld [vmem:[#allocation5 + $0x3600] sm:$0xff]
    %v1985 = vld [vmem:[#allocation5 + $0x3608] sm:$0xff]
    %v1986 = vld [vmem:[#allocation5 + $0x3610] sm:$0xff]
    %v1987 = vld [vmem:[#allocation5 + $0x3618] sm:$0xff]
    %v1988 = vld [vmem:[#allocation5 + $0x3620] sm:$0xff]
    %v1989 = vld [vmem:[#allocation5 + $0x3628] sm:$0xff]
    %v1990 = vld [vmem:[#allocation5 + $0x3630] sm:$0xff]
    %v1991 = vld [vmem:[#allocation5 + $0x3638] sm:$0xff]
    %v1992 = vld [vmem:[#allocation5 + $0x3640] sm:$0xff]
    %v1993 = vld [vmem:[#allocation5 + $0x3648] sm:$0xff]
    %v1994 = vld [vmem:[#allocation5 + $0x3650] sm:$0xff]
    %v1995 = vld [vmem:[#allocation5 + $0x3658] sm:$0xff]
    %v1996 = vld [vmem:[#allocation5 + $0x3660] sm:$0xff]
    %v1997 = vld [vmem:[#allocation5 + $0x3668] sm:$0xff]
    %v1998 = vld [vmem:[#allocation5 + $0x3670] sm:$0xff]
    %v1999 = vld [vmem:[#allocation5 + $0x3678] sm:$0xff]
    %v2000 = vld [vmem:[#allocation5 + $0x3680] sm:$0xff]
    %v2001 = vld [vmem:[#allocation5 + $0x3688] sm:$0xff]
    %v2002 = vld [vmem:[#allocation5 + $0x3690] sm:$0xff]
    %v2003 = vld [vmem:[#allocation5 + $0x3698] sm:$0xff]
    %v2004 = vld [vmem:[#allocation5 + $0x36a0] sm:$0xff]
    %v2005 = vld [vmem:[#allocation5 + $0x36a8] sm:$0xff]
    %v2006 = vld [vmem:[#allocation5 + $0x36b0] sm:$0xff]
    %v2007 = vld [vmem:[#allocation5 + $0x36b8] sm:$0xff]
    %v2008 = vld [vmem:[#allocation5 + $0x36c0] sm:$0xff]
    %v2009 = vld [vmem:[#allocation5 + $0x36c8] sm:$0xff]
    %v2010 = vld [vmem:[#allocation5 + $0x36d0] sm:$0xff]
    %v2011 = vld [vmem:[#allocation5 + $0x36d8] sm:$0xff]
    %v2012 = vld [vmem:[#allocation5 + $0x36e0] sm:$0xff]
    %v2013 = vld [vmem:[#allocation5 + $0x36e8] sm:$0xff]
    %v2014 = vld [vmem:[#allocation5 + $0x36f0] sm:$0xff]
    %v2015 = vld [vmem:[#allocation5 + $0x36f8] sm:$0xff]
    %v2016 = vld [vmem:[#allocation5 + $0x3700] sm:$0xff]
    %v2017 = vld [vmem:[#allocation5 + $0x3708] sm:$0xff]
    %v2018 = vld [vmem:[#allocation5 + $0x3710] sm:$0xff]
    %v2019 = vld [vmem:[#allocation5 + $0x3718] sm:$0xff]
    %v2020 = vld [vmem:[#allocation5 + $0x3720] sm:$0xff]
    %v2021 = vld [vmem:[#allocation5 + $0x3728] sm:$0xff]
    %v2022 = vld [vmem:[#allocation5 + $0x3730] sm:$0xff]
    %v2023 = vld [vmem:[#allocation5 + $0x3738] sm:$0xff]
    %v2024 = vld [vmem:[#allocation5 + $0x3740] sm:$0xff]
    %v2025 = vld [vmem:[#allocation5 + $0x3748] sm:$0xff]
    %v2026 = vld [vmem:[#allocation5 + $0x3750] sm:$0xff]
    %v2027 = vld [vmem:[#allocation5 + $0x3758] sm:$0xff]
    %v2028 = vld [vmem:[#allocation5 + $0x3760] sm:$0xff]
    %v2029 = vld [vmem:[#allocation5 + $0x3768] sm:$0xff]
    %v2030 = vld [vmem:[#allocation5 + $0x3770] sm:$0xff]
    %v2031 = vld [vmem:[#allocation5 + $0x3778] sm:$0xff]
    %v2032 = vld [vmem:[#allocation5 + $0x3780] sm:$0xff]
    %v2033 = vld [vmem:[#allocation5 + $0x3788] sm:$0xff]
    %v2034 = vld [vmem:[#allocation5 + $0x3790] sm:$0xff]
    %v2035 = vld [vmem:[#allocation5 + $0x3798] sm:$0xff]
    %v2036 = vld [vmem:[#allocation5 + $0x37a0] sm:$0xff]
    %v2037 = vld [vmem:[#allocation5 + $0x37a8] sm:$0xff]
    %v2038 = vld [vmem:[#allocation5 + $0x37b0] sm:$0xff]
    %v2039 = vld [vmem:[#allocation5 + $0x37b8] sm:$0xff]
    %v2040 = vld [vmem:[#allocation5 + $0x37c0] sm:$0xff]
    %v2041 = vld [vmem:[#allocation5 + $0x37c8] sm:$0xff]
    %v2042 = vld [vmem:[#allocation5 + $0x37d0] sm:$0xff]
    %v2043 = vld [vmem:[#allocation5 + $0x37d8] sm:$0xff]
    %v2044 = vld [vmem:[#allocation5 + $0x37e0] sm:$0xff]
    %v2045 = vld [vmem:[#allocation5 + $0x37e8] sm:$0xff]
    %v2046 = vld [vmem:[#allocation5 + $0x37f0] sm:$0xff]
    %v2047 = vld [vmem:[#allocation5 + $0x37f8] sm:$0xff]
    %v2048 = vld [vmem:[#allocation5 + $0x3800] sm:$0xff]
    %v2049 = vld [vmem:[#allocation5 + $0x3808] sm:$0xff]
    %v2050 = vld [vmem:[#allocation5 + $0x3810] sm:$0xff]
    %v2051 = vld [vmem:[#allocation5 + $0x3818] sm:$0xff]
    %v2052 = vld [vmem:[#allocation5 + $0x3820] sm:$0xff]
    %v2053 = vld [vmem:[#allocation5 + $0x3828] sm:$0xff]
    %v2054 = vld [vmem:[#allocation5 + $0x3830] sm:$0xff]
    %v2055 = vld [vmem:[#allocation5 + $0x3838] sm:$0xff]
    %v2056 = vld [vmem:[#allocation5 + $0x3840] sm:$0xff]
    %v2057 = vld [vmem:[#allocation5 + $0x3848] sm:$0xff]
    %v2058 = vld [vmem:[#allocation5 + $0x3850] sm:$0xff]
    %v2059 = vld [vmem:[#allocation5 + $0x3858] sm:$0xff]
    %v2060 = vld [vmem:[#allocation5 + $0x3860] sm:$0xff]
    %v2061 = vld [vmem:[#allocation5 + $0x3868] sm:$0xff]
    %v2062 = vld [vmem:[#allocation5 + $0x3870] sm:$0xff]
    %v2063 = vld [vmem:[#allocation5 + $0x3878] sm:$0xff]
    %v2064 = vld [vmem:[#allocation5 + $0x3880] sm:$0xff]
    %v2065 = vld [vmem:[#allocation5 + $0x3888] sm:$0xff]
    %v2066 = vld [vmem:[#allocation5 + $0x3890] sm:$0xff]
    %v2067 = vld [vmem:[#allocation5 + $0x3898] sm:$0xff]
    %v2068 = vld [vmem:[#allocation5 + $0x38a0] sm:$0xff]
    %v2069 = vld [vmem:[#allocation5 + $0x38a8] sm:$0xff]
    %v2070 = vld [vmem:[#allocation5 + $0x38b0] sm:$0xff]
    %v2071 = vld [vmem:[#allocation5 + $0x38b8] sm:$0xff]
    %v2072 = vld [vmem:[#allocation5 + $0x38c0] sm:$0xff]
    %v2073 = vld [vmem:[#allocation5 + $0x38c8] sm:$0xff]
    %v2074 = vld [vmem:[#allocation5 + $0x38d0] sm:$0xff]
    %v2075 = vld [vmem:[#allocation5 + $0x38d8] sm:$0xff]
    %v2076 = vld [vmem:[#allocation5 + $0x38e0] sm:$0xff]
    %v2077 = vld [vmem:[#allocation5 + $0x38e8] sm:$0xff]
    %v2078 = vld [vmem:[#allocation5 + $0x38f0] sm:$0xff]
    %v2079 = vld [vmem:[#allocation5 + $0x38f8] sm:$0xff]
    %v2080 = vld [vmem:[#allocation5 + $0x3900] sm:$0xff]
    %v2081 = vld [vmem:[#allocation5 + $0x3908] sm:$0xff]
    %v2082 = vld [vmem:[#allocation5 + $0x3910] sm:$0xff]
    %v2083 = vld [vmem:[#allocation5 + $0x3918] sm:$0xff]
    %v2084 = vld [vmem:[#allocation5 + $0x3920] sm:$0xff]
    %v2085 = vld [vmem:[#allocation5 + $0x3928] sm:$0xff]
    %v2086 = vld [vmem:[#allocation5 + $0x3930] sm:$0xff]
    %v2087 = vld [vmem:[#allocation5 + $0x3938] sm:$0xff]
    %v2088 = vld [vmem:[#allocation5 + $0x3940] sm:$0xff]
    %v2089 = vld [vmem:[#allocation5 + $0x3948] sm:$0xff]
    %v2090 = vld [vmem:[#allocation5 + $0x3950] sm:$0xff]
    %v2091 = vld [vmem:[#allocation5 + $0x3958] sm:$0xff]
    %v2092 = vld [vmem:[#allocation5 + $0x3960] sm:$0xff]
    %v2093 = vld [vmem:[#allocation5 + $0x3968] sm:$0xff]
    %v2094 = vld [vmem:[#allocation5 + $0x3970] sm:$0xff]
    %v2095 = vld [vmem:[#allocation5 + $0x3978] sm:$0xff]
    %v2096 = vld [vmem:[#allocation5 + $0x3980] sm:$0xff]
    %v2097 = vld [vmem:[#allocation5 + $0x3988] sm:$0xff]
    %v2098 = vld [vmem:[#allocation5 + $0x3990] sm:$0xff]
    %v2099 = vld [vmem:[#allocation5 + $0x3998] sm:$0xff]
    %v2100 = vld [vmem:[#allocation5 + $0x39a0] sm:$0xff]
    %v2101 = vld [vmem:[#allocation5 + $0x39a8] sm:$0xff]
    %v2102 = vld [vmem:[#allocation5 + $0x39b0] sm:$0xff]
    %v2103 = vld [vmem:[#allocation5 + $0x39b8] sm:$0xff]
    %v2104 = vld [vmem:[#allocation5 + $0x39c0] sm:$0xff]
    %v2105 = vld [vmem:[#allocation5 + $0x39c8] sm:$0xff]
    %v2106 = vld [vmem:[#allocation5 + $0x39d0] sm:$0xff]
    %v2107 = vld [vmem:[#allocation5 + $0x39d8] sm:$0xff]
    %v2108 = vld [vmem:[#allocation5 + $0x39e0] sm:$0xff]
    %v2109 = vld [vmem:[#allocation5 + $0x39e8] sm:$0xff]
    %v2110 = vld [vmem:[#allocation5 + $0x39f0] sm:$0xff]
    %v2111 = vld [vmem:[#allocation5 + $0x39f8] sm:$0xff]
    %v2112 = vld [vmem:[#allocation5 + $0x3a00] sm:$0xff]
    %v2113 = vld [vmem:[#allocation5 + $0x3a08] sm:$0xff]
    %v2114 = vld [vmem:[#allocation5 + $0x3a10] sm:$0xff]
    %v2115 = vld [vmem:[#allocation5 + $0x3a18] sm:$0xff]
    %v2116 = vld [vmem:[#allocation5 + $0x3a20] sm:$0xff]
    %v2117 = vld [vmem:[#allocation5 + $0x3a28] sm:$0xff]
    %v2118 = vld [vmem:[#allocation5 + $0x3a30] sm:$0xff]
    %v2119 = vld [vmem:[#allocation5 + $0x3a38] sm:$0xff]
    %v2120 = vld [vmem:[#allocation5 + $0x3a40] sm:$0xff]
    %v2121 = vld [vmem:[#allocation5 + $0x3a48] sm:$0xff]
    %v2122 = vld [vmem:[#allocation5 + $0x3a50] sm:$0xff]
    %v2123 = vld [vmem:[#allocation5 + $0x3a58] sm:$0xff]
    %v2124 = vld [vmem:[#allocation5 + $0x3a60] sm:$0xff]
    %v2125 = vld [vmem:[#allocation5 + $0x3a68] sm:$0xff]
    %v2126 = vld [vmem:[#allocation5 + $0x3a70] sm:$0xff]
    %v2127 = vld [vmem:[#allocation5 + $0x3a78] sm:$0xff]
    %v2128 = vld [vmem:[#allocation5 + $0x3a80] sm:$0xff]
    %v2129 = vld [vmem:[#allocation5 + $0x3a88] sm:$0xff]
    %v2130 = vld [vmem:[#allocation5 + $0x3a90] sm:$0xff]
    %v2131 = vld [vmem:[#allocation5 + $0x3a98] sm:$0xff]
    %v2132 = vld [vmem:[#allocation5 + $0x3aa0] sm:$0xff]
    %v2133 = vld [vmem:[#allocation5 + $0x3aa8] sm:$0xff]
    %v2134 = vld [vmem:[#allocation5 + $0x3ab0] sm:$0xff]
    %v2135 = vld [vmem:[#allocation5 + $0x3ab8] sm:$0xff]
    %v2136 = vld [vmem:[#allocation5 + $0x3ac0] sm:$0xff]
    %v2137 = vld [vmem:[#allocation5 + $0x3ac8] sm:$0xff]
    %v2138 = vld [vmem:[#allocation5 + $0x3ad0] sm:$0xff]
    %v2139 = vld [vmem:[#allocation5 + $0x3ad8] sm:$0xff]
    %v2140 = vld [vmem:[#allocation5 + $0x3ae0] sm:$0xff]
    %v2141 = vld [vmem:[#allocation5 + $0x3ae8] sm:$0xff]
    %v2142 = vld [vmem:[#allocation5 + $0x3af0] sm:$0xff]
    %v2143 = vld [vmem:[#allocation5 + $0x3af8] sm:$0xff]
    %v2144 = vld [vmem:[#allocation5 + $0x3b00] sm:$0xff]
    %v2145 = vld [vmem:[#allocation5 + $0x3b08] sm:$0xff]
    %v2146 = vld [vmem:[#allocation5 + $0x3b10] sm:$0xff]
    %v2147 = vld [vmem:[#allocation5 + $0x3b18] sm:$0xff]
    %v2148 = vld [vmem:[#allocation5 + $0x3b20] sm:$0xff]
    %v2149 = vld [vmem:[#allocation5 + $0x3b28] sm:$0xff]
    %v2150 = vld [vmem:[#allocation5 + $0x3b30] sm:$0xff]
    %v2151 = vld [vmem:[#allocation5 + $0x3b38] sm:$0xff]
    %v2152 = vld [vmem:[#allocation5 + $0x3b40] sm:$0xff]
    %v2153 = vld [vmem:[#allocation5 + $0x3b48] sm:$0xff]
    %v2154 = vld [vmem:[#allocation5 + $0x3b50] sm:$0xff]
    %v2155 = vld [vmem:[#allocation5 + $0x3b58] sm:$0xff]
    %v2156 = vld [vmem:[#allocation5 + $0x3b60] sm:$0xff]
    %v2157 = vld [vmem:[#allocation5 + $0x3b68] sm:$0xff]
    %v2158 = vld [vmem:[#allocation5 + $0x3b70] sm:$0xff]
    %v2159 = vld [vmem:[#allocation5 + $0x3b78] sm:$0xff]
    %v2160 = vld [vmem:[#allocation5 + $0x3b80] sm:$0xff]
    %v2161 = vld [vmem:[#allocation5 + $0x3b88] sm:$0xff]
    %v2162 = vld [vmem:[#allocation5 + $0x3b90] sm:$0xff]
    %v2163 = vld [vmem:[#allocation5 + $0x3b98] sm:$0xff]
    %v2164 = vld [vmem:[#allocation5 + $0x3ba0] sm:$0xff]
    %v2165 = vld [vmem:[#allocation5 + $0x3ba8] sm:$0xff]
    %v2166 = vld [vmem:[#allocation5 + $0x3bb0] sm:$0xff]
    %v2167 = vld [vmem:[#allocation5 + $0x3bb8] sm:$0xff]
    %v2168 = vld [vmem:[#allocation5 + $0x3bc0] sm:$0xff]
    %v2169 = vld [vmem:[#allocation5 + $0x3bc8] sm:$0xff]
    %v2170 = vld [vmem:[#allocation5 + $0x3bd0] sm:$0xff]
    %v2171 = vld [vmem:[#allocation5 + $0x3bd8] sm:$0xff]
    %v2172 = vld [vmem:[#allocation5 + $0x3be0] sm:$0xff]
    %v2173 = vld [vmem:[#allocation5 + $0x3be8] sm:$0xff]
    %v2174 = vld [vmem:[#allocation5 + $0x3bf0] sm:$0xff]
    %v2175 = vld [vmem:[#allocation5 + $0x3bf8] sm:$0xff]
    %v2176 = vld [vmem:[#allocation5 + $0x3c00] sm:$0xff]
    %v2177 = vld [vmem:[#allocation5 + $0x3c08] sm:$0xff]
    %v2178 = vld [vmem:[#allocation5 + $0x3c10] sm:$0xff]
    %v2179 = vld [vmem:[#allocation5 + $0x3c18] sm:$0xff]
    %v2180 = vld [vmem:[#allocation5 + $0x3c20] sm:$0xff]
    %v2181 = vld [vmem:[#allocation5 + $0x3c28] sm:$0xff]
    %v2182 = vld [vmem:[#allocation5 + $0x3c30] sm:$0xff]
    %v2183 = vld [vmem:[#allocation5 + $0x3c38] sm:$0xff]
    %v2184 = vld [vmem:[#allocation5 + $0x3c40] sm:$0xff]
    %v2185 = vld [vmem:[#allocation5 + $0x3c48] sm:$0xff]
    %v2186 = vld [vmem:[#allocation5 + $0x3c50] sm:$0xff]
    %v2187 = vld [vmem:[#allocation5 + $0x3c58] sm:$0xff]
    %v2188 = vld [vmem:[#allocation5 + $0x3c60] sm:$0xff]
    %v2189 = vld [vmem:[#allocation5 + $0x3c68] sm:$0xff]
    %v2190 = vld [vmem:[#allocation5 + $0x3c70] sm:$0xff]
    %v2191 = vld [vmem:[#allocation5 + $0x3c78] sm:$0xff]
    %v2192 = vld [vmem:[#allocation5 + $0x3c80] sm:$0xff]
    %v2193 = vld [vmem:[#allocation5 + $0x3c88] sm:$0xff]
    %v2194 = vld [vmem:[#allocation5 + $0x3c90] sm:$0xff]
    %v2195 = vld [vmem:[#allocation5 + $0x3c98] sm:$0xff]
    %v2196 = vld [vmem:[#allocation5 + $0x3ca0] sm:$0xff]
    %v2197 = vld [vmem:[#allocation5 + $0x3ca8] sm:$0xff]
    %v2198 = vld [vmem:[#allocation5 + $0x3cb0] sm:$0xff]
    %v2199 = vld [vmem:[#allocation5 + $0x3cb8] sm:$0xff]
    %v2200 = vld [vmem:[#allocation5 + $0x3cc0] sm:$0xff]
    %v2201 = vld [vmem:[#allocation5 + $0x3cc8] sm:$0xff]
    %v2202 = vld [vmem:[#allocation5 + $0x3cd0] sm:$0xff]
    %v2203 = vld [vmem:[#allocation5 + $0x3cd8] sm:$0xff]
    %v2204 = vld [vmem:[#allocation5 + $0x3ce0] sm:$0xff]
    %v2205 = vld [vmem:[#allocation5 + $0x3ce8] sm:$0xff]
    %v2206 = vld [vmem:[#allocation5 + $0x3cf0] sm:$0xff]
    %v2207 = vld [vmem:[#allocation5 + $0x3cf8] sm:$0xff]
    %v2208 = vld [vmem:[#allocation5 + $0x3d00] sm:$0xff]
    %v2209 = vld [vmem:[#allocation5 + $0x3d08] sm:$0xff]
    %v2210 = vld [vmem:[#allocation5 + $0x3d10] sm:$0xff]
    %v2211 = vld [vmem:[#allocation5 + $0x3d18] sm:$0xff]
    %v2212 = vld [vmem:[#allocation5 + $0x3d20] sm:$0xff]
    %v2213 = vld [vmem:[#allocation5 + $0x3d28] sm:$0xff]
    %v2214 = vld [vmem:[#allocation5 + $0x3d30] sm:$0xff]
    %v2215 = vld [vmem:[#allocation5 + $0x3d38] sm:$0xff]
    %v2216 = vld [vmem:[#allocation5 + $0x3d40] sm:$0xff]
    %v2217 = vld [vmem:[#allocation5 + $0x3d48] sm:$0xff]
    %v2218 = vld [vmem:[#allocation5 + $0x3d50] sm:$0xff]
    %v2219 = vld [vmem:[#allocation5 + $0x3d58] sm:$0xff]
    %v2220 = vld [vmem:[#allocation5 + $0x3d60] sm:$0xff]
    %v2221 = vld [vmem:[#allocation5 + $0x3d68] sm:$0xff]
    %v2222 = vld [vmem:[#allocation5 + $0x3d70] sm:$0xff]
    %v2223 = vld [vmem:[#allocation5 + $0x3d78] sm:$0xff]
    %v2224 = vld [vmem:[#allocation5 + $0x3d80] sm:$0xff]
    %v2225 = vld [vmem:[#allocation5 + $0x3d88] sm:$0xff]
    %v2226 = vld [vmem:[#allocation5 + $0x3d90] sm:$0xff]
    %v2227 = vld [vmem:[#allocation5 + $0x3d98] sm:$0xff]
    %v2228 = vld [vmem:[#allocation5 + $0x3da0] sm:$0xff]
    %v2229 = vld [vmem:[#allocation5 + $0x3da8] sm:$0xff]
    %v2230 = vld [vmem:[#allocation5 + $0x3db0] sm:$0xff]
    %v2231 = vld [vmem:[#allocation5 + $0x3db8] sm:$0xff]
    %v2232 = vld [vmem:[#allocation5 + $0x3dc0] sm:$0xff]
    %v2233 = vld [vmem:[#allocation5 + $0x3dc8] sm:$0xff]
    %v2234 = vld [vmem:[#allocation5 + $0x3dd0] sm:$0xff]
    %v2235 = vld [vmem:[#allocation5 + $0x3dd8] sm:$0xff]
    %v2236 = vld [vmem:[#allocation5 + $0x3de0] sm:$0xff]
    %v2237 = vld [vmem:[#allocation5 + $0x3de8] sm:$0xff]
    %v2238 = vld [vmem:[#allocation5 + $0x3df0] sm:$0xff]
    %v2239 = vld [vmem:[#allocation5 + $0x3df8] sm:$0xff]
    %v2240 = vld [vmem:[#allocation5 + $0x3e00] sm:$0xff]
    %v2241 = vld [vmem:[#allocation5 + $0x3e08] sm:$0xff]
    %v2242 = vld [vmem:[#allocation5 + $0x3e10] sm:$0xff]
    %v2243 = vld [vmem:[#allocation5 + $0x3e18] sm:$0xff]
    %v2244 = vld [vmem:[#allocation5 + $0x3e20] sm:$0xff]
    %v2245 = vld [vmem:[#allocation5 + $0x3e28] sm:$0xff]
    %v2246 = vld [vmem:[#allocation5 + $0x3e30] sm:$0xff]
    %v2247 = vld [vmem:[#allocation5 + $0x3e38] sm:$0xff]
    %v2248 = vld [vmem:[#allocation5 + $0x3e40] sm:$0xff]
    %v2249 = vld [vmem:[#allocation5 + $0x3e48] sm:$0xff]
    %v2250 = vld [vmem:[#allocation5 + $0x3e50] sm:$0xff]
    %v2251 = vld [vmem:[#allocation5 + $0x3e58] sm:$0xff]
    %v2252 = vld [vmem:[#allocation5 + $0x3e60] sm:$0xff]
    %v2253 = vld [vmem:[#allocation5 + $0x3e68] sm:$0xff]
    %v2254 = vld [vmem:[#allocation5 + $0x3e70] sm:$0xff]
    %v2255 = vld [vmem:[#allocation5 + $0x3e78] sm:$0xff]
    %v2256 = vld [vmem:[#allocation5 + $0x3e80] sm:$0xff]
    %v2257 = vld [vmem:[#allocation5 + $0x3e88] sm:$0xff]
    %v2258 = vld [vmem:[#allocation5 + $0x3e90] sm:$0xff]
    %v2259 = vld [vmem:[#allocation5 + $0x3e98] sm:$0xff]
    %v2260 = vld [vmem:[#allocation5 + $0x3ea0] sm:$0xff]
    %v2261 = vld [vmem:[#allocation5 + $0x3ea8] sm:$0xff]
    %v2262 = vld [vmem:[#allocation5 + $0x3eb0] sm:$0xff]
    %v2263 = vld [vmem:[#allocation5 + $0x3eb8] sm:$0xff]
    %v2264 = vld [vmem:[#allocation5 + $0x3ec0] sm:$0xff]
    %v2265 = vld [vmem:[#allocation5 + $0x3ec8] sm:$0xff]
    %v2266 = vld [vmem:[#allocation5 + $0x3ed0] sm:$0xff]
    %v2267 = vld [vmem:[#allocation5 + $0x3ed8] sm:$0xff]
    %v2268 = vld [vmem:[#allocation5 + $0x3ee0] sm:$0xff]
    %v2269 = vld [vmem:[#allocation5 + $0x3ee8] sm:$0xff]
    %v2270 = vld [vmem:[#allocation5 + $0x3ef0] sm:$0xff]
    %v2271 = vld [vmem:[#allocation5 + $0x3ef8] sm:$0xff]
    %v2272 = vld [vmem:[#allocation5 + $0x3f00] sm:$0xff]
    %v2273 = vld [vmem:[#allocation5 + $0x3f08] sm:$0xff]
    %v2274 = vld [vmem:[#allocation5 + $0x3f10] sm:$0xff]
    %v2275 = vld [vmem:[#allocation5 + $0x3f18] sm:$0xff]
    %v2276 = vld [vmem:[#allocation5 + $0x3f20] sm:$0xff]
    %v2277 = vld [vmem:[#allocation5 + $0x3f28] sm:$0xff]
    %v2278 = vld [vmem:[#allocation5 + $0x3f30] sm:$0xff]
    %v2279 = vld [vmem:[#allocation5 + $0x3f38] sm:$0xff]
    %v2280 = vld [vmem:[#allocation5 + $0x3f40] sm:$0xff]
    %v2281 = vld [vmem:[#allocation5 + $0x3f48] sm:$0xff]
    %v2282 = vld [vmem:[#allocation5 + $0x3f50] sm:$0xff]
    %v2283 = vld [vmem:[#allocation5 + $0x3f58] sm:$0xff]
    %v2284 = vld [vmem:[#allocation5 + $0x3f60] sm:$0xff]
    %v2285 = vld [vmem:[#allocation5 + $0x3f68] sm:$0xff]
    %v2286 = vld [vmem:[#allocation5 + $0x3f70] sm:$0xff]
    %v2287 = vld [vmem:[#allocation5 + $0x3f78] sm:$0xff]
    %v2288 = vld [vmem:[#allocation5 + $0x3f80] sm:$0xff]
    %v2289 = vld [vmem:[#allocation5 + $0x3f88] sm:$0xff]
    %v2290 = vld [vmem:[#allocation5 + $0x3f90] sm:$0xff]
    %v2291 = vld [vmem:[#allocation5 + $0x3f98] sm:$0xff]
    %v2292 = vld [vmem:[#allocation5 + $0x3fa0] sm:$0xff]
    %v2293 = vld [vmem:[#allocation5 + $0x3fa8] sm:$0xff]
    %v2294 = vld [vmem:[#allocation5 + $0x3fb0] sm:$0xff]
    %v2295 = vld [vmem:[#allocation5 + $0x3fb8] sm:$0xff]
    %v2296 = vld [vmem:[#allocation5 + $0x3fc0] sm:$0xff]
    %v2297 = vld [vmem:[#allocation5 + $0x3fc8] sm:$0xff]
    %v2298 = vld [vmem:[#allocation5 + $0x3fd0] sm:$0xff]
    %v2299 = vld [vmem:[#allocation5 + $0x3fd8] sm:$0xff]
    %v2300 = vld [vmem:[#allocation5 + $0x3fe0] sm:$0xff]
    %v2301 = vld [vmem:[#allocation5 + $0x3fe8] sm:$0xff]
    %v2302 = vld [vmem:[#allocation5 + $0x3ff0] sm:$0xff]
    %v2303 = vld [vmem:[#allocation5 + $0x3ff8] sm:$0xff]
    %v2304 = vld [vmem:[#allocation5 + $0x4000] sm:$0xff]
    %v2305 = vld [vmem:[#allocation5 + $0x4008] sm:$0xff]
    %v2306 = vld [vmem:[#allocation5 + $0x4010] sm:$0xff]
    %v2307 = vld [vmem:[#allocation5 + $0x4018] sm:$0xff]
    %v2308 = vld [vmem:[#allocation5 + $0x4020] sm:$0xff]
    %v2309 = vld [vmem:[#allocation5 + $0x4028] sm:$0xff]
    %v2310 = vld [vmem:[#allocation5 + $0x4030] sm:$0xff]
    %v2311 = vld [vmem:[#allocation5 + $0x4038] sm:$0xff]
    %v2312 = vld [vmem:[#allocation5 + $0x4040] sm:$0xff]
    %v2313 = vld [vmem:[#allocation5 + $0x4048] sm:$0xff]
    %v2314 = vld [vmem:[#allocation5 + $0x4050] sm:$0xff]
    %v2315 = vld [vmem:[#allocation5 + $0x4058] sm:$0xff]
    %v2316 = vld [vmem:[#allocation5 + $0x4060] sm:$0xff]
    %v2317 = vld [vmem:[#allocation5 + $0x4068] sm:$0xff]
    %v2318 = vld [vmem:[#allocation5 + $0x4070] sm:$0xff]
    %v2319 = vld [vmem:[#allocation5 + $0x4078] sm:$0xff]
    %v2320 = vld [vmem:[#allocation5 + $0x4080] sm:$0xff]
    %v2321 = vld [vmem:[#allocation5 + $0x4088] sm:$0xff]
    %v2322 = vld [vmem:[#allocation5 + $0x4090] sm:$0xff]
    %v2323 = vld [vmem:[#allocation5 + $0x4098] sm:$0xff]
    %v2324 = vld [vmem:[#allocation5 + $0x40a0] sm:$0xff]
    %v2325 = vld [vmem:[#allocation5 + $0x40a8] sm:$0xff]
    %v2326 = vld [vmem:[#allocation5 + $0x40b0] sm:$0xff]
    %v2327 = vld [vmem:[#allocation5 + $0x40b8] sm:$0xff]
    %v2328 = vld [vmem:[#allocation5 + $0x40c0] sm:$0xff]
    %v2329 = vld [vmem:[#allocation5 + $0x40c8] sm:$0xff]
    %v2330 = vld [vmem:[#allocation5 + $0x40d0] sm:$0xff]
    %v2331 = vld [vmem:[#allocation5 + $0x40d8] sm:$0xff]
    %v2332 = vld [vmem:[#allocation5 + $0x40e0] sm:$0xff]
    %v2333 = vld [vmem:[#allocation5 + $0x40e8] sm:$0xff]
    %v2334 = vld [vmem:[#allocation5 + $0x40f0] sm:$0xff]
    %v2335 = vld [vmem:[#allocation5 + $0x40f8] sm:$0xff]
    %v2336 = vld [vmem:[#allocation5 + $0x4100] sm:$0xff]
    %v2337 = vld [vmem:[#allocation5 + $0x4108] sm:$0xff]
    %v2338 = vld [vmem:[#allocation5 + $0x4110] sm:$0xff]
    %v2339 = vld [vmem:[#allocation5 + $0x4118] sm:$0xff]
    %v2340 = vld [vmem:[#allocation5 + $0x4120] sm:$0xff]
    %v2341 = vld [vmem:[#allocation5 + $0x4128] sm:$0xff]
    %v2342 = vld [vmem:[#allocation5 + $0x4130] sm:$0xff]
    %v2343 = vld [vmem:[#allocation5 + $0x4138] sm:$0xff]
    %v2344 = vld [vmem:[#allocation5 + $0x4140] sm:$0xff]
    %v2345 = vld [vmem:[#allocation5 + $0x4148] sm:$0xff]
    %v2346 = vld [vmem:[#allocation5 + $0x4150] sm:$0xff]
    %v2347 = vld [vmem:[#allocation5 + $0x4158] sm:$0xff]
    %v2348 = vld [vmem:[#allocation5 + $0x4160] sm:$0xff]
    %v2349 = vld [vmem:[#allocation5 + $0x4168] sm:$0xff]
    %v2350 = vld [vmem:[#allocation5 + $0x4170] sm:$0xff]
    %v2351 = vld [vmem:[#allocation5 + $0x4178] sm:$0xff]
    %v2352 = vld [vmem:[#allocation5 + $0x4180] sm:$0xff]
    %v2353 = vld [vmem:[#allocation5 + $0x4188] sm:$0xff]
    %v2354 = vld [vmem:[#allocation5 + $0x4190] sm:$0xff]
    %v2355 = vld [vmem:[#allocation5 + $0x4198] sm:$0xff]
    %v2356 = vld [vmem:[#allocation5 + $0x41a0] sm:$0xff]
    %v2357 = vld [vmem:[#allocation5 + $0x41a8] sm:$0xff]
    %v2358 = vld [vmem:[#allocation5 + $0x41b0] sm:$0xff]
    %v2359 = vld [vmem:[#allocation5 + $0x41b8] sm:$0xff]
    %v2360 = vld [vmem:[#allocation5 + $0x41c0] sm:$0xff]
    %v2361 = vld [vmem:[#allocation5 + $0x41c8] sm:$0xff]
    %v2362 = vld [vmem:[#allocation5 + $0x41d0] sm:$0xff]
    %v2363 = vld [vmem:[#allocation5 + $0x41d8] sm:$0xff]
    %v2364 = vld [vmem:[#allocation5 + $0x41e0] sm:$0xff]
    %v2365 = vld [vmem:[#allocation5 + $0x41e8] sm:$0xff]
    %v2366 = vld [vmem:[#allocation5 + $0x41f0] sm:$0xff]
    %v2367 = vld [vmem:[#allocation5 + $0x41f8] sm:$0xff]
    %v2368 = vld [vmem:[#allocation5 + $0x4200] sm:$0xff]
    %v2369 = vld [vmem:[#allocation5 + $0x4208] sm:$0xff]
    %v2370 = vld [vmem:[#allocation5 + $0x4210] sm:$0xff]
    %v2371 = vld [vmem:[#allocation5 + $0x4218] sm:$0xff]
    %v2372 = vld [vmem:[#allocation5 + $0x4220] sm:$0xff]
    %v2373 = vld [vmem:[#allocation5 + $0x4228] sm:$0xff]
    %v2374 = vld [vmem:[#allocation5 + $0x4230] sm:$0xff]
    %v2375 = vld [vmem:[#allocation5 + $0x4238] sm:$0xff]
    %v2376 = vld [vmem:[#allocation5 + $0x4240] sm:$0xff]
    %v2377 = vld [vmem:[#allocation5 + $0x4248] sm:$0xff]
    %v2378 = vld [vmem:[#allocation5 + $0x4250] sm:$0xff]
    %v2379 = vld [vmem:[#allocation5 + $0x4258] sm:$0xff]
    %v2380 = vld [vmem:[#allocation5 + $0x4260] sm:$0xff]
    %v2381 = vld [vmem:[#allocation5 + $0x4268] sm:$0xff]
    %v2382 = vld [vmem:[#allocation5 + $0x4270] sm:$0xff]
    %v2383 = vld [vmem:[#allocation5 + $0x4278] sm:$0xff]
    %v2384 = vld [vmem:[#allocation5 + $0x4280] sm:$0xff]
    %v2385 = vld [vmem:[#allocation5 + $0x4288] sm:$0xff]
    %v2386 = vld [vmem:[#allocation5 + $0x4290] sm:$0xff]
    %v2387 = vld [vmem:[#allocation5 + $0x4298] sm:$0xff]
    %v2388 = vld [vmem:[#allocation5 + $0x42a0] sm:$0xff]
    %v2389 = vld [vmem:[#allocation5 + $0x42a8] sm:$0xff]
    %v2390 = vld [vmem:[#allocation5 + $0x42b0] sm:$0xff]
    %v2391 = vld [vmem:[#allocation5 + $0x42b8] sm:$0xff]
    %v2392 = vld [vmem:[#allocation5 + $0x42c0] sm:$0xff]
    %v2393 = vld [vmem:[#allocation5 + $0x42c8] sm:$0xff]
    %v2394 = vld [vmem:[#allocation5 + $0x42d0] sm:$0xff]
    %v2395 = vld [vmem:[#allocation5 + $0x42d8] sm:$0xff]
    %v2396 = vld [vmem:[#allocation5 + $0x42e0] sm:$0xff]
    %v2397 = vld [vmem:[#allocation5 + $0x42e8] sm:$0xff]
    %v2398 = vld [vmem:[#allocation5 + $0x42f0] sm:$0xff]
    %v2399 = vld [vmem:[#allocation5 + $0x42f8] sm:$0xff]
    %v2400 = vld [vmem:[#allocation5 + $0x4300] sm:$0xff]
    %v2401 = vld [vmem:[#allocation5 + $0x4308] sm:$0xff]
    %v2402 = vld [vmem:[#allocation5 + $0x4310] sm:$0xff]
    %v2403 = vld [vmem:[#allocation5 + $0x4318] sm:$0xff]
    %v2404 = vld [vmem:[#allocation5 + $0x4320] sm:$0xff]
    %v2405 = vld [vmem:[#allocation5 + $0x4328] sm:$0xff]
    %v2406 = vld [vmem:[#allocation5 + $0x4330] sm:$0xff]
    %v2407 = vld [vmem:[#allocation5 + $0x4338] sm:$0xff]
    %v2408 = vld [vmem:[#allocation5 + $0x4340] sm:$0xff]
    %v2409 = vld [vmem:[#allocation5 + $0x4348] sm:$0xff]
    %v2410 = vld [vmem:[#allocation5 + $0x4350] sm:$0xff]
    %v2411 = vld [vmem:[#allocation5 + $0x4358] sm:$0xff]
    %v2412 = vld [vmem:[#allocation5 + $0x4360] sm:$0xff]
    %v2413 = vld [vmem:[#allocation5 + $0x4368] sm:$0xff]
    %v2414 = vld [vmem:[#allocation5 + $0x4370] sm:$0xff]
    %v2415 = vld [vmem:[#allocation5 + $0x4378] sm:$0xff]
    %v2416 = vld [vmem:[#allocation5 + $0x4380] sm:$0xff]
    %v2417 = vld [vmem:[#allocation5 + $0x4388] sm:$0xff]
    %v2418 = vld [vmem:[#allocation5 + $0x4390] sm:$0xff]
    %v2419 = vld [vmem:[#allocation5 + $0x4398] sm:$0xff]
    %v2420 = vld [vmem:[#allocation5 + $0x43a0] sm:$0xff]
    %v2421 = vld [vmem:[#allocation5 + $0x43a8] sm:$0xff]
    %v2422 = vld [vmem:[#allocation5 + $0x43b0] sm:$0xff]
    %v2423 = vld [vmem:[#allocation5 + $0x43b8] sm:$0xff]
    %v2424 = vld [vmem:[#allocation5 + $0x43c0] sm:$0xff]
    %v2425 = vld [vmem:[#allocation5 + $0x43c8] sm:$0xff]
    %v2426 = vld [vmem:[#allocation5 + $0x43d0] sm:$0xff]
    %v2427 = vld [vmem:[#allocation5 + $0x43d8] sm:$0xff]
    %v2428 = vld [vmem:[#allocation5 + $0x43e0] sm:$0xff]
    %v2429 = vld [vmem:[#allocation5 + $0x43e8] sm:$0xff]
    %v2430 = vld [vmem:[#allocation5 + $0x43f0] sm:$0xff]
    %v2431 = vld [vmem:[#allocation5 + $0x43f8] sm:$0xff]
    %v2432 = vld [vmem:[#allocation5 + $0x4400] sm:$0xff]
    %v2433 = vld [vmem:[#allocation5 + $0x4408] sm:$0xff]
    %v2434 = vld [vmem:[#allocation5 + $0x4410] sm:$0xff]
    %v2435 = vld [vmem:[#allocation5 + $0x4418] sm:$0xff]
    %v2436 = vld [vmem:[#allocation5 + $0x4420] sm:$0xff]
    %v2437 = vld [vmem:[#allocation5 + $0x4428] sm:$0xff]
    %v2438 = vld [vmem:[#allocation5 + $0x4430] sm:$0xff]
    %v2439 = vld [vmem:[#allocation5 + $0x4438] sm:$0xff]
    %v2440 = vld [vmem:[#allocation5 + $0x4440] sm:$0xff]
    %v2441 = vld [vmem:[#allocation5 + $0x4448] sm:$0xff]
    %v2442 = vld [vmem:[#allocation5 + $0x4450] sm:$0xff]
    %v2443 = vld [vmem:[#allocation5 + $0x4458] sm:$0xff]
    %v2444 = vld [vmem:[#allocation5 + $0x4460] sm:$0xff]
    %v2445 = vld [vmem:[#allocation5 + $0x4468] sm:$0xff]
    %v2446 = vld [vmem:[#allocation5 + $0x4470] sm:$0xff]
    %v2447 = vld [vmem:[#allocation5 + $0x4478] sm:$0xff]
    %v2448 = vld [vmem:[#allocation5 + $0x4480] sm:$0xff]
    %v2449 = vld [vmem:[#allocation5 + $0x4488] sm:$0xff]
    %v2450 = vld [vmem:[#allocation5 + $0x4490] sm:$0xff]
    %v2451 = vld [vmem:[#allocation5 + $0x4498] sm:$0xff]
    %v2452 = vld [vmem:[#allocation5 + $0x44a0] sm:$0xff]
    %v2453 = vld [vmem:[#allocation5 + $0x44a8] sm:$0xff]
    %v2454 = vld [vmem:[#allocation5 + $0x44b0] sm:$0xff]
    %v2455 = vld [vmem:[#allocation5 + $0x44b8] sm:$0xff]
    %v2456 = vld [vmem:[#allocation5 + $0x44c0] sm:$0xff]
    %v2457 = vld [vmem:[#allocation5 + $0x44c8] sm:$0xff]
    %v2458 = vld [vmem:[#allocation5 + $0x44d0] sm:$0xff]
    %v2459 = vld [vmem:[#allocation5 + $0x44d8] sm:$0xff]
    %v2460 = vld [vmem:[#allocation5 + $0x44e0] sm:$0xff]
    %v2461 = vld [vmem:[#allocation5 + $0x44e8] sm:$0xff]
    %v2462 = vld [vmem:[#allocation5 + $0x44f0] sm:$0xff]
    %v2463 = vld [vmem:[#allocation5 + $0x44f8] sm:$0xff]
    %v2464 = vld [vmem:[#allocation5 + $0x4500] sm:$0xff]
    %v2465 = vld [vmem:[#allocation5 + $0x4508] sm:$0xff]
    %v2466 = vld [vmem:[#allocation5 + $0x4510] sm:$0xff]
    %v2467 = vld [vmem:[#allocation5 + $0x4518] sm:$0xff]
    %v2468 = vld [vmem:[#allocation5 + $0x4520] sm:$0xff]
    %v2469 = vld [vmem:[#allocation5 + $0x4528] sm:$0xff]
    %v2470 = vld [vmem:[#allocation5 + $0x4530] sm:$0xff]
    %v2471 = vld [vmem:[#allocation5 + $0x4538] sm:$0xff]
    %v2472 = vld [vmem:[#allocation5 + $0x4540] sm:$0xff]
    %v2473 = vld [vmem:[#allocation5 + $0x4548] sm:$0xff]
    %v2474 = vld [vmem:[#allocation5 + $0x4550] sm:$0xff]
    %v2475 = vld [vmem:[#allocation5 + $0x4558] sm:$0xff]
    %v2476 = vld [vmem:[#allocation5 + $0x4560] sm:$0xff]
    %v2477 = vld [vmem:[#allocation5 + $0x4568] sm:$0xff]
    %v2478 = vld [vmem:[#allocation5 + $0x4570] sm:$0xff]
    %v2479 = vld [vmem:[#allocation5 + $0x4578] sm:$0xff]
    %v2480 = vld [vmem:[#allocation5 + $0x4580] sm:$0xff]
    %v2481 = vld [vmem:[#allocation5 + $0x4588] sm:$0xff]
    %v2482 = vld [vmem:[#allocation5 + $0x4590] sm:$0xff]
    %v2483 = vld [vmem:[#allocation5 + $0x4598] sm:$0xff]
    %v2484 = vld [vmem:[#allocation5 + $0x45a0] sm:$0xff]
    %v2485 = vld [vmem:[#allocation5 + $0x45a8] sm:$0xff]
    %v2486 = vld [vmem:[#allocation5 + $0x45b0] sm:$0xff]
    %v2487 = vld [vmem:[#allocation5 + $0x45b8] sm:$0xff]
    %v2488 = vld [vmem:[#allocation5 + $0x45c0] sm:$0xff]
    %v2489 = vld [vmem:[#allocation5 + $0x45c8] sm:$0xff]
    %v2490 = vld [vmem:[#allocation5 + $0x45d0] sm:$0xff]
    %v2491 = vld [vmem:[#allocation5 + $0x45d8] sm:$0xff]
    %v2492 = vld [vmem:[#allocation5 + $0x45e0] sm:$0xff]
    %v2493 = vld [vmem:[#allocation5 + $0x45e8] sm:$0xff]
    %v2494 = vld [vmem:[#allocation5 + $0x45f0] sm:$0xff]
    %v2495 = vld [vmem:[#allocation5 + $0x45f8] sm:$0xff]
    %v2496 = vld [vmem:[#allocation5 + $0x4600] sm:$0xff]
    %v2497 = vld [vmem:[#allocation5 + $0x4608] sm:$0xff]
    %v2498 = vld [vmem:[#allocation5 + $0x4610] sm:$0xff]
    %v2499 = vld [vmem:[#allocation5 + $0x4618] sm:$0xff]
    %v2500 = vld [vmem:[#allocation5 + $0x4620] sm:$0xff]
    %v2501 = vld [vmem:[#allocation5 + $0x4628] sm:$0xff]
    %v2502 = vld [vmem:[#allocation5 + $0x4630] sm:$0xff]
    %v2503 = vld [vmem:[#allocation5 + $0x4638] sm:$0xff]
    %v2504 = vld [vmem:[#allocation5 + $0x4640] sm:$0xff]
    %v2505 = vld [vmem:[#allocation5 + $0x4648] sm:$0xff]
    %v2506 = vld [vmem:[#allocation5 + $0x4650] sm:$0xff]
    %v2507 = vld [vmem:[#allocation5 + $0x4658] sm:$0xff]
    %v2508 = vld [vmem:[#allocation5 + $0x4660] sm:$0xff]
    %v2509 = vld [vmem:[#allocation5 + $0x4668] sm:$0xff]
    %v2510 = vld [vmem:[#allocation5 + $0x4670] sm:$0xff]
    %v2511 = vld [vmem:[#allocation5 + $0x4678] sm:$0xff]
    %v2512 = vld [vmem:[#allocation5 + $0x4680] sm:$0xff]
    %v2513 = vld [vmem:[#allocation5 + $0x4688] sm:$0xff]
    %v2514 = vld [vmem:[#allocation5 + $0x4690] sm:$0xff]
    %v2515 = vld [vmem:[#allocation5 + $0x4698] sm:$0xff]
    %v2516 = vld [vmem:[#allocation5 + $0x46a0] sm:$0xff]
    %v2517 = vld [vmem:[#allocation5 + $0x46a8] sm:$0xff]
    %v2518 = vld [vmem:[#allocation5 + $0x46b0] sm:$0xff]
    %v2519 = vld [vmem:[#allocation5 + $0x46b8] sm:$0xff]
    %v2520 = vld [vmem:[#allocation5 + $0x46c0] sm:$0xff]
    %v2521 = vld [vmem:[#allocation5 + $0x46c8] sm:$0xff]
    %v2522 = vld [vmem:[#allocation5 + $0x46d0] sm:$0xff]
    %v2523 = vld [vmem:[#allocation5 + $0x46d8] sm:$0xff]
    %v2524 = vld [vmem:[#allocation5 + $0x46e0] sm:$0xff]
    %v2525 = vld [vmem:[#allocation5 + $0x46e8] sm:$0xff]
    %v2526 = vld [vmem:[#allocation5 + $0x46f0] sm:$0xff]
    %v2527 = vld [vmem:[#allocation5 + $0x46f8] sm:$0xff]
    %v2528 = vld [vmem:[#allocation5 + $0x4700] sm:$0xff]
    %v2529 = vld [vmem:[#allocation5 + $0x4708] sm:$0xff]
    %v2530 = vld [vmem:[#allocation5 + $0x4710] sm:$0xff]
    %v2531 = vld [vmem:[#allocation5 + $0x4718] sm:$0xff]
    %v2532 = vld [vmem:[#allocation5 + $0x4720] sm:$0xff]
    %v2533 = vld [vmem:[#allocation5 + $0x4728] sm:$0xff]
    %v2534 = vld [vmem:[#allocation5 + $0x4730] sm:$0xff]
    %v2535 = vld [vmem:[#allocation5 + $0x4738] sm:$0xff]
    %v2536 = vld [vmem:[#allocation5 + $0x4740] sm:$0xff]
    %v2537 = vld [vmem:[#allocation5 + $0x4748] sm:$0xff]
    %v2538 = vld [vmem:[#allocation5 + $0x4750] sm:$0xff]
    %v2539 = vld [vmem:[#allocation5 + $0x4758] sm:$0xff]
    %v2540 = vld [vmem:[#allocation5 + $0x4760] sm:$0xff]
    %v2541 = vld [vmem:[#allocation5 + $0x4768] sm:$0xff]
    %v2542 = vld [vmem:[#allocation5 + $0x4770] sm:$0xff]
    %v2543 = vld [vmem:[#allocation5 + $0x4778] sm:$0xff]
    %v2544 = vld [vmem:[#allocation5 + $0x4780] sm:$0xff]
    %v2545 = vld [vmem:[#allocation5 + $0x4788] sm:$0xff]
    %v2546 = vld [vmem:[#allocation5 + $0x4790] sm:$0xff]
    %v2547 = vld [vmem:[#allocation5 + $0x4798] sm:$0xff]
    %v2548 = vld [vmem:[#allocation5 + $0x47a0] sm:$0xff]
    %v2549 = vld [vmem:[#allocation5 + $0x47a8] sm:$0xff]
    %v2550 = vld [vmem:[#allocation5 + $0x47b0] sm:$0xff]
    %v2551 = vld [vmem:[#allocation5 + $0x47b8] sm:$0xff]
    %v2552 = vld [vmem:[#allocation5 + $0x47c0] sm:$0xff]
    %v2553 = vld [vmem:[#allocation5 + $0x47c8] sm:$0xff]
    %v2554 = vld [vmem:[#allocation5 + $0x47d0] sm:$0xff]
    %v2555 = vld [vmem:[#allocation5 + $0x47d8] sm:$0xff]
    %v2556 = vld [vmem:[#allocation5 + $0x47e0] sm:$0xff]
    %v2557 = vld [vmem:[#allocation5 + $0x47e8] sm:$0xff]
    %v2558 = vld [vmem:[#allocation5 + $0x47f0] sm:$0xff]
    %v2559 = vld [vmem:[#allocation5 + $0x47f8] sm:$0xff]
    %v2560 = vld [vmem:[#allocation5 + $0x4800] sm:$0xff]
    %v2561 = vld [vmem:[#allocation5 + $0x4808] sm:$0xff]
    %v2562 = vld [vmem:[#allocation5 + $0x4810] sm:$0xff]
    %v2563 = vld [vmem:[#allocation5 + $0x4818] sm:$0xff]
    %v2564 = vld [vmem:[#allocation5 + $0x4820] sm:$0xff]
    %v2565 = vld [vmem:[#allocation5 + $0x4828] sm:$0xff]
    %v2566 = vld [vmem:[#allocation5 + $0x4830] sm:$0xff]
    %v2567 = vld [vmem:[#allocation5 + $0x4838] sm:$0xff]
    %v2568 = vld [vmem:[#allocation5 + $0x4840] sm:$0xff]
    %v2569 = vld [vmem:[#allocation5 + $0x4848] sm:$0xff]
    %v2570 = vld [vmem:[#allocation5 + $0x4850] sm:$0xff]
    %v2571 = vld [vmem:[#allocation5 + $0x4858] sm:$0xff]
    %v2572 = vld [vmem:[#allocation5 + $0x4860] sm:$0xff]
    %v2573 = vld [vmem:[#allocation5 + $0x4868] sm:$0xff]
    %v2574 = vld [vmem:[#allocation5 + $0x4870] sm:$0xff]
    %v2575 = vld [vmem:[#allocation5 + $0x4878] sm:$0xff]
    %v2576 = vld [vmem:[#allocation5 + $0x4880] sm:$0xff]
    %v2577 = vld [vmem:[#allocation5 + $0x4888] sm:$0xff]
    %v2578 = vld [vmem:[#allocation5 + $0x4890] sm:$0xff]
    %v2579 = vld [vmem:[#allocation5 + $0x4898] sm:$0xff]
    %v2580 = vld [vmem:[#allocation5 + $0x48a0] sm:$0xff]
    %v2581 = vld [vmem:[#allocation5 + $0x48a8] sm:$0xff]
    %v2582 = vld [vmem:[#allocation5 + $0x48b0] sm:$0xff]
    %v2583 = vld [vmem:[#allocation5 + $0x48b8] sm:$0xff]
    %v2584 = vld [vmem:[#allocation5 + $0x48c0] sm:$0xff]
    %v2585 = vld [vmem:[#allocation5 + $0x48c8] sm:$0xff]
    %v2586 = vld [vmem:[#allocation5 + $0x48d0] sm:$0xff]
    %v2587 = vld [vmem:[#allocation5 + $0x48d8] sm:$0xff]
    %v2588 = vld [vmem:[#allocation5 + $0x48e0] sm:$0xff]
    %v2589 = vld [vmem:[#allocation5 + $0x48e8] sm:$0xff]
    %v2590 = vld [vmem:[#allocation5 + $0x48f0] sm:$0xff]
    %v2591 = vld [vmem:[#allocation5 + $0x48f8] sm:$0xff]
    %v2592 = vld [vmem:[#allocation5 + $0x4900] sm:$0xff]
    %v2593 = vld [vmem:[#allocation5 + $0x4908] sm:$0xff]
    %v2594 = vld [vmem:[#allocation5 + $0x4910] sm:$0xff]
    %v2595 = vld [vmem:[#allocation5 + $0x4918] sm:$0xff]
    %v2596 = vld [vmem:[#allocation5 + $0x4920] sm:$0xff]
    %v2597 = vld [vmem:[#allocation5 + $0x4928] sm:$0xff]
    %v2598 = vld [vmem:[#allocation5 + $0x4930] sm:$0xff]
    %v2599 = vld [vmem:[#allocation5 + $0x4938] sm:$0xff]
    %v2600 = vld [vmem:[#allocation5 + $0x4940] sm:$0xff]
    %v2601 = vld [vmem:[#allocation5 + $0x4948] sm:$0xff]
    %v2602 = vld [vmem:[#allocation5 + $0x4950] sm:$0xff]
    %v2603 = vld [vmem:[#allocation5 + $0x4958] sm:$0xff]
    %v2604 = vld [vmem:[#allocation5 + $0x4960] sm:$0xff]
    %v2605 = vld [vmem:[#allocation5 + $0x4968] sm:$0xff]
    %v2606 = vld [vmem:[#allocation5 + $0x4970] sm:$0xff]
    %v2607 = vld [vmem:[#allocation5 + $0x4978] sm:$0xff]
    %v2608 = vld [vmem:[#allocation5 + $0x4980] sm:$0xff]
    %v2609 = vld [vmem:[#allocation5 + $0x4988] sm:$0xff]
    %v2610 = vld [vmem:[#allocation5 + $0x4990] sm:$0xff]
    %v2611 = vld [vmem:[#allocation5 + $0x4998] sm:$0xff]
    %v2612 = vld [vmem:[#allocation5 + $0x49a0] sm:$0xff]
    %v2613 = vld [vmem:[#allocation5 + $0x49a8] sm:$0xff]
    %v2614 = vld [vmem:[#allocation5 + $0x49b0] sm:$0xff]
    %v2615 = vld [vmem:[#allocation5 + $0x49b8] sm:$0xff]
    %v2616 = vld [vmem:[#allocation5 + $0x49c0] sm:$0xff]
    %v2617 = vld [vmem:[#allocation5 + $0x49c8] sm:$0xff]
    %v2618 = vld [vmem:[#allocation5 + $0x49d0] sm:$0xff]
    %v2619 = vld [vmem:[#allocation5 + $0x49d8] sm:$0xff]
    %v2620 = vld [vmem:[#allocation5 + $0x49e0] sm:$0xff]
    %v2621 = vld [vmem:[#allocation5 + $0x49e8] sm:$0xff]
    %v2622 = vld [vmem:[#allocation5 + $0x49f0] sm:$0xff]
    %v2623 = vld [vmem:[#allocation5 + $0x49f8] sm:$0xff]
    %v2624 = vld [vmem:[#allocation5 + $0x4a00] sm:$0xff]
    %v2625 = vld [vmem:[#allocation5 + $0x4a08] sm:$0xff]
    %v2626 = vld [vmem:[#allocation5 + $0x4a10] sm:$0xff]
    %v2627 = vld [vmem:[#allocation5 + $0x4a18] sm:$0xff]
    %v2628 = vld [vmem:[#allocation5 + $0x4a20] sm:$0xff]
    %v2629 = vld [vmem:[#allocation5 + $0x4a28] sm:$0xff]
    %v2630 = vld [vmem:[#allocation5 + $0x4a30] sm:$0xff]
    %v2631 = vld [vmem:[#allocation5 + $0x4a38] sm:$0xff]
    %v2632 = vld [vmem:[#allocation5 + $0x4a40] sm:$0xff]
    %v2633 = vld [vmem:[#allocation5 + $0x4a48] sm:$0xff]
    %v2634 = vld [vmem:[#allocation5 + $0x4a50] sm:$0xff]
    %v2635 = vld [vmem:[#allocation5 + $0x4a58] sm:$0xff]
    %v2636 = vld [vmem:[#allocation5 + $0x4a60] sm:$0xff]
    %v2637 = vld [vmem:[#allocation5 + $0x4a68] sm:$0xff]
    %v2638 = vld [vmem:[#allocation5 + $0x4a70] sm:$0xff]
    %v2639 = vld [vmem:[#allocation5 + $0x4a78] sm:$0xff]
    %v2640 = vld [vmem:[#allocation5 + $0x4a80] sm:$0xff]
    %v2641 = vld [vmem:[#allocation5 + $0x4a88] sm:$0xff]
    %v2642 = vld [vmem:[#allocation5 + $0x4a90] sm:$0xff]
    %v2643 = vld [vmem:[#allocation5 + $0x4a98] sm:$0xff]
    %v2644 = vld [vmem:[#allocation5 + $0x4aa0] sm:$0xff]
    %v2645 = vld [vmem:[#allocation5 + $0x4aa8] sm:$0xff]
    %v2646 = vld [vmem:[#allocation5 + $0x4ab0] sm:$0xff]
    %v2647 = vld [vmem:[#allocation5 + $0x4ab8] sm:$0xff]
    %v2648 = vld [vmem:[#allocation5 + $0x4ac0] sm:$0xff]
    %v2649 = vld [vmem:[#allocation5 + $0x4ac8] sm:$0xff]
    %v2650 = vld [vmem:[#allocation5 + $0x4ad0] sm:$0xff]
    %v2651 = vld [vmem:[#allocation5 + $0x4ad8] sm:$0xff]
    %v2652 = vld [vmem:[#allocation5 + $0x4ae0] sm:$0xff]
    %v2653 = vld [vmem:[#allocation5 + $0x4ae8] sm:$0xff]
    %v2654 = vld [vmem:[#allocation5 + $0x4af0] sm:$0xff]
    %v2655 = vld [vmem:[#allocation5 + $0x4af8] sm:$0xff]
    %v2656 = vld [vmem:[#allocation5 + $0x4b00] sm:$0xff]
    %v2657 = vld [vmem:[#allocation5 + $0x4b08] sm:$0xff]
    %v2658 = vld [vmem:[#allocation5 + $0x4b10] sm:$0xff]
    %v2659 = vld [vmem:[#allocation5 + $0x4b18] sm:$0xff]
    %v2660 = vld [vmem:[#allocation5 + $0x4b20] sm:$0xff]
    %v2661 = vld [vmem:[#allocation5 + $0x4b28] sm:$0xff]
    %v2662 = vld [vmem:[#allocation5 + $0x4b30] sm:$0xff]
    %v2663 = vld [vmem:[#allocation5 + $0x4b38] sm:$0xff]
    %v2664 = vld [vmem:[#allocation5 + $0x4b40] sm:$0xff]
    %v2665 = vld [vmem:[#allocation5 + $0x4b48] sm:$0xff]
    %v2666 = vld [vmem:[#allocation5 + $0x4b50] sm:$0xff]
    %v2667 = vld [vmem:[#allocation5 + $0x4b58] sm:$0xff]
    %v2668 = vld [vmem:[#allocation5 + $0x4b60] sm:$0xff]
    %v2669 = vld [vmem:[#allocation5 + $0x4b68] sm:$0xff]
    %v2670 = vld [vmem:[#allocation5 + $0x4b70] sm:$0xff]
    %v2671 = vld [vmem:[#allocation5 + $0x4b78] sm:$0xff]
    %v2672 = vld [vmem:[#allocation5 + $0x4b80] sm:$0xff]
    %v2673 = vld [vmem:[#allocation5 + $0x4b88] sm:$0xff]
    %v2674 = vld [vmem:[#allocation5 + $0x4b90] sm:$0xff]
    %v2675 = vld [vmem:[#allocation5 + $0x4b98] sm:$0xff]
    %v2676 = vld [vmem:[#allocation5 + $0x4ba0] sm:$0xff]
    %v2677 = vld [vmem:[#allocation5 + $0x4ba8] sm:$0xff]
    %v2678 = vld [vmem:[#allocation5 + $0x4bb0] sm:$0xff]
    %v2679 = vld [vmem:[#allocation5 + $0x4bb8] sm:$0xff]
    %v2680 = vld [vmem:[#allocation5 + $0x4bc0] sm:$0xff]
    %v2681 = vld [vmem:[#allocation5 + $0x4bc8] sm:$0xff]
    %v2682 = vld [vmem:[#allocation5 + $0x4bd0] sm:$0xff]
    %v2683 = vld [vmem:[#allocation5 + $0x4bd8] sm:$0xff]
    %v2684 = vld [vmem:[#allocation5 + $0x4be0] sm:$0xff]
    %v2685 = vld [vmem:[#allocation5 + $0x4be8] sm:$0xff]
    %v2686 = vld [vmem:[#allocation5 + $0x4bf0] sm:$0xff]
    %v2687 = vld [vmem:[#allocation5 + $0x4bf8] sm:$0xff]
    %v2688 = vld [vmem:[#allocation5 + $0x4c00] sm:$0xff]
    %v2689 = vld [vmem:[#allocation5 + $0x4c08] sm:$0xff]
    %v2690 = vld [vmem:[#allocation5 + $0x4c10] sm:$0xff]
    %v2691 = vld [vmem:[#allocation5 + $0x4c18] sm:$0xff]
    %v2692 = vld [vmem:[#allocation5 + $0x4c20] sm:$0xff]
    %v2693 = vld [vmem:[#allocation5 + $0x4c28] sm:$0xff]
    %v2694 = vld [vmem:[#allocation5 + $0x4c30] sm:$0xff]
    %v2695 = vld [vmem:[#allocation5 + $0x4c38] sm:$0xff]
    %v2696 = vld [vmem:[#allocation5 + $0x4c40] sm:$0xff]
    %v2697 = vld [vmem:[#allocation5 + $0x4c48] sm:$0xff]
    %v2698 = vld [vmem:[#allocation5 + $0x4c50] sm:$0xff]
    %v2699 = vld [vmem:[#allocation5 + $0x4c58] sm:$0xff]
    %v2700 = vld [vmem:[#allocation5 + $0x4c60] sm:$0xff]
    %v2701 = vld [vmem:[#allocation5 + $0x4c68] sm:$0xff]
    %v2702 = vld [vmem:[#allocation5 + $0x4c70] sm:$0xff]
    %v2703 = vld [vmem:[#allocation5 + $0x4c78] sm:$0xff]
    %v2704 = vld [vmem:[#allocation5 + $0x4c80] sm:$0xff]
    %v2705 = vld [vmem:[#allocation5 + $0x4c88] sm:$0xff]
    %v2706 = vld [vmem:[#allocation5 + $0x4c90] sm:$0xff]
    %v2707 = vld [vmem:[#allocation5 + $0x4c98] sm:$0xff]
    %v2708 = vld [vmem:[#allocation5 + $0x4ca0] sm:$0xff]
    %v2709 = vld [vmem:[#allocation5 + $0x4ca8] sm:$0xff]
    %v2710 = vld [vmem:[#allocation5 + $0x4cb0] sm:$0xff]
    %v2711 = vld [vmem:[#allocation5 + $0x4cb8] sm:$0xff]
    %v2712 = vld [vmem:[#allocation5 + $0x4cc0] sm:$0xff]
    %v2713 = vld [vmem:[#allocation5 + $0x4cc8] sm:$0xff]
    %v2714 = vld [vmem:[#allocation5 + $0x4cd0] sm:$0xff]
    %v2715 = vld [vmem:[#allocation5 + $0x4cd8] sm:$0xff]
    %v2716 = vld [vmem:[#allocation5 + $0x4ce0] sm:$0xff]
    %v2717 = vld [vmem:[#allocation5 + $0x4ce8] sm:$0xff]
    %v2718 = vld [vmem:[#allocation5 + $0x4cf0] sm:$0xff]
    %v2719 = vld [vmem:[#allocation5 + $0x4cf8] sm:$0xff]
    %v2720 = vld [vmem:[#allocation5 + $0x4d00] sm:$0xff]
    %v2721 = vld [vmem:[#allocation5 + $0x4d08] sm:$0xff]
    %v2722 = vld [vmem:[#allocation5 + $0x4d10] sm:$0xff]
    %v2723 = vld [vmem:[#allocation5 + $0x4d18] sm:$0xff]
    %v2724 = vld [vmem:[#allocation5 + $0x4d20] sm:$0xff]
    %v2725 = vld [vmem:[#allocation5 + $0x4d28] sm:$0xff]
    %v2726 = vld [vmem:[#allocation5 + $0x4d30] sm:$0xff]
    %v2727 = vld [vmem:[#allocation5 + $0x4d38] sm:$0xff]
    %v2728 = vld [vmem:[#allocation5 + $0x4d40] sm:$0xff]
    %v2729 = vld [vmem:[#allocation5 + $0x4d48] sm:$0xff]
    %v2730 = vld [vmem:[#allocation5 + $0x4d50] sm:$0xff]
    %v2731 = vld [vmem:[#allocation5 + $0x4d58] sm:$0xff]
    %v2732 = vld [vmem:[#allocation5 + $0x4d60] sm:$0xff]
    %v2733 = vld [vmem:[#allocation5 + $0x4d68] sm:$0xff]
    %v2734 = vld [vmem:[#allocation5 + $0x4d70] sm:$0xff]
    %v2735 = vld [vmem:[#allocation5 + $0x4d78] sm:$0xff]
    %v2736 = vld [vmem:[#allocation5 + $0x4d80] sm:$0xff]
    %v2737 = vld [vmem:[#allocation5 + $0x4d88] sm:$0xff]
    %v2738 = vld [vmem:[#allocation5 + $0x4d90] sm:$0xff]
    %v2739 = vld [vmem:[#allocation5 + $0x4d98] sm:$0xff]
    %v2740 = vld [vmem:[#allocation5 + $0x4da0] sm:$0xff]
    %v2741 = vld [vmem:[#allocation5 + $0x4da8] sm:$0xff]
    %v2742 = vld [vmem:[#allocation5 + $0x4db0] sm:$0xff]
    %v2743 = vld [vmem:[#allocation5 + $0x4db8] sm:$0xff]
    %v2744 = vld [vmem:[#allocation5 + $0x4dc0] sm:$0xff]
    %v2745 = vld [vmem:[#allocation5 + $0x4dc8] sm:$0xff]
    %v2746 = vld [vmem:[#allocation5 + $0x4dd0] sm:$0xff]
    %v2747 = vld [vmem:[#allocation5 + $0x4dd8] sm:$0xff]
    %v2748 = vld [vmem:[#allocation5 + $0x4de0] sm:$0xff]
    %v2749 = vld [vmem:[#allocation5 + $0x4de8] sm:$0xff]
    %v2750 = vld [vmem:[#allocation5 + $0x4df0] sm:$0xff]
    %v2751 = vld [vmem:[#allocation5 + $0x4df8] sm:$0xff]
    %v2752 = vld [vmem:[#allocation5 + $0x4e00] sm:$0xff]
    %v2753 = vld [vmem:[#allocation5 + $0x4e08] sm:$0xff]
    %v2754 = vld [vmem:[#allocation5 + $0x4e10] sm:$0xff]
    %v2755 = vld [vmem:[#allocation5 + $0x4e18] sm:$0xff]
    %v2756 = vld [vmem:[#allocation5 + $0x4e20] sm:$0xff]
    %v2757 = vld [vmem:[#allocation5 + $0x4e28] sm:$0xff]
    %v2758 = vld [vmem:[#allocation5 + $0x4e30] sm:$0xff]
    %v2759 = vld [vmem:[#allocation5 + $0x4e38] sm:$0xff]
    %v2760 = vld [vmem:[#allocation5 + $0x4e40] sm:$0xff]
    %v2761 = vld [vmem:[#allocation5 + $0x4e48] sm:$0xff]
    %v2762 = vld [vmem:[#allocation5 + $0x4e50] sm:$0xff]
    %v2763 = vld [vmem:[#allocation5 + $0x4e58] sm:$0xff]
    %v2764 = vld [vmem:[#allocation5 + $0x4e60] sm:$0xff]
    %v2765 = vld [vmem:[#allocation5 + $0x4e68] sm:$0xff]
    %v2766 = vld [vmem:[#allocation5 + $0x4e70] sm:$0xff]
    %v2767 = vld [vmem:[#allocation5 + $0x4e78] sm:$0xff]
    %v2768 = vld [vmem:[#allocation5 + $0x4e80] sm:$0xff]
    %v2769 = vld [vmem:[#allocation5 + $0x4e88] sm:$0xff]
    %v2770 = vld [vmem:[#allocation5 + $0x4e90] sm:$0xff]
    %v2771 = vld [vmem:[#allocation5 + $0x4e98] sm:$0xff]
    %v2772 = vld [vmem:[#allocation5 + $0x4ea0] sm:$0xff]
    %v2773 = vld [vmem:[#allocation5 + $0x4ea8] sm:$0xff]
    %v2774 = vld [vmem:[#allocation5 + $0x4eb0] sm:$0xff]
    %v2775 = vld [vmem:[#allocation5 + $0x4eb8] sm:$0xff]
    %v2776 = vld [vmem:[#allocation5 + $0x4ec0] sm:$0xff]
    %v2777 = vld [vmem:[#allocation5 + $0x4ec8] sm:$0xff]
    %v2778 = vld [vmem:[#allocation5 + $0x4ed0] sm:$0xff]
    %v2779 = vld [vmem:[#allocation5 + $0x4ed8] sm:$0xff]
    %v2780 = vld [vmem:[#allocation5 + $0x4ee0] sm:$0xff]
    %v2781 = vld [vmem:[#allocation5 + $0x4ee8] sm:$0xff]
    %v2782 = vld [vmem:[#allocation5 + $0x4ef0] sm:$0xff]
    %v2783 = vld [vmem:[#allocation5 + $0x4ef8] sm:$0xff]
    %v2784 = vld [vmem:[#allocation5 + $0x4f00] sm:$0xff]
    %v2785 = vld [vmem:[#allocation5 + $0x4f08] sm:$0xff]
    %v2786 = vld [vmem:[#allocation5 + $0x4f10] sm:$0xff]
    %v2787 = vld [vmem:[#allocation5 + $0x4f18] sm:$0xff]
    %v2788 = vld [vmem:[#allocation5 + $0x4f20] sm:$0xff]
    %v2789 = vld [vmem:[#allocation5 + $0x4f28] sm:$0xff]
    %v2790 = vld [vmem:[#allocation5 + $0x4f30] sm:$0xff]
    %v2791 = vld [vmem:[#allocation5 + $0x4f38] sm:$0xff]
    %v2792 = vld [vmem:[#allocation5 + $0x4f40] sm:$0xff]
    %v2793 = vld [vmem:[#allocation5 + $0x4f48] sm:$0xff]
    %v2794 = vld [vmem:[#allocation5 + $0x4f50] sm:$0xff]
    %v2795 = vld [vmem:[#allocation5 + $0x4f58] sm:$0xff]
    %v2796 = vld [vmem:[#allocation5 + $0x4f60] sm:$0xff]
    %v2797 = vld [vmem:[#allocation5 + $0x4f68] sm:$0xff]
    %v2798 = vld [vmem:[#allocation5 + $0x4f70] sm:$0xff]
    %v2799 = vld [vmem:[#allocation5 + $0x4f78] sm:$0xff]
    %v2800 = vld [vmem:[#allocation5 + $0x4f80] sm:$0xff]
    %v2801 = vld [vmem:[#allocation5 + $0x4f88] sm:$0xff]
    %v2802 = vld [vmem:[#allocation5 + $0x4f90] sm:$0xff]
    %v2803 = vld [vmem:[#allocation5 + $0x4f98] sm:$0xff]
    %v2804 = vld [vmem:[#allocation5 + $0x4fa0] sm:$0xff]
    %v2805 = vld [vmem:[#allocation5 + $0x4fa8] sm:$0xff]
    %v2806 = vld [vmem:[#allocation5 + $0x4fb0] sm:$0xff]
    %v2807 = vld [vmem:[#allocation5 + $0x4fb8] sm:$0xff]
    %v2808 = vld [vmem:[#allocation5 + $0x4fc0] sm:$0xff]
    %v2809 = vld [vmem:[#allocation5 + $0x4fc8] sm:$0xff]
    %v2810 = vld [vmem:[#allocation5 + $0x4fd0] sm:$0xff]
    %v2811 = vld [vmem:[#allocation5 + $0x4fd8] sm:$0xff]
    %v2812 = vld [vmem:[#allocation5 + $0x4fe0] sm:$0xff]
    %v2813 = vld [vmem:[#allocation5 + $0x4fe8] sm:$0xff]
    %v2814 = vld [vmem:[#allocation5 + $0x4ff0] sm:$0xff]
    %v2815 = vld [vmem:[#allocation5 + $0x4ff8] sm:$0xff]
    %v2816 = vld [vmem:[#allocation5 + $0x5000] sm:$0xff]
    %v2817 = vld [vmem:[#allocation5 + $0x5008] sm:$0xff]
    %v2818 = vld [vmem:[#allocation5 + $0x5010] sm:$0xff]
    %v2819 = vld [vmem:[#allocation5 + $0x5018] sm:$0xff]
    %v2820 = vld [vmem:[#allocation5 + $0x5020] sm:$0xff]
    %v2821 = vld [vmem:[#allocation5 + $0x5028] sm:$0xff]
    %v2822 = vld [vmem:[#allocation5 + $0x5030] sm:$0xff]
    %v2823 = vld [vmem:[#allocation5 + $0x5038] sm:$0xff]
    %v2824 = vld [vmem:[#allocation5 + $0x5040] sm:$0xff]
    %v2825 = vld [vmem:[#allocation5 + $0x5048] sm:$0xff]
    %v2826 = vld [vmem:[#allocation5 + $0x5050] sm:$0xff]
    %v2827 = vld [vmem:[#allocation5 + $0x5058] sm:$0xff]
    %v2828 = vld [vmem:[#allocation5 + $0x5060] sm:$0xff]
    %v2829 = vld [vmem:[#allocation5 + $0x5068] sm:$0xff]
    %v2830 = vld [vmem:[#allocation5 + $0x5070] sm:$0xff]
    %v2831 = vld [vmem:[#allocation5 + $0x5078] sm:$0xff]
    %v2832 = vld [vmem:[#allocation5 + $0x5080] sm:$0xff]
    %v2833 = vld [vmem:[#allocation5 + $0x5088] sm:$0xff]
    %v2834 = vld [vmem:[#allocation5 + $0x5090] sm:$0xff]
    %v2835 = vld [vmem:[#allocation5 + $0x5098] sm:$0xff]
    %v2836 = vld [vmem:[#allocation5 + $0x50a0] sm:$0xff]
    %v2837 = vld [vmem:[#allocation5 + $0x50a8] sm:$0xff]
    %v2838 = vld [vmem:[#allocation5 + $0x50b0] sm:$0xff]
    %v2839 = vld [vmem:[#allocation5 + $0x50b8] sm:$0xff]
    %v2840 = vld [vmem:[#allocation5 + $0x50c0] sm:$0xff]
    %v2841 = vld [vmem:[#allocation5 + $0x50c8] sm:$0xff]
    %v2842 = vld [vmem:[#allocation5 + $0x50d0] sm:$0xff]
    %v2843 = vld [vmem:[#allocation5 + $0x50d8] sm:$0xff]
    %v2844 = vld [vmem:[#allocation5 + $0x50e0] sm:$0xff]
    %v2845 = vld [vmem:[#allocation5 + $0x50e8] sm:$0xff]
    %v2846 = vld [vmem:[#allocation5 + $0x50f0] sm:$0xff]
    %v2847 = vld [vmem:[#allocation5 + $0x50f8] sm:$0xff]
    %v2848 = vld [vmem:[#allocation5 + $0x5100] sm:$0xff]
    %v2849 = vld [vmem:[#allocation5 + $0x5108] sm:$0xff]
    %v2850 = vld [vmem:[#allocation5 + $0x5110] sm:$0xff]
    %v2851 = vld [vmem:[#allocation5 + $0x5118] sm:$0xff]
    %v2852 = vld [vmem:[#allocation5 + $0x5120] sm:$0xff]
    %v2853 = vld [vmem:[#allocation5 + $0x5128] sm:$0xff]
    %v2854 = vld [vmem:[#allocation5 + $0x5130] sm:$0xff]
    %v2855 = vld [vmem:[#allocation5 + $0x5138] sm:$0xff]
    %v2856 = vld [vmem:[#allocation5 + $0x5140] sm:$0xff]
    %v2857 = vld [vmem:[#allocation5 + $0x5148] sm:$0xff]
    %v2858 = vld [vmem:[#allocation5 + $0x5150] sm:$0xff]
    %v2859 = vld [vmem:[#allocation5 + $0x5158] sm:$0xff]
    %v2860 = vld [vmem:[#allocation5 + $0x5160] sm:$0xff]
    %v2861 = vld [vmem:[#allocation5 + $0x5168] sm:$0xff]
    %v2862 = vld [vmem:[#allocation5 + $0x5170] sm:$0xff]
    %v2863 = vld [vmem:[#allocation5 + $0x5178] sm:$0xff]
    %v2864 = vld [vmem:[#allocation5 + $0x5180] sm:$0xff]
    %v2865 = vld [vmem:[#allocation5 + $0x5188] sm:$0xff]
    %v2866 = vld [vmem:[#allocation5 + $0x5190] sm:$0xff]
    %v2867 = vld [vmem:[#allocation5 + $0x5198] sm:$0xff]
    %v2868 = vld [vmem:[#allocation5 + $0x51a0] sm:$0xff]
    %v2869 = vld [vmem:[#allocation5 + $0x51a8] sm:$0xff]
    %v2870 = vld [vmem:[#allocation5 + $0x51b0] sm:$0xff]
    %v2871 = vld [vmem:[#allocation5 + $0x51b8] sm:$0xff]
    %v2872 = vld [vmem:[#allocation5 + $0x51c0] sm:$0xff]
    %v2873 = vld [vmem:[#allocation5 + $0x51c8] sm:$0xff]
    %v2874 = vld [vmem:[#allocation5 + $0x51d0] sm:$0xff]
    %v2875 = vld [vmem:[#allocation5 + $0x51d8] sm:$0xff]
    %v2876 = vld [vmem:[#allocation5 + $0x51e0] sm:$0xff]
    %v2877 = vld [vmem:[#allocation5 + $0x51e8] sm:$0xff]
    %v2878 = vld [vmem:[#allocation5 + $0x51f0] sm:$0xff]
    %v2879 = vld [vmem:[#allocation5 + $0x51f8] sm:$0xff]
    %v2880 = vld [vmem:[#allocation5 + $0x5200] sm:$0xff]
    %v2881 = vld [vmem:[#allocation5 + $0x5208] sm:$0xff]
    %v2882 = vld [vmem:[#allocation5 + $0x5210] sm:$0xff]
    %v2883 = vld [vmem:[#allocation5 + $0x5218] sm:$0xff]
    %v2884 = vld [vmem:[#allocation5 + $0x5220] sm:$0xff]
    %v2885 = vld [vmem:[#allocation5 + $0x5228] sm:$0xff]
    %v2886 = vld [vmem:[#allocation5 + $0x5230] sm:$0xff]
    %v2887 = vld [vmem:[#allocation5 + $0x5238] sm:$0xff]
    %v2888 = vld [vmem:[#allocation5 + $0x5240] sm:$0xff]
    %v2889 = vld [vmem:[#allocation5 + $0x5248] sm:$0xff]
    %v2890 = vld [vmem:[#allocation5 + $0x5250] sm:$0xff]
    %v2891 = vld [vmem:[#allocation5 + $0x5258] sm:$0xff]
    %v2892 = vld [vmem:[#allocation5 + $0x5260] sm:$0xff]
    %v2893 = vld [vmem:[#allocation5 + $0x5268] sm:$0xff]
    %v2894 = vld [vmem:[#allocation5 + $0x5270] sm:$0xff]
    %v2895 = vld [vmem:[#allocation5 + $0x5278] sm:$0xff]
    %v2896 = vld [vmem:[#allocation5 + $0x5280] sm:$0xff]
    %v2897 = vld [vmem:[#allocation5 + $0x5288] sm:$0xff]
    %v2898 = vld [vmem:[#allocation5 + $0x5290] sm:$0xff]
    %v2899 = vld [vmem:[#allocation5 + $0x5298] sm:$0xff]
    %v2900 = vld [vmem:[#allocation5 + $0x52a0] sm:$0xff]
    %v2901 = vld [vmem:[#allocation5 + $0x52a8] sm:$0xff]
    %v2902 = vld [vmem:[#allocation5 + $0x52b0] sm:$0xff]
    %v2903 = vld [vmem:[#allocation5 + $0x52b8] sm:$0xff]
    %v2904 = vld [vmem:[#allocation5 + $0x52c0] sm:$0xff]
    %v2905 = vld [vmem:[#allocation5 + $0x52c8] sm:$0xff]
    %v2906 = vld [vmem:[#allocation5 + $0x52d0] sm:$0xff]
    %v2907 = vld [vmem:[#allocation5 + $0x52d8] sm:$0xff]
    %v2908 = vld [vmem:[#allocation5 + $0x52e0] sm:$0xff]
    %v2909 = vld [vmem:[#allocation5 + $0x52e8] sm:$0xff]
    %v2910 = vld [vmem:[#allocation5 + $0x52f0] sm:$0xff]
    %v2911 = vld [vmem:[#allocation5 + $0x52f8] sm:$0xff]
    %v2912 = vld [vmem:[#allocation5 + $0x5300] sm:$0xff]
    %v2913 = vld [vmem:[#allocation5 + $0x5308] sm:$0xff]
    %v2914 = vld [vmem:[#allocation5 + $0x5310] sm:$0xff]
    %v2915 = vld [vmem:[#allocation5 + $0x5318] sm:$0xff]
    %v2916 = vld [vmem:[#allocation5 + $0x5320] sm:$0xff]
    %v2917 = vld [vmem:[#allocation5 + $0x5328] sm:$0xff]
    %v2918 = vld [vmem:[#allocation5 + $0x5330] sm:$0xff]
    %v2919 = vld [vmem:[#allocation5 + $0x5338] sm:$0xff]
    %v2920 = vld [vmem:[#allocation5 + $0x5340] sm:$0xff]
    %v2921 = vld [vmem:[#allocation5 + $0x5348] sm:$0xff]
    %v2922 = vld [vmem:[#allocation5 + $0x5350] sm:$0xff]
    %v2923 = vld [vmem:[#allocation5 + $0x5358] sm:$0xff]
    %v2924 = vld [vmem:[#allocation5 + $0x5360] sm:$0xff]
    %v2925 = vld [vmem:[#allocation5 + $0x5368] sm:$0xff]
    %v2926 = vld [vmem:[#allocation5 + $0x5370] sm:$0xff]
    %v2927 = vld [vmem:[#allocation5 + $0x5378] sm:$0xff]
    %v2928 = vld [vmem:[#allocation5 + $0x5380] sm:$0xff]
    %v2929 = vld [vmem:[#allocation5 + $0x5388] sm:$0xff]
    %v2930 = vld [vmem:[#allocation5 + $0x5390] sm:$0xff]
    %v2931 = vld [vmem:[#allocation5 + $0x5398] sm:$0xff]
    %v2932 = vld [vmem:[#allocation5 + $0x53a0] sm:$0xff]
    %v2933 = vld [vmem:[#allocation5 + $0x53a8] sm:$0xff]
    %v2934 = vld [vmem:[#allocation5 + $0x53b0] sm:$0xff]
    %v2935 = vld [vmem:[#allocation5 + $0x53b8] sm:$0xff]
    %v2936 = vld [vmem:[#allocation5 + $0x53c0] sm:$0xff]
    %v2937 = vld [vmem:[#allocation5 + $0x53c8] sm:$0xff]
    %v2938 = vld [vmem:[#allocation5 + $0x53d0] sm:$0xff]
    %v2939 = vld [vmem:[#allocation5 + $0x53d8] sm:$0xff]
    %v2940 = vld [vmem:[#allocation5 + $0x53e0] sm:$0xff]
    %v2941 = vld [vmem:[#allocation5 + $0x53e8] sm:$0xff]
    %v2942 = vld [vmem:[#allocation5 + $0x53f0] sm:$0xff]
    %v2943 = vld [vmem:[#allocation5 + $0x53f8] sm:$0xff]
    %v2944 = vld [vmem:[#allocation5 + $0x5400] sm:$0xff]
    %v2945 = vld [vmem:[#allocation5 + $0x5408] sm:$0xff]
    %v2946 = vld [vmem:[#allocation5 + $0x5410] sm:$0xff]
    %v2947 = vld [vmem:[#allocation5 + $0x5418] sm:$0xff]
    %v2948 = vld [vmem:[#allocation5 + $0x5420] sm:$0xff]
    %v2949 = vld [vmem:[#allocation5 + $0x5428] sm:$0xff]
    %v2950 = vld [vmem:[#allocation5 + $0x5430] sm:$0xff]
    %v2951 = vld [vmem:[#allocation5 + $0x5438] sm:$0xff]
    %v2952 = vld [vmem:[#allocation5 + $0x5440] sm:$0xff]
    %v2953 = vld [vmem:[#allocation5 + $0x5448] sm:$0xff]
    %v2954 = vld [vmem:[#allocation5 + $0x5450] sm:$0xff]
    %v2955 = vld [vmem:[#allocation5 + $0x5458] sm:$0xff]
    %v2956 = vld [vmem:[#allocation5 + $0x5460] sm:$0xff]
    %v2957 = vld [vmem:[#allocation5 + $0x5468] sm:$0xff]
    %v2958 = vld [vmem:[#allocation5 + $0x5470] sm:$0xff]
    %v2959 = vld [vmem:[#allocation5 + $0x5478] sm:$0xff]
    %v2960 = vld [vmem:[#allocation5 + $0x5480] sm:$0xff]
    %v2961 = vld [vmem:[#allocation5 + $0x5488] sm:$0xff]
    %v2962 = vld [vmem:[#allocation5 + $0x5490] sm:$0xff]
    %v2963 = vld [vmem:[#allocation5 + $0x5498] sm:$0xff]
    %v2964 = vld [vmem:[#allocation5 + $0x54a0] sm:$0xff]
    %v2965 = vld [vmem:[#allocation5 + $0x54a8] sm:$0xff]
    %v2966 = vld [vmem:[#allocation5 + $0x54b0] sm:$0xff]
    %v2967 = vld [vmem:[#allocation5 + $0x54b8] sm:$0xff]
    %v2968 = vld [vmem:[#allocation5 + $0x54c0] sm:$0xff]
    %v2969 = vld [vmem:[#allocation5 + $0x54c8] sm:$0xff]
    %v2970 = vld [vmem:[#allocation5 + $0x54d0] sm:$0xff]
    %v2971 = vld [vmem:[#allocation5 + $0x54d8] sm:$0xff]
    %v2972 = vld [vmem:[#allocation5 + $0x54e0] sm:$0xff]
    %v2973 = vld [vmem:[#allocation5 + $0x54e8] sm:$0xff]
    %v2974 = vld [vmem:[#allocation5 + $0x54f0] sm:$0xff]
    %v2975 = vld [vmem:[#allocation5 + $0x54f8] sm:$0xff]
    %v2976 = vld [vmem:[#allocation5 + $0x5500] sm:$0xff]
    %v2977 = vld [vmem:[#allocation5 + $0x5508] sm:$0xff]
    %v2978 = vld [vmem:[#allocation5 + $0x5510] sm:$0xff]
    %v2979 = vld [vmem:[#allocation5 + $0x5518] sm:$0xff]
    %v2980 = vld [vmem:[#allocation5 + $0x5520] sm:$0xff]
    %v2981 = vld [vmem:[#allocation5 + $0x5528] sm:$0xff]
    %v2982 = vld [vmem:[#allocation5 + $0x5530] sm:$0xff]
    %v2983 = vld [vmem:[#allocation5 + $0x5538] sm:$0xff]
    %v2984 = vld [vmem:[#allocation5 + $0x5540] sm:$0xff]
    %v2985 = vld [vmem:[#allocation5 + $0x5548] sm:$0xff]
    %v2986 = vld [vmem:[#allocation5 + $0x5550] sm:$0xff]
    %v2987 = vld [vmem:[#allocation5 + $0x5558] sm:$0xff]
    %v2988 = vld [vmem:[#allocation5 + $0x5560] sm:$0xff]
    %v2989 = vld [vmem:[#allocation5 + $0x5568] sm:$0xff]
    %v2990 = vld [vmem:[#allocation5 + $0x5570] sm:$0xff]
    %v2991 = vld [vmem:[#allocation5 + $0x5578] sm:$0xff]
    %v2992 = vld [vmem:[#allocation5 + $0x5580] sm:$0xff]
    %v2993 = vld [vmem:[#allocation5 + $0x5588] sm:$0xff]
    %v2994 = vld [vmem:[#allocation5 + $0x5590] sm:$0xff]
    %v2995 = vld [vmem:[#allocation5 + $0x5598] sm:$0xff]
    %v2996 = vld [vmem:[#allocation5 + $0x55a0] sm:$0xff]
    %v2997 = vld [vmem:[#allocation5 + $0x55a8] sm:$0xff]
    %v2998 = vld [vmem:[#allocation5 + $0x55b0] sm:$0xff]
    %v2999 = vld [vmem:[#allocation5 + $0x55b8] sm:$0xff]
    %v3000 = vld [vmem:[#allocation5 + $0x55c0] sm:$0xff]
    %v3001 = vld [vmem:[#allocation5 + $0x55c8] sm:$0xff]
    %v3002 = vld [vmem:[#allocation5 + $0x55d0] sm:$0xff]
    %v3003 = vld [vmem:[#allocation5 + $0x55d8] sm:$0xff]
    %v3004 = vld [vmem:[#allocation5 + $0x55e0] sm:$0xff]
    %v3005 = vld [vmem:[#allocation5 + $0x55e8] sm:$0xff]
    %v3006 = vld [vmem:[#allocation5 + $0x55f0] sm:$0xff]
    %v3007 = vld [vmem:[#allocation5 + $0x55f8] sm:$0xff]
    %v3008 = vld [vmem:[#allocation5 + $0x5600] sm:$0xff]
    %v3009 = vld [vmem:[#allocation5 + $0x5608] sm:$0xff]
    %v3010 = vld [vmem:[#allocation5 + $0x5610] sm:$0xff]
    %v3011 = vld [vmem:[#allocation5 + $0x5618] sm:$0xff]
    %v3012 = vld [vmem:[#allocation5 + $0x5620] sm:$0xff]
    %v3013 = vld [vmem:[#allocation5 + $0x5628] sm:$0xff]
    %v3014 = vld [vmem:[#allocation5 + $0x5630] sm:$0xff]
    %v3015 = vld [vmem:[#allocation5 + $0x5638] sm:$0xff]
    %v3016 = vld [vmem:[#allocation5 + $0x5640] sm:$0xff]
    %v3017 = vld [vmem:[#allocation5 + $0x5648] sm:$0xff]
    %v3018 = vld [vmem:[#allocation5 + $0x5650] sm:$0xff]
    %v3019 = vld [vmem:[#allocation5 + $0x5658] sm:$0xff]
    %v3020 = vld [vmem:[#allocation5 + $0x5660] sm:$0xff]
    %v3021 = vld [vmem:[#allocation5 + $0x5668] sm:$0xff]
    %v3022 = vld [vmem:[#allocation5 + $0x5670] sm:$0xff]
    %v3023 = vld [vmem:[#allocation5 + $0x5678] sm:$0xff]
    %v3024 = vld [vmem:[#allocation5 + $0x5680] sm:$0xff]
    %v3025 = vld [vmem:[#allocation5 + $0x5688] sm:$0xff]
    %v3026 = vld [vmem:[#allocation5 + $0x5690] sm:$0xff]
    %v3027 = vld [vmem:[#allocation5 + $0x5698] sm:$0xff]
    %v3028 = vld [vmem:[#allocation5 + $0x56a0] sm:$0xff]
    %v3029 = vld [vmem:[#allocation5 + $0x56a8] sm:$0xff]
    %v3030 = vld [vmem:[#allocation5 + $0x56b0] sm:$0xff]
    %v3031 = vld [vmem:[#allocation5 + $0x56b8] sm:$0xff]
    %v3032 = vld [vmem:[#allocation5 + $0x56c0] sm:$0xff]
    %v3033 = vld [vmem:[#allocation5 + $0x56c8] sm:$0xff]
    %v3034 = vld [vmem:[#allocation5 + $0x56d0] sm:$0xff]
    %v3035 = vld [vmem:[#allocation5 + $0x56d8] sm:$0xff]
    %v3036 = vld [vmem:[#allocation5 + $0x56e0] sm:$0xff]
    %v3037 = vld [vmem:[#allocation5 + $0x56e8] sm:$0xff]
    %v3038 = vld [vmem:[#allocation5 + $0x56f0] sm:$0xff]
    %v3039 = vld [vmem:[#allocation5 + $0x56f8] sm:$0xff]
    %v3040 = vld [vmem:[#allocation5 + $0x5700] sm:$0xff]
    %v3041 = vld [vmem:[#allocation5 + $0x5708] sm:$0xff]
    %v3042 = vld [vmem:[#allocation5 + $0x5710] sm:$0xff]
    %v3043 = vld [vmem:[#allocation5 + $0x5718] sm:$0xff]
    %v3044 = vld [vmem:[#allocation5 + $0x5720] sm:$0xff]
    %v3045 = vld [vmem:[#allocation5 + $0x5728] sm:$0xff]
    %v3046 = vld [vmem:[#allocation5 + $0x5730] sm:$0xff]
    %v3047 = vld [vmem:[#allocation5 + $0x5738] sm:$0xff]
    %v3048 = vld [vmem:[#allocation5 + $0x5740] sm:$0xff]
    %v3049 = vld [vmem:[#allocation5 + $0x5748] sm:$0xff]
    %v3050 = vld [vmem:[#allocation5 + $0x5750] sm:$0xff]
    %v3051 = vld [vmem:[#allocation5 + $0x5758] sm:$0xff]
    %v3052 = vld [vmem:[#allocation5 + $0x5760] sm:$0xff]
    %v3053 = vld [vmem:[#allocation5 + $0x5768] sm:$0xff]
    %v3054 = vld [vmem:[#allocation5 + $0x5770] sm:$0xff]
    %v3055 = vld [vmem:[#allocation5 + $0x5778] sm:$0xff]
    %v3056 = vld [vmem:[#allocation5 + $0x5780] sm:$0xff]
    %v3057 = vld [vmem:[#allocation5 + $0x5788] sm:$0xff]
    %v3058 = vld [vmem:[#allocation5 + $0x5790] sm:$0xff]
    %v3059 = vld [vmem:[#allocation5 + $0x5798] sm:$0xff]
    %v3060 = vld [vmem:[#allocation5 + $0x57a0] sm:$0xff]
    %v3061 = vld [vmem:[#allocation5 + $0x57a8] sm:$0xff]
    %v3062 = vld [vmem:[#allocation5 + $0x57b0] sm:$0xff]
    %v3063 = vld [vmem:[#allocation5 + $0x57b8] sm:$0xff]
    %v3064 = vld [vmem:[#allocation5 + $0x57c0] sm:$0xff]
    %v3065 = vld [vmem:[#allocation5 + $0x57c8] sm:$0xff]
    %v3066 = vld [vmem:[#allocation5 + $0x57d0] sm:$0xff]
    %v3067 = vld [vmem:[#allocation5 + $0x57d8] sm:$0xff]
    %v3068 = vld [vmem:[#allocation5 + $0x57e0] sm:$0xff]
    %v3069 = vld [vmem:[#allocation5 + $0x57e8] sm:$0xff]
    %v3070 = vld [vmem:[#allocation5 + $0x57f0] sm:$0xff]
    %v3071 = vld [vmem:[#allocation5 + $0x57f8] sm:$0xff]
    %v3072 = vld [vmem:[#allocation5 + $0x5800] sm:$0xff]
    %v3073 = vld [vmem:[#allocation5 + $0x5808] sm:$0xff]
    %v3074 = vld [vmem:[#allocation5 + $0x5810] sm:$0xff]
    %v3075 = vld [vmem:[#allocation5 + $0x5818] sm:$0xff]
    %v3076 = vld [vmem:[#allocation5 + $0x5820] sm:$0xff]
    %v3077 = vld [vmem:[#allocation5 + $0x5828] sm:$0xff]
    %v3078 = vld [vmem:[#allocation5 + $0x5830] sm:$0xff]
    %v3079 = vld [vmem:[#allocation5 + $0x5838] sm:$0xff]
    %v3080 = vld [vmem:[#allocation5 + $0x5840] sm:$0xff]
    %v3081 = vld [vmem:[#allocation5 + $0x5848] sm:$0xff]
    %v3082 = vld [vmem:[#allocation5 + $0x5850] sm:$0xff]
    %v3083 = vld [vmem:[#allocation5 + $0x5858] sm:$0xff]
    %v3084 = vld [vmem:[#allocation5 + $0x5860] sm:$0xff]
    %v3085 = vld [vmem:[#allocation5 + $0x5868] sm:$0xff]
    %v3086 = vld [vmem:[#allocation5 + $0x5870] sm:$0xff]
    %v3087 = vld [vmem:[#allocation5 + $0x5878] sm:$0xff]
    %v3088 = vld [vmem:[#allocation5 + $0x5880] sm:$0xff]
    %v3089 = vld [vmem:[#allocation5 + $0x5888] sm:$0xff]
    %v3090 = vld [vmem:[#allocation5 + $0x5890] sm:$0xff]
    %v3091 = vld [vmem:[#allocation5 + $0x5898] sm:$0xff]
    %v3092 = vld [vmem:[#allocation5 + $0x58a0] sm:$0xff]
    %v3093 = vld [vmem:[#allocation5 + $0x58a8] sm:$0xff]
    %v3094 = vld [vmem:[#allocation5 + $0x58b0] sm:$0xff]
    %v3095 = vld [vmem:[#allocation5 + $0x58b8] sm:$0xff]
    %v3096 = vld [vmem:[#allocation5 + $0x58c0] sm:$0xff]
    %v3097 = vld [vmem:[#allocation5 + $0x58c8] sm:$0xff]
    %v3098 = vld [vmem:[#allocation5 + $0x58d0] sm:$0xff]
    %v3099 = vld [vmem:[#allocation5 + $0x58d8] sm:$0xff]
    %v3100 = vld [vmem:[#allocation5 + $0x58e0] sm:$0xff]
    %v3101 = vld [vmem:[#allocation5 + $0x58e8] sm:$0xff]
    %v3102 = vld [vmem:[#allocation5 + $0x58f0] sm:$0xff]
    %v3103 = vld [vmem:[#allocation5 + $0x58f8] sm:$0xff]
    %v3104 = vld [vmem:[#allocation5 + $0x5900] sm:$0xff]
    %v3105 = vld [vmem:[#allocation5 + $0x5908] sm:$0xff]
    %v3106 = vld [vmem:[#allocation5 + $0x5910] sm:$0xff]
    %v3107 = vld [vmem:[#allocation5 + $0x5918] sm:$0xff]
    %v3108 = vld [vmem:[#allocation5 + $0x5920] sm:$0xff]
    %v3109 = vld [vmem:[#allocation5 + $0x5928] sm:$0xff]
    %v3110 = vld [vmem:[#allocation5 + $0x5930] sm:$0xff]
    %v3111 = vld [vmem:[#allocation5 + $0x5938] sm:$0xff]
    %v3112 = vld [vmem:[#allocation5 + $0x5940] sm:$0xff]
    %v3113 = vld [vmem:[#allocation5 + $0x5948] sm:$0xff]
    %v3114 = vld [vmem:[#allocation5 + $0x5950] sm:$0xff]
    %v3115 = vld [vmem:[#allocation5 + $0x5958] sm:$0xff]
    %v3116 = vld [vmem:[#allocation5 + $0x5960] sm:$0xff]
    %v3117 = vld [vmem:[#allocation5 + $0x5968] sm:$0xff]
    %v3118 = vld [vmem:[#allocation5 + $0x5970] sm:$0xff]
    %v3119 = vld [vmem:[#allocation5 + $0x5978] sm:$0xff]
    %v3120 = vld [vmem:[#allocation5 + $0x5980] sm:$0xff]
    %v3121 = vld [vmem:[#allocation5 + $0x5988] sm:$0xff]
    %v3122 = vld [vmem:[#allocation5 + $0x5990] sm:$0xff]
    %v3123 = vld [vmem:[#allocation5 + $0x5998] sm:$0xff]
    %v3124 = vld [vmem:[#allocation5 + $0x59a0] sm:$0xff]
    %v3125 = vld [vmem:[#allocation5 + $0x59a8] sm:$0xff]
    %v3126 = vld [vmem:[#allocation5 + $0x59b0] sm:$0xff]
    %v3127 = vld [vmem:[#allocation5 + $0x59b8] sm:$0xff]
    %v3128 = vld [vmem:[#allocation5 + $0x59c0] sm:$0xff]
    %v3129 = vld [vmem:[#allocation5 + $0x59c8] sm:$0xff]
    %v3130 = vld [vmem:[#allocation5 + $0x59d0] sm:$0xff]
    %v3131 = vld [vmem:[#allocation5 + $0x59d8] sm:$0xff]
    %v3132 = vld [vmem:[#allocation5 + $0x59e0] sm:$0xff]
    %v3133 = vld [vmem:[#allocation5 + $0x59e8] sm:$0xff]
    %v3134 = vld [vmem:[#allocation5 + $0x59f0] sm:$0xff]
    %v3135 = vld [vmem:[#allocation5 + $0x59f8] sm:$0xff]
    %v3136 = vld [vmem:[#allocation5 + $0x5a00] sm:$0xff]
    %v3137 = vld [vmem:[#allocation5 + $0x5a08] sm:$0xff]
    %v3138 = vld [vmem:[#allocation5 + $0x5a10] sm:$0xff]
    %v3139 = vld [vmem:[#allocation5 + $0x5a18] sm:$0xff]
    %v3140 = vld [vmem:[#allocation5 + $0x5a20] sm:$0xff]
    %v3141 = vld [vmem:[#allocation5 + $0x5a28] sm:$0xff]
    %v3142 = vld [vmem:[#allocation5 + $0x5a30] sm:$0xff]
    %v3143 = vld [vmem:[#allocation5 + $0x5a38] sm:$0xff]
    %v3144 = vld [vmem:[#allocation5 + $0x5a40] sm:$0xff]
    %v3145 = vld [vmem:[#allocation5 + $0x5a48] sm:$0xff]
    %v3146 = vld [vmem:[#allocation5 + $0x5a50] sm:$0xff]
    %v3147 = vld [vmem:[#allocation5 + $0x5a58] sm:$0xff]
    %v3148 = vld [vmem:[#allocation5 + $0x5a60] sm:$0xff]
    %v3149 = vld [vmem:[#allocation5 + $0x5a68] sm:$0xff]
    %v3150 = vld [vmem:[#allocation5 + $0x5a70] sm:$0xff]
    %v3151 = vld [vmem:[#allocation5 + $0x5a78] sm:$0xff]
    %v3152 = vld [vmem:[#allocation5 + $0x5a80] sm:$0xff]
    %v3153 = vld [vmem:[#allocation5 + $0x5a88] sm:$0xff]
    %v3154 = vld [vmem:[#allocation5 + $0x5a90] sm:$0xff]
    %v3155 = vld [vmem:[#allocation5 + $0x5a98] sm:$0xff]
    %v3156 = vld [vmem:[#allocation5 + $0x5aa0] sm:$0xff]
    %v3157 = vld [vmem:[#allocation5 + $0x5aa8] sm:$0xff]
    %v3158 = vld [vmem:[#allocation5 + $0x5ab0] sm:$0xff]
    %v3159 = vld [vmem:[#allocation5 + $0x5ab8] sm:$0xff]
    %v3160 = vld [vmem:[#allocation5 + $0x5ac0] sm:$0xff]
    %v3161 = vld [vmem:[#allocation5 + $0x5ac8] sm:$0xff]
    %v3162 = vld [vmem:[#allocation5 + $0x5ad0] sm:$0xff]
    %v3163 = vld [vmem:[#allocation5 + $0x5ad8] sm:$0xff]
    %v3164 = vld [vmem:[#allocation5 + $0x5ae0] sm:$0xff]
    %v3165 = vld [vmem:[#allocation5 + $0x5ae8] sm:$0xff]
    %v3166 = vld [vmem:[#allocation5 + $0x5af0] sm:$0xff]
    %v3167 = vld [vmem:[#allocation5 + $0x5af8] sm:$0xff]
    %v3168 = vld [vmem:[#allocation5 + $0x5b00] sm:$0xff]
    %v3169 = vld [vmem:[#allocation5 + $0x5b08] sm:$0xff]
    %v3170 = vld [vmem:[#allocation5 + $0x5b10] sm:$0xff]
    %v3171 = vld [vmem:[#allocation5 + $0x5b18] sm:$0xff]
    %v3172 = vld [vmem:[#allocation5 + $0x5b20] sm:$0xff]
    %v3173 = vld [vmem:[#allocation5 + $0x5b28] sm:$0xff]
    %v3174 = vld [vmem:[#allocation5 + $0x5b30] sm:$0xff]
    %v3175 = vld [vmem:[#allocation5 + $0x5b38] sm:$0xff]
    %v3176 = vld [vmem:[#allocation5 + $0x5b40] sm:$0xff]
    %v3177 = vld [vmem:[#allocation5 + $0x5b48] sm:$0xff]
    %v3178 = vld [vmem:[#allocation5 + $0x5b50] sm:$0xff]
    %v3179 = vld [vmem:[#allocation5 + $0x5b58] sm:$0xff]
    %v3180 = vld [vmem:[#allocation5 + $0x5b60] sm:$0xff]
    %v3181 = vld [vmem:[#allocation5 + $0x5b68] sm:$0xff]
    %v3182 = vld [vmem:[#allocation5 + $0x5b70] sm:$0xff]
    %v3183 = vld [vmem:[#allocation5 + $0x5b78] sm:$0xff]
    %v3184 = vld [vmem:[#allocation5 + $0x5b80] sm:$0xff]
    %v3185 = vld [vmem:[#allocation5 + $0x5b88] sm:$0xff]
    %v3186 = vld [vmem:[#allocation5 + $0x5b90] sm:$0xff]
    %v3187 = vld [vmem:[#allocation5 + $0x5b98] sm:$0xff]
    %v3188 = vld [vmem:[#allocation5 + $0x5ba0] sm:$0xff]
    %v3189 = vld [vmem:[#allocation5 + $0x5ba8] sm:$0xff]
    %v3190 = vld [vmem:[#allocation5 + $0x5bb0] sm:$0xff]
    %v3191 = vld [vmem:[#allocation5 + $0x5bb8] sm:$0xff]
    %v3192 = vld [vmem:[#allocation5 + $0x5bc0] sm:$0xff]
    %v3193 = vld [vmem:[#allocation5 + $0x5bc8] sm:$0xff]
    %v3194 = vld [vmem:[#allocation5 + $0x5bd0] sm:$0xff]
    %v3195 = vld [vmem:[#allocation5 + $0x5bd8] sm:$0xff]
    %v3196 = vld [vmem:[#allocation5 + $0x5be0] sm:$0xff]
    %v3197 = vld [vmem:[#allocation5 + $0x5be8] sm:$0xff]
    %v3198 = vld [vmem:[#allocation5 + $0x5bf0] sm:$0xff]
    %v3199 = vld [vmem:[#allocation5 + $0x5bf8] sm:$0xff]
    %v3200 = vld [vmem:[#allocation5 + $0x5c00] sm:$0xff]
    %v3201 = vld [vmem:[#allocation5 + $0x5c08] sm:$0xff]
    %v3202 = vld [vmem:[#allocation5 + $0x5c10] sm:$0xff]
    %v3203 = vld [vmem:[#allocation5 + $0x5c18] sm:$0xff]
    %v3204 = vld [vmem:[#allocation5 + $0x5c20] sm:$0xff]
    %v3205 = vld [vmem:[#allocation5 + $0x5c28] sm:$0xff]
    %v3206 = vld [vmem:[#allocation5 + $0x5c30] sm:$0xff]
    %v3207 = vld [vmem:[#allocation5 + $0x5c38] sm:$0xff]
    %v3208 = vld [vmem:[#allocation5 + $0x5c40] sm:$0xff]
    %v3209 = vld [vmem:[#allocation5 + $0x5c48] sm:$0xff]
    %v3210 = vld [vmem:[#allocation5 + $0x5c50] sm:$0xff]
    %v3211 = vld [vmem:[#allocation5 + $0x5c58] sm:$0xff]
    %v3212 = vld [vmem:[#allocation5 + $0x5c60] sm:$0xff]
    %v3213 = vld [vmem:[#allocation5 + $0x5c68] sm:$0xff]
    %v3214 = vld [vmem:[#allocation5 + $0x5c70] sm:$0xff]
    %v3215 = vld [vmem:[#allocation5 + $0x5c78] sm:$0xff]
    %v3216 = vld [vmem:[#allocation5 + $0x5c80] sm:$0xff]
    %v3217 = vld [vmem:[#allocation5 + $0x5c88] sm:$0xff]
    %v3218 = vld [vmem:[#allocation5 + $0x5c90] sm:$0xff]
    %v3219 = vld [vmem:[#allocation5 + $0x5c98] sm:$0xff]
    %v3220 = vld [vmem:[#allocation5 + $0x5ca0] sm:$0xff]
    %v3221 = vld [vmem:[#allocation5 + $0x5ca8] sm:$0xff]
    %v3222 = vld [vmem:[#allocation5 + $0x5cb0] sm:$0xff]
    %v3223 = vld [vmem:[#allocation5 + $0x5cb8] sm:$0xff]
    %v3224 = vld [vmem:[#allocation5 + $0x5cc0] sm:$0xff]
    %v3225 = vld [vmem:[#allocation5 + $0x5cc8] sm:$0xff]
    %v3226 = vld [vmem:[#allocation5 + $0x5cd0] sm:$0xff]
    %v3227 = vld [vmem:[#allocation5 + $0x5cd8] sm:$0xff]
    %v3228 = vld [vmem:[#allocation5 + $0x5ce0] sm:$0xff]
    %v3229 = vld [vmem:[#allocation5 + $0x5ce8] sm:$0xff]
    %v3230 = vld [vmem:[#allocation5 + $0x5cf0] sm:$0xff]
    %v3231 = vld [vmem:[#allocation5 + $0x5cf8] sm:$0xff]
    %v3232 = vld [vmem:[#allocation5 + $0x5d00] sm:$0xff]
    %v3233 = vld [vmem:[#allocation5 + $0x5d08] sm:$0xff]
    %v3234 = vld [vmem:[#allocation5 + $0x5d10] sm:$0xff]
    %v3235 = vld [vmem:[#allocation5 + $0x5d18] sm:$0xff]
    %v3236 = vld [vmem:[#allocation5 + $0x5d20] sm:$0xff]
    %v3237 = vld [vmem:[#allocation5 + $0x5d28] sm:$0xff]
    %v3238 = vld [vmem:[#allocation5 + $0x5d30] sm:$0xff]
    %v3239 = vld [vmem:[#allocation5 + $0x5d38] sm:$0xff]
    %v3240 = vld [vmem:[#allocation5 + $0x5d40] sm:$0xff]
    %v3241 = vld [vmem:[#allocation5 + $0x5d48] sm:$0xff]
    %v3242 = vld [vmem:[#allocation5 + $0x5d50] sm:$0xff]
    %v3243 = vld [vmem:[#allocation5 + $0x5d58] sm:$0xff]
    %v3244 = vld [vmem:[#allocation5 + $0x5d60] sm:$0xff]
    %v3245 = vld [vmem:[#allocation5 + $0x5d68] sm:$0xff]
    %v3246 = vld [vmem:[#allocation5 + $0x5d70] sm:$0xff]
    %v3247 = vld [vmem:[#allocation5 + $0x5d78] sm:$0xff]
    %v3248 = vld [vmem:[#allocation5 + $0x5d80] sm:$0xff]
    %v3249 = vld [vmem:[#allocation5 + $0x5d88] sm:$0xff]
    %v3250 = vld [vmem:[#allocation5 + $0x5d90] sm:$0xff]
    %v3251 = vld [vmem:[#allocation5 + $0x5d98] sm:$0xff]
    %v3252 = vld [vmem:[#allocation5 + $0x5da0] sm:$0xff]
    %v3253 = vld [vmem:[#allocation5 + $0x5da8] sm:$0xff]
    %v3254 = vld [vmem:[#allocation5 + $0x5db0] sm:$0xff]
    %v3255 = vld [vmem:[#allocation5 + $0x5db8] sm:$0xff]
    %v3256 = vld [vmem:[#allocation5 + $0x5dc0] sm:$0xff]
    %v3257 = vld [vmem:[#allocation5 + $0x5dc8] sm:$0xff]
    %v3258 = vld [vmem:[#allocation5 + $0x5dd0] sm:$0xff]
    %v3259 = vld [vmem:[#allocation5 + $0x5dd8] sm:$0xff]
    %v3260 = vld [vmem:[#allocation5 + $0x5de0] sm:$0xff]
    %v3261 = vld [vmem:[#allocation5 + $0x5de8] sm:$0xff]
    %v3262 = vld [vmem:[#allocation5 + $0x5df0] sm:$0xff]
    %v3263 = vld [vmem:[#allocation5 + $0x5df8] sm:$0xff]
    %v3264 = vld [vmem:[#allocation5 + $0x5e00] sm:$0xff]
    %v3265 = vld [vmem:[#allocation5 + $0x5e08] sm:$0xff]
    %v3266 = vld [vmem:[#allocation5 + $0x5e10] sm:$0xff]
    %v3267 = vld [vmem:[#allocation5 + $0x5e18] sm:$0xff]
    %v3268 = vld [vmem:[#allocation5 + $0x5e20] sm:$0xff]
    %v3269 = vld [vmem:[#allocation5 + $0x5e28] sm:$0xff]
    %v3270 = vld [vmem:[#allocation5 + $0x5e30] sm:$0xff]
    %v3271 = vld [vmem:[#allocation5 + $0x5e38] sm:$0xff]
    %v3272 = vld [vmem:[#allocation5 + $0x5e40] sm:$0xff]
    %v3273 = vld [vmem:[#allocation5 + $0x5e48] sm:$0xff]
    %v3274 = vld [vmem:[#allocation5 + $0x5e50] sm:$0xff]
    %v3275 = vld [vmem:[#allocation5 + $0x5e58] sm:$0xff]
    %v3276 = vld [vmem:[#allocation5 + $0x5e60] sm:$0xff]
    %v3277 = vld [vmem:[#allocation5 + $0x5e68] sm:$0xff]
    %v3278 = vld [vmem:[#allocation5 + $0x5e70] sm:$0xff]
    %v3279 = vld [vmem:[#allocation5 + $0x5e78] sm:$0xff]
    %v3280 = vld [vmem:[#allocation5 + $0x5e80] sm:$0xff]
    %v3281 = vld [vmem:[#allocation5 + $0x5e88] sm:$0xff]
    %v3282 = vld [vmem:[#allocation5 + $0x5e90] sm:$0xff]
    %v3283 = vld [vmem:[#allocation5 + $0x5e98] sm:$0xff]
    %v3284 = vld [vmem:[#allocation5 + $0x5ea0] sm:$0xff]
    %v3285 = vld [vmem:[#allocation5 + $0x5ea8] sm:$0xff]
    %v3286 = vld [vmem:[#allocation5 + $0x5eb0] sm:$0xff]
    %v3287 = vld [vmem:[#allocation5 + $0x5eb8] sm:$0xff]
    %v3288 = vld [vmem:[#allocation5 + $0x5ec0] sm:$0xff]
    %v3289 = vld [vmem:[#allocation5 + $0x5ec8] sm:$0xff]
    %v3290 = vld [vmem:[#allocation5 + $0x5ed0] sm:$0xff]
    %v3291 = vld [vmem:[#allocation5 + $0x5ed8] sm:$0xff]
    %v3292 = vld [vmem:[#allocation5 + $0x5ee0] sm:$0xff]
    %v3293 = vld [vmem:[#allocation5 + $0x5ee8] sm:$0xff]
    %v3294 = vld [vmem:[#allocation5 + $0x5ef0] sm:$0xff]
    %v3295 = vld [vmem:[#allocation5 + $0x5ef8] sm:$0xff]
    %v3296 = vld [vmem:[#allocation5 + $0x5f00] sm:$0xff]
    %v3297 = vld [vmem:[#allocation5 + $0x5f08] sm:$0xff]
    %v3298 = vld [vmem:[#allocation5 + $0x5f10] sm:$0xff]
    %v3299 = vld [vmem:[#allocation5 + $0x5f18] sm:$0xff]
    %v3300 = vld [vmem:[#allocation5 + $0x5f20] sm:$0xff]
    %v3301 = vld [vmem:[#allocation5 + $0x5f28] sm:$0xff]
    %v3302 = vld [vmem:[#allocation5 + $0x5f30] sm:$0xff]
    %v3303 = vld [vmem:[#allocation5 + $0x5f38] sm:$0xff]
    %v3304 = vld [vmem:[#allocation5 + $0x5f40] sm:$0xff]
    %v3305 = vld [vmem:[#allocation5 + $0x5f48] sm:$0xff]
    %v3306 = vld [vmem:[#allocation5 + $0x5f50] sm:$0xff]
    %v3307 = vld [vmem:[#allocation5 + $0x5f58] sm:$0xff]
    %v3308 = vld [vmem:[#allocation5 + $0x5f60] sm:$0xff]
    %v3309 = vld [vmem:[#allocation5 + $0x5f68] sm:$0xff]
    %v3310 = vld [vmem:[#allocation5 + $0x5f70] sm:$0xff]
    %v3311 = vld [vmem:[#allocation5 + $0x5f78] sm:$0xff]
    %v3312 = vld [vmem:[#allocation5 + $0x5f80] sm:$0xff]
    %v3313 = vld [vmem:[#allocation5 + $0x5f88] sm:$0xff]
    %v3314 = vld [vmem:[#allocation5 + $0x5f90] sm:$0xff]
    %v3315 = vld [vmem:[#allocation5 + $0x5f98] sm:$0xff]
    %v3316 = vld [vmem:[#allocation5 + $0x5fa0] sm:$0xff]
    %v3317 = vld [vmem:[#allocation5 + $0x5fa8] sm:$0xff]
    %v3318 = vld [vmem:[#allocation5 + $0x5fb0] sm:$0xff]
    %v3319 = vld [vmem:[#allocation5 + $0x5fb8] sm:$0xff]
    %v3320 = vld [vmem:[#allocation5 + $0x5fc0] sm:$0xff]
    %v3321 = vld [vmem:[#allocation5 + $0x5fc8] sm:$0xff]
    %v3322 = vld [vmem:[#allocation5 + $0x5fd0] sm:$0xff]
    %v3323 = vld [vmem:[#allocation5 + $0x5fd8] sm:$0xff]
    %v3324 = vld [vmem:[#allocation5 + $0x5fe0] sm:$0xff]
    %v3325 = vld [vmem:[#allocation5 + $0x5fe8] sm:$0xff]
    %v3326 = vld [vmem:[#allocation5 + $0x5ff0] sm:$0xff]
    %v3327 = vld [vmem:[#allocation5 + $0x5ff8] sm:$0xff]
    %v3328 = vld [vmem:[#allocation5 + $0x6000] sm:$0xff]
    %v3329 = vld [vmem:[#allocation5 + $0x6008] sm:$0xff]
    %v3330 = vld [vmem:[#allocation5 + $0x6010] sm:$0xff]
    %v3331 = vld [vmem:[#allocation5 + $0x6018] sm:$0xff]
    %v3332 = vld [vmem:[#allocation5 + $0x6020] sm:$0xff]
    %v3333 = vld [vmem:[#allocation5 + $0x6028] sm:$0xff]
    %v3334 = vld [vmem:[#allocation5 + $0x6030] sm:$0xff]
    %v3335 = vld [vmem:[#allocation5 + $0x6038] sm:$0xff]
    %v3336 = vld [vmem:[#allocation5 + $0x6040] sm:$0xff]
    %v3337 = vld [vmem:[#allocation5 + $0x6048] sm:$0xff]
    %v3338 = vld [vmem:[#allocation5 + $0x6050] sm:$0xff]
    %v3339 = vld [vmem:[#allocation5 + $0x6058] sm:$0xff]
    %v3340 = vld [vmem:[#allocation5 + $0x6060] sm:$0xff]
    %v3341 = vld [vmem:[#allocation5 + $0x6068] sm:$0xff]
    %v3342 = vld [vmem:[#allocation5 + $0x6070] sm:$0xff]
    %v3343 = vld [vmem:[#allocation5 + $0x6078] sm:$0xff]
    %v3344 = vld [vmem:[#allocation5 + $0x6080] sm:$0xff]
    %v3345 = vld [vmem:[#allocation5 + $0x6088] sm:$0xff]
    %v3346 = vld [vmem:[#allocation5 + $0x6090] sm:$0xff]
    %v3347 = vld [vmem:[#allocation5 + $0x6098] sm:$0xff]
    %v3348 = vld [vmem:[#allocation5 + $0x60a0] sm:$0xff]
    %v3349 = vld [vmem:[#allocation5 + $0x60a8] sm:$0xff]
    %v3350 = vld [vmem:[#allocation5 + $0x60b0] sm:$0xff]
    %v3351 = vld [vmem:[#allocation5 + $0x60b8] sm:$0xff]
    %v3352 = vld [vmem:[#allocation5 + $0x60c0] sm:$0xff]
    %v3353 = vld [vmem:[#allocation5 + $0x60c8] sm:$0xff]
    %v3354 = vld [vmem:[#allocation5 + $0x60d0] sm:$0xff]
    %v3355 = vld [vmem:[#allocation5 + $0x60d8] sm:$0xff]
    %v3356 = vld [vmem:[#allocation5 + $0x60e0] sm:$0xff]
    %v3357 = vld [vmem:[#allocation5 + $0x60e8] sm:$0xff]
    %v3358 = vld [vmem:[#allocation5 + $0x60f0] sm:$0xff]
    %v3359 = vld [vmem:[#allocation5 + $0x60f8] sm:$0xff]
    %v3360 = vld [vmem:[#allocation5 + $0x6100] sm:$0xff]
    %v3361 = vld [vmem:[#allocation5 + $0x6108] sm:$0xff]
    %v3362 = vld [vmem:[#allocation5 + $0x6110] sm:$0xff]
    %v3363 = vld [vmem:[#allocation5 + $0x6118] sm:$0xff]
    %v3364 = vld [vmem:[#allocation5 + $0x6120] sm:$0xff]
    %v3365 = vld [vmem:[#allocation5 + $0x6128] sm:$0xff]
    %v3366 = vld [vmem:[#allocation5 + $0x6130] sm:$0xff]
    %v3367 = vld [vmem:[#allocation5 + $0x6138] sm:$0xff]
    %v3368 = vld [vmem:[#allocation5 + $0x6140] sm:$0xff]
    %v3369 = vld [vmem:[#allocation5 + $0x6148] sm:$0xff]
    %v3370 = vld [vmem:[#allocation5 + $0x6150] sm:$0xff]
    %v3371 = vld [vmem:[#allocation5 + $0x6158] sm:$0xff]
    %v3372 = vld [vmem:[#allocation5 + $0x6160] sm:$0xff]
    %v3373 = vld [vmem:[#allocation5 + $0x6168] sm:$0xff]
    %v3374 = vld [vmem:[#allocation5 + $0x6170] sm:$0xff]
    %v3375 = vld [vmem:[#allocation5 + $0x6178] sm:$0xff]
    %v3376 = vld [vmem:[#allocation5 + $0x6180] sm:$0xff]
    %v3377 = vld [vmem:[#allocation5 + $0x6188] sm:$0xff]
    %v3378 = vld [vmem:[#allocation5 + $0x6190] sm:$0xff]
    %v3379 = vld [vmem:[#allocation5 + $0x6198] sm:$0xff]
    %v3380 = vld [vmem:[#allocation5 + $0x61a0] sm:$0xff]
    %v3381 = vld [vmem:[#allocation5 + $0x61a8] sm:$0xff]
    %v3382 = vld [vmem:[#allocation5 + $0x61b0] sm:$0xff]
    %v3383 = vld [vmem:[#allocation5 + $0x61b8] sm:$0xff]
    %v3384 = vld [vmem:[#allocation5 + $0x61c0] sm:$0xff]
    %v3385 = vld [vmem:[#allocation5 + $0x61c8] sm:$0xff]
    %v3386 = vld [vmem:[#allocation5 + $0x61d0] sm:$0xff]
    %v3387 = vld [vmem:[#allocation5 + $0x61d8] sm:$0xff]
    %v3388 = vld [vmem:[#allocation5 + $0x61e0] sm:$0xff]
    %v3389 = vld [vmem:[#allocation5 + $0x61e8] sm:$0xff]
    %v3390 = vld [vmem:[#allocation5 + $0x61f0] sm:$0xff]
    %v3391 = vld [vmem:[#allocation5 + $0x61f8] sm:$0xff]
    %v3392 = vld [vmem:[#allocation7] sm:$0x1]
    %v3394 = vperm.slane %v3392, 0
    %3592 = vst [vmem:[#allocation1] ss:$4 sm:$0xff] %v60
    %s3593 = scalar_lea.vmem [#allocation1], 1
    %3594 = vst [vmem:[%s3593] ss:$4 sm:$0xff] %v109
    %s3595 = scalar_lea.vmem [#allocation1], 2
    %3596 = vst [vmem:[%s3595] ss:$4 sm:$0xff] %v158
    %s3597 = scalar_lea.vmem [#allocation1], 3
    %3598 = vst [vmem:[%s3597] ss:$4 sm:$0xff] %v207
    %s3599 = scalar_lea.vmem [#allocation1], 32
    %3600 = vst [vmem:[%s3599] ss:$4 sm:$0xff] %v61
    %s3601 = scalar_lea.vmem [#allocation1], 33
    %3602 = vst [vmem:[%s3601] ss:$4 sm:$0xff] %v110
    %s3603 = scalar_lea.vmem [#allocation1], 34
    %3604 = vst [vmem:[%s3603] ss:$4 sm:$0xff] %v159
    %s3605 = scalar_lea.vmem [#allocation1], 35
    %3606 = vst [vmem:[%s3605] ss:$4 sm:$0xff] %v208
    %v3607 = vld.sshfl [vmem:[#allocation1] sm:$0xff pattern:$0x73625140]
    %v3608 = vld.sshfl [vmem:[#allocation1 + $0x8] sm:$0xff pattern:$0x73625140]
    %v3609 = vld.sshfl [vmem:[#allocation1 + $0x10] sm:$0xff pattern:$0x73625140]
    %v3610 = vld.sshfl [vmem:[#allocation1 + $0x18] sm:$0xff pattern:$0x73625140]
    %v3611 = vld.sshfl [vmem:[#allocation1 + $0x20] sm:$0xff pattern:$0x73625140]
    %v3612 = vld.sshfl [vmem:[#allocation1 + $0x28] sm:$0xff pattern:$0x73625140]
    %v3613 = vld.sshfl [vmem:[#allocation1 + $0x30] sm:$0xff pattern:$0x73625140]
    %v3614 = vld.sshfl [vmem:[#allocation1 + $0x38] sm:$0xff pattern:$0x73625140]
    %3615 = vst [vmem:[#allocation1] ss:$4 sm:$0xff] %v62
    %3616 = vst [vmem:[%s3593] ss:$4 sm:$0xff] %v111
    %3617 = vst [vmem:[%s3595] ss:$4 sm:$0xff] %v160
    %3618 = vst [vmem:[%s3597] ss:$4 sm:$0xff] %v209
    %3619 = vst [vmem:[%s3599] ss:$4 sm:$0xff] %v63
    %3620 = vst [vmem:[%s3601] ss:$4 sm:$0xff] %v112
    %3621 = vst [vmem:[%s3603] ss:$4 sm:$0xff] %v161
    %3622 = vst [vmem:[%s3605] ss:$4 sm:$0xff] %v210
    %v3623 = vld.sshfl [vmem:[#allocation1] sm:$0xff pattern:$0x73625140]
    %v3624 = vld.sshfl [vmem:[#allocation1 + $0x8] sm:$0xff pattern:$0x73625140]
    %v3625 = vld.sshfl [vmem:[#allocation1 + $0x10] sm:$0xff pattern:$0x73625140]
    %v3626 = vld.sshfl [vmem:[#allocation1 + $0x18] sm:$0xff pattern:$0x73625140]
    %v3627 = vld.sshfl [vmem:[#allocation1 + $0x20] sm:$0xff pattern:$0x73625140]
    %v3628 = vld.sshfl [vmem:[#allocation1 + $0x28] sm:$0xff pattern:$0x73625140]
    %v3629 = vld.sshfl [vmem:[#allocation1 + $0x30] sm:$0xff pattern:$0x73625140]
    %v3630 = vld.sshfl [vmem:[#allocation1 + $0x38] sm:$0xff pattern:$0x73625140]
    %3631 = vst [vmem:[#allocation1] ss:$4 sm:$0xff] %v64
    %3632 = vst [vmem:[%s3593] ss:$4 sm:$0xff] %v113
    %3633 = vst [vmem:[%s3595] ss:$4 sm:$0xff] %v162
    %3634 = vst [vmem:[%s3597] ss:$4 sm:$0xff] %v211
    %3635 = vst [vmem:[%s3599] ss:$4 sm:$0xff] %v65
    %3636 = vst [vmem:[%s3601] ss:$4 sm:$0xff] %v114
    %3637 = vst [vmem:[%s3603] ss:$4 sm:$0xff] %v163
    %3638 = vst [vmem:[%s3605] ss:$4 sm:$0xff] %v212
    %v3639 = vld.sshfl [vmem:[#allocation1] sm:$0xff pattern:$0x73625140]
    %v3640 = vld.sshfl [vmem:[#allocation1 + $0x8] sm:$0xff pattern:$0x73625140]
    %v3641 = vld.sshfl [vmem:[#allocation1 + $0x10] sm:$0xff pattern:$0x73625140]
    %v3642 = vld.sshfl [vmem:[#allocation1 + $0x18] sm:$0xff pattern:$0x73625140]
    %v3643 = vld.sshfl [vmem:[#allocation1 + $0x20] sm:$0xff pattern:$0x73625140]
    %v3644 = vld.sshfl [vmem:[#allocation1 + $0x28] sm:$0xff pattern:$0x73625140]
    %v3645 = vld.sshfl [vmem:[#allocation1 + $0x30] sm:$0xff pattern:$0x73625140]
    %v3646 = vld.sshfl [vmem:[#allocation1 + $0x38] sm:$0xff pattern:$0x73625140]
    %3647 = vst [vmem:[#allocation1] ss:$4 sm:$0xff] %v66
    %3648 = vst [vmem:[%s3593] ss:$4 sm:$0xff] %v115
    %3649 = vst [vmem:[%s3595] ss:$4 sm:$0xff] %v164
    %3650 = vst [vmem:[%s3597] ss:$4 sm:$0xff] %v213
    %3651 = vst [vmem:[%s3599] ss:$4 sm:$0xff] %v67
    %3652 = vst [vmem:[%s3601] ss:$4 sm:$0xff] %v116
    %3653 = vst [vmem:[%s3603] ss:$4 sm:$0xff] %v165
    %3654 = vst [vmem:[%s3605] ss:$4 sm:$0xff] %v214
    %v3655 = vld.sshfl [vmem:[#allocation1] sm:$0xff pattern:$0x73625140]
    %v3656 = vld.sshfl [vmem:[#allocation1 + $0x8] sm:$0xff pattern:$0x73625140]
    %v3657 = vld.sshfl [vmem:[#allocation1 + $0x10] sm:$0xff pattern:$0x73625140]
    %v3658 = vld.sshfl [vmem:[#allocation1 + $0x18] sm:$0xff pattern:$0x73625140]
    %v3659 = vld.sshfl [vmem:[#allocation1 + $0x20] sm:$0xff pattern:$0x73625140]
    %v3660 = vld.sshfl [vmem:[#allocation1 + $0x28] sm:$0xff pattern:$0x73625140]
    %v3661 = vld.sshfl [vmem:[#allocation1 + $0x30] sm:$0xff pattern:$0x73625140]
    %v3662 = vld.sshfl [vmem:[#allocation1 + $0x38] sm:$0xff pattern:$0x73625140]
    %3663 = vst [vmem:[#allocation1] ss:$4 sm:$0xff] %v68
    %3664 = vst [vmem:[%s3593] ss:$4 sm:$0xff] %v117
    %3665 = vst [vmem:[%s3595] ss:$4 sm:$0xff] %v166
    %3666 = vst [vmem:[%s3597] ss:$4 sm:$0xff] %v215
    %3667 = vst [vmem:[%s3599] ss:$4 sm:$0xff] %v69
    %3668 = vst [vmem:[%s3601] ss:$4 sm:$0xff] %v118
    %3669 = vst [vmem:[%s3603] ss:$4 sm:$0xff] %v167
    %3670 = vst [vmem:[%s3605] ss:$4 sm:$0xff] %v216
    %v3671 = vld.sshfl [vmem:[#allocation1] sm:$0xff pattern:$0x73625140]
    %v3672 = vld.sshfl [vmem:[#allocation1 + $0x8] sm:$0xff pattern:$0x73625140]
    %v3673 = vld.sshfl [vmem:[#allocation1 + $0x10] sm:$0xff pattern:$0x73625140]
    %v3674 = vld.sshfl [vmem:[#allocation1 + $0x18] sm:$0xff pattern:$0x73625140]
    %v3675 = vld.sshfl [vmem:[#allocation1 + $0x20] sm:$0xff pattern:$0x73625140]
    %v3676 = vld.sshfl [vmem:[#allocation1 + $0x28] sm:$0xff pattern:$0x73625140]
    %v3677 = vld.sshfl [vmem:[#allocation1 + $0x30] sm:$0xff pattern:$0x73625140]
    %v3678 = vld.sshfl [vmem:[#allocation1 + $0x38] sm:$0xff pattern:$0x73625140]
    %3679 = vst [vmem:[#allocation1] ss:$4 sm:$0xff] %v70
    %3680 = vst [vmem:[%s3593] ss:$4 sm:$0xff] %v119
    %3681 = vst [vmem:[%s3595] ss:$4 sm:$0xff] %v168
    %3682 = vst [vmem:[%s3597] ss:$4 sm:$0xff] %v217
    %3683 = vst [vmem:[%s3599] ss:$4 sm:$0xff] %v71
    %3684 = vst [vmem:[%s3601] ss:$4 sm:$0xff] %v120
    %3685 = vst [vmem:[%s3603] ss:$4 sm:$0xff] %v169
    %3686 = vst [vmem:[%s3605] ss:$4 sm:$0xff] %v218
    %v3687 = vld.sshfl [vmem:[#allocation1] sm:$0xff pattern:$0x73625140]
    %v3688 = vld.sshfl [vmem:[#allocation1 + $0x8] sm:$0xff pattern:$0x73625140]
    %v3689 = vld.sshfl [vmem:[#allocation1 + $0x10] sm:$0xff pattern:$0x73625140]
    %v3690 = vld.sshfl [vmem:[#allocation1 + $0x18] sm:$0xff pattern:$0x73625140]
    %v3691 = vld.sshfl [vmem:[#allocation1 + $0x20] sm:$0xff pattern:$0x73625140]
    %v3692 = vld.sshfl [vmem:[#allocation1 + $0x28] sm:$0xff pattern:$0x73625140]
    %v3693 = vld.sshfl [vmem:[#allocation1 + $0x30] sm:$0xff pattern:$0x73625140]
    %v3694 = vld.sshfl [vmem:[#allocation1 + $0x38] sm:$0xff pattern:$0x73625140]
    %3695 = vst [vmem:[#allocation1] ss:$4 sm:$0xff] %v72
    %3696 = vst [vmem:[%s3593] ss:$4 sm:$0xff] %v121
    %3697 = vst [vmem:[%s3595] ss:$4 sm:$0xff] %v170
    %3698 = vst [vmem:[%s3597] ss:$4 sm:$0xff] %v219
    %3699 = vst [vmem:[%s3599] ss:$4 sm:$0xff] %v73
    %3700 = vst [vmem:[%s3601] ss:$4 sm:$0xff] %v122
    %3701 = vst [vmem:[%s3603] ss:$4 sm:$0xff] %v171
    %3702 = vst [vmem:[%s3605] ss:$4 sm:$0xff] %v220
    %v3703 = vld.sshfl [vmem:[#allocation1] sm:$0xff pattern:$0x73625140]
    %v3704 = vld.sshfl [vmem:[#allocation1 + $0x8] sm:$0xff pattern:$0x73625140]
    %v3705 = vld.sshfl [vmem:[#allocation1 + $0x10] sm:$0xff pattern:$0x73625140]
    %v3706 = vld.sshfl [vmem:[#allocation1 + $0x18] sm:$0xff pattern:$0x73625140]
    %v3707 = vld.sshfl [vmem:[#allocation1 + $0x20] sm:$0xff pattern:$0x73625140]
    %v3708 = vld.sshfl [vmem:[#allocation1 + $0x28] sm:$0xff pattern:$0x73625140]
    %v3709 = vld.sshfl [vmem:[#allocation1 + $0x30] sm:$0xff pattern:$0x73625140]
    %v3710 = vld.sshfl [vmem:[#allocation1 + $0x38] sm:$0xff pattern:$0x73625140]
    %3711 = vst [vmem:[#allocation1] ss:$4 sm:$0xff] %v74
    %3712 = vst [vmem:[%s3593] ss:$4 sm:$0xff] %v123
    %3713 = vst [vmem:[%s3595] ss:$4 sm:$0xff] %v172
    %3714 = vst [vmem:[%s3597] ss:$4 sm:$0xff] %v221
    %3715 = vst [vmem:[%s3599] ss:$4 sm:$0xff] %v75
    %3716 = vst [vmem:[%s3601] ss:$4 sm:$0xff] %v124
    %3717 = vst [vmem:[%s3603] ss:$4 sm:$0xff] %v173
    %3718 = vst [vmem:[%s3605] ss:$4 sm:$0xff] %v222
    %v3719 = vld.sshfl [vmem:[#allocation1] sm:$0xff pattern:$0x73625140]
    %v3720 = vld.sshfl [vmem:[#allocation1 + $0x8] sm:$0xff pattern:$0x73625140]
    %v3721 = vld.sshfl [vmem:[#allocation1 + $0x10] sm:$0xff pattern:$0x73625140]
    %v3722 = vld.sshfl [vmem:[#allocation1 + $0x18] sm:$0xff pattern:$0x73625140]
    %v3723 = vld.sshfl [vmem:[#allocation1 + $0x20] sm:$0xff pattern:$0x73625140]
    %v3724 = vld.sshfl [vmem:[#allocation1 + $0x28] sm:$0xff pattern:$0x73625140]
    %v3725 = vld.sshfl [vmem:[#allocation1 + $0x30] sm:$0xff pattern:$0x73625140]
    %v3726 = vld.sshfl [vmem:[#allocation1 + $0x38] sm:$0xff pattern:$0x73625140]
    %3727 = vst [vmem:[#allocation1] ss:$4 sm:$0xff] %v76
    %3728 = vst [vmem:[%s3593] ss:$4 sm:$0xff] %v125
    %3729 = vst [vmem:[%s3595] ss:$4 sm:$0xff] %v174
    %3730 = vst [vmem:[%s3597] ss:$4 sm:$0xff] %v223
    %3731 = vst [vmem:[%s3599] ss:$4 sm:$0xff] %v77
    %3732 = vst [vmem:[%s3601] ss:$4 sm:$0xff] %v126
    %3733 = vst [vmem:[%s3603] ss:$4 sm:$0xff] %v175
    %3734 = vst [vmem:[%s3605] ss:$4 sm:$0xff] %v224
    %v3735 = vld.sshfl [vmem:[#allocation1] sm:$0xff pattern:$0x73625140]
    %v3736 = vld.sshfl [vmem:[#allocation1 + $0x8] sm:$0xff pattern:$0x73625140]
    %v3737 = vld.sshfl [vmem:[#allocation1 + $0x10] sm:$0xff pattern:$0x73625140]
    %v3738 = vld.sshfl [vmem:[#allocation1 + $0x18] sm:$0xff pattern:$0x73625140]
    %v3739 = vld.sshfl [vmem:[#allocation1 + $0x20] sm:$0xff pattern:$0x73625140]
    %v3740 = vld.sshfl [vmem:[#allocation1 + $0x28] sm:$0xff pattern:$0x73625140]
    %v3741 = vld.sshfl [vmem:[#allocation1 + $0x30] sm:$0xff pattern:$0x73625140]
    %v3742 = vld.sshfl [vmem:[#allocation1 + $0x38] sm:$0xff pattern:$0x73625140]
    %3743 = vst [vmem:[#allocation1] ss:$4 sm:$0xff] %v78
    %3744 = vst [vmem:[%s3593] ss:$4 sm:$0xff] %v127
    %3745 = vst [vmem:[%s3595] ss:$4 sm:$0xff] %v176
    %3746 = vst [vmem:[%s3597] ss:$4 sm:$0xff] %v225
    %3747 = vst [vmem:[%s3599] ss:$4 sm:$0xff] %v79
    %3748 = vst [vmem:[%s3601] ss:$4 sm:$0xff] %v128
    %3749 = vst [vmem:[%s3603] ss:$4 sm:$0xff] %v177
    %3750 = vst [vmem:[%s3605] ss:$4 sm:$0xff] %v226
    %v3751 = vld.sshfl [vmem:[#allocation1] sm:$0xff pattern:$0x73625140]
    %v3752 = vld.sshfl [vmem:[#allocation1 + $0x8] sm:$0xff pattern:$0x73625140]
    %v3753 = vld.sshfl [vmem:[#allocation1 + $0x10] sm:$0xff pattern:$0x73625140]
    %v3754 = vld.sshfl [vmem:[#allocation1 + $0x18] sm:$0xff pattern:$0x73625140]
    %v3755 = vld.sshfl [vmem:[#allocation1 + $0x20] sm:$0xff pattern:$0x73625140]
    %v3756 = vld.sshfl [vmem:[#allocation1 + $0x28] sm:$0xff pattern:$0x73625140]
    %v3757 = vld.sshfl [vmem:[#allocation1 + $0x30] sm:$0xff pattern:$0x73625140]
    %v3758 = vld.sshfl [vmem:[#allocation1 + $0x38] sm:$0xff pattern:$0x73625140]
    %3759 = vst [vmem:[#allocation1] ss:$4 sm:$0xff] %v80
    %3760 = vst [vmem:[%s3593] ss:$4 sm:$0xff] %v129
    %3761 = vst [vmem:[%s3595] ss:$4 sm:$0xff] %v178
    %3762 = vst [vmem:[%s3597] ss:$4 sm:$0xff] %v227
    %3763 = vst [vmem:[%s3599] ss:$4 sm:$0xff] %v81
    %3764 = vst [vmem:[%s3601] ss:$4 sm:$0xff] %v130
    %3765 = vst [vmem:[%s3603] ss:$4 sm:$0xff] %v179
    %3766 = vst [vmem:[%s3605] ss:$4 sm:$0xff] %v228
    %v3767 = vld.sshfl [vmem:[#allocation1] sm:$0xff pattern:$0x73625140]
    %v3768 = vld.sshfl [vmem:[#allocation1 + $0x8] sm:$0xff pattern:$0x73625140]
    %v3769 = vld.sshfl [vmem:[#allocation1 + $0x10] sm:$0xff pattern:$0x73625140]
    %v3770 = vld.sshfl [vmem:[#allocation1 + $0x18] sm:$0xff pattern:$0x73625140]
    %v3771 = vld.sshfl [vmem:[#allocation1 + $0x20] sm:$0xff pattern:$0x73625140]
    %v3772 = vld.sshfl [vmem:[#allocation1 + $0x28] sm:$0xff pattern:$0x73625140]
    %v3773 = vld.sshfl [vmem:[#allocation1 + $0x30] sm:$0xff pattern:$0x73625140]
    %v3774 = vld.sshfl [vmem:[#allocation1 + $0x38] sm:$0xff pattern:$0x73625140]
    %3775 = vst [vmem:[#allocation1] ss:$4 sm:$0xff] %v82
    %3776 = vst [vmem:[%s3593] ss:$4 sm:$0xff] %v131
    %3777 = vst [vmem:[%s3595] ss:$4 sm:$0xff] %v180
    %3778 = vst [vmem:[%s3597] ss:$4 sm:$0xff] %v229
    %3779 = vst [vmem:[%s3599] ss:$4 sm:$0xff] %v83
    %3780 = vst [vmem:[%s3601] ss:$4 sm:$0xff] %v132
    %3781 = vst [vmem:[%s3603] ss:$4 sm:$0xff] %v181
    %3782 = vst [vmem:[%s3605] ss:$4 sm:$0xff] %v230
    %v3783 = vld.sshfl [vmem:[#allocation1] sm:$0xff pattern:$0x73625140]
    %v3784 = vld.sshfl [vmem:[#allocation1 + $0x8] sm:$0xff pattern:$0x73625140]
    %v3785 = vld.sshfl [vmem:[#allocation1 + $0x10] sm:$0xff pattern:$0x73625140]
    %v3786 = vld.sshfl [vmem:[#allocation1 + $0x18] sm:$0xff pattern:$0x73625140]
    %v3787 = vld.sshfl [vmem:[#allocation1 + $0x20] sm:$0xff pattern:$0x73625140]
    %v3788 = vld.sshfl [vmem:[#allocation1 + $0x28] sm:$0xff pattern:$0x73625140]
    %v3789 = vld.sshfl [vmem:[#allocation1 + $0x30] sm:$0xff pattern:$0x73625140]
    %v3790 = vld.sshfl [vmem:[#allocation1 + $0x38] sm:$0xff pattern:$0x73625140]
    %3791 = vst [vmem:[#allocation1] ss:$4 sm:$0xff] %v84
    %3792 = vst [vmem:[%s3593] ss:$4 sm:$0xff] %v133
    %3793 = vst [vmem:[%s3595] ss:$4 sm:$0xff] %v182
    %3794 = vst [vmem:[%s3597] ss:$4 sm:$0xff] %v231
    %3795 = vst [vmem:[%s3599] ss:$4 sm:$0xff] %v85
    %3796 = vst [vmem:[%s3601] ss:$4 sm:$0xff] %v134
    %3797 = vst [vmem:[%s3603] ss:$4 sm:$0xff] %v183
    %3798 = vst [vmem:[%s3605] ss:$4 sm:$0xff] %v232
    %v3799 = vld.sshfl [vmem:[#allocation1] sm:$0xff pattern:$0x73625140]
    %v3800 = vld.sshfl [vmem:[#allocation1 + $0x8] sm:$0xff pattern:$0x73625140]
    %v3801 = vld.sshfl [vmem:[#allocation1 + $0x10] sm:$0xff pattern:$0x73625140]
    %v3802 = vld.sshfl [vmem:[#allocation1 + $0x18] sm:$0xff pattern:$0x73625140]
    %v3803 = vld.sshfl [vmem:[#allocation1 + $0x20] sm:$0xff pattern:$0x73625140]
    %v3804 = vld.sshfl [vmem:[#allocation1 + $0x28] sm:$0xff pattern:$0x73625140]
    %v3805 = vld.sshfl [vmem:[#allocation1 + $0x30] sm:$0xff pattern:$0x73625140]
    %v3806 = vld.sshfl [vmem:[#allocation1 + $0x38] sm:$0xff pattern:$0x73625140]
    %3807 = vst [vmem:[#allocation1] ss:$4 sm:$0xff] %v86
    %3808 = vst [vmem:[%s3593] ss:$4 sm:$0xff] %v135
    %3809 = vst [vmem:[%s3595] ss:$4 sm:$0xff] %v184
    %3810 = vst [vmem:[%s3597] ss:$4 sm:$0xff] %v233
    %3811 = vst [vmem:[%s3599] ss:$4 sm:$0xff] %v87
    %3812 = vst [vmem:[%s3601] ss:$4 sm:$0xff] %v136
    %3813 = vst [vmem:[%s3603] ss:$4 sm:$0xff] %v185
    %3814 = vst [vmem:[%s3605] ss:$4 sm:$0xff] %v234
    %v3815 = vld.sshfl [vmem:[#allocation1] sm:$0xff pattern:$0x73625140]
    %v3816 = vld.sshfl [vmem:[#allocation1 + $0x8] sm:$0xff pattern:$0x73625140]
    %v3817 = vld.sshfl [vmem:[#allocation1 + $0x10] sm:$0xff pattern:$0x73625140]
    %v3818 = vld.sshfl [vmem:[#allocation1 + $0x18] sm:$0xff pattern:$0x73625140]
    %v3819 = vld.sshfl [vmem:[#allocation1 + $0x20] sm:$0xff pattern:$0x73625140]
    %v3820 = vld.sshfl [vmem:[#allocation1 + $0x28] sm:$0xff pattern:$0x73625140]
    %v3821 = vld.sshfl [vmem:[#allocation1 + $0x30] sm:$0xff pattern:$0x73625140]
    %v3822 = vld.sshfl [vmem:[#allocation1 + $0x38] sm:$0xff pattern:$0x73625140]
    %3823 = vst [vmem:[#allocation1] ss:$4 sm:$0xff] %v88
    %3824 = vst [vmem:[%s3593] ss:$4 sm:$0xff] %v137
    %3825 = vst [vmem:[%s3595] ss:$4 sm:$0xff] %v186
    %3826 = vst [vmem:[%s3597] ss:$4 sm:$0xff] %v235
    %3827 = vst [vmem:[%s3599] ss:$4 sm:$0xff] %v89
    %3828 = vst [vmem:[%s3601] ss:$4 sm:$0xff] %v138
    %3829 = vst [vmem:[%s3603] ss:$4 sm:$0xff] %v187
    %3830 = vst [vmem:[%s3605] ss:$4 sm:$0xff] %v236
    %v3831 = vld.sshfl [vmem:[#allocation1] sm:$0xff pattern:$0x73625140]
    %v3832 = vld.sshfl [vmem:[#allocation1 + $0x8] sm:$0xff pattern:$0x73625140]
    %v3833 = vld.sshfl [vmem:[#allocation1 + $0x10] sm:$0xff pattern:$0x73625140]
    %v3834 = vld.sshfl [vmem:[#allocation1 + $0x18] sm:$0xff pattern:$0x73625140]
    %v3835 = vld.sshfl [vmem:[#allocation1 + $0x20] sm:$0xff pattern:$0x73625140]
    %v3836 = vld.sshfl [vmem:[#allocation1 + $0x28] sm:$0xff pattern:$0x73625140]
    %v3837 = vld.sshfl [vmem:[#allocation1 + $0x30] sm:$0xff pattern:$0x73625140]
    %v3838 = vld.sshfl [vmem:[#allocation1 + $0x38] sm:$0xff pattern:$0x73625140]
    %3839 = vst [vmem:[#allocation1] ss:$4 sm:$0xff] %v90
    %3840 = vst [vmem:[%s3593] ss:$4 sm:$0xff] %v139
    %3841 = vst [vmem:[%s3595] ss:$4 sm:$0xff] %v188
    %3842 = vst [vmem:[%s3597] ss:$4 sm:$0xff] %v237
    %3843 = vst [vmem:[%s3599] ss:$4 sm:$0xff] %v91
    %3844 = vst [vmem:[%s3601] ss:$4 sm:$0xff] %v140
    %3845 = vst [vmem:[%s3603] ss:$4 sm:$0xff] %v189
    %3846 = vst [vmem:[%s3605] ss:$4 sm:$0xff] %v238
    %v3847 = vld.sshfl [vmem:[#allocation1] sm:$0xff pattern:$0x73625140]
    %v3848 = vld.sshfl [vmem:[#allocation1 + $0x8] sm:$0xff pattern:$0x73625140]
    %v3849 = vld.sshfl [vmem:[#allocation1 + $0x10] sm:$0xff pattern:$0x73625140]
    %v3850 = vld.sshfl [vmem:[#allocation1 + $0x18] sm:$0xff pattern:$0x73625140]
    %v3851 = vld.sshfl [vmem:[#allocation1 + $0x20] sm:$0xff pattern:$0x73625140]
    %v3852 = vld.sshfl [vmem:[#allocation1 + $0x28] sm:$0xff pattern:$0x73625140]
    %v3853 = vld.sshfl [vmem:[#allocation1 + $0x30] sm:$0xff pattern:$0x73625140]
    %v3854 = vld.sshfl [vmem:[#allocation1 + $0x38] sm:$0xff pattern:$0x73625140]
    %3855 = vst [vmem:[#allocation1] ss:$4 sm:$0xff] %v92
    %3856 = vst [vmem:[%s3593] ss:$4 sm:$0xff] %v141
    %3857 = vst [vmem:[%s3595] ss:$4 sm:$0xff] %v190
    %3858 = vst [vmem:[%s3597] ss:$4 sm:$0xff] %v239
    %3859 = vst [vmem:[%s3599] ss:$4 sm:$0xff] %v93
    %3860 = vst [vmem:[%s3601] ss:$4 sm:$0xff] %v142
    %3861 = vst [vmem:[%s3603] ss:$4 sm:$0xff] %v191
    %3862 = vst [vmem:[%s3605] ss:$4 sm:$0xff] %v240
    %v3863 = vld.sshfl [vmem:[#allocation1] sm:$0xff pattern:$0x73625140]
    %v3864 = vld.sshfl [vmem:[#allocation1 + $0x8] sm:$0xff pattern:$0x73625140]
    %v3865 = vld.sshfl [vmem:[#allocation1 + $0x10] sm:$0xff pattern:$0x73625140]
    %v3866 = vld.sshfl [vmem:[#allocation1 + $0x18] sm:$0xff pattern:$0x73625140]
    %v3867 = vld.sshfl [vmem:[#allocation1 + $0x20] sm:$0xff pattern:$0x73625140]
    %v3868 = vld.sshfl [vmem:[#allocation1 + $0x28] sm:$0xff pattern:$0x73625140]
    %v3869 = vld.sshfl [vmem:[#allocation1 + $0x30] sm:$0xff pattern:$0x73625140]
    %v3870 = vld.sshfl [vmem:[#allocation1 + $0x38] sm:$0xff pattern:$0x73625140]
    %3871 = vst [vmem:[#allocation1] ss:$4 sm:$0xff] %v94
    %3872 = vst [vmem:[%s3593] ss:$4 sm:$0xff] %v143
    %3873 = vst [vmem:[%s3595] ss:$4 sm:$0xff] %v192
    %3874 = vst [vmem:[%s3597] ss:$4 sm:$0xff] %v241
    %3875 = vst [vmem:[%s3599] ss:$4 sm:$0xff] %v95
    %3876 = vst [vmem:[%s3601] ss:$4 sm:$0xff] %v144
    %3877 = vst [vmem:[%s3603] ss:$4 sm:$0xff] %v193
    %3878 = vst [vmem:[%s3605] ss:$4 sm:$0xff] %v242
    %v3879 = vld.sshfl [vmem:[#allocation1] sm:$0xff pattern:$0x73625140]
    %v3880 = vld.sshfl [vmem:[#allocation1 + $0x8] sm:$0xff pattern:$0x73625140]
    %v3881 = vld.sshfl [vmem:[#allocation1 + $0x10] sm:$0xff pattern:$0x73625140]
    %v3882 = vld.sshfl [vmem:[#allocation1 + $0x18] sm:$0xff pattern:$0x73625140]
    %v3883 = vld.sshfl [vmem:[#allocation1 + $0x20] sm:$0xff pattern:$0x73625140]
    %v3884 = vld.sshfl [vmem:[#allocation1 + $0x28] sm:$0xff pattern:$0x73625140]
    %v3885 = vld.sshfl [vmem:[#allocation1 + $0x30] sm:$0xff pattern:$0x73625140]
    %v3886 = vld.sshfl [vmem:[#allocation1 + $0x38] sm:$0xff pattern:$0x73625140]
    %3887 = vst [vmem:[#allocation1] ss:$4 sm:$0xff] %v96
    %3888 = vst [vmem:[%s3593] ss:$4 sm:$0xff] %v145
    %3889 = vst [vmem:[%s3595] ss:$4 sm:$0xff] %v194
    %3890 = vst [vmem:[%s3597] ss:$4 sm:$0xff] %v243
    %3891 = vst [vmem:[%s3599] ss:$4 sm:$0xff] %v97
    %3892 = vst [vmem:[%s3601] ss:$4 sm:$0xff] %v146
    %3893 = vst [vmem:[%s3603] ss:$4 sm:$0xff] %v195
    %3894 = vst [vmem:[%s3605] ss:$4 sm:$0xff] %v244
    %v3895 = vld.sshfl [vmem:[#allocation1] sm:$0xff pattern:$0x73625140]
    %v3896 = vld.sshfl [vmem:[#allocation1 + $0x8] sm:$0xff pattern:$0x73625140]
    %v3897 = vld.sshfl [vmem:[#allocation1 + $0x10] sm:$0xff pattern:$0x73625140]
    %v3898 = vld.sshfl [vmem:[#allocation1 + $0x18] sm:$0xff pattern:$0x73625140]
    %v3899 = vld.sshfl [vmem:[#allocation1 + $0x20] sm:$0xff pattern:$0x73625140]
    %v3900 = vld.sshfl [vmem:[#allocation1 + $0x28] sm:$0xff pattern:$0x73625140]
    %v3901 = vld.sshfl [vmem:[#allocation1 + $0x30] sm:$0xff pattern:$0x73625140]
    %v3902 = vld.sshfl [vmem:[#allocation1 + $0x38] sm:$0xff pattern:$0x73625140]
    %3903 = vst [vmem:[#allocation1] ss:$4 sm:$0xff] %v98
    %3904 = vst [vmem:[%s3593] ss:$4 sm:$0xff] %v147
    %3905 = vst [vmem:[%s3595] ss:$4 sm:$0xff] %v196
    %3906 = vst [vmem:[%s3597] ss:$4 sm:$0xff] %v245
    %3907 = vst [vmem:[%s3599] ss:$4 sm:$0xff] %v99
    %3908 = vst [vmem:[%s3601] ss:$4 sm:$0xff] %v148
    %3909 = vst [vmem:[%s3603] ss:$4 sm:$0xff] %v197
    %3910 = vst [vmem:[%s3605] ss:$4 sm:$0xff] %v246
    %v3911 = vld.sshfl [vmem:[#allocation1] sm:$0xff pattern:$0x73625140]
    %v3912 = vld.sshfl [vmem:[#allocation1 + $0x8] sm:$0xff pattern:$0x73625140]
    %v3913 = vld.sshfl [vmem:[#allocation1 + $0x10] sm:$0xff pattern:$0x73625140]
    %v3914 = vld.sshfl [vmem:[#allocation1 + $0x18] sm:$0xff pattern:$0x73625140]
    %v3915 = vld.sshfl [vmem:[#allocation1 + $0x20] sm:$0xff pattern:$0x73625140]
    %v3916 = vld.sshfl [vmem:[#allocation1 + $0x28] sm:$0xff pattern:$0x73625140]
    %v3917 = vld.sshfl [vmem:[#allocation1 + $0x30] sm:$0xff pattern:$0x73625140]
    %v3918 = vld.sshfl [vmem:[#allocation1 + $0x38] sm:$0xff pattern:$0x73625140]
    %3919 = vst [vmem:[#allocation1] ss:$4 sm:$0xff] %v100
    %3920 = vst [vmem:[%s3593] ss:$4 sm:$0xff] %v149
    %3921 = vst [vmem:[%s3595] ss:$4 sm:$0xff] %v198
    %3922 = vst [vmem:[%s3597] ss:$4 sm:$0xff] %v247
    %3923 = vst [vmem:[%s3599] ss:$4 sm:$0xff] %v101
    %3924 = vst [vmem:[%s3601] ss:$4 sm:$0xff] %v150
    %3925 = vst [vmem:[%s3603] ss:$4 sm:$0xff] %v199
    %3926 = vst [vmem:[%s3605] ss:$4 sm:$0xff] %v248
    %v3927 = vld.sshfl [vmem:[#allocation1] sm:$0xff pattern:$0x73625140]
    %v3928 = vld.sshfl [vmem:[#allocation1 + $0x8] sm:$0xff pattern:$0x73625140]
    %v3929 = vld.sshfl [vmem:[#allocation1 + $0x10] sm:$0xff pattern:$0x73625140]
    %v3930 = vld.sshfl [vmem:[#allocation1 + $0x18] sm:$0xff pattern:$0x73625140]
    %v3931 = vld.sshfl [vmem:[#allocation1 + $0x20] sm:$0xff pattern:$0x73625140]
    %v3932 = vld.sshfl [vmem:[#allocation1 + $0x28] sm:$0xff pattern:$0x73625140]
    %v3933 = vld.sshfl [vmem:[#allocation1 + $0x30] sm:$0xff pattern:$0x73625140]
    %v3934 = vld.sshfl [vmem:[#allocation1 + $0x38] sm:$0xff pattern:$0x73625140]
    %3935 = vst [vmem:[#allocation1] ss:$4 sm:$0xff] %v102
    %3936 = vst [vmem:[%s3593] ss:$4 sm:$0xff] %v151
    %3937 = vst [vmem:[%s3595] ss:$4 sm:$0xff] %v200
    %3938 = vst [vmem:[%s3597] ss:$4 sm:$0xff] %v249
    %3939 = vst [vmem:[%s3599] ss:$4 sm:$0xff] %v103
    %3940 = vst [vmem:[%s3601] ss:$4 sm:$0xff] %v152
    %3941 = vst [vmem:[%s3603] ss:$4 sm:$0xff] %v201
    %3942 = vst [vmem:[%s3605] ss:$4 sm:$0xff] %v250
    %v3943 = vld.sshfl [vmem:[#allocation1] sm:$0xff pattern:$0x73625140]
    %v3944 = vld.sshfl [vmem:[#allocation1 + $0x8] sm:$0xff pattern:$0x73625140]
    %v3945 = vld.sshfl [vmem:[#allocation1 + $0x10] sm:$0xff pattern:$0x73625140]
    %v3946 = vld.sshfl [vmem:[#allocation1 + $0x18] sm:$0xff pattern:$0x73625140]
    %v3947 = vld.sshfl [vmem:[#allocation1 + $0x20] sm:$0xff pattern:$0x73625140]
    %v3948 = vld.sshfl [vmem:[#allocation1 + $0x28] sm:$0xff pattern:$0x73625140]
    %v3949 = vld.sshfl [vmem:[#allocation1 + $0x30] sm:$0xff pattern:$0x73625140]
    %v3950 = vld.sshfl [vmem:[#allocation1 + $0x38] sm:$0xff pattern:$0x73625140]
    %3951 = vst [vmem:[#allocation1] ss:$4 sm:$0xff] %v104
    %3952 = vst [vmem:[%s3593] ss:$4 sm:$0xff] %v153
    %3953 = vst [vmem:[%s3595] ss:$4 sm:$0xff] %v202
    %3954 = vst [vmem:[%s3597] ss:$4 sm:$0xff] %v251
    %3955 = vst [vmem:[%s3599] ss:$4 sm:$0xff] %v105
    %3956 = vst [vmem:[%s3601] ss:$4 sm:$0xff] %v154
    %3957 = vst [vmem:[%s3603] ss:$4 sm:$0xff] %v203
    %3958 = vst [vmem:[%s3605] ss:$4 sm:$0xff] %v252
    %v3959 = vld.sshfl [vmem:[#allocation1] sm:$0xff pattern:$0x73625140]
    %v3960 = vld.sshfl [vmem:[#allocation1 + $0x8] sm:$0xff pattern:$0x73625140]
    %v3961 = vld.sshfl [vmem:[#allocation1 + $0x10] sm:$0xff pattern:$0x73625140]
    %v3962 = vld.sshfl [vmem:[#allocation1 + $0x18] sm:$0xff pattern:$0x73625140]
    %v3963 = vld.sshfl [vmem:[#allocation1 + $0x20] sm:$0xff pattern:$0x73625140]
    %v3964 = vld.sshfl [vmem:[#allocation1 + $0x28] sm:$0xff pattern:$0x73625140]
    %v3965 = vld.sshfl [vmem:[#allocation1 + $0x30] sm:$0xff pattern:$0x73625140]
    %v3966 = vld.sshfl [vmem:[#allocation1 + $0x38] sm:$0xff pattern:$0x73625140]
    %3967 = vst [vmem:[#allocation1] ss:$4 sm:$0xff] %v106
    %3968 = vst [vmem:[%s3593] ss:$4 sm:$0xff] %v155
    %3969 = vst [vmem:[%s3595] ss:$4 sm:$0xff] %v204
    %3970 = vst [vmem:[%s3597] ss:$4 sm:$0xff] %v253
    %3971 = vst [vmem:[%s3599] ss:$4 sm:$0xff] %v107
    %3972 = vst [vmem:[%s3601] ss:$4 sm:$0xff] %v156
    %3973 = vst [vmem:[%s3603] ss:$4 sm:$0xff] %v205
    %3974 = vst [vmem:[%s3605] ss:$4 sm:$0xff] %v254
    %v3975 = vld.sshfl [vmem:[#allocation1] sm:$0xff pattern:$0x73625140]
    %v3976 = vld.sshfl [vmem:[#allocation1 + $0x8] sm:$0xff pattern:$0x73625140]
    %v3977 = vld.sshfl [vmem:[#allocation1 + $0x10] sm:$0xff pattern:$0x73625140]
    %v3978 = vld.sshfl [vmem:[#allocation1 + $0x18] sm:$0xff pattern:$0x73625140]
    %v3979 = vld.sshfl [vmem:[#allocation1 + $0x20] sm:$0xff pattern:$0x73625140]
    %v3980 = vld.sshfl [vmem:[#allocation1 + $0x28] sm:$0xff pattern:$0x73625140]
    %v3981 = vld.sshfl [vmem:[#allocation1 + $0x30] sm:$0xff pattern:$0x73625140]
    %v3982 = vld.sshfl [vmem:[#allocation1 + $0x38] sm:$0xff pattern:$0x73625140]
    %3983 = vst [vmem:[#allocation1] ss:$4 sm:$0xff] %v108
    %3984 = vst [vmem:[%s3593] ss:$4 sm:$0xff] %v157
    %3985 = vst [vmem:[%s3595] ss:$4 sm:$0xff] %v206
    %3986 = vst [vmem:[%s3597] ss:$4 sm:$0xff] %v255
    %v3987 = vld.sshfl [vmem:[#allocation1] sm:$0xff pattern:$0x73625140]
    %v3988 = vld.sshfl [vmem:[#allocation1 + $0x8] sm:$0xff pattern:$0x73625140]
    %v3989 = vld.sshfl [vmem:[#allocation1 + $0x10] sm:$0xff pattern:$0x73625140]
    %v3990 = vld.sshfl [vmem:[#allocation1 + $0x18] sm:$0xff pattern:$0x73625140]
    %4187 = vmatpush.msra.mxu0 %v271
    %4188 = vmatpush.msra.mxu0 %v270
    %4189 = vmatpush.msra.mxu0 %v269
    %4190 = vmatpush.msra.mxu0 %v268
    %4191 = vmatpush.msra.mxu0 %v267
    %4192 = vmatpush.msra.mxu0 %v266
    %4193 = vmatpush.msra.mxu0 %v265
    %4194 = vmatpush.msra.mxu0 %v264
    %4195 = vmatpush.msra.mxu0 %v263
    %4196 = vmatpush.msra.mxu0 %v262
    %4197 = vmatpush.msra.mxu0 %v261
    %4198 = vmatpush.msra.mxu0 %v260
    %4199 = vmatpush.msra.mxu0 %v259
    %4200 = vmatpush.msra.mxu0 %v258
    %4201 = vmatpush.msra.mxu0 %v257
    %4202 = vmatpush.msra.mxu0 %v256
    %4203 = vmatmul.f32.gmra.mxu0 %v3607
    %v4204 = vpop.f32.mrf.mxu0
    %v4205 = vadd.f32 %v3394, %v4204
    %4206 = vdwg.mxu0
    %4207 = vmatpush.msra.mxu0 %v287
    %4208 = vmatpush.msra.mxu0 %v286
    %4209 = vmatpush.msra.mxu0 %v285
    %4210 = vmatpush.msra.mxu0 %v284
    %4211 = vmatpush.msra.mxu0 %v283
    %4212 = vmatpush.msra.mxu0 %v282
    %4213 = vmatpush.msra.mxu0 %v281
    %4214 = vmatpush.msra.mxu0 %v280
    %4215 = vmatpush.msra.mxu0 %v279
    %4216 = vmatpush.msra.mxu0 %v278
    %4217 = vmatpush.msra.mxu0 %v277
    %4218 = vmatpush.msra.mxu0 %v276
    %4219 = vmatpush.msra.mxu0 %v275
    %4220 = vmatpush.msra.mxu0 %v274
    %4221 = vmatpush.msra.mxu0 %v273
    %4222 = vmatpush.msra.mxu0 %v272
    %4223 = vmatmul.f32.gmra.mxu0 %v3608
    %v4224 = vpop.f32.mrf.mxu0
    %v4225 = vadd.f32 %v4205, %v4224
    %4226 = vdwg.mxu0
    %4227 = vmatpush.msra.mxu0 %v303
    %4228 = vmatpush.msra.mxu0 %v302
    %4229 = vmatpush.msra.mxu0 %v301
    %4230 = vmatpush.msra.mxu0 %v300
    %4231 = vmatpush.msra.mxu0 %v299
    %4232 = vmatpush.msra.mxu0 %v298
    %4233 = vmatpush.msra.mxu0 %v297
    %4234 = vmatpush.msra.mxu0 %v296
    %4235 = vmatpush.msra.mxu0 %v295
    %4236 = vmatpush.msra.mxu0 %v294
    %4237 = vmatpush.msra.mxu0 %v293
    %4238 = vmatpush.msra.mxu0 %v292
    %4239 = vmatpush.msra.mxu0 %v291
    %4240 = vmatpush.msra.mxu0 %v290
    %4241 = vmatpush.msra.mxu0 %v289
    %4242 = vmatpush.msra.mxu0 %v288
    %4243 = vmatmul.f32.gmra.mxu0 %v3609
    %v4244 = vpop.f32.mrf.mxu0
    %v4245 = vadd.f32 %v4225, %v4244
    %4246 = vdwg.mxu0
    %4247 = vmatpush.msra.mxu0 %v319
    %4248 = vmatpush.msra.mxu0 %v318
    %4249 = vmatpush.msra.mxu0 %v317
    %4250 = vmatpush.msra.mxu0 %v316
    %4251 = vmatpush.msra.mxu0 %v315
    %4252 = vmatpush.msra.mxu0 %v314
    %4253 = vmatpush.msra.mxu0 %v313
    %4254 = vmatpush.msra.mxu0 %v312
    %4255 = vmatpush.msra.mxu0 %v311
    %4256 = vmatpush.msra.mxu0 %v310
    %4257 = vmatpush.msra.mxu0 %v309
    %4258 = vmatpush.msra.mxu0 %v308
    %4259 = vmatpush.msra.mxu0 %v307
    %4260 = vmatpush.msra.mxu0 %v306
    %4261 = vmatpush.msra.mxu0 %v305
    %4262 = vmatpush.msra.mxu0 %v304
    %4263 = vmatmul.f32.gmra.mxu0 %v3610
    %v4264 = vpop.f32.mrf.mxu0
    %v4265 = vadd.f32 %v4245, %v4264
    %4266 = vdwg.mxu0
    %4267 = vmatpush.msra.mxu0 %v335
    %4268 = vmatpush.msra.mxu0 %v334
    %4269 = vmatpush.msra.mxu0 %v333
    %4270 = vmatpush.msra.mxu0 %v332
    %4271 = vmatpush.msra.mxu0 %v331
    %4272 = vmatpush.msra.mxu0 %v330
    %4273 = vmatpush.msra.mxu0 %v329
    %4274 = vmatpush.msra.mxu0 %v328
    %4275 = vmatpush.msra.mxu0 %v327
    %4276 = vmatpush.msra.mxu0 %v326
    %4277 = vmatpush.msra.mxu0 %v325
    %4278 = vmatpush.msra.mxu0 %v324
    %4279 = vmatpush.msra.mxu0 %v323
    %4280 = vmatpush.msra.mxu0 %v322
    %4281 = vmatpush.msra.mxu0 %v321
    %4282 = vmatpush.msra.mxu0 %v320
    %4283 = vmatmul.f32.gmra.mxu0 %v3611
    %v4284 = vpop.f32.mrf.mxu0
    %v4285 = vadd.f32 %v4265, %v4284
    %4286 = vdwg.mxu0
    %4287 = vmatpush.msra.mxu0 %v351
    %4288 = vmatpush.msra.mxu0 %v350
    %4289 = vmatpush.msra.mxu0 %v349
    %4290 = vmatpush.msra.mxu0 %v348
    %4291 = vmatpush.msra.mxu0 %v347
    %4292 = vmatpush.msra.mxu0 %v346
    %4293 = vmatpush.msra.mxu0 %v345
    %4294 = vmatpush.msra.mxu0 %v344
    %4295 = vmatpush.msra.mxu0 %v343
    %4296 = vmatpush.msra.mxu0 %v342
    %4297 = vmatpush.msra.mxu0 %v341
    %4298 = vmatpush.msra.mxu0 %v340
    %4299 = vmatpush.msra.mxu0 %v339
    %4300 = vmatpush.msra.mxu0 %v338
    %4301 = vmatpush.msra.mxu0 %v337
    %4302 = vmatpush.msra.mxu0 %v336
    %4303 = vmatmul.f32.gmra.mxu0 %v3612
    %v4304 = vpop.f32.mrf.mxu0
    %v4305 = vadd.f32 %v4285, %v4304
    %4306 = vdwg.mxu0
    %4307 = vmatpush.msra.mxu0 %v367
    %4308 = vmatpush.msra.mxu0 %v366
    %4309 = vmatpush.msra.mxu0 %v365
    %4310 = vmatpush.msra.mxu0 %v364
    %4311 = vmatpush.msra.mxu0 %v363
    %4312 = vmatpush.msra.mxu0 %v362
    %4313 = vmatpush.msra.mxu0 %v361
    %4314 = vmatpush.msra.mxu0 %v360
    %4315 = vmatpush.msra.mxu0 %v359
    %4316 = vmatpush.msra.mxu0 %v358
    %4317 = vmatpush.msra.mxu0 %v357
    %4318 = vmatpush.msra.mxu0 %v356
    %4319 = vmatpush.msra.mxu0 %v355
    %4320 = vmatpush.msra.mxu0 %v354
    %4321 = vmatpush.msra.mxu0 %v353
    %4322 = vmatpush.msra.mxu0 %v352
    %4323 = vmatmul.f32.gmra.mxu0 %v3613
    %v4324 = vpop.f32.mrf.mxu0
    %v4325 = vadd.f32 %v4305, %v4324
    %4326 = vdwg.mxu0
    %4327 = vmatpush.msra.mxu0 %v383
    %4328 = vmatpush.msra.mxu0 %v382
    %4329 = vmatpush.msra.mxu0 %v381
    %4330 = vmatpush.msra.mxu0 %v380
    %4331 = vmatpush.msra.mxu0 %v379
    %4332 = vmatpush.msra.mxu0 %v378
    %4333 = vmatpush.msra.mxu0 %v377
    %4334 = vmatpush.msra.mxu0 %v376
    %4335 = vmatpush.msra.mxu0 %v375
    %4336 = vmatpush.msra.mxu0 %v374
    %4337 = vmatpush.msra.mxu0 %v373
    %4338 = vmatpush.msra.mxu0 %v372
    %4339 = vmatpush.msra.mxu0 %v371
    %4340 = vmatpush.msra.mxu0 %v370
    %4341 = vmatpush.msra.mxu0 %v369
    %4342 = vmatpush.msra.mxu0 %v368
    %4343 = vmatmul.f32.gmra.mxu0 %v3614
    %v4344 = vpop.f32.mrf.mxu0
    %v4345 = vadd.f32 %v4325, %v4344
    %4346 = vdwg.mxu0
    %4347 = vmatpush.msra.mxu0 %v399
    %4348 = vmatpush.msra.mxu0 %v398
    %4349 = vmatpush.msra.mxu0 %v397
    %4350 = vmatpush.msra.mxu0 %v396
    %4351 = vmatpush.msra.mxu0 %v395
    %4352 = vmatpush.msra.mxu0 %v394
    %4353 = vmatpush.msra.mxu0 %v393
    %4354 = vmatpush.msra.mxu0 %v392
    %4355 = vmatpush.msra.mxu0 %v391
    %4356 = vmatpush.msra.mxu0 %v390
    %4357 = vmatpush.msra.mxu0 %v389
    %4358 = vmatpush.msra.mxu0 %v388
    %4359 = vmatpush.msra.mxu0 %v387
    %4360 = vmatpush.msra.mxu0 %v386
    %4361 = vmatpush.msra.mxu0 %v385
    %4362 = vmatpush.msra.mxu0 %v384
    %4363 = vmatmul.f32.gmra.mxu0 %v3623
    %v4364 = vpop.f32.mrf.mxu0
    %v4365 = vadd.f32 %v4345, %v4364
    %4366 = vdwg.mxu0
    %4367 = vmatpush.msra.mxu0 %v415
    %4368 = vmatpush.msra.mxu0 %v414
    %4369 = vmatpush.msra.mxu0 %v413
    %4370 = vmatpush.msra.mxu0 %v412
    %4371 = vmatpush.msra.mxu0 %v411
    %4372 = vmatpush.msra.mxu0 %v410
    %4373 = vmatpush.msra.mxu0 %v409
    %4374 = vmatpush.msra.mxu0 %v408
    %4375 = vmatpush.msra.mxu0 %v407
    %4376 = vmatpush.msra.mxu0 %v406
    %4377 = vmatpush.msra.mxu0 %v405
    %4378 = vmatpush.msra.mxu0 %v404
    %4379 = vmatpush.msra.mxu0 %v403
    %4380 = vmatpush.msra.mxu0 %v402
    %4381 = vmatpush.msra.mxu0 %v401
    %4382 = vmatpush.msra.mxu0 %v400
    %4383 = vmatmul.f32.gmra.mxu0 %v3624
    %v4384 = vpop.f32.mrf.mxu0
    %v4385 = vadd.f32 %v4365, %v4384
    %4386 = vdwg.mxu0
    %4387 = vmatpush.msra.mxu0 %v431
    %4388 = vmatpush.msra.mxu0 %v430
    %4389 = vmatpush.msra.mxu0 %v429
    %4390 = vmatpush.msra.mxu0 %v428
    %4391 = vmatpush.msra.mxu0 %v427
    %4392 = vmatpush.msra.mxu0 %v426
    %4393 = vmatpush.msra.mxu0 %v425
    %4394 = vmatpush.msra.mxu0 %v424
    %4395 = vmatpush.msra.mxu0 %v423
    %4396 = vmatpush.msra.mxu0 %v422
    %4397 = vmatpush.msra.mxu0 %v421
    %4398 = vmatpush.msra.mxu0 %v420
    %4399 = vmatpush.msra.mxu0 %v419
    %4400 = vmatpush.msra.mxu0 %v418
    %4401 = vmatpush.msra.mxu0 %v417
    %4402 = vmatpush.msra.mxu0 %v416
    %4403 = vmatmul.f32.gmra.mxu0 %v3625
    %v4404 = vpop.f32.mrf.mxu0
    %v4405 = vadd.f32 %v4385, %v4404
    %4406 = vdwg.mxu0
    %4407 = vmatpush.msra.mxu0 %v447
    %4408 = vmatpush.msra.mxu0 %v446
    %4409 = vmatpush.msra.mxu0 %v445
    %4410 = vmatpush.msra.mxu0 %v444
    %4411 = vmatpush.msra.mxu0 %v443
    %4412 = vmatpush.msra.mxu0 %v442
    %4413 = vmatpush.msra.mxu0 %v441
    %4414 = vmatpush.msra.mxu0 %v440
    %4415 = vmatpush.msra.mxu0 %v439
    %4416 = vmatpush.msra.mxu0 %v438
    %4417 = vmatpush.msra.mxu0 %v437
    %4418 = vmatpush.msra.mxu0 %v436
    %4419 = vmatpush.msra.mxu0 %v435
    %4420 = vmatpush.msra.mxu0 %v434
    %4421 = vmatpush.msra.mxu0 %v433
    %4422 = vmatpush.msra.mxu0 %v432
    %4423 = vmatmul.f32.gmra.mxu0 %v3626
    %v4424 = vpop.f32.mrf.mxu0
    %v4425 = vadd.f32 %v4405, %v4424
    %4426 = vdwg.mxu0
    %4427 = vmatpush.msra.mxu0 %v463
    %4428 = vmatpush.msra.mxu0 %v462
    %4429 = vmatpush.msra.mxu0 %v461
    %4430 = vmatpush.msra.mxu0 %v460
    %4431 = vmatpush.msra.mxu0 %v459
    %4432 = vmatpush.msra.mxu0 %v458
    %4433 = vmatpush.msra.mxu0 %v457
    %4434 = vmatpush.msra.mxu0 %v456
    %4435 = vmatpush.msra.mxu0 %v455
    %4436 = vmatpush.msra.mxu0 %v454
    %4437 = vmatpush.msra.mxu0 %v453
    %4438 = vmatpush.msra.mxu0 %v452
    %4439 = vmatpush.msra.mxu0 %v451
    %4440 = vmatpush.msra.mxu0 %v450
    %4441 = vmatpush.msra.mxu0 %v449
    %4442 = vmatpush.msra.mxu0 %v448
    %4443 = vmatmul.f32.gmra.mxu0 %v3627
    %v4444 = vpop.f32.mrf.mxu0
    %v4445 = vadd.f32 %v4425, %v4444
    %4446 = vdwg.mxu0
    %4447 = vmatpush.msra.mxu0 %v479
    %4448 = vmatpush.msra.mxu0 %v478
    %4449 = vmatpush.msra.mxu0 %v477
    %4450 = vmatpush.msra.mxu0 %v476
    %4451 = vmatpush.msra.mxu0 %v475
    %4452 = vmatpush.msra.mxu0 %v474
    %4453 = vmatpush.msra.mxu0 %v473
    %4454 = vmatpush.msra.mxu0 %v472
    %4455 = vmatpush.msra.mxu0 %v471
    %4456 = vmatpush.msra.mxu0 %v470
    %4457 = vmatpush.msra.mxu0 %v469
    %4458 = vmatpush.msra.mxu0 %v468
    %4459 = vmatpush.msra.mxu0 %v467
    %4460 = vmatpush.msra.mxu0 %v466
    %4461 = vmatpush.msra.mxu0 %v465
    %4462 = vmatpush.msra.mxu0 %v464
    %4463 = vmatmul.f32.gmra.mxu0 %v3628
    %v4464 = vpop.f32.mrf.mxu0
    %v4465 = vadd.f32 %v4445, %v4464
    %4466 = vdwg.mxu0
    %4467 = vmatpush.msra.mxu0 %v495
    %4468 = vmatpush.msra.mxu0 %v494
    %4469 = vmatpush.msra.mxu0 %v493
    %4470 = vmatpush.msra.mxu0 %v492
    %4471 = vmatpush.msra.mxu0 %v491
    %4472 = vmatpush.msra.mxu0 %v490
    %4473 = vmatpush.msra.mxu0 %v489
    %4474 = vmatpush.msra.mxu0 %v488
    %4475 = vmatpush.msra.mxu0 %v487
    %4476 = vmatpush.msra.mxu0 %v486
    %4477 = vmatpush.msra.mxu0 %v485
    %4478 = vmatpush.msra.mxu0 %v484
    %4479 = vmatpush.msra.mxu0 %v483
    %4480 = vmatpush.msra.mxu0 %v482
    %4481 = vmatpush.msra.mxu0 %v481
    %4482 = vmatpush.msra.mxu0 %v480
    %4483 = vmatmul.f32.gmra.mxu0 %v3629
    %v4484 = vpop.f32.mrf.mxu0
    %v4485 = vadd.f32 %v4465, %v4484
    %4486 = vdwg.mxu0
    %4487 = vmatpush.msra.mxu0 %v511
    %4488 = vmatpush.msra.mxu0 %v510
    %4489 = vmatpush.msra.mxu0 %v509
    %4490 = vmatpush.msra.mxu0 %v508
    %4491 = vmatpush.msra.mxu0 %v507
    %4492 = vmatpush.msra.mxu0 %v506
    %4493 = vmatpush.msra.mxu0 %v505
    %4494 = vmatpush.msra.mxu0 %v504
    %4495 = vmatpush.msra.mxu0 %v503
    %4496 = vmatpush.msra.mxu0 %v502
    %4497 = vmatpush.msra.mxu0 %v501
    %4498 = vmatpush.msra.mxu0 %v500
    %4499 = vmatpush.msra.mxu0 %v499
    %4500 = vmatpush.msra.mxu0 %v498
    %4501 = vmatpush.msra.mxu0 %v497
    %4502 = vmatpush.msra.mxu0 %v496
    %4503 = vmatmul.f32.gmra.mxu0 %v3630
    %v4504 = vpop.f32.mrf.mxu0
    %v4505 = vadd.f32 %v4485, %v4504
    %4506 = vdwg.mxu0
    %4507 = vmatpush.msra.mxu0 %v527
    %4508 = vmatpush.msra.mxu0 %v526
    %4509 = vmatpush.msra.mxu0 %v525
    %4510 = vmatpush.msra.mxu0 %v524
    %4511 = vmatpush.msra.mxu0 %v523
    %4512 = vmatpush.msra.mxu0 %v522
    %4513 = vmatpush.msra.mxu0 %v521
    %4514 = vmatpush.msra.mxu0 %v520
    %4515 = vmatpush.msra.mxu0 %v519
    %4516 = vmatpush.msra.mxu0 %v518
    %4517 = vmatpush.msra.mxu0 %v517
    %4518 = vmatpush.msra.mxu0 %v516
    %4519 = vmatpush.msra.mxu0 %v515
    %4520 = vmatpush.msra.mxu0 %v514
    %4521 = vmatpush.msra.mxu0 %v513
    %4522 = vmatpush.msra.mxu0 %v512
    %4523 = vmatmul.f32.gmra.mxu0 %v3639
    %v4524 = vpop.f32.mrf.mxu0
    %v4525 = vadd.f32 %v4505, %v4524
    %4526 = vdwg.mxu0
    %4527 = vmatpush.msra.mxu0 %v543
    %4528 = vmatpush.msra.mxu0 %v542
    %4529 = vmatpush.msra.mxu0 %v541
    %4530 = vmatpush.msra.mxu0 %v540
    %4531 = vmatpush.msra.mxu0 %v539
    %4532 = vmatpush.msra.mxu0 %v538
    %4533 = vmatpush.msra.mxu0 %v537
    %4534 = vmatpush.msra.mxu0 %v536
    %4535 = vmatpush.msra.mxu0 %v535
    %4536 = vmatpush.msra.mxu0 %v534
    %4537 = vmatpush.msra.mxu0 %v533
    %4538 = vmatpush.msra.mxu0 %v532
    %4539 = vmatpush.msra.mxu0 %v531
    %4540 = vmatpush.msra.mxu0 %v530
    %4541 = vmatpush.msra.mxu0 %v529
    %4542 = vmatpush.msra.mxu0 %v528
    %4543 = vmatmul.f32.gmra.mxu0 %v3640
    %v4544 = vpop.f32.mrf.mxu0
    %v4545 = vadd.f32 %v4525, %v4544
    %4546 = vdwg.mxu0
    %4547 = vmatpush.msra.mxu0 %v559
    %4548 = vmatpush.msra.mxu0 %v558
    %4549 = vmatpush.msra.mxu0 %v557
    %4550 = vmatpush.msra.mxu0 %v556
    %4551 = vmatpush.msra.mxu0 %v555
    %4552 = vmatpush.msra.mxu0 %v554
    %4553 = vmatpush.msra.mxu0 %v553
    %4554 = vmatpush.msra.mxu0 %v552
    %4555 = vmatpush.msra.mxu0 %v551
    %4556 = vmatpush.msra.mxu0 %v550
    %4557 = vmatpush.msra.mxu0 %v549
    %4558 = vmatpush.msra.mxu0 %v548
    %4559 = vmatpush.msra.mxu0 %v547
    %4560 = vmatpush.msra.mxu0 %v546
    %4561 = vmatpush.msra.mxu0 %v545
    %4562 = vmatpush.msra.mxu0 %v544
    %4563 = vmatmul.f32.gmra.mxu0 %v3641
    %v4564 = vpop.f32.mrf.mxu0
    %v4565 = vadd.f32 %v4545, %v4564
    %4566 = vdwg.mxu0
    %4567 = vmatpush.msra.mxu0 %v575
    %4568 = vmatpush.msra.mxu0 %v574
    %4569 = vmatpush.msra.mxu0 %v573
    %4570 = vmatpush.msra.mxu0 %v572
    %4571 = vmatpush.msra.mxu0 %v571
    %4572 = vmatpush.msra.mxu0 %v570
    %4573 = vmatpush.msra.mxu0 %v569
    %4574 = vmatpush.msra.mxu0 %v568
    %4575 = vmatpush.msra.mxu0 %v567
    %4576 = vmatpush.msra.mxu0 %v566
    %4577 = vmatpush.msra.mxu0 %v565
    %4578 = vmatpush.msra.mxu0 %v564
    %4579 = vmatpush.msra.mxu0 %v563
    %4580 = vmatpush.msra.mxu0 %v562
    %4581 = vmatpush.msra.mxu0 %v561
    %4582 = vmatpush.msra.mxu0 %v560
    %4583 = vmatmul.f32.gmra.mxu0 %v3642
    %v4584 = vpop.f32.mrf.mxu0
    %v4585 = vadd.f32 %v4565, %v4584
    %4586 = vdwg.mxu0
    %4587 = vmatpush.msra.mxu0 %v591
    %4588 = vmatpush.msra.mxu0 %v590
    %4589 = vmatpush.msra.mxu0 %v589
    %4590 = vmatpush.msra.mxu0 %v588
    %4591 = vmatpush.msra.mxu0 %v587
    %4592 = vmatpush.msra.mxu0 %v586
    %4593 = vmatpush.msra.mxu0 %v585
    %4594 = vmatpush.msra.mxu0 %v584
    %4595 = vmatpush.msra.mxu0 %v583
    %4596 = vmatpush.msra.mxu0 %v582
    %4597 = vmatpush.msra.mxu0 %v581
    %4598 = vmatpush.msra.mxu0 %v580
    %4599 = vmatpush.msra.mxu0 %v579
    %4600 = vmatpush.msra.mxu0 %v578
    %4601 = vmatpush.msra.mxu0 %v577
    %4602 = vmatpush.msra.mxu0 %v576
    %4603 = vmatmul.f32.gmra.mxu0 %v3643
    %v4604 = vpop.f32.mrf.mxu0
    %v4605 = vadd.f32 %v4585, %v4604
    %4606 = vdwg.mxu0
    %4607 = vmatpush.msra.mxu0 %v607
    %4608 = vmatpush.msra.mxu0 %v606
    %4609 = vmatpush.msra.mxu0 %v605
    %4610 = vmatpush.msra.mxu0 %v604
    %4611 = vmatpush.msra.mxu0 %v603
    %4612 = vmatpush.msra.mxu0 %v602
    %4613 = vmatpush.msra.mxu0 %v601
    %4614 = vmatpush.msra.mxu0 %v600
    %4615 = vmatpush.msra.mxu0 %v599
    %4616 = vmatpush.msra.mxu0 %v598
    %4617 = vmatpush.msra.mxu0 %v597
    %4618 = vmatpush.msra.mxu0 %v596
    %4619 = vmatpush.msra.mxu0 %v595
    %4620 = vmatpush.msra.mxu0 %v594
    %4621 = vmatpush.msra.mxu0 %v593
    %4622 = vmatpush.msra.mxu0 %v592
    %4623 = vmatmul.f32.gmra.mxu0 %v3644
    %v4624 = vpop.f32.mrf.mxu0
    %v4625 = vadd.f32 %v4605, %v4624
    %4626 = vdwg.mxu0
    %4627 = vmatpush.msra.mxu0 %v623
    %4628 = vmatpush.msra.mxu0 %v622
    %4629 = vmatpush.msra.mxu0 %v621
    %4630 = vmatpush.msra.mxu0 %v620
    %4631 = vmatpush.msra.mxu0 %v619
    %4632 = vmatpush.msra.mxu0 %v618
    %4633 = vmatpush.msra.mxu0 %v617
    %4634 = vmatpush.msra.mxu0 %v616
    %4635 = vmatpush.msra.mxu0 %v615
    %4636 = vmatpush.msra.mxu0 %v614
    %4637 = vmatpush.msra.mxu0 %v613
    %4638 = vmatpush.msra.mxu0 %v612
    %4639 = vmatpush.msra.mxu0 %v611
    %4640 = vmatpush.msra.mxu0 %v610
    %4641 = vmatpush.msra.mxu0 %v609
    %4642 = vmatpush.msra.mxu0 %v608
    %4643 = vmatmul.f32.gmra.mxu0 %v3645
    %v4644 = vpop.f32.mrf.mxu0
    %v4645 = vadd.f32 %v4625, %v4644
    %4646 = vdwg.mxu0
    %4647 = vmatpush.msra.mxu0 %v639
    %4648 = vmatpush.msra.mxu0 %v638
    %4649 = vmatpush.msra.mxu0 %v637
    %4650 = vmatpush.msra.mxu0 %v636
    %4651 = vmatpush.msra.mxu0 %v635
    %4652 = vmatpush.msra.mxu0 %v634
    %4653 = vmatpush.msra.mxu0 %v633
    %4654 = vmatpush.msra.mxu0 %v632
    %4655 = vmatpush.msra.mxu0 %v631
    %4656 = vmatpush.msra.mxu0 %v630
    %4657 = vmatpush.msra.mxu0 %v629
    %4658 = vmatpush.msra.mxu0 %v628
    %4659 = vmatpush.msra.mxu0 %v627
    %4660 = vmatpush.msra.mxu0 %v626
    %4661 = vmatpush.msra.mxu0 %v625
    %4662 = vmatpush.msra.mxu0 %v624
    %4663 = vmatmul.f32.gmra.mxu0 %v3646
    %v4664 = vpop.f32.mrf.mxu0
    %v4665 = vadd.f32 %v4645, %v4664
    %4666 = vdwg.mxu0
    %4667 = vmatpush.msra.mxu0 %v655
    %4668 = vmatpush.msra.mxu0 %v654
    %4669 = vmatpush.msra.mxu0 %v653
    %4670 = vmatpush.msra.mxu0 %v652
    %4671 = vmatpush.msra.mxu0 %v651
    %4672 = vmatpush.msra.mxu0 %v650
    %4673 = vmatpush.msra.mxu0 %v649
    %4674 = vmatpush.msra.mxu0 %v648
    %4675 = vmatpush.msra.mxu0 %v647
    %4676 = vmatpush.msra.mxu0 %v646
    %4677 = vmatpush.msra.mxu0 %v645
    %4678 = vmatpush.msra.mxu0 %v644
    %4679 = vmatpush.msra.mxu0 %v643
    %4680 = vmatpush.msra.mxu0 %v642
    %4681 = vmatpush.msra.mxu0 %v641
    %4682 = vmatpush.msra.mxu0 %v640
    %4683 = vmatmul.f32.gmra.mxu0 %v3655
    %v4684 = vpop.f32.mrf.mxu0
    %v4685 = vadd.f32 %v4665, %v4684
    %4686 = vdwg.mxu0
    %4687 = vmatpush.msra.mxu0 %v671
    %4688 = vmatpush.msra.mxu0 %v670
    %4689 = vmatpush.msra.mxu0 %v669
    %4690 = vmatpush.msra.mxu0 %v668
    %4691 = vmatpush.msra.mxu0 %v667
    %4692 = vmatpush.msra.mxu0 %v666
    %4693 = vmatpush.msra.mxu0 %v665
    %4694 = vmatpush.msra.mxu0 %v664
    %4695 = vmatpush.msra.mxu0 %v663
    %4696 = vmatpush.msra.mxu0 %v662
    %4697 = vmatpush.msra.mxu0 %v661
    %4698 = vmatpush.msra.mxu0 %v660
    %4699 = vmatpush.msra.mxu0 %v659
    %4700 = vmatpush.msra.mxu0 %v658
    %4701 = vmatpush.msra.mxu0 %v657
    %4702 = vmatpush.msra.mxu0 %v656
    %4703 = vmatmul.f32.gmra.mxu0 %v3656
    %v4704 = vpop.f32.mrf.mxu0
    %v4705 = vadd.f32 %v4685, %v4704
    %4706 = vdwg.mxu0
    %4707 = vmatpush.msra.mxu0 %v687
    %4708 = vmatpush.msra.mxu0 %v686
    %4709 = vmatpush.msra.mxu0 %v685
    %4710 = vmatpush.msra.mxu0 %v684
    %4711 = vmatpush.msra.mxu0 %v683
    %4712 = vmatpush.msra.mxu0 %v682
    %4713 = vmatpush.msra.mxu0 %v681
    %4714 = vmatpush.msra.mxu0 %v680
    %4715 = vmatpush.msra.mxu0 %v679
    %4716 = vmatpush.msra.mxu0 %v678
    %4717 = vmatpush.msra.mxu0 %v677
    %4718 = vmatpush.msra.mxu0 %v676
    %4719 = vmatpush.msra.mxu0 %v675
    %4720 = vmatpush.msra.mxu0 %v674
    %4721 = vmatpush.msra.mxu0 %v673
    %4722 = vmatpush.msra.mxu0 %v672
    %4723 = vmatmul.f32.gmra.mxu0 %v3657
    %v4724 = vpop.f32.mrf.mxu0
    %v4725 = vadd.f32 %v4705, %v4724
    %4726 = vdwg.mxu0
    %4727 = vmatpush.msra.mxu0 %v703
    %4728 = vmatpush.msra.mxu0 %v702
    %4729 = vmatpush.msra.mxu0 %v701
    %4730 = vmatpush.msra.mxu0 %v700
    %4731 = vmatpush.msra.mxu0 %v699
    %4732 = vmatpush.msra.mxu0 %v698
    %4733 = vmatpush.msra.mxu0 %v697
    %4734 = vmatpush.msra.mxu0 %v696
    %4735 = vmatpush.msra.mxu0 %v695
    %4736 = vmatpush.msra.mxu0 %v694
    %4737 = vmatpush.msra.mxu0 %v693
    %4738 = vmatpush.msra.mxu0 %v692
    %4739 = vmatpush.msra.mxu0 %v691
    %4740 = vmatpush.msra.mxu0 %v690
    %4741 = vmatpush.msra.mxu0 %v689
    %4742 = vmatpush.msra.mxu0 %v688
    %4743 = vmatmul.f32.gmra.mxu0 %v3658
    %v4744 = vpop.f32.mrf.mxu0
    %v4745 = vadd.f32 %v4725, %v4744
    %4746 = vdwg.mxu0
    %4747 = vmatpush.msra.mxu0 %v719
    %4748 = vmatpush.msra.mxu0 %v718
    %4749 = vmatpush.msra.mxu0 %v717
    %4750 = vmatpush.msra.mxu0 %v716
    %4751 = vmatpush.msra.mxu0 %v715
    %4752 = vmatpush.msra.mxu0 %v714
    %4753 = vmatpush.msra.mxu0 %v713
    %4754 = vmatpush.msra.mxu0 %v712
    %4755 = vmatpush.msra.mxu0 %v711
    %4756 = vmatpush.msra.mxu0 %v710
    %4757 = vmatpush.msra.mxu0 %v709
    %4758 = vmatpush.msra.mxu0 %v708
    %4759 = vmatpush.msra.mxu0 %v707
    %4760 = vmatpush.msra.mxu0 %v706
    %4761 = vmatpush.msra.mxu0 %v705
    %4762 = vmatpush.msra.mxu0 %v704
    %4763 = vmatmul.f32.gmra.mxu0 %v3659
    %v4764 = vpop.f32.mrf.mxu0
    %v4765 = vadd.f32 %v4745, %v4764
    %4766 = vdwg.mxu0
    %4767 = vmatpush.msra.mxu0 %v735
    %4768 = vmatpush.msra.mxu0 %v734
    %4769 = vmatpush.msra.mxu0 %v733
    %4770 = vmatpush.msra.mxu0 %v732
    %4771 = vmatpush.msra.mxu0 %v731
    %4772 = vmatpush.msra.mxu0 %v730
    %4773 = vmatpush.msra.mxu0 %v729
    %4774 = vmatpush.msra.mxu0 %v728
    %4775 = vmatpush.msra.mxu0 %v727
    %4776 = vmatpush.msra.mxu0 %v726
    %4777 = vmatpush.msra.mxu0 %v725
    %4778 = vmatpush.msra.mxu0 %v724
    %4779 = vmatpush.msra.mxu0 %v723
    %4780 = vmatpush.msra.mxu0 %v722
    %4781 = vmatpush.msra.mxu0 %v721
    %4782 = vmatpush.msra.mxu0 %v720
    %4783 = vmatmul.f32.gmra.mxu0 %v3660
    %v4784 = vpop.f32.mrf.mxu0
    %v4785 = vadd.f32 %v4765, %v4784
    %4786 = vdwg.mxu0
    %4787 = vmatpush.msra.mxu0 %v751
    %4788 = vmatpush.msra.mxu0 %v750
    %4789 = vmatpush.msra.mxu0 %v749
    %4790 = vmatpush.msra.mxu0 %v748
    %4791 = vmatpush.msra.mxu0 %v747
    %4792 = vmatpush.msra.mxu0 %v746
    %4793 = vmatpush.msra.mxu0 %v745
    %4794 = vmatpush.msra.mxu0 %v744
    %4795 = vmatpush.msra.mxu0 %v743
    %4796 = vmatpush.msra.mxu0 %v742
    %4797 = vmatpush.msra.mxu0 %v741
    %4798 = vmatpush.msra.mxu0 %v740
    %4799 = vmatpush.msra.mxu0 %v739
    %4800 = vmatpush.msra.mxu0 %v738
    %4801 = vmatpush.msra.mxu0 %v737
    %4802 = vmatpush.msra.mxu0 %v736
    %4803 = vmatmul.f32.gmra.mxu0 %v3661
    %v4804 = vpop.f32.mrf.mxu0
    %v4805 = vadd.f32 %v4785, %v4804
    %4806 = vdwg.mxu0
    %4807 = vmatpush.msra.mxu0 %v767
    %4808 = vmatpush.msra.mxu0 %v766
    %4809 = vmatpush.msra.mxu0 %v765
    %4810 = vmatpush.msra.mxu0 %v764
    %4811 = vmatpush.msra.mxu0 %v763
    %4812 = vmatpush.msra.mxu0 %v762
    %4813 = vmatpush.msra.mxu0 %v761
    %4814 = vmatpush.msra.mxu0 %v760
    %4815 = vmatpush.msra.mxu0 %v759
    %4816 = vmatpush.msra.mxu0 %v758
    %4817 = vmatpush.msra.mxu0 %v757
    %4818 = vmatpush.msra.mxu0 %v756
    %4819 = vmatpush.msra.mxu0 %v755
    %4820 = vmatpush.msra.mxu0 %v754
    %4821 = vmatpush.msra.mxu0 %v753
    %4822 = vmatpush.msra.mxu0 %v752
    %4823 = vmatmul.f32.gmra.mxu0 %v3662
    %v4824 = vpop.f32.mrf.mxu0
    %v4825 = vadd.f32 %v4805, %v4824
    %4826 = vdwg.mxu0
    %4827 = vmatpush.msra.mxu0 %v783
    %4828 = vmatpush.msra.mxu0 %v782
    %4829 = vmatpush.msra.mxu0 %v781
    %4830 = vmatpush.msra.mxu0 %v780
    %4831 = vmatpush.msra.mxu0 %v779
    %4832 = vmatpush.msra.mxu0 %v778
    %4833 = vmatpush.msra.mxu0 %v777
    %4834 = vmatpush.msra.mxu0 %v776
    %4835 = vmatpush.msra.mxu0 %v775
    %4836 = vmatpush.msra.mxu0 %v774
    %4837 = vmatpush.msra.mxu0 %v773
    %4838 = vmatpush.msra.mxu0 %v772
    %4839 = vmatpush.msra.mxu0 %v771
    %4840 = vmatpush.msra.mxu0 %v770
    %4841 = vmatpush.msra.mxu0 %v769
    %4842 = vmatpush.msra.mxu0 %v768
    %4843 = vmatmul.f32.gmra.mxu0 %v3671
    %v4844 = vpop.f32.mrf.mxu0
    %v4845 = vadd.f32 %v4825, %v4844
    %4846 = vdwg.mxu0
    %4847 = vmatpush.msra.mxu0 %v799
    %4848 = vmatpush.msra.mxu0 %v798
    %4849 = vmatpush.msra.mxu0 %v797
    %4850 = vmatpush.msra.mxu0 %v796
    %4851 = vmatpush.msra.mxu0 %v795
    %4852 = vmatpush.msra.mxu0 %v794
    %4853 = vmatpush.msra.mxu0 %v793
    %4854 = vmatpush.msra.mxu0 %v792
    %4855 = vmatpush.msra.mxu0 %v791
    %4856 = vmatpush.msra.mxu0 %v790
    %4857 = vmatpush.msra.mxu0 %v789
    %4858 = vmatpush.msra.mxu0 %v788
    %4859 = vmatpush.msra.mxu0 %v787
    %4860 = vmatpush.msra.mxu0 %v786
    %4861 = vmatpush.msra.mxu0 %v785
    %4862 = vmatpush.msra.mxu0 %v784
    %4863 = vmatmul.f32.gmra.mxu0 %v3672
    %v4864 = vpop.f32.mrf.mxu0
    %v4865 = vadd.f32 %v4845, %v4864
    %4866 = vdwg.mxu0
    %4867 = vmatpush.msra.mxu0 %v815
    %4868 = vmatpush.msra.mxu0 %v814
    %4869 = vmatpush.msra.mxu0 %v813
    %4870 = vmatpush.msra.mxu0 %v812
    %4871 = vmatpush.msra.mxu0 %v811
    %4872 = vmatpush.msra.mxu0 %v810
    %4873 = vmatpush.msra.mxu0 %v809
    %4874 = vmatpush.msra.mxu0 %v808
    %4875 = vmatpush.msra.mxu0 %v807
    %4876 = vmatpush.msra.mxu0 %v806
    %4877 = vmatpush.msra.mxu0 %v805
    %4878 = vmatpush.msra.mxu0 %v804
    %4879 = vmatpush.msra.mxu0 %v803
    %4880 = vmatpush.msra.mxu0 %v802
    %4881 = vmatpush.msra.mxu0 %v801
    %4882 = vmatpush.msra.mxu0 %v800
    %4883 = vmatmul.f32.gmra.mxu0 %v3673
    %v4884 = vpop.f32.mrf.mxu0
    %v4885 = vadd.f32 %v4865, %v4884
    %4886 = vdwg.mxu0
    %4887 = vmatpush.msra.mxu0 %v831
    %4888 = vmatpush.msra.mxu0 %v830
    %4889 = vmatpush.msra.mxu0 %v829
    %4890 = vmatpush.msra.mxu0 %v828
    %4891 = vmatpush.msra.mxu0 %v827
    %4892 = vmatpush.msra.mxu0 %v826
    %4893 = vmatpush.msra.mxu0 %v825
    %4894 = vmatpush.msra.mxu0 %v824
    %4895 = vmatpush.msra.mxu0 %v823
    %4896 = vmatpush.msra.mxu0 %v822
    %4897 = vmatpush.msra.mxu0 %v821
    %4898 = vmatpush.msra.mxu0 %v820
    %4899 = vmatpush.msra.mxu0 %v819
    %4900 = vmatpush.msra.mxu0 %v818
    %4901 = vmatpush.msra.mxu0 %v817
    %4902 = vmatpush.msra.mxu0 %v816
    %4903 = vmatmul.f32.gmra.mxu0 %v3674
    %v4904 = vpop.f32.mrf.mxu0
    %v4905 = vadd.f32 %v4885, %v4904
    %4906 = vdwg.mxu0
    %4907 = vmatpush.msra.mxu0 %v847
    %4908 = vmatpush.msra.mxu0 %v846
    %4909 = vmatpush.msra.mxu0 %v845
    %4910 = vmatpush.msra.mxu0 %v844
    %4911 = vmatpush.msra.mxu0 %v843
    %4912 = vmatpush.msra.mxu0 %v842
    %4913 = vmatpush.msra.mxu0 %v841
    %4914 = vmatpush.msra.mxu0 %v840
    %4915 = vmatpush.msra.mxu0 %v839
    %4916 = vmatpush.msra.mxu0 %v838
    %4917 = vmatpush.msra.mxu0 %v837
    %4918 = vmatpush.msra.mxu0 %v836
    %4919 = vmatpush.msra.mxu0 %v835
    %4920 = vmatpush.msra.mxu0 %v834
    %4921 = vmatpush.msra.mxu0 %v833
    %4922 = vmatpush.msra.mxu0 %v832
    %4923 = vmatmul.f32.gmra.mxu0 %v3675
    %v4924 = vpop.f32.mrf.mxu0
    %v4925 = vadd.f32 %v4905, %v4924
    %4926 = vdwg.mxu0
    %4927 = vmatpush.msra.mxu0 %v863
    %4928 = vmatpush.msra.mxu0 %v862
    %4929 = vmatpush.msra.mxu0 %v861
    %4930 = vmatpush.msra.mxu0 %v860
    %4931 = vmatpush.msra.mxu0 %v859
    %4932 = vmatpush.msra.mxu0 %v858
    %4933 = vmatpush.msra.mxu0 %v857
    %4934 = vmatpush.msra.mxu0 %v856
    %4935 = vmatpush.msra.mxu0 %v855
    %4936 = vmatpush.msra.mxu0 %v854
    %4937 = vmatpush.msra.mxu0 %v853
    %4938 = vmatpush.msra.mxu0 %v852
    %4939 = vmatpush.msra.mxu0 %v851
    %4940 = vmatpush.msra.mxu0 %v850
    %4941 = vmatpush.msra.mxu0 %v849
    %4942 = vmatpush.msra.mxu0 %v848
    %4943 = vmatmul.f32.gmra.mxu0 %v3676
    %v4944 = vpop.f32.mrf.mxu0
    %v4945 = vadd.f32 %v4925, %v4944
    %4946 = vdwg.mxu0
    %4947 = vmatpush.msra.mxu0 %v879
    %4948 = vmatpush.msra.mxu0 %v878
    %4949 = vmatpush.msra.mxu0 %v877
    %4950 = vmatpush.msra.mxu0 %v876
    %4951 = vmatpush.msra.mxu0 %v875
    %4952 = vmatpush.msra.mxu0 %v874
    %4953 = vmatpush.msra.mxu0 %v873
    %4954 = vmatpush.msra.mxu0 %v872
    %4955 = vmatpush.msra.mxu0 %v871
    %4956 = vmatpush.msra.mxu0 %v870
    %4957 = vmatpush.msra.mxu0 %v869
    %4958 = vmatpush.msra.mxu0 %v868
    %4959 = vmatpush.msra.mxu0 %v867
    %4960 = vmatpush.msra.mxu0 %v866
    %4961 = vmatpush.msra.mxu0 %v865
    %4962 = vmatpush.msra.mxu0 %v864
    %4963 = vmatmul.f32.gmra.mxu0 %v3677
    %v4964 = vpop.f32.mrf.mxu0
    %v4965 = vadd.f32 %v4945, %v4964
    %4966 = vdwg.mxu0
    %4967 = vmatpush.msra.mxu0 %v895
    %4968 = vmatpush.msra.mxu0 %v894
    %4969 = vmatpush.msra.mxu0 %v893
    %4970 = vmatpush.msra.mxu0 %v892
    %4971 = vmatpush.msra.mxu0 %v891
    %4972 = vmatpush.msra.mxu0 %v890
    %4973 = vmatpush.msra.mxu0 %v889
    %4974 = vmatpush.msra.mxu0 %v888
    %4975 = vmatpush.msra.mxu0 %v887
    %4976 = vmatpush.msra.mxu0 %v886
    %4977 = vmatpush.msra.mxu0 %v885
    %4978 = vmatpush.msra.mxu0 %v884
    %4979 = vmatpush.msra.mxu0 %v883
    %4980 = vmatpush.msra.mxu0 %v882
    %4981 = vmatpush.msra.mxu0 %v881
    %4982 = vmatpush.msra.mxu0 %v880
    %4983 = vmatmul.f32.gmra.mxu0 %v3678
    %v4984 = vpop.f32.mrf.mxu0
    %v4985 = vadd.f32 %v4965, %v4984
    %4986 = vdwg.mxu0
    %4987 = vmatpush.msra.mxu0 %v911
    %4988 = vmatpush.msra.mxu0 %v910
    %4989 = vmatpush.msra.mxu0 %v909
    %4990 = vmatpush.msra.mxu0 %v908
    %4991 = vmatpush.msra.mxu0 %v907
    %4992 = vmatpush.msra.mxu0 %v906
    %4993 = vmatpush.msra.mxu0 %v905
    %4994 = vmatpush.msra.mxu0 %v904
    %4995 = vmatpush.msra.mxu0 %v903
    %4996 = vmatpush.msra.mxu0 %v902
    %4997 = vmatpush.msra.mxu0 %v901
    %4998 = vmatpush.msra.mxu0 %v900
    %4999 = vmatpush.msra.mxu0 %v899
    %5000 = vmatpush.msra.mxu0 %v898
    %5001 = vmatpush.msra.mxu0 %v897
    %5002 = vmatpush.msra.mxu0 %v896
    %5003 = vmatmul.f32.gmra.mxu0 %v3687
    %v5004 = vpop.f32.mrf.mxu0
    %v5005 = vadd.f32 %v4985, %v5004
    %5006 = vdwg.mxu0
    %5007 = vmatpush.msra.mxu0 %v927
    %5008 = vmatpush.msra.mxu0 %v926
    %5009 = vmatpush.msra.mxu0 %v925
    %5010 = vmatpush.msra.mxu0 %v924
    %5011 = vmatpush.msra.mxu0 %v923
    %5012 = vmatpush.msra.mxu0 %v922
    %5013 = vmatpush.msra.mxu0 %v921
    %5014 = vmatpush.msra.mxu0 %v920
    %5015 = vmatpush.msra.mxu0 %v919
    %5016 = vmatpush.msra.mxu0 %v918
    %5017 = vmatpush.msra.mxu0 %v917
    %5018 = vmatpush.msra.mxu0 %v916
    %5019 = vmatpush.msra.mxu0 %v915
    %5020 = vmatpush.msra.mxu0 %v914
    %5021 = vmatpush.msra.mxu0 %v913
    %5022 = vmatpush.msra.mxu0 %v912
    %5023 = vmatmul.f32.gmra.mxu0 %v3688
    %v5024 = vpop.f32.mrf.mxu0
    %v5025 = vadd.f32 %v5005, %v5024
    %5026 = vdwg.mxu0
    %5027 = vmatpush.msra.mxu0 %v943
    %5028 = vmatpush.msra.mxu0 %v942
    %5029 = vmatpush.msra.mxu0 %v941
    %5030 = vmatpush.msra.mxu0 %v940
    %5031 = vmatpush.msra.mxu0 %v939
    %5032 = vmatpush.msra.mxu0 %v938
    %5033 = vmatpush.msra.mxu0 %v937
    %5034 = vmatpush.msra.mxu0 %v936
    %5035 = vmatpush.msra.mxu0 %v935
    %5036 = vmatpush.msra.mxu0 %v934
    %5037 = vmatpush.msra.mxu0 %v933
    %5038 = vmatpush.msra.mxu0 %v932
    %5039 = vmatpush.msra.mxu0 %v931
    %5040 = vmatpush.msra.mxu0 %v930
    %5041 = vmatpush.msra.mxu0 %v929
    %5042 = vmatpush.msra.mxu0 %v928
    %5043 = vmatmul.f32.gmra.mxu0 %v3689
    %v5044 = vpop.f32.mrf.mxu0
    %v5045 = vadd.f32 %v5025, %v5044
    %5046 = vdwg.mxu0
    %5047 = vmatpush.msra.mxu0 %v959
    %5048 = vmatpush.msra.mxu0 %v958
    %5049 = vmatpush.msra.mxu0 %v957
    %5050 = vmatpush.msra.mxu0 %v956
    %5051 = vmatpush.msra.mxu0 %v955
    %5052 = vmatpush.msra.mxu0 %v954
    %5053 = vmatpush.msra.mxu0 %v953
    %5054 = vmatpush.msra.mxu0 %v952
    %5055 = vmatpush.msra.mxu0 %v951
    %5056 = vmatpush.msra.mxu0 %v950
    %5057 = vmatpush.msra.mxu0 %v949
    %5058 = vmatpush.msra.mxu0 %v948
    %5059 = vmatpush.msra.mxu0 %v947
    %5060 = vmatpush.msra.mxu0 %v946
    %5061 = vmatpush.msra.mxu0 %v945
    %5062 = vmatpush.msra.mxu0 %v944
    %5063 = vmatmul.f32.gmra.mxu0 %v3690
    %v5064 = vpop.f32.mrf.mxu0
    %v5065 = vadd.f32 %v5045, %v5064
    %5066 = vdwg.mxu0
    %5067 = vmatpush.msra.mxu0 %v975
    %5068 = vmatpush.msra.mxu0 %v974
    %5069 = vmatpush.msra.mxu0 %v973
    %5070 = vmatpush.msra.mxu0 %v972
    %5071 = vmatpush.msra.mxu0 %v971
    %5072 = vmatpush.msra.mxu0 %v970
    %5073 = vmatpush.msra.mxu0 %v969
    %5074 = vmatpush.msra.mxu0 %v968
    %5075 = vmatpush.msra.mxu0 %v967
    %5076 = vmatpush.msra.mxu0 %v966
    %5077 = vmatpush.msra.mxu0 %v965
    %5078 = vmatpush.msra.mxu0 %v964
    %5079 = vmatpush.msra.mxu0 %v963
    %5080 = vmatpush.msra.mxu0 %v962
    %5081 = vmatpush.msra.mxu0 %v961
    %5082 = vmatpush.msra.mxu0 %v960
    %5083 = vmatmul.f32.gmra.mxu0 %v3691
    %v5084 = vpop.f32.mrf.mxu0
    %v5085 = vadd.f32 %v5065, %v5084
    %5086 = vdwg.mxu0
    %5087 = vmatpush.msra.mxu0 %v991
    %5088 = vmatpush.msra.mxu0 %v990
    %5089 = vmatpush.msra.mxu0 %v989
    %5090 = vmatpush.msra.mxu0 %v988
    %5091 = vmatpush.msra.mxu0 %v987
    %5092 = vmatpush.msra.mxu0 %v986
    %5093 = vmatpush.msra.mxu0 %v985
    %5094 = vmatpush.msra.mxu0 %v984
    %5095 = vmatpush.msra.mxu0 %v983
    %5096 = vmatpush.msra.mxu0 %v982
    %5097 = vmatpush.msra.mxu0 %v981
    %5098 = vmatpush.msra.mxu0 %v980
    %5099 = vmatpush.msra.mxu0 %v979
    %5100 = vmatpush.msra.mxu0 %v978
    %5101 = vmatpush.msra.mxu0 %v977
    %5102 = vmatpush.msra.mxu0 %v976
    %5103 = vmatmul.f32.gmra.mxu0 %v3692
    %v5104 = vpop.f32.mrf.mxu0
    %v5105 = vadd.f32 %v5085, %v5104
    %5106 = vdwg.mxu0
    %5107 = vmatpush.msra.mxu0 %v1007
    %5108 = vmatpush.msra.mxu0 %v1006
    %5109 = vmatpush.msra.mxu0 %v1005
    %5110 = vmatpush.msra.mxu0 %v1004
    %5111 = vmatpush.msra.mxu0 %v1003
    %5112 = vmatpush.msra.mxu0 %v1002
    %5113 = vmatpush.msra.mxu0 %v1001
    %5114 = vmatpush.msra.mxu0 %v1000
    %5115 = vmatpush.msra.mxu0 %v999
    %5116 = vmatpush.msra.mxu0 %v998
    %5117 = vmatpush.msra.mxu0 %v997
    %5118 = vmatpush.msra.mxu0 %v996
    %5119 = vmatpush.msra.mxu0 %v995
    %5120 = vmatpush.msra.mxu0 %v994
    %5121 = vmatpush.msra.mxu0 %v993
    %5122 = vmatpush.msra.mxu0 %v992
    %5123 = vmatmul.f32.gmra.mxu0 %v3693
    %v5124 = vpop.f32.mrf.mxu0
    %v5125 = vadd.f32 %v5105, %v5124
    %5126 = vdwg.mxu0
    %5127 = vmatpush.msra.mxu0 %v1023
    %5128 = vmatpush.msra.mxu0 %v1022
    %5129 = vmatpush.msra.mxu0 %v1021
    %5130 = vmatpush.msra.mxu0 %v1020
    %5131 = vmatpush.msra.mxu0 %v1019
    %5132 = vmatpush.msra.mxu0 %v1018
    %5133 = vmatpush.msra.mxu0 %v1017
    %5134 = vmatpush.msra.mxu0 %v1016
    %5135 = vmatpush.msra.mxu0 %v1015
    %5136 = vmatpush.msra.mxu0 %v1014
    %5137 = vmatpush.msra.mxu0 %v1013
    %5138 = vmatpush.msra.mxu0 %v1012
    %5139 = vmatpush.msra.mxu0 %v1011
    %5140 = vmatpush.msra.mxu0 %v1010
    %5141 = vmatpush.msra.mxu0 %v1009
    %5142 = vmatpush.msra.mxu0 %v1008
    %5143 = vmatmul.f32.gmra.mxu0 %v3694
    %v5144 = vpop.f32.mrf.mxu0
    %v5145 = vadd.f32 %v5125, %v5144
    %5146 = vdwg.mxu0
    %5147 = vmatpush.msra.mxu0 %v1039
    %5148 = vmatpush.msra.mxu0 %v1038
    %5149 = vmatpush.msra.mxu0 %v1037
    %5150 = vmatpush.msra.mxu0 %v1036
    %5151 = vmatpush.msra.mxu0 %v1035
    %5152 = vmatpush.msra.mxu0 %v1034
    %5153 = vmatpush.msra.mxu0 %v1033
    %5154 = vmatpush.msra.mxu0 %v1032
    %5155 = vmatpush.msra.mxu0 %v1031
    %5156 = vmatpush.msra.mxu0 %v1030
    %5157 = vmatpush.msra.mxu0 %v1029
    %5158 = vmatpush.msra.mxu0 %v1028
    %5159 = vmatpush.msra.mxu0 %v1027
    %5160 = vmatpush.msra.mxu0 %v1026
    %5161 = vmatpush.msra.mxu0 %v1025
    %5162 = vmatpush.msra.mxu0 %v1024
    %5163 = vmatmul.f32.gmra.mxu0 %v3703
    %v5164 = vpop.f32.mrf.mxu0
    %v5165 = vadd.f32 %v5145, %v5164
    %5166 = vdwg.mxu0
    %5167 = vmatpush.msra.mxu0 %v1055
    %5168 = vmatpush.msra.mxu0 %v1054
    %5169 = vmatpush.msra.mxu0 %v1053
    %5170 = vmatpush.msra.mxu0 %v1052
    %5171 = vmatpush.msra.mxu0 %v1051
    %5172 = vmatpush.msra.mxu0 %v1050
    %5173 = vmatpush.msra.mxu0 %v1049
    %5174 = vmatpush.msra.mxu0 %v1048
    %5175 = vmatpush.msra.mxu0 %v1047
    %5176 = vmatpush.msra.mxu0 %v1046
    %5177 = vmatpush.msra.mxu0 %v1045
    %5178 = vmatpush.msra.mxu0 %v1044
    %5179 = vmatpush.msra.mxu0 %v1043
    %5180 = vmatpush.msra.mxu0 %v1042
    %5181 = vmatpush.msra.mxu0 %v1041
    %5182 = vmatpush.msra.mxu0 %v1040
    %5183 = vmatmul.f32.gmra.mxu0 %v3704
    %v5184 = vpop.f32.mrf.mxu0
    %v5185 = vadd.f32 %v5165, %v5184
    %5186 = vdwg.mxu0
    %5187 = vmatpush.msra.mxu0 %v1071
    %5188 = vmatpush.msra.mxu0 %v1070
    %5189 = vmatpush.msra.mxu0 %v1069
    %5190 = vmatpush.msra.mxu0 %v1068
    %5191 = vmatpush.msra.mxu0 %v1067
    %5192 = vmatpush.msra.mxu0 %v1066
    %5193 = vmatpush.msra.mxu0 %v1065
    %5194 = vmatpush.msra.mxu0 %v1064
    %5195 = vmatpush.msra.mxu0 %v1063
    %5196 = vmatpush.msra.mxu0 %v1062
    %5197 = vmatpush.msra.mxu0 %v1061
    %5198 = vmatpush.msra.mxu0 %v1060
    %5199 = vmatpush.msra.mxu0 %v1059
    %5200 = vmatpush.msra.mxu0 %v1058
    %5201 = vmatpush.msra.mxu0 %v1057
    %5202 = vmatpush.msra.mxu0 %v1056
    %5203 = vmatmul.f32.gmra.mxu0 %v3705
    %v5204 = vpop.f32.mrf.mxu0
    %v5205 = vadd.f32 %v5185, %v5204
    %5206 = vdwg.mxu0
    %5207 = vmatpush.msra.mxu0 %v1087
    %5208 = vmatpush.msra.mxu0 %v1086
    %5209 = vmatpush.msra.mxu0 %v1085
    %5210 = vmatpush.msra.mxu0 %v1084
    %5211 = vmatpush.msra.mxu0 %v1083
    %5212 = vmatpush.msra.mxu0 %v1082
    %5213 = vmatpush.msra.mxu0 %v1081
    %5214 = vmatpush.msra.mxu0 %v1080
    %5215 = vmatpush.msra.mxu0 %v1079
    %5216 = vmatpush.msra.mxu0 %v1078
    %5217 = vmatpush.msra.mxu0 %v1077
    %5218 = vmatpush.msra.mxu0 %v1076
    %5219 = vmatpush.msra.mxu0 %v1075
    %5220 = vmatpush.msra.mxu0 %v1074
    %5221 = vmatpush.msra.mxu0 %v1073
    %5222 = vmatpush.msra.mxu0 %v1072
    %5223 = vmatmul.f32.gmra.mxu0 %v3706
    %v5224 = vpop.f32.mrf.mxu0
    %v5225 = vadd.f32 %v5205, %v5224
    %5226 = vdwg.mxu0
    %5227 = vmatpush.msra.mxu0 %v1103
    %5228 = vmatpush.msra.mxu0 %v1102
    %5229 = vmatpush.msra.mxu0 %v1101
    %5230 = vmatpush.msra.mxu0 %v1100
    %5231 = vmatpush.msra.mxu0 %v1099
    %5232 = vmatpush.msra.mxu0 %v1098
    %5233 = vmatpush.msra.mxu0 %v1097
    %5234 = vmatpush.msra.mxu0 %v1096
    %5235 = vmatpush.msra.mxu0 %v1095
    %5236 = vmatpush.msra.mxu0 %v1094
    %5237 = vmatpush.msra.mxu0 %v1093
    %5238 = vmatpush.msra.mxu0 %v1092
    %5239 = vmatpush.msra.mxu0 %v1091
    %5240 = vmatpush.msra.mxu0 %v1090
    %5241 = vmatpush.msra.mxu0 %v1089
    %5242 = vmatpush.msra.mxu0 %v1088
    %5243 = vmatmul.f32.gmra.mxu0 %v3707
    %v5244 = vpop.f32.mrf.mxu0
    %v5245 = vadd.f32 %v5225, %v5244
    %5246 = vdwg.mxu0
    %5247 = vmatpush.msra.mxu0 %v1119
    %5248 = vmatpush.msra.mxu0 %v1118
    %5249 = vmatpush.msra.mxu0 %v1117
    %5250 = vmatpush.msra.mxu0 %v1116
    %5251 = vmatpush.msra.mxu0 %v1115
    %5252 = vmatpush.msra.mxu0 %v1114
    %5253 = vmatpush.msra.mxu0 %v1113
    %5254 = vmatpush.msra.mxu0 %v1112
    %5255 = vmatpush.msra.mxu0 %v1111
    %5256 = vmatpush.msra.mxu0 %v1110
    %5257 = vmatpush.msra.mxu0 %v1109
    %5258 = vmatpush.msra.mxu0 %v1108
    %5259 = vmatpush.msra.mxu0 %v1107
    %5260 = vmatpush.msra.mxu0 %v1106
    %5261 = vmatpush.msra.mxu0 %v1105
    %5262 = vmatpush.msra.mxu0 %v1104
    %5263 = vmatmul.f32.gmra.mxu0 %v3708
    %v5264 = vpop.f32.mrf.mxu0
    %v5265 = vadd.f32 %v5245, %v5264
    %5266 = vdwg.mxu0
    %5267 = vmatpush.msra.mxu0 %v1135
    %5268 = vmatpush.msra.mxu0 %v1134
    %5269 = vmatpush.msra.mxu0 %v1133
    %5270 = vmatpush.msra.mxu0 %v1132
    %5271 = vmatpush.msra.mxu0 %v1131
    %5272 = vmatpush.msra.mxu0 %v1130
    %5273 = vmatpush.msra.mxu0 %v1129
    %5274 = vmatpush.msra.mxu0 %v1128
    %5275 = vmatpush.msra.mxu0 %v1127
    %5276 = vmatpush.msra.mxu0 %v1126
    %5277 = vmatpush.msra.mxu0 %v1125
    %5278 = vmatpush.msra.mxu0 %v1124
    %5279 = vmatpush.msra.mxu0 %v1123
    %5280 = vmatpush.msra.mxu0 %v1122
    %5281 = vmatpush.msra.mxu0 %v1121
    %5282 = vmatpush.msra.mxu0 %v1120
    %5283 = vmatmul.f32.gmra.mxu0 %v3709
    %v5284 = vpop.f32.mrf.mxu0
    %v5285 = vadd.f32 %v5265, %v5284
    %5286 = vdwg.mxu0
    %5287 = vmatpush.msra.mxu0 %v1151
    %5288 = vmatpush.msra.mxu0 %v1150
    %5289 = vmatpush.msra.mxu0 %v1149
    %5290 = vmatpush.msra.mxu0 %v1148
    %5291 = vmatpush.msra.mxu0 %v1147
    %5292 = vmatpush.msra.mxu0 %v1146
    %5293 = vmatpush.msra.mxu0 %v1145
    %5294 = vmatpush.msra.mxu0 %v1144
    %5295 = vmatpush.msra.mxu0 %v1143
    %5296 = vmatpush.msra.mxu0 %v1142
    %5297 = vmatpush.msra.mxu0 %v1141
    %5298 = vmatpush.msra.mxu0 %v1140
    %5299 = vmatpush.msra.mxu0 %v1139
    %5300 = vmatpush.msra.mxu0 %v1138
    %5301 = vmatpush.msra.mxu0 %v1137
    %5302 = vmatpush.msra.mxu0 %v1136
    %5303 = vmatmul.f32.gmra.mxu0 %v3710
    %v5304 = vpop.f32.mrf.mxu0
    %v5305 = vadd.f32 %v5285, %v5304
    %5306 = vdwg.mxu0
    %5307 = vmatpush.msra.mxu0 %v1167
    %5308 = vmatpush.msra.mxu0 %v1166
    %5309 = vmatpush.msra.mxu0 %v1165
    %5310 = vmatpush.msra.mxu0 %v1164
    %5311 = vmatpush.msra.mxu0 %v1163
    %5312 = vmatpush.msra.mxu0 %v1162
    %5313 = vmatpush.msra.mxu0 %v1161
    %5314 = vmatpush.msra.mxu0 %v1160
    %5315 = vmatpush.msra.mxu0 %v1159
    %5316 = vmatpush.msra.mxu0 %v1158
    %5317 = vmatpush.msra.mxu0 %v1157
    %5318 = vmatpush.msra.mxu0 %v1156
    %5319 = vmatpush.msra.mxu0 %v1155
    %5320 = vmatpush.msra.mxu0 %v1154
    %5321 = vmatpush.msra.mxu0 %v1153
    %5322 = vmatpush.msra.mxu0 %v1152
    %5323 = vmatmul.f32.gmra.mxu0 %v3719
    %v5324 = vpop.f32.mrf.mxu0
    %v5325 = vadd.f32 %v5305, %v5324
    %5326 = vdwg.mxu0
    %5327 = vmatpush.msra.mxu0 %v1183
    %5328 = vmatpush.msra.mxu0 %v1182
    %5329 = vmatpush.msra.mxu0 %v1181
    %5330 = vmatpush.msra.mxu0 %v1180
    %5331 = vmatpush.msra.mxu0 %v1179
    %5332 = vmatpush.msra.mxu0 %v1178
    %5333 = vmatpush.msra.mxu0 %v1177
    %5334 = vmatpush.msra.mxu0 %v1176
    %5335 = vmatpush.msra.mxu0 %v1175
    %5336 = vmatpush.msra.mxu0 %v1174
    %5337 = vmatpush.msra.mxu0 %v1173
    %5338 = vmatpush.msra.mxu0 %v1172
    %5339 = vmatpush.msra.mxu0 %v1171
    %5340 = vmatpush.msra.mxu0 %v1170
    %5341 = vmatpush.msra.mxu0 %v1169
    %5342 = vmatpush.msra.mxu0 %v1168
    %5343 = vmatmul.f32.gmra.mxu0 %v3720
    %v5344 = vpop.f32.mrf.mxu0
    %v5345 = vadd.f32 %v5325, %v5344
    %5346 = vdwg.mxu0
    %5347 = vmatpush.msra.mxu0 %v1199
    %5348 = vmatpush.msra.mxu0 %v1198
    %5349 = vmatpush.msra.mxu0 %v1197
    %5350 = vmatpush.msra.mxu0 %v1196
    %5351 = vmatpush.msra.mxu0 %v1195
    %5352 = vmatpush.msra.mxu0 %v1194
    %5353 = vmatpush.msra.mxu0 %v1193
    %5354 = vmatpush.msra.mxu0 %v1192
    %5355 = vmatpush.msra.mxu0 %v1191
    %5356 = vmatpush.msra.mxu0 %v1190
    %5357 = vmatpush.msra.mxu0 %v1189
    %5358 = vmatpush.msra.mxu0 %v1188
    %5359 = vmatpush.msra.mxu0 %v1187
    %5360 = vmatpush.msra.mxu0 %v1186
    %5361 = vmatpush.msra.mxu0 %v1185
    %5362 = vmatpush.msra.mxu0 %v1184
    %5363 = vmatmul.f32.gmra.mxu0 %v3721
    %v5364 = vpop.f32.mrf.mxu0
    %v5365 = vadd.f32 %v5345, %v5364
    %5366 = vdwg.mxu0
    %5367 = vmatpush.msra.mxu0 %v1215
    %5368 = vmatpush.msra.mxu0 %v1214
    %5369 = vmatpush.msra.mxu0 %v1213
    %5370 = vmatpush.msra.mxu0 %v1212
    %5371 = vmatpush.msra.mxu0 %v1211
    %5372 = vmatpush.msra.mxu0 %v1210
    %5373 = vmatpush.msra.mxu0 %v1209
    %5374 = vmatpush.msra.mxu0 %v1208
    %5375 = vmatpush.msra.mxu0 %v1207
    %5376 = vmatpush.msra.mxu0 %v1206
    %5377 = vmatpush.msra.mxu0 %v1205
    %5378 = vmatpush.msra.mxu0 %v1204
    %5379 = vmatpush.msra.mxu0 %v1203
    %5380 = vmatpush.msra.mxu0 %v1202
    %5381 = vmatpush.msra.mxu0 %v1201
    %5382 = vmatpush.msra.mxu0 %v1200
    %5383 = vmatmul.f32.gmra.mxu0 %v3722
    %v5384 = vpop.f32.mrf.mxu0
    %v5385 = vadd.f32 %v5365, %v5384
    %5386 = vdwg.mxu0
    %5387 = vmatpush.msra.mxu0 %v1231
    %5388 = vmatpush.msra.mxu0 %v1230
    %5389 = vmatpush.msra.mxu0 %v1229
    %5390 = vmatpush.msra.mxu0 %v1228
    %5391 = vmatpush.msra.mxu0 %v1227
    %5392 = vmatpush.msra.mxu0 %v1226
    %5393 = vmatpush.msra.mxu0 %v1225
    %5394 = vmatpush.msra.mxu0 %v1224
    %5395 = vmatpush.msra.mxu0 %v1223
    %5396 = vmatpush.msra.mxu0 %v1222
    %5397 = vmatpush.msra.mxu0 %v1221
    %5398 = vmatpush.msra.mxu0 %v1220
    %5399 = vmatpush.msra.mxu0 %v1219
    %5400 = vmatpush.msra.mxu0 %v1218
    %5401 = vmatpush.msra.mxu0 %v1217
    %5402 = vmatpush.msra.mxu0 %v1216
    %5403 = vmatmul.f32.gmra.mxu0 %v3723
    %v5404 = vpop.f32.mrf.mxu0
    %v5405 = vadd.f32 %v5385, %v5404
    %5406 = vdwg.mxu0
    %5407 = vmatpush.msra.mxu0 %v1247
    %5408 = vmatpush.msra.mxu0 %v1246
    %5409 = vmatpush.msra.mxu0 %v1245
    %5410 = vmatpush.msra.mxu0 %v1244
    %5411 = vmatpush.msra.mxu0 %v1243
    %5412 = vmatpush.msra.mxu0 %v1242
    %5413 = vmatpush.msra.mxu0 %v1241
    %5414 = vmatpush.msra.mxu0 %v1240
    %5415 = vmatpush.msra.mxu0 %v1239
    %5416 = vmatpush.msra.mxu0 %v1238
    %5417 = vmatpush.msra.mxu0 %v1237
    %5418 = vmatpush.msra.mxu0 %v1236
    %5419 = vmatpush.msra.mxu0 %v1235
    %5420 = vmatpush.msra.mxu0 %v1234
    %5421 = vmatpush.msra.mxu0 %v1233
    %5422 = vmatpush.msra.mxu0 %v1232
    %5423 = vmatmul.f32.gmra.mxu0 %v3724
    %v5424 = vpop.f32.mrf.mxu0
    %v5425 = vadd.f32 %v5405, %v5424
    %5426 = vdwg.mxu0
    %5427 = vmatpush.msra.mxu0 %v1263
    %5428 = vmatpush.msra.mxu0 %v1262
    %5429 = vmatpush.msra.mxu0 %v1261
    %5430 = vmatpush.msra.mxu0 %v1260
    %5431 = vmatpush.msra.mxu0 %v1259
    %5432 = vmatpush.msra.mxu0 %v1258
    %5433 = vmatpush.msra.mxu0 %v1257
    %5434 = vmatpush.msra.mxu0 %v1256
    %5435 = vmatpush.msra.mxu0 %v1255
    %5436 = vmatpush.msra.mxu0 %v1254
    %5437 = vmatpush.msra.mxu0 %v1253
    %5438 = vmatpush.msra.mxu0 %v1252
    %5439 = vmatpush.msra.mxu0 %v1251
    %5440 = vmatpush.msra.mxu0 %v1250
    %5441 = vmatpush.msra.mxu0 %v1249
    %5442 = vmatpush.msra.mxu0 %v1248
    %5443 = vmatmul.f32.gmra.mxu0 %v3725
    %v5444 = vpop.f32.mrf.mxu0
    %v5445 = vadd.f32 %v5425, %v5444
    %5446 = vdwg.mxu0
    %5447 = vmatpush.msra.mxu0 %v1279
    %5448 = vmatpush.msra.mxu0 %v1278
    %5449 = vmatpush.msra.mxu0 %v1277
    %5450 = vmatpush.msra.mxu0 %v1276
    %5451 = vmatpush.msra.mxu0 %v1275
    %5452 = vmatpush.msra.mxu0 %v1274
    %5453 = vmatpush.msra.mxu0 %v1273
    %5454 = vmatpush.msra.mxu0 %v1272
    %5455 = vmatpush.msra.mxu0 %v1271
    %5456 = vmatpush.msra.mxu0 %v1270
    %5457 = vmatpush.msra.mxu0 %v1269
    %5458 = vmatpush.msra.mxu0 %v1268
    %5459 = vmatpush.msra.mxu0 %v1267
    %5460 = vmatpush.msra.mxu0 %v1266
    %5461 = vmatpush.msra.mxu0 %v1265
    %5462 = vmatpush.msra.mxu0 %v1264
    %5463 = vmatmul.f32.gmra.mxu0 %v3726
    %v5464 = vpop.f32.mrf.mxu0
    %v5465 = vadd.f32 %v5445, %v5464
    %5466 = vdwg.mxu0
    %5467 = vmatpush.msra.mxu0 %v1295
    %5468 = vmatpush.msra.mxu0 %v1294
    %5469 = vmatpush.msra.mxu0 %v1293
    %5470 = vmatpush.msra.mxu0 %v1292
    %5471 = vmatpush.msra.mxu0 %v1291
    %5472 = vmatpush.msra.mxu0 %v1290
    %5473 = vmatpush.msra.mxu0 %v1289
    %5474 = vmatpush.msra.mxu0 %v1288
    %5475 = vmatpush.msra.mxu0 %v1287
    %5476 = vmatpush.msra.mxu0 %v1286
    %5477 = vmatpush.msra.mxu0 %v1285
    %5478 = vmatpush.msra.mxu0 %v1284
    %5479 = vmatpush.msra.mxu0 %v1283
    %5480 = vmatpush.msra.mxu0 %v1282
    %5481 = vmatpush.msra.mxu0 %v1281
    %5482 = vmatpush.msra.mxu0 %v1280
    %5483 = vmatmul.f32.gmra.mxu0 %v3735
    %v5484 = vpop.f32.mrf.mxu0
    %v5485 = vadd.f32 %v5465, %v5484
    %5486 = vdwg.mxu0
    %5487 = vmatpush.msra.mxu0 %v1311
    %5488 = vmatpush.msra.mxu0 %v1310
    %5489 = vmatpush.msra.mxu0 %v1309
    %5490 = vmatpush.msra.mxu0 %v1308
    %5491 = vmatpush.msra.mxu0 %v1307
    %5492 = vmatpush.msra.mxu0 %v1306
    %5493 = vmatpush.msra.mxu0 %v1305
    %5494 = vmatpush.msra.mxu0 %v1304
    %5495 = vmatpush.msra.mxu0 %v1303
    %5496 = vmatpush.msra.mxu0 %v1302
    %5497 = vmatpush.msra.mxu0 %v1301
    %5498 = vmatpush.msra.mxu0 %v1300
    %5499 = vmatpush.msra.mxu0 %v1299
    %5500 = vmatpush.msra.mxu0 %v1298
    %5501 = vmatpush.msra.mxu0 %v1297
    %5502 = vmatpush.msra.mxu0 %v1296
    %5503 = vmatmul.f32.gmra.mxu0 %v3736
    %v5504 = vpop.f32.mrf.mxu0
    %v5505 = vadd.f32 %v5485, %v5504
    %5506 = vdwg.mxu0
    %5507 = vmatpush.msra.mxu0 %v1327
    %5508 = vmatpush.msra.mxu0 %v1326
    %5509 = vmatpush.msra.mxu0 %v1325
    %5510 = vmatpush.msra.mxu0 %v1324
    %5511 = vmatpush.msra.mxu0 %v1323
    %5512 = vmatpush.msra.mxu0 %v1322
    %5513 = vmatpush.msra.mxu0 %v1321
    %5514 = vmatpush.msra.mxu0 %v1320
    %5515 = vmatpush.msra.mxu0 %v1319
    %5516 = vmatpush.msra.mxu0 %v1318
    %5517 = vmatpush.msra.mxu0 %v1317
    %5518 = vmatpush.msra.mxu0 %v1316
    %5519 = vmatpush.msra.mxu0 %v1315
    %5520 = vmatpush.msra.mxu0 %v1314
    %5521 = vmatpush.msra.mxu0 %v1313
    %5522 = vmatpush.msra.mxu0 %v1312
    %5523 = vmatmul.f32.gmra.mxu0 %v3737
    %v5524 = vpop.f32.mrf.mxu0
    %v5525 = vadd.f32 %v5505, %v5524
    %5526 = vdwg.mxu0
    %5527 = vmatpush.msra.mxu0 %v1343
    %5528 = vmatpush.msra.mxu0 %v1342
    %5529 = vmatpush.msra.mxu0 %v1341
    %5530 = vmatpush.msra.mxu0 %v1340
    %5531 = vmatpush.msra.mxu0 %v1339
    %5532 = vmatpush.msra.mxu0 %v1338
    %5533 = vmatpush.msra.mxu0 %v1337
    %5534 = vmatpush.msra.mxu0 %v1336
    %5535 = vmatpush.msra.mxu0 %v1335
    %5536 = vmatpush.msra.mxu0 %v1334
    %5537 = vmatpush.msra.mxu0 %v1333
    %5538 = vmatpush.msra.mxu0 %v1332
    %5539 = vmatpush.msra.mxu0 %v1331
    %5540 = vmatpush.msra.mxu0 %v1330
    %5541 = vmatpush.msra.mxu0 %v1329
    %5542 = vmatpush.msra.mxu0 %v1328
    %5543 = vmatmul.f32.gmra.mxu0 %v3738
    %v5544 = vpop.f32.mrf.mxu0
    %v5545 = vadd.f32 %v5525, %v5544
    %5546 = vdwg.mxu0
    %5547 = vmatpush.msra.mxu0 %v1359
    %5548 = vmatpush.msra.mxu0 %v1358
    %5549 = vmatpush.msra.mxu0 %v1357
    %5550 = vmatpush.msra.mxu0 %v1356
    %5551 = vmatpush.msra.mxu0 %v1355
    %5552 = vmatpush.msra.mxu0 %v1354
    %5553 = vmatpush.msra.mxu0 %v1353
    %5554 = vmatpush.msra.mxu0 %v1352
    %5555 = vmatpush.msra.mxu0 %v1351
    %5556 = vmatpush.msra.mxu0 %v1350
    %5557 = vmatpush.msra.mxu0 %v1349
    %5558 = vmatpush.msra.mxu0 %v1348
    %5559 = vmatpush.msra.mxu0 %v1347
    %5560 = vmatpush.msra.mxu0 %v1346
    %5561 = vmatpush.msra.mxu0 %v1345
    %5562 = vmatpush.msra.mxu0 %v1344
    %5563 = vmatmul.f32.gmra.mxu0 %v3739
    %v5564 = vpop.f32.mrf.mxu0
    %v5565 = vadd.f32 %v5545, %v5564
    %5566 = vdwg.mxu0
    %5567 = vmatpush.msra.mxu0 %v1375
    %5568 = vmatpush.msra.mxu0 %v1374
    %5569 = vmatpush.msra.mxu0 %v1373
    %5570 = vmatpush.msra.mxu0 %v1372
    %5571 = vmatpush.msra.mxu0 %v1371
    %5572 = vmatpush.msra.mxu0 %v1370
    %5573 = vmatpush.msra.mxu0 %v1369
    %5574 = vmatpush.msra.mxu0 %v1368
    %5575 = vmatpush.msra.mxu0 %v1367
    %5576 = vmatpush.msra.mxu0 %v1366
    %5577 = vmatpush.msra.mxu0 %v1365
    %5578 = vmatpush.msra.mxu0 %v1364
    %5579 = vmatpush.msra.mxu0 %v1363
    %5580 = vmatpush.msra.mxu0 %v1362
    %5581 = vmatpush.msra.mxu0 %v1361
    %5582 = vmatpush.msra.mxu0 %v1360
    %5583 = vmatmul.f32.gmra.mxu0 %v3740
    %v5584 = vpop.f32.mrf.mxu0
    %v5585 = vadd.f32 %v5565, %v5584
    %5586 = vdwg.mxu0
    %5587 = vmatpush.msra.mxu0 %v1391
    %5588 = vmatpush.msra.mxu0 %v1390
    %5589 = vmatpush.msra.mxu0 %v1389
    %5590 = vmatpush.msra.mxu0 %v1388
    %5591 = vmatpush.msra.mxu0 %v1387
    %5592 = vmatpush.msra.mxu0 %v1386
    %5593 = vmatpush.msra.mxu0 %v1385
    %5594 = vmatpush.msra.mxu0 %v1384
    %5595 = vmatpush.msra.mxu0 %v1383
    %5596 = vmatpush.msra.mxu0 %v1382
    %5597 = vmatpush.msra.mxu0 %v1381
    %5598 = vmatpush.msra.mxu0 %v1380
    %5599 = vmatpush.msra.mxu0 %v1379
    %5600 = vmatpush.msra.mxu0 %v1378
    %5601 = vmatpush.msra.mxu0 %v1377
    %5602 = vmatpush.msra.mxu0 %v1376
    %5603 = vmatmul.f32.gmra.mxu0 %v3741
    %v5604 = vpop.f32.mrf.mxu0
    %v5605 = vadd.f32 %v5585, %v5604
    %5606 = vdwg.mxu0
    %5607 = vmatpush.msra.mxu0 %v1407
    %5608 = vmatpush.msra.mxu0 %v1406
    %5609 = vmatpush.msra.mxu0 %v1405
    %5610 = vmatpush.msra.mxu0 %v1404
    %5611 = vmatpush.msra.mxu0 %v1403
    %5612 = vmatpush.msra.mxu0 %v1402
    %5613 = vmatpush.msra.mxu0 %v1401
    %5614 = vmatpush.msra.mxu0 %v1400
    %5615 = vmatpush.msra.mxu0 %v1399
    %5616 = vmatpush.msra.mxu0 %v1398
    %5617 = vmatpush.msra.mxu0 %v1397
    %5618 = vmatpush.msra.mxu0 %v1396
    %5619 = vmatpush.msra.mxu0 %v1395
    %5620 = vmatpush.msra.mxu0 %v1394
    %5621 = vmatpush.msra.mxu0 %v1393
    %5622 = vmatpush.msra.mxu0 %v1392
    %5623 = vmatmul.f32.gmra.mxu0 %v3742
    %v5624 = vpop.f32.mrf.mxu0
    %v5625 = vadd.f32 %v5605, %v5624
    %5626 = vdwg.mxu0
    %5627 = vmatpush.msra.mxu0 %v1423
    %5628 = vmatpush.msra.mxu0 %v1422
    %5629 = vmatpush.msra.mxu0 %v1421
    %5630 = vmatpush.msra.mxu0 %v1420
    %5631 = vmatpush.msra.mxu0 %v1419
    %5632 = vmatpush.msra.mxu0 %v1418
    %5633 = vmatpush.msra.mxu0 %v1417
    %5634 = vmatpush.msra.mxu0 %v1416
    %5635 = vmatpush.msra.mxu0 %v1415
    %5636 = vmatpush.msra.mxu0 %v1414
    %5637 = vmatpush.msra.mxu0 %v1413
    %5638 = vmatpush.msra.mxu0 %v1412
    %5639 = vmatpush.msra.mxu0 %v1411
    %5640 = vmatpush.msra.mxu0 %v1410
    %5641 = vmatpush.msra.mxu0 %v1409
    %5642 = vmatpush.msra.mxu0 %v1408
    %5643 = vmatmul.f32.gmra.mxu0 %v3751
    %v5644 = vpop.f32.mrf.mxu0
    %v5645 = vadd.f32 %v5625, %v5644
    %5646 = vdwg.mxu0
    %5647 = vmatpush.msra.mxu0 %v1439
    %5648 = vmatpush.msra.mxu0 %v1438
    %5649 = vmatpush.msra.mxu0 %v1437
    %5650 = vmatpush.msra.mxu0 %v1436
    %5651 = vmatpush.msra.mxu0 %v1435
    %5652 = vmatpush.msra.mxu0 %v1434
    %5653 = vmatpush.msra.mxu0 %v1433
    %5654 = vmatpush.msra.mxu0 %v1432
    %5655 = vmatpush.msra.mxu0 %v1431
    %5656 = vmatpush.msra.mxu0 %v1430
    %5657 = vmatpush.msra.mxu0 %v1429
    %5658 = vmatpush.msra.mxu0 %v1428
    %5659 = vmatpush.msra.mxu0 %v1427
    %5660 = vmatpush.msra.mxu0 %v1426
    %5661 = vmatpush.msra.mxu0 %v1425
    %5662 = vmatpush.msra.mxu0 %v1424
    %5663 = vmatmul.f32.gmra.mxu0 %v3752
    %v5664 = vpop.f32.mrf.mxu0
    %v5665 = vadd.f32 %v5645, %v5664
    %5666 = vdwg.mxu0
    %5667 = vmatpush.msra.mxu0 %v1455
    %5668 = vmatpush.msra.mxu0 %v1454
    %5669 = vmatpush.msra.mxu0 %v1453
    %5670 = vmatpush.msra.mxu0 %v1452
    %5671 = vmatpush.msra.mxu0 %v1451
    %5672 = vmatpush.msra.mxu0 %v1450
    %5673 = vmatpush.msra.mxu0 %v1449
    %5674 = vmatpush.msra.mxu0 %v1448
    %5675 = vmatpush.msra.mxu0 %v1447
    %5676 = vmatpush.msra.mxu0 %v1446
    %5677 = vmatpush.msra.mxu0 %v1445
    %5678 = vmatpush.msra.mxu0 %v1444
    %5679 = vmatpush.msra.mxu0 %v1443
    %5680 = vmatpush.msra.mxu0 %v1442
    %5681 = vmatpush.msra.mxu0 %v1441
    %5682 = vmatpush.msra.mxu0 %v1440
    %5683 = vmatmul.f32.gmra.mxu0 %v3753
    %v5684 = vpop.f32.mrf.mxu0
    %v5685 = vadd.f32 %v5665, %v5684
    %5686 = vdwg.mxu0
    %5687 = vmatpush.msra.mxu0 %v1471
    %5688 = vmatpush.msra.mxu0 %v1470
    %5689 = vmatpush.msra.mxu0 %v1469
    %5690 = vmatpush.msra.mxu0 %v1468
    %5691 = vmatpush.msra.mxu0 %v1467
    %5692 = vmatpush.msra.mxu0 %v1466
    %5693 = vmatpush.msra.mxu0 %v1465
    %5694 = vmatpush.msra.mxu0 %v1464
    %5695 = vmatpush.msra.mxu0 %v1463
    %5696 = vmatpush.msra.mxu0 %v1462
    %5697 = vmatpush.msra.mxu0 %v1461
    %5698 = vmatpush.msra.mxu0 %v1460
    %5699 = vmatpush.msra.mxu0 %v1459
    %5700 = vmatpush.msra.mxu0 %v1458
    %5701 = vmatpush.msra.mxu0 %v1457
    %5702 = vmatpush.msra.mxu0 %v1456
    %5703 = vmatmul.f32.gmra.mxu0 %v3754
    %v5704 = vpop.f32.mrf.mxu0
    %v5705 = vadd.f32 %v5685, %v5704
    %5706 = vdwg.mxu0
    %5707 = vmatpush.msra.mxu0 %v1487
    %5708 = vmatpush.msra.mxu0 %v1486
    %5709 = vmatpush.msra.mxu0 %v1485
    %5710 = vmatpush.msra.mxu0 %v1484
    %5711 = vmatpush.msra.mxu0 %v1483
    %5712 = vmatpush.msra.mxu0 %v1482
    %5713 = vmatpush.msra.mxu0 %v1481
    %5714 = vmatpush.msra.mxu0 %v1480
    %5715 = vmatpush.msra.mxu0 %v1479
    %5716 = vmatpush.msra.mxu0 %v1478
    %5717 = vmatpush.msra.mxu0 %v1477
    %5718 = vmatpush.msra.mxu0 %v1476
    %5719 = vmatpush.msra.mxu0 %v1475
    %5720 = vmatpush.msra.mxu0 %v1474
    %5721 = vmatpush.msra.mxu0 %v1473
    %5722 = vmatpush.msra.mxu0 %v1472
    %5723 = vmatmul.f32.gmra.mxu0 %v3755
    %v5724 = vpop.f32.mrf.mxu0
    %v5725 = vadd.f32 %v5705, %v5724
    %5726 = vdwg.mxu0
    %5727 = vmatpush.msra.mxu0 %v1503
    %5728 = vmatpush.msra.mxu0 %v1502
    %5729 = vmatpush.msra.mxu0 %v1501
    %5730 = vmatpush.msra.mxu0 %v1500
    %5731 = vmatpush.msra.mxu0 %v1499
    %5732 = vmatpush.msra.mxu0 %v1498
    %5733 = vmatpush.msra.mxu0 %v1497
    %5734 = vmatpush.msra.mxu0 %v1496
    %5735 = vmatpush.msra.mxu0 %v1495
    %5736 = vmatpush.msra.mxu0 %v1494
    %5737 = vmatpush.msra.mxu0 %v1493
    %5738 = vmatpush.msra.mxu0 %v1492
    %5739 = vmatpush.msra.mxu0 %v1491
    %5740 = vmatpush.msra.mxu0 %v1490
    %5741 = vmatpush.msra.mxu0 %v1489
    %5742 = vmatpush.msra.mxu0 %v1488
    %5743 = vmatmul.f32.gmra.mxu0 %v3756
    %v5744 = vpop.f32.mrf.mxu0
    %v5745 = vadd.f32 %v5725, %v5744
    %5746 = vdwg.mxu0
    %5747 = vmatpush.msra.mxu0 %v1519
    %5748 = vmatpush.msra.mxu0 %v1518
    %5749 = vmatpush.msra.mxu0 %v1517
    %5750 = vmatpush.msra.mxu0 %v1516
    %5751 = vmatpush.msra.mxu0 %v1515
    %5752 = vmatpush.msra.mxu0 %v1514
    %5753 = vmatpush.msra.mxu0 %v1513
    %5754 = vmatpush.msra.mxu0 %v1512
    %5755 = vmatpush.msra.mxu0 %v1511
    %5756 = vmatpush.msra.mxu0 %v1510
    %5757 = vmatpush.msra.mxu0 %v1509
    %5758 = vmatpush.msra.mxu0 %v1508
    %5759 = vmatpush.msra.mxu0 %v1507
    %5760 = vmatpush.msra.mxu0 %v1506
    %5761 = vmatpush.msra.mxu0 %v1505
    %5762 = vmatpush.msra.mxu0 %v1504
    %5763 = vmatmul.f32.gmra.mxu0 %v3757
    %v5764 = vpop.f32.mrf.mxu0
    %v5765 = vadd.f32 %v5745, %v5764
    %5766 = vdwg.mxu0
    %5767 = vmatpush.msra.mxu0 %v1535
    %5768 = vmatpush.msra.mxu0 %v1534
    %5769 = vmatpush.msra.mxu0 %v1533
    %5770 = vmatpush.msra.mxu0 %v1532
    %5771 = vmatpush.msra.mxu0 %v1531
    %5772 = vmatpush.msra.mxu0 %v1530
    %5773 = vmatpush.msra.mxu0 %v1529
    %5774 = vmatpush.msra.mxu0 %v1528
    %5775 = vmatpush.msra.mxu0 %v1527
    %5776 = vmatpush.msra.mxu0 %v1526
    %5777 = vmatpush.msra.mxu0 %v1525
    %5778 = vmatpush.msra.mxu0 %v1524
    %5779 = vmatpush.msra.mxu0 %v1523
    %5780 = vmatpush.msra.mxu0 %v1522
    %5781 = vmatpush.msra.mxu0 %v1521
    %5782 = vmatpush.msra.mxu0 %v1520
    %5783 = vmatmul.f32.gmra.mxu0 %v3758
    %v5784 = vpop.f32.mrf.mxu0
    %v5785 = vadd.f32 %v5765, %v5784
    %5786 = vdwg.mxu0
    %5787 = vmatpush.msra.mxu0 %v1551
    %5788 = vmatpush.msra.mxu0 %v1550
    %5789 = vmatpush.msra.mxu0 %v1549
    %5790 = vmatpush.msra.mxu0 %v1548
    %5791 = vmatpush.msra.mxu0 %v1547
    %5792 = vmatpush.msra.mxu0 %v1546
    %5793 = vmatpush.msra.mxu0 %v1545
    %5794 = vmatpush.msra.mxu0 %v1544
    %5795 = vmatpush.msra.mxu0 %v1543
    %5796 = vmatpush.msra.mxu0 %v1542
    %5797 = vmatpush.msra.mxu0 %v1541
    %5798 = vmatpush.msra.mxu0 %v1540
    %5799 = vmatpush.msra.mxu0 %v1539
    %5800 = vmatpush.msra.mxu0 %v1538
    %5801 = vmatpush.msra.mxu0 %v1537
    %5802 = vmatpush.msra.mxu0 %v1536
    %5803 = vmatmul.f32.gmra.mxu0 %v3767
    %v5804 = vpop.f32.mrf.mxu0
    %v5805 = vadd.f32 %v5785, %v5804
    %5806 = vdwg.mxu0
    %5807 = vmatpush.msra.mxu0 %v1567
    %5808 = vmatpush.msra.mxu0 %v1566
    %5809 = vmatpush.msra.mxu0 %v1565
    %5810 = vmatpush.msra.mxu0 %v1564
    %5811 = vmatpush.msra.mxu0 %v1563
    %5812 = vmatpush.msra.mxu0 %v1562
    %5813 = vmatpush.msra.mxu0 %v1561
    %5814 = vmatpush.msra.mxu0 %v1560
    %5815 = vmatpush.msra.mxu0 %v1559
    %5816 = vmatpush.msra.mxu0 %v1558
    %5817 = vmatpush.msra.mxu0 %v1557
    %5818 = vmatpush.msra.mxu0 %v1556
    %5819 = vmatpush.msra.mxu0 %v1555
    %5820 = vmatpush.msra.mxu0 %v1554
    %5821 = vmatpush.msra.mxu0 %v1553
    %5822 = vmatpush.msra.mxu0 %v1552
    %5823 = vmatmul.f32.gmra.mxu0 %v3768
    %v5824 = vpop.f32.mrf.mxu0
    %v5825 = vadd.f32 %v5805, %v5824
    %5826 = vdwg.mxu0
    %5827 = vmatpush.msra.mxu0 %v1583
    %5828 = vmatpush.msra.mxu0 %v1582
    %5829 = vmatpush.msra.mxu0 %v1581
    %5830 = vmatpush.msra.mxu0 %v1580
    %5831 = vmatpush.msra.mxu0 %v1579
    %5832 = vmatpush.msra.mxu0 %v1578
    %5833 = vmatpush.msra.mxu0 %v1577
    %5834 = vmatpush.msra.mxu0 %v1576
    %5835 = vmatpush.msra.mxu0 %v1575
    %5836 = vmatpush.msra.mxu0 %v1574
    %5837 = vmatpush.msra.mxu0 %v1573
    %5838 = vmatpush.msra.mxu0 %v1572
    %5839 = vmatpush.msra.mxu0 %v1571
    %5840 = vmatpush.msra.mxu0 %v1570
    %5841 = vmatpush.msra.mxu0 %v1569
    %5842 = vmatpush.msra.mxu0 %v1568
    %5843 = vmatmul.f32.gmra.mxu0 %v3769
    %v5844 = vpop.f32.mrf.mxu0
    %v5845 = vadd.f32 %v5825, %v5844
    %5846 = vdwg.mxu0
    %5847 = vmatpush.msra.mxu0 %v1599
    %5848 = vmatpush.msra.mxu0 %v1598
    %5849 = vmatpush.msra.mxu0 %v1597
    %5850 = vmatpush.msra.mxu0 %v1596
    %5851 = vmatpush.msra.mxu0 %v1595
    %5852 = vmatpush.msra.mxu0 %v1594
    %5853 = vmatpush.msra.mxu0 %v1593
    %5854 = vmatpush.msra.mxu0 %v1592
    %5855 = vmatpush.msra.mxu0 %v1591
    %5856 = vmatpush.msra.mxu0 %v1590
    %5857 = vmatpush.msra.mxu0 %v1589
    %5858 = vmatpush.msra.mxu0 %v1588
    %5859 = vmatpush.msra.mxu0 %v1587
    %5860 = vmatpush.msra.mxu0 %v1586
    %5861 = vmatpush.msra.mxu0 %v1585
    %5862 = vmatpush.msra.mxu0 %v1584
    %5863 = vmatmul.f32.gmra.mxu0 %v3770
    %v5864 = vpop.f32.mrf.mxu0
    %v5865 = vadd.f32 %v5845, %v5864
    %5866 = vdwg.mxu0
    %5867 = vmatpush.msra.mxu0 %v1615
    %5868 = vmatpush.msra.mxu0 %v1614
    %5869 = vmatpush.msra.mxu0 %v1613
    %5870 = vmatpush.msra.mxu0 %v1612
    %5871 = vmatpush.msra.mxu0 %v1611
    %5872 = vmatpush.msra.mxu0 %v1610
    %5873 = vmatpush.msra.mxu0 %v1609
    %5874 = vmatpush.msra.mxu0 %v1608
    %5875 = vmatpush.msra.mxu0 %v1607
    %5876 = vmatpush.msra.mxu0 %v1606
    %5877 = vmatpush.msra.mxu0 %v1605
    %5878 = vmatpush.msra.mxu0 %v1604
    %5879 = vmatpush.msra.mxu0 %v1603
    %5880 = vmatpush.msra.mxu0 %v1602
    %5881 = vmatpush.msra.mxu0 %v1601
    %5882 = vmatpush.msra.mxu0 %v1600
    %5883 = vmatmul.f32.gmra.mxu0 %v3771
    %v5884 = vpop.f32.mrf.mxu0
    %v5885 = vadd.f32 %v5865, %v5884
    %5886 = vdwg.mxu0
    %5887 = vmatpush.msra.mxu0 %v1631
    %5888 = vmatpush.msra.mxu0 %v1630
    %5889 = vmatpush.msra.mxu0 %v1629
    %5890 = vmatpush.msra.mxu0 %v1628
    %5891 = vmatpush.msra.mxu0 %v1627
    %5892 = vmatpush.msra.mxu0 %v1626
    %5893 = vmatpush.msra.mxu0 %v1625
    %5894 = vmatpush.msra.mxu0 %v1624
    %5895 = vmatpush.msra.mxu0 %v1623
    %5896 = vmatpush.msra.mxu0 %v1622
    %5897 = vmatpush.msra.mxu0 %v1621
    %5898 = vmatpush.msra.mxu0 %v1620
    %5899 = vmatpush.msra.mxu0 %v1619
    %5900 = vmatpush.msra.mxu0 %v1618
    %5901 = vmatpush.msra.mxu0 %v1617
    %5902 = vmatpush.msra.mxu0 %v1616
    %5903 = vmatmul.f32.gmra.mxu0 %v3772
    %v5904 = vpop.f32.mrf.mxu0
    %v5905 = vadd.f32 %v5885, %v5904
    %5906 = vdwg.mxu0
    %5907 = vmatpush.msra.mxu0 %v1647
    %5908 = vmatpush.msra.mxu0 %v1646
    %5909 = vmatpush.msra.mxu0 %v1645
    %5910 = vmatpush.msra.mxu0 %v1644
    %5911 = vmatpush.msra.mxu0 %v1643
    %5912 = vmatpush.msra.mxu0 %v1642
    %5913 = vmatpush.msra.mxu0 %v1641
    %5914 = vmatpush.msra.mxu0 %v1640
    %5915 = vmatpush.msra.mxu0 %v1639
    %5916 = vmatpush.msra.mxu0 %v1638
    %5917 = vmatpush.msra.mxu0 %v1637
    %5918 = vmatpush.msra.mxu0 %v1636
    %5919 = vmatpush.msra.mxu0 %v1635
    %5920 = vmatpush.msra.mxu0 %v1634
    %5921 = vmatpush.msra.mxu0 %v1633
    %5922 = vmatpush.msra.mxu0 %v1632
    %5923 = vmatmul.f32.gmra.mxu0 %v3773
    %v5924 = vpop.f32.mrf.mxu0
    %v5925 = vadd.f32 %v5905, %v5924
    %5926 = vdwg.mxu0
    %5927 = vmatpush.msra.mxu0 %v1663
    %5928 = vmatpush.msra.mxu0 %v1662
    %5929 = vmatpush.msra.mxu0 %v1661
    %5930 = vmatpush.msra.mxu0 %v1660
    %5931 = vmatpush.msra.mxu0 %v1659
    %5932 = vmatpush.msra.mxu0 %v1658
    %5933 = vmatpush.msra.mxu0 %v1657
    %5934 = vmatpush.msra.mxu0 %v1656
    %5935 = vmatpush.msra.mxu0 %v1655
    %5936 = vmatpush.msra.mxu0 %v1654
    %5937 = vmatpush.msra.mxu0 %v1653
    %5938 = vmatpush.msra.mxu0 %v1652
    %5939 = vmatpush.msra.mxu0 %v1651
    %5940 = vmatpush.msra.mxu0 %v1650
    %5941 = vmatpush.msra.mxu0 %v1649
    %5942 = vmatpush.msra.mxu0 %v1648
    %5943 = vmatmul.f32.gmra.mxu0 %v3774
    %v5944 = vpop.f32.mrf.mxu0
    %v5945 = vadd.f32 %v5925, %v5944
    %5946 = vdwg.mxu0
    %5947 = vmatpush.msra.mxu0 %v1679
    %5948 = vmatpush.msra.mxu0 %v1678
    %5949 = vmatpush.msra.mxu0 %v1677
    %5950 = vmatpush.msra.mxu0 %v1676
    %5951 = vmatpush.msra.mxu0 %v1675
    %5952 = vmatpush.msra.mxu0 %v1674
    %5953 = vmatpush.msra.mxu0 %v1673
    %5954 = vmatpush.msra.mxu0 %v1672
    %5955 = vmatpush.msra.mxu0 %v1671
    %5956 = vmatpush.msra.mxu0 %v1670
    %5957 = vmatpush.msra.mxu0 %v1669
    %5958 = vmatpush.msra.mxu0 %v1668
    %5959 = vmatpush.msra.mxu0 %v1667
    %5960 = vmatpush.msra.mxu0 %v1666
    %5961 = vmatpush.msra.mxu0 %v1665
    %5962 = vmatpush.msra.mxu0 %v1664
    %5963 = vmatmul.f32.gmra.mxu0 %v3783
    %v5964 = vpop.f32.mrf.mxu0
    %v5965 = vadd.f32 %v5945, %v5964
    %5966 = vdwg.mxu0
    %5967 = vmatpush.msra.mxu0 %v1695
    %5968 = vmatpush.msra.mxu0 %v1694
    %5969 = vmatpush.msra.mxu0 %v1693
    %5970 = vmatpush.msra.mxu0 %v1692
    %5971 = vmatpush.msra.mxu0 %v1691
    %5972 = vmatpush.msra.mxu0 %v1690
    %5973 = vmatpush.msra.mxu0 %v1689
    %5974 = vmatpush.msra.mxu0 %v1688
    %5975 = vmatpush.msra.mxu0 %v1687
    %5976 = vmatpush.msra.mxu0 %v1686
    %5977 = vmatpush.msra.mxu0 %v1685
    %5978 = vmatpush.msra.mxu0 %v1684
    %5979 = vmatpush.msra.mxu0 %v1683
    %5980 = vmatpush.msra.mxu0 %v1682
    %5981 = vmatpush.msra.mxu0 %v1681
    %5982 = vmatpush.msra.mxu0 %v1680
    %5983 = vmatmul.f32.gmra.mxu0 %v3784
    %v5984 = vpop.f32.mrf.mxu0
    %v5985 = vadd.f32 %v5965, %v5984
    %5986 = vdwg.mxu0
    %5987 = vmatpush.msra.mxu0 %v1711
    %5988 = vmatpush.msra.mxu0 %v1710
    %5989 = vmatpush.msra.mxu0 %v1709
    %5990 = vmatpush.msra.mxu0 %v1708
    %5991 = vmatpush.msra.mxu0 %v1707
    %5992 = vmatpush.msra.mxu0 %v1706
    %5993 = vmatpush.msra.mxu0 %v1705
    %5994 = vmatpush.msra.mxu0 %v1704
    %5995 = vmatpush.msra.mxu0 %v1703
    %5996 = vmatpush.msra.mxu0 %v1702
    %5997 = vmatpush.msra.mxu0 %v1701
    %5998 = vmatpush.msra.mxu0 %v1700
    %5999 = vmatpush.msra.mxu0 %v1699
    %6000 = vmatpush.msra.mxu0 %v1698
    %6001 = vmatpush.msra.mxu0 %v1697
    %6002 = vmatpush.msra.mxu0 %v1696
    %6003 = vmatmul.f32.gmra.mxu0 %v3785
    %v6004 = vpop.f32.mrf.mxu0
    %v6005 = vadd.f32 %v5985, %v6004
    %6006 = vdwg.mxu0
    %6007 = vmatpush.msra.mxu0 %v1727
    %6008 = vmatpush.msra.mxu0 %v1726
    %6009 = vmatpush.msra.mxu0 %v1725
    %6010 = vmatpush.msra.mxu0 %v1724
    %6011 = vmatpush.msra.mxu0 %v1723
    %6012 = vmatpush.msra.mxu0 %v1722
    %6013 = vmatpush.msra.mxu0 %v1721
    %6014 = vmatpush.msra.mxu0 %v1720
    %6015 = vmatpush.msra.mxu0 %v1719
    %6016 = vmatpush.msra.mxu0 %v1718
    %6017 = vmatpush.msra.mxu0 %v1717
    %6018 = vmatpush.msra.mxu0 %v1716
    %6019 = vmatpush.msra.mxu0 %v1715
    %6020 = vmatpush.msra.mxu0 %v1714
    %6021 = vmatpush.msra.mxu0 %v1713
    %6022 = vmatpush.msra.mxu0 %v1712
    %6023 = vmatmul.f32.gmra.mxu0 %v3786
    %v6024 = vpop.f32.mrf.mxu0
    %v6025 = vadd.f32 %v6005, %v6024
    %6026 = vdwg.mxu0
    %6027 = vmatpush.msra.mxu0 %v1743
    %6028 = vmatpush.msra.mxu0 %v1742
    %6029 = vmatpush.msra.mxu0 %v1741
    %6030 = vmatpush.msra.mxu0 %v1740
    %6031 = vmatpush.msra.mxu0 %v1739
    %6032 = vmatpush.msra.mxu0 %v1738
    %6033 = vmatpush.msra.mxu0 %v1737
    %6034 = vmatpush.msra.mxu0 %v1736
    %6035 = vmatpush.msra.mxu0 %v1735
    %6036 = vmatpush.msra.mxu0 %v1734
    %6037 = vmatpush.msra.mxu0 %v1733
    %6038 = vmatpush.msra.mxu0 %v1732
    %6039 = vmatpush.msra.mxu0 %v1731
    %6040 = vmatpush.msra.mxu0 %v1730
    %6041 = vmatpush.msra.mxu0 %v1729
    %6042 = vmatpush.msra.mxu0 %v1728
    %6043 = vmatmul.f32.gmra.mxu0 %v3787
    %v6044 = vpop.f32.mrf.mxu0
    %v6045 = vadd.f32 %v6025, %v6044
    %6046 = vdwg.mxu0
    %6047 = vmatpush.msra.mxu0 %v1759
    %6048 = vmatpush.msra.mxu0 %v1758
    %6049 = vmatpush.msra.mxu0 %v1757
    %6050 = vmatpush.msra.mxu0 %v1756
    %6051 = vmatpush.msra.mxu0 %v1755
    %6052 = vmatpush.msra.mxu0 %v1754
    %6053 = vmatpush.msra.mxu0 %v1753
    %6054 = vmatpush.msra.mxu0 %v1752
    %6055 = vmatpush.msra.mxu0 %v1751
    %6056 = vmatpush.msra.mxu0 %v1750
    %6057 = vmatpush.msra.mxu0 %v1749
    %6058 = vmatpush.msra.mxu0 %v1748
    %6059 = vmatpush.msra.mxu0 %v1747
    %6060 = vmatpush.msra.mxu0 %v1746
    %6061 = vmatpush.msra.mxu0 %v1745
    %6062 = vmatpush.msra.mxu0 %v1744
    %6063 = vmatmul.f32.gmra.mxu0 %v3788
    %v6064 = vpop.f32.mrf.mxu0
    %v6065 = vadd.f32 %v6045, %v6064
    %6066 = vdwg.mxu0
    %6067 = vmatpush.msra.mxu0 %v1775
    %6068 = vmatpush.msra.mxu0 %v1774
    %6069 = vmatpush.msra.mxu0 %v1773
    %6070 = vmatpush.msra.mxu0 %v1772
    %6071 = vmatpush.msra.mxu0 %v1771
    %6072 = vmatpush.msra.mxu0 %v1770
    %6073 = vmatpush.msra.mxu0 %v1769
    %6074 = vmatpush.msra.mxu0 %v1768
    %6075 = vmatpush.msra.mxu0 %v1767
    %6076 = vmatpush.msra.mxu0 %v1766
    %6077 = vmatpush.msra.mxu0 %v1765
    %6078 = vmatpush.msra.mxu0 %v1764
    %6079 = vmatpush.msra.mxu0 %v1763
    %6080 = vmatpush.msra.mxu0 %v1762
    %6081 = vmatpush.msra.mxu0 %v1761
    %6082 = vmatpush.msra.mxu0 %v1760
    %6083 = vmatmul.f32.gmra.mxu0 %v3789
    %v6084 = vpop.f32.mrf.mxu0
    %v6085 = vadd.f32 %v6065, %v6084
    %6086 = vdwg.mxu0
    %6087 = vmatpush.msra.mxu0 %v1791
    %6088 = vmatpush.msra.mxu0 %v1790
    %6089 = vmatpush.msra.mxu0 %v1789
    %6090 = vmatpush.msra.mxu0 %v1788
    %6091 = vmatpush.msra.mxu0 %v1787
    %6092 = vmatpush.msra.mxu0 %v1786
    %6093 = vmatpush.msra.mxu0 %v1785
    %6094 = vmatpush.msra.mxu0 %v1784
    %6095 = vmatpush.msra.mxu0 %v1783
    %6096 = vmatpush.msra.mxu0 %v1782
    %6097 = vmatpush.msra.mxu0 %v1781
    %6098 = vmatpush.msra.mxu0 %v1780
    %6099 = vmatpush.msra.mxu0 %v1779
    %6100 = vmatpush.msra.mxu0 %v1778
    %6101 = vmatpush.msra.mxu0 %v1777
    %6102 = vmatpush.msra.mxu0 %v1776
    %6103 = vmatmul.f32.gmra.mxu0 %v3790
    %v6104 = vpop.f32.mrf.mxu0
    %v6105 = vadd.f32 %v6085, %v6104
    %6106 = vdwg.mxu0
    %6107 = vmatpush.msra.mxu0 %v1807
    %6108 = vmatpush.msra.mxu0 %v1806
    %6109 = vmatpush.msra.mxu0 %v1805
    %6110 = vmatpush.msra.mxu0 %v1804
    %6111 = vmatpush.msra.mxu0 %v1803
    %6112 = vmatpush.msra.mxu0 %v1802
    %6113 = vmatpush.msra.mxu0 %v1801
    %6114 = vmatpush.msra.mxu0 %v1800
    %6115 = vmatpush.msra.mxu0 %v1799
    %6116 = vmatpush.msra.mxu0 %v1798
    %6117 = vmatpush.msra.mxu0 %v1797
    %6118 = vmatpush.msra.mxu0 %v1796
    %6119 = vmatpush.msra.mxu0 %v1795
    %6120 = vmatpush.msra.mxu0 %v1794
    %6121 = vmatpush.msra.mxu0 %v1793
    %6122 = vmatpush.msra.mxu0 %v1792
    %6123 = vmatmul.f32.gmra.mxu0 %v3799
    %v6124 = vpop.f32.mrf.mxu0
    %v6125 = vadd.f32 %v6105, %v6124
    %6126 = vdwg.mxu0
    %6127 = vmatpush.msra.mxu0 %v1823
    %6128 = vmatpush.msra.mxu0 %v1822
    %6129 = vmatpush.msra.mxu0 %v1821
    %6130 = vmatpush.msra.mxu0 %v1820
    %6131 = vmatpush.msra.mxu0 %v1819
    %6132 = vmatpush.msra.mxu0 %v1818
    %6133 = vmatpush.msra.mxu0 %v1817
    %6134 = vmatpush.msra.mxu0 %v1816
    %6135 = vmatpush.msra.mxu0 %v1815
    %6136 = vmatpush.msra.mxu0 %v1814
    %6137 = vmatpush.msra.mxu0 %v1813
    %6138 = vmatpush.msra.mxu0 %v1812
    %6139 = vmatpush.msra.mxu0 %v1811
    %6140 = vmatpush.msra.mxu0 %v1810
    %6141 = vmatpush.msra.mxu0 %v1809
    %6142 = vmatpush.msra.mxu0 %v1808
    %6143 = vmatmul.f32.gmra.mxu0 %v3800
    %v6144 = vpop.f32.mrf.mxu0
    %v6145 = vadd.f32 %v6125, %v6144
    %6146 = vdwg.mxu0
    %6147 = vmatpush.msra.mxu0 %v1839
    %6148 = vmatpush.msra.mxu0 %v1838
    %6149 = vmatpush.msra.mxu0 %v1837
    %6150 = vmatpush.msra.mxu0 %v1836
    %6151 = vmatpush.msra.mxu0 %v1835
    %6152 = vmatpush.msra.mxu0 %v1834
    %6153 = vmatpush.msra.mxu0 %v1833
    %6154 = vmatpush.msra.mxu0 %v1832
    %6155 = vmatpush.msra.mxu0 %v1831
    %6156 = vmatpush.msra.mxu0 %v1830
    %6157 = vmatpush.msra.mxu0 %v1829
    %6158 = vmatpush.msra.mxu0 %v1828
    %6159 = vmatpush.msra.mxu0 %v1827
    %6160 = vmatpush.msra.mxu0 %v1826
    %6161 = vmatpush.msra.mxu0 %v1825
    %6162 = vmatpush.msra.mxu0 %v1824
    %6163 = vmatmul.f32.gmra.mxu0 %v3801
    %v6164 = vpop.f32.mrf.mxu0
    %v6165 = vadd.f32 %v6145, %v6164
    %6166 = vdwg.mxu0
    %6167 = vmatpush.msra.mxu0 %v1855
    %6168 = vmatpush.msra.mxu0 %v1854
    %6169 = vmatpush.msra.mxu0 %v1853
    %6170 = vmatpush.msra.mxu0 %v1852
    %6171 = vmatpush.msra.mxu0 %v1851
    %6172 = vmatpush.msra.mxu0 %v1850
    %6173 = vmatpush.msra.mxu0 %v1849
    %6174 = vmatpush.msra.mxu0 %v1848
    %6175 = vmatpush.msra.mxu0 %v1847
    %6176 = vmatpush.msra.mxu0 %v1846
    %6177 = vmatpush.msra.mxu0 %v1845
    %6178 = vmatpush.msra.mxu0 %v1844
    %6179 = vmatpush.msra.mxu0 %v1843
    %6180 = vmatpush.msra.mxu0 %v1842
    %6181 = vmatpush.msra.mxu0 %v1841
    %6182 = vmatpush.msra.mxu0 %v1840
    %6183 = vmatmul.f32.gmra.mxu0 %v3802
    %v6184 = vpop.f32.mrf.mxu0
    %v6185 = vadd.f32 %v6165, %v6184
    %6186 = vdwg.mxu0
    %6187 = vmatpush.msra.mxu0 %v1871
    %6188 = vmatpush.msra.mxu0 %v1870
    %6189 = vmatpush.msra.mxu0 %v1869
    %6190 = vmatpush.msra.mxu0 %v1868
    %6191 = vmatpush.msra.mxu0 %v1867
    %6192 = vmatpush.msra.mxu0 %v1866
    %6193 = vmatpush.msra.mxu0 %v1865
    %6194 = vmatpush.msra.mxu0 %v1864
    %6195 = vmatpush.msra.mxu0 %v1863
    %6196 = vmatpush.msra.mxu0 %v1862
    %6197 = vmatpush.msra.mxu0 %v1861
    %6198 = vmatpush.msra.mxu0 %v1860
    %6199 = vmatpush.msra.mxu0 %v1859
    %6200 = vmatpush.msra.mxu0 %v1858
    %6201 = vmatpush.msra.mxu0 %v1857
    %6202 = vmatpush.msra.mxu0 %v1856
    %6203 = vmatmul.f32.gmra.mxu0 %v3803
    %v6204 = vpop.f32.mrf.mxu0
    %v6205 = vadd.f32 %v6185, %v6204
    %6206 = vdwg.mxu0
    %6207 = vmatpush.msra.mxu0 %v1887
    %6208 = vmatpush.msra.mxu0 %v1886
    %6209 = vmatpush.msra.mxu0 %v1885
    %6210 = vmatpush.msra.mxu0 %v1884
    %6211 = vmatpush.msra.mxu0 %v1883
    %6212 = vmatpush.msra.mxu0 %v1882
    %6213 = vmatpush.msra.mxu0 %v1881
    %6214 = vmatpush.msra.mxu0 %v1880
    %6215 = vmatpush.msra.mxu0 %v1879
    %6216 = vmatpush.msra.mxu0 %v1878
    %6217 = vmatpush.msra.mxu0 %v1877
    %6218 = vmatpush.msra.mxu0 %v1876
    %6219 = vmatpush.msra.mxu0 %v1875
    %6220 = vmatpush.msra.mxu0 %v1874
    %6221 = vmatpush.msra.mxu0 %v1873
    %6222 = vmatpush.msra.mxu0 %v1872
    %6223 = vmatmul.f32.gmra.mxu0 %v3804
    %v6224 = vpop.f32.mrf.mxu0
    %v6225 = vadd.f32 %v6205, %v6224
    %6226 = vdwg.mxu0
    %6227 = vmatpush.msra.mxu0 %v1903
    %6228 = vmatpush.msra.mxu0 %v1902
    %6229 = vmatpush.msra.mxu0 %v1901
    %6230 = vmatpush.msra.mxu0 %v1900
    %6231 = vmatpush.msra.mxu0 %v1899
    %6232 = vmatpush.msra.mxu0 %v1898
    %6233 = vmatpush.msra.mxu0 %v1897
    %6234 = vmatpush.msra.mxu0 %v1896
    %6235 = vmatpush.msra.mxu0 %v1895
    %6236 = vmatpush.msra.mxu0 %v1894
    %6237 = vmatpush.msra.mxu0 %v1893
    %6238 = vmatpush.msra.mxu0 %v1892
    %6239 = vmatpush.msra.mxu0 %v1891
    %6240 = vmatpush.msra.mxu0 %v1890
    %6241 = vmatpush.msra.mxu0 %v1889
    %6242 = vmatpush.msra.mxu0 %v1888
    %6243 = vmatmul.f32.gmra.mxu0 %v3805
    %v6244 = vpop.f32.mrf.mxu0
    %v6245 = vadd.f32 %v6225, %v6244
    %6246 = vdwg.mxu0
    %6247 = vmatpush.msra.mxu0 %v1919
    %6248 = vmatpush.msra.mxu0 %v1918
    %6249 = vmatpush.msra.mxu0 %v1917
    %6250 = vmatpush.msra.mxu0 %v1916
    %6251 = vmatpush.msra.mxu0 %v1915
    %6252 = vmatpush.msra.mxu0 %v1914
    %6253 = vmatpush.msra.mxu0 %v1913
    %6254 = vmatpush.msra.mxu0 %v1912
    %6255 = vmatpush.msra.mxu0 %v1911
    %6256 = vmatpush.msra.mxu0 %v1910
    %6257 = vmatpush.msra.mxu0 %v1909
    %6258 = vmatpush.msra.mxu0 %v1908
    %6259 = vmatpush.msra.mxu0 %v1907
    %6260 = vmatpush.msra.mxu0 %v1906
    %6261 = vmatpush.msra.mxu0 %v1905
    %6262 = vmatpush.msra.mxu0 %v1904
    %6263 = vmatmul.f32.gmra.mxu0 %v3806
    %v6264 = vpop.f32.mrf.mxu0
    %v6265 = vadd.f32 %v6245, %v6264
    %6266 = vdwg.mxu0
    %6267 = vmatpush.msra.mxu0 %v1935
    %6268 = vmatpush.msra.mxu0 %v1934
    %6269 = vmatpush.msra.mxu0 %v1933
    %6270 = vmatpush.msra.mxu0 %v1932
    %6271 = vmatpush.msra.mxu0 %v1931
    %6272 = vmatpush.msra.mxu0 %v1930
    %6273 = vmatpush.msra.mxu0 %v1929
    %6274 = vmatpush.msra.mxu0 %v1928
    %6275 = vmatpush.msra.mxu0 %v1927
    %6276 = vmatpush.msra.mxu0 %v1926
    %6277 = vmatpush.msra.mxu0 %v1925
    %6278 = vmatpush.msra.mxu0 %v1924
    %6279 = vmatpush.msra.mxu0 %v1923
    %6280 = vmatpush.msra.mxu0 %v1922
    %6281 = vmatpush.msra.mxu0 %v1921
    %6282 = vmatpush.msra.mxu0 %v1920
    %6283 = vmatmul.f32.gmra.mxu0 %v3815
    %v6284 = vpop.f32.mrf.mxu0
    %v6285 = vadd.f32 %v6265, %v6284
    %6286 = vdwg.mxu0
    %6287 = vmatpush.msra.mxu0 %v1951
    %6288 = vmatpush.msra.mxu0 %v1950
    %6289 = vmatpush.msra.mxu0 %v1949
    %6290 = vmatpush.msra.mxu0 %v1948
    %6291 = vmatpush.msra.mxu0 %v1947
    %6292 = vmatpush.msra.mxu0 %v1946
    %6293 = vmatpush.msra.mxu0 %v1945
    %6294 = vmatpush.msra.mxu0 %v1944
    %6295 = vmatpush.msra.mxu0 %v1943
    %6296 = vmatpush.msra.mxu0 %v1942
    %6297 = vmatpush.msra.mxu0 %v1941
    %6298 = vmatpush.msra.mxu0 %v1940
    %6299 = vmatpush.msra.mxu0 %v1939
    %6300 = vmatpush.msra.mxu0 %v1938
    %6301 = vmatpush.msra.mxu0 %v1937
    %6302 = vmatpush.msra.mxu0 %v1936
    %6303 = vmatmul.f32.gmra.mxu0 %v3816
    %v6304 = vpop.f32.mrf.mxu0
    %v6305 = vadd.f32 %v6285, %v6304
    %6306 = vdwg.mxu0
    %6307 = vmatpush.msra.mxu0 %v1967
    %6308 = vmatpush.msra.mxu0 %v1966
    %6309 = vmatpush.msra.mxu0 %v1965
    %6310 = vmatpush.msra.mxu0 %v1964
    %6311 = vmatpush.msra.mxu0 %v1963
    %6312 = vmatpush.msra.mxu0 %v1962
    %6313 = vmatpush.msra.mxu0 %v1961
    %6314 = vmatpush.msra.mxu0 %v1960
    %6315 = vmatpush.msra.mxu0 %v1959
    %6316 = vmatpush.msra.mxu0 %v1958
    %6317 = vmatpush.msra.mxu0 %v1957
    %6318 = vmatpush.msra.mxu0 %v1956
    %6319 = vmatpush.msra.mxu0 %v1955
    %6320 = vmatpush.msra.mxu0 %v1954
    %6321 = vmatpush.msra.mxu0 %v1953
    %6322 = vmatpush.msra.mxu0 %v1952
    %6323 = vmatmul.f32.gmra.mxu0 %v3817
    %v6324 = vpop.f32.mrf.mxu0
    %v6325 = vadd.f32 %v6305, %v6324
    %6326 = vdwg.mxu0
    %6327 = vmatpush.msra.mxu0 %v1983
    %6328 = vmatpush.msra.mxu0 %v1982
    %6329 = vmatpush.msra.mxu0 %v1981
    %6330 = vmatpush.msra.mxu0 %v1980
    %6331 = vmatpush.msra.mxu0 %v1979
    %6332 = vmatpush.msra.mxu0 %v1978
    %6333 = vmatpush.msra.mxu0 %v1977
    %6334 = vmatpush.msra.mxu0 %v1976
    %6335 = vmatpush.msra.mxu0 %v1975
    %6336 = vmatpush.msra.mxu0 %v1974
    %6337 = vmatpush.msra.mxu0 %v1973
    %6338 = vmatpush.msra.mxu0 %v1972
    %6339 = vmatpush.msra.mxu0 %v1971
    %6340 = vmatpush.msra.mxu0 %v1970
    %6341 = vmatpush.msra.mxu0 %v1969
    %6342 = vmatpush.msra.mxu0 %v1968
    %6343 = vmatmul.f32.gmra.mxu0 %v3818
    %v6344 = vpop.f32.mrf.mxu0
    %v6345 = vadd.f32 %v6325, %v6344
    %6346 = vdwg.mxu0
    %6347 = vmatpush.msra.mxu0 %v1999
    %6348 = vmatpush.msra.mxu0 %v1998
    %6349 = vmatpush.msra.mxu0 %v1997
    %6350 = vmatpush.msra.mxu0 %v1996
    %6351 = vmatpush.msra.mxu0 %v1995
    %6352 = vmatpush.msra.mxu0 %v1994
    %6353 = vmatpush.msra.mxu0 %v1993
    %6354 = vmatpush.msra.mxu0 %v1992
    %6355 = vmatpush.msra.mxu0 %v1991
    %6356 = vmatpush.msra.mxu0 %v1990
    %6357 = vmatpush.msra.mxu0 %v1989
    %6358 = vmatpush.msra.mxu0 %v1988
    %6359 = vmatpush.msra.mxu0 %v1987
    %6360 = vmatpush.msra.mxu0 %v1986
    %6361 = vmatpush.msra.mxu0 %v1985
    %6362 = vmatpush.msra.mxu0 %v1984
    %6363 = vmatmul.f32.gmra.mxu0 %v3819
    %v6364 = vpop.f32.mrf.mxu0
    %v6365 = vadd.f32 %v6345, %v6364
    %6366 = vdwg.mxu0
    %6367 = vmatpush.msra.mxu0 %v2015
    %6368 = vmatpush.msra.mxu0 %v2014
    %6369 = vmatpush.msra.mxu0 %v2013
    %6370 = vmatpush.msra.mxu0 %v2012
    %6371 = vmatpush.msra.mxu0 %v2011
    %6372 = vmatpush.msra.mxu0 %v2010
    %6373 = vmatpush.msra.mxu0 %v2009
    %6374 = vmatpush.msra.mxu0 %v2008
    %6375 = vmatpush.msra.mxu0 %v2007
    %6376 = vmatpush.msra.mxu0 %v2006
    %6377 = vmatpush.msra.mxu0 %v2005
    %6378 = vmatpush.msra.mxu0 %v2004
    %6379 = vmatpush.msra.mxu0 %v2003
    %6380 = vmatpush.msra.mxu0 %v2002
    %6381 = vmatpush.msra.mxu0 %v2001
    %6382 = vmatpush.msra.mxu0 %v2000
    %6383 = vmatmul.f32.gmra.mxu0 %v3820
    %v6384 = vpop.f32.mrf.mxu0
    %v6385 = vadd.f32 %v6365, %v6384
    %6386 = vdwg.mxu0
    %6387 = vmatpush.msra.mxu0 %v2031
    %6388 = vmatpush.msra.mxu0 %v2030
    %6389 = vmatpush.msra.mxu0 %v2029
    %6390 = vmatpush.msra.mxu0 %v2028
    %6391 = vmatpush.msra.mxu0 %v2027
    %6392 = vmatpush.msra.mxu0 %v2026
    %6393 = vmatpush.msra.mxu0 %v2025
    %6394 = vmatpush.msra.mxu0 %v2024
    %6395 = vmatpush.msra.mxu0 %v2023
    %6396 = vmatpush.msra.mxu0 %v2022
    %6397 = vmatpush.msra.mxu0 %v2021
    %6398 = vmatpush.msra.mxu0 %v2020
    %6399 = vmatpush.msra.mxu0 %v2019
    %6400 = vmatpush.msra.mxu0 %v2018
    %6401 = vmatpush.msra.mxu0 %v2017
    %6402 = vmatpush.msra.mxu0 %v2016
    %6403 = vmatmul.f32.gmra.mxu0 %v3821
    %v6404 = vpop.f32.mrf.mxu0
    %v6405 = vadd.f32 %v6385, %v6404
    %6406 = vdwg.mxu0
    %6407 = vmatpush.msra.mxu0 %v2047
    %6408 = vmatpush.msra.mxu0 %v2046
    %6409 = vmatpush.msra.mxu0 %v2045
    %6410 = vmatpush.msra.mxu0 %v2044
    %6411 = vmatpush.msra.mxu0 %v2043
    %6412 = vmatpush.msra.mxu0 %v2042
    %6413 = vmatpush.msra.mxu0 %v2041
    %6414 = vmatpush.msra.mxu0 %v2040
    %6415 = vmatpush.msra.mxu0 %v2039
    %6416 = vmatpush.msra.mxu0 %v2038
    %6417 = vmatpush.msra.mxu0 %v2037
    %6418 = vmatpush.msra.mxu0 %v2036
    %6419 = vmatpush.msra.mxu0 %v2035
    %6420 = vmatpush.msra.mxu0 %v2034
    %6421 = vmatpush.msra.mxu0 %v2033
    %6422 = vmatpush.msra.mxu0 %v2032
    %6423 = vmatmul.f32.gmra.mxu0 %v3822
    %v6424 = vpop.f32.mrf.mxu0
    %v6425 = vadd.f32 %v6405, %v6424
    %6426 = vdwg.mxu0
    %6427 = vmatpush.msra.mxu0 %v2063
    %6428 = vmatpush.msra.mxu0 %v2062
    %6429 = vmatpush.msra.mxu0 %v2061
    %6430 = vmatpush.msra.mxu0 %v2060
    %6431 = vmatpush.msra.mxu0 %v2059
    %6432 = vmatpush.msra.mxu0 %v2058
    %6433 = vmatpush.msra.mxu0 %v2057
    %6434 = vmatpush.msra.mxu0 %v2056
    %6435 = vmatpush.msra.mxu0 %v2055
    %6436 = vmatpush.msra.mxu0 %v2054
    %6437 = vmatpush.msra.mxu0 %v2053
    %6438 = vmatpush.msra.mxu0 %v2052
    %6439 = vmatpush.msra.mxu0 %v2051
    %6440 = vmatpush.msra.mxu0 %v2050
    %6441 = vmatpush.msra.mxu0 %v2049
    %6442 = vmatpush.msra.mxu0 %v2048
    %6443 = vmatmul.f32.gmra.mxu0 %v3831
    %v6444 = vpop.f32.mrf.mxu0
    %v6445 = vadd.f32 %v6425, %v6444
    %6446 = vdwg.mxu0
    %6447 = vmatpush.msra.mxu0 %v2079
    %6448 = vmatpush.msra.mxu0 %v2078
    %6449 = vmatpush.msra.mxu0 %v2077
    %6450 = vmatpush.msra.mxu0 %v2076
    %6451 = vmatpush.msra.mxu0 %v2075
    %6452 = vmatpush.msra.mxu0 %v2074
    %6453 = vmatpush.msra.mxu0 %v2073
    %6454 = vmatpush.msra.mxu0 %v2072
    %6455 = vmatpush.msra.mxu0 %v2071
    %6456 = vmatpush.msra.mxu0 %v2070
    %6457 = vmatpush.msra.mxu0 %v2069
    %6458 = vmatpush.msra.mxu0 %v2068
    %6459 = vmatpush.msra.mxu0 %v2067
    %6460 = vmatpush.msra.mxu0 %v2066
    %6461 = vmatpush.msra.mxu0 %v2065
    %6462 = vmatpush.msra.mxu0 %v2064
    %6463 = vmatmul.f32.gmra.mxu0 %v3832
    %v6464 = vpop.f32.mrf.mxu0
    %v6465 = vadd.f32 %v6445, %v6464
    %6466 = vdwg.mxu0
    %6467 = vmatpush.msra.mxu0 %v2095
    %6468 = vmatpush.msra.mxu0 %v2094
    %6469 = vmatpush.msra.mxu0 %v2093
    %6470 = vmatpush.msra.mxu0 %v2092
    %6471 = vmatpush.msra.mxu0 %v2091
    %6472 = vmatpush.msra.mxu0 %v2090
    %6473 = vmatpush.msra.mxu0 %v2089
    %6474 = vmatpush.msra.mxu0 %v2088
    %6475 = vmatpush.msra.mxu0 %v2087
    %6476 = vmatpush.msra.mxu0 %v2086
    %6477 = vmatpush.msra.mxu0 %v2085
    %6478 = vmatpush.msra.mxu0 %v2084
    %6479 = vmatpush.msra.mxu0 %v2083
    %6480 = vmatpush.msra.mxu0 %v2082
    %6481 = vmatpush.msra.mxu0 %v2081
    %6482 = vmatpush.msra.mxu0 %v2080
    %6483 = vmatmul.f32.gmra.mxu0 %v3833
    %v6484 = vpop.f32.mrf.mxu0
    %v6485 = vadd.f32 %v6465, %v6484
    %6486 = vdwg.mxu0
    %6487 = vmatpush.msra.mxu0 %v2111
    %6488 = vmatpush.msra.mxu0 %v2110
    %6489 = vmatpush.msra.mxu0 %v2109
    %6490 = vmatpush.msra.mxu0 %v2108
    %6491 = vmatpush.msra.mxu0 %v2107
    %6492 = vmatpush.msra.mxu0 %v2106
    %6493 = vmatpush.msra.mxu0 %v2105
    %6494 = vmatpush.msra.mxu0 %v2104
    %6495 = vmatpush.msra.mxu0 %v2103
    %6496 = vmatpush.msra.mxu0 %v2102
    %6497 = vmatpush.msra.mxu0 %v2101
    %6498 = vmatpush.msra.mxu0 %v2100
    %6499 = vmatpush.msra.mxu0 %v2099
    %6500 = vmatpush.msra.mxu0 %v2098
    %6501 = vmatpush.msra.mxu0 %v2097
    %6502 = vmatpush.msra.mxu0 %v2096
    %6503 = vmatmul.f32.gmra.mxu0 %v3834
    %v6504 = vpop.f32.mrf.mxu0
    %v6505 = vadd.f32 %v6485, %v6504
    %6506 = vdwg.mxu0
    %6507 = vmatpush.msra.mxu0 %v2127
    %6508 = vmatpush.msra.mxu0 %v2126
    %6509 = vmatpush.msra.mxu0 %v2125
    %6510 = vmatpush.msra.mxu0 %v2124
    %6511 = vmatpush.msra.mxu0 %v2123
    %6512 = vmatpush.msra.mxu0 %v2122
    %6513 = vmatpush.msra.mxu0 %v2121
    %6514 = vmatpush.msra.mxu0 %v2120
    %6515 = vmatpush.msra.mxu0 %v2119
    %6516 = vmatpush.msra.mxu0 %v2118
    %6517 = vmatpush.msra.mxu0 %v2117
    %6518 = vmatpush.msra.mxu0 %v2116
    %6519 = vmatpush.msra.mxu0 %v2115
    %6520 = vmatpush.msra.mxu0 %v2114
    %6521 = vmatpush.msra.mxu0 %v2113
    %6522 = vmatpush.msra.mxu0 %v2112
    %6523 = vmatmul.f32.gmra.mxu0 %v3835
    %v6524 = vpop.f32.mrf.mxu0
    %v6525 = vadd.f32 %v6505, %v6524
    %6526 = vdwg.mxu0
    %6527 = vmatpush.msra.mxu0 %v2143
    %6528 = vmatpush.msra.mxu0 %v2142
    %6529 = vmatpush.msra.mxu0 %v2141
    %6530 = vmatpush.msra.mxu0 %v2140
    %6531 = vmatpush.msra.mxu0 %v2139
    %6532 = vmatpush.msra.mxu0 %v2138
    %6533 = vmatpush.msra.mxu0 %v2137
    %6534 = vmatpush.msra.mxu0 %v2136
    %6535 = vmatpush.msra.mxu0 %v2135
    %6536 = vmatpush.msra.mxu0 %v2134
    %6537 = vmatpush.msra.mxu0 %v2133
    %6538 = vmatpush.msra.mxu0 %v2132
    %6539 = vmatpush.msra.mxu0 %v2131
    %6540 = vmatpush.msra.mxu0 %v2130
    %6541 = vmatpush.msra.mxu0 %v2129
    %6542 = vmatpush.msra.mxu0 %v2128
    %6543 = vmatmul.f32.gmra.mxu0 %v3836
    %v6544 = vpop.f32.mrf.mxu0
    %v6545 = vadd.f32 %v6525, %v6544
    %6546 = vdwg.mxu0
    %6547 = vmatpush.msra.mxu0 %v2159
    %6548 = vmatpush.msra.mxu0 %v2158
    %6549 = vmatpush.msra.mxu0 %v2157
    %6550 = vmatpush.msra.mxu0 %v2156
    %6551 = vmatpush.msra.mxu0 %v2155
    %6552 = vmatpush.msra.mxu0 %v2154
    %6553 = vmatpush.msra.mxu0 %v2153
    %6554 = vmatpush.msra.mxu0 %v2152
    %6555 = vmatpush.msra.mxu0 %v2151
    %6556 = vmatpush.msra.mxu0 %v2150
    %6557 = vmatpush.msra.mxu0 %v2149
    %6558 = vmatpush.msra.mxu0 %v2148
    %6559 = vmatpush.msra.mxu0 %v2147
    %6560 = vmatpush.msra.mxu0 %v2146
    %6561 = vmatpush.msra.mxu0 %v2145
    %6562 = vmatpush.msra.mxu0 %v2144
    %6563 = vmatmul.f32.gmra.mxu0 %v3837
    %v6564 = vpop.f32.mrf.mxu0
    %v6565 = vadd.f32 %v6545, %v6564
    %6566 = vdwg.mxu0
    %6567 = vmatpush.msra.mxu0 %v2175
    %6568 = vmatpush.msra.mxu0 %v2174
    %6569 = vmatpush.msra.mxu0 %v2173
    %6570 = vmatpush.msra.mxu0 %v2172
    %6571 = vmatpush.msra.mxu0 %v2171
    %6572 = vmatpush.msra.mxu0 %v2170
    %6573 = vmatpush.msra.mxu0 %v2169
    %6574 = vmatpush.msra.mxu0 %v2168
    %6575 = vmatpush.msra.mxu0 %v2167
    %6576 = vmatpush.msra.mxu0 %v2166
    %6577 = vmatpush.msra.mxu0 %v2165
    %6578 = vmatpush.msra.mxu0 %v2164
    %6579 = vmatpush.msra.mxu0 %v2163
    %6580 = vmatpush.msra.mxu0 %v2162
    %6581 = vmatpush.msra.mxu0 %v2161
    %6582 = vmatpush.msra.mxu0 %v2160
    %6583 = vmatmul.f32.gmra.mxu0 %v3838
    %v6584 = vpop.f32.mrf.mxu0
    %v6585 = vadd.f32 %v6565, %v6584
    %6586 = vdwg.mxu0
    %6587 = vmatpush.msra.mxu0 %v2191
    %6588 = vmatpush.msra.mxu0 %v2190
    %6589 = vmatpush.msra.mxu0 %v2189
    %6590 = vmatpush.msra.mxu0 %v2188
    %6591 = vmatpush.msra.mxu0 %v2187
    %6592 = vmatpush.msra.mxu0 %v2186
    %6593 = vmatpush.msra.mxu0 %v2185
    %6594 = vmatpush.msra.mxu0 %v2184
    %6595 = vmatpush.msra.mxu0 %v2183
    %6596 = vmatpush.msra.mxu0 %v2182
    %6597 = vmatpush.msra.mxu0 %v2181
    %6598 = vmatpush.msra.mxu0 %v2180
    %6599 = vmatpush.msra.mxu0 %v2179
    %6600 = vmatpush.msra.mxu0 %v2178
    %6601 = vmatpush.msra.mxu0 %v2177
    %6602 = vmatpush.msra.mxu0 %v2176
    %6603 = vmatmul.f32.gmra.mxu0 %v3847
    %v6604 = vpop.f32.mrf.mxu0
    %v6605 = vadd.f32 %v6585, %v6604
    %6606 = vdwg.mxu0
    %6607 = vmatpush.msra.mxu0 %v2207
    %6608 = vmatpush.msra.mxu0 %v2206
    %6609 = vmatpush.msra.mxu0 %v2205
    %6610 = vmatpush.msra.mxu0 %v2204
    %6611 = vmatpush.msra.mxu0 %v2203
    %6612 = vmatpush.msra.mxu0 %v2202
    %6613 = vmatpush.msra.mxu0 %v2201
    %6614 = vmatpush.msra.mxu0 %v2200
    %6615 = vmatpush.msra.mxu0 %v2199
    %6616 = vmatpush.msra.mxu0 %v2198
    %6617 = vmatpush.msra.mxu0 %v2197
    %6618 = vmatpush.msra.mxu0 %v2196
    %6619 = vmatpush.msra.mxu0 %v2195
    %6620 = vmatpush.msra.mxu0 %v2194
    %6621 = vmatpush.msra.mxu0 %v2193
    %6622 = vmatpush.msra.mxu0 %v2192
    %6623 = vmatmul.f32.gmra.mxu0 %v3848
    %v6624 = vpop.f32.mrf.mxu0
    %v6625 = vadd.f32 %v6605, %v6624
    %6626 = vdwg.mxu0
    %6627 = vmatpush.msra.mxu0 %v2223
    %6628 = vmatpush.msra.mxu0 %v2222
    %6629 = vmatpush.msra.mxu0 %v2221
    %6630 = vmatpush.msra.mxu0 %v2220
    %6631 = vmatpush.msra.mxu0 %v2219
    %6632 = vmatpush.msra.mxu0 %v2218
    %6633 = vmatpush.msra.mxu0 %v2217
    %6634 = vmatpush.msra.mxu0 %v2216
    %6635 = vmatpush.msra.mxu0 %v2215
    %6636 = vmatpush.msra.mxu0 %v2214
    %6637 = vmatpush.msra.mxu0 %v2213
    %6638 = vmatpush.msra.mxu0 %v2212
    %6639 = vmatpush.msra.mxu0 %v2211
    %6640 = vmatpush.msra.mxu0 %v2210
    %6641 = vmatpush.msra.mxu0 %v2209
    %6642 = vmatpush.msra.mxu0 %v2208
    %6643 = vmatmul.f32.gmra.mxu0 %v3849
    %v6644 = vpop.f32.mrf.mxu0
    %v6645 = vadd.f32 %v6625, %v6644
    %6646 = vdwg.mxu0
    %6647 = vmatpush.msra.mxu0 %v2239
    %6648 = vmatpush.msra.mxu0 %v2238
    %6649 = vmatpush.msra.mxu0 %v2237
    %6650 = vmatpush.msra.mxu0 %v2236
    %6651 = vmatpush.msra.mxu0 %v2235
    %6652 = vmatpush.msra.mxu0 %v2234
    %6653 = vmatpush.msra.mxu0 %v2233
    %6654 = vmatpush.msra.mxu0 %v2232
    %6655 = vmatpush.msra.mxu0 %v2231
    %6656 = vmatpush.msra.mxu0 %v2230
    %6657 = vmatpush.msra.mxu0 %v2229
    %6658 = vmatpush.msra.mxu0 %v2228
    %6659 = vmatpush.msra.mxu0 %v2227
    %6660 = vmatpush.msra.mxu0 %v2226
    %6661 = vmatpush.msra.mxu0 %v2225
    %6662 = vmatpush.msra.mxu0 %v2224
    %6663 = vmatmul.f32.gmra.mxu0 %v3850
    %v6664 = vpop.f32.mrf.mxu0
    %v6665 = vadd.f32 %v6645, %v6664
    %6666 = vdwg.mxu0
    %6667 = vmatpush.msra.mxu0 %v2255
    %6668 = vmatpush.msra.mxu0 %v2254
    %6669 = vmatpush.msra.mxu0 %v2253
    %6670 = vmatpush.msra.mxu0 %v2252
    %6671 = vmatpush.msra.mxu0 %v2251
    %6672 = vmatpush.msra.mxu0 %v2250
    %6673 = vmatpush.msra.mxu0 %v2249
    %6674 = vmatpush.msra.mxu0 %v2248
    %6675 = vmatpush.msra.mxu0 %v2247
    %6676 = vmatpush.msra.mxu0 %v2246
    %6677 = vmatpush.msra.mxu0 %v2245
    %6678 = vmatpush.msra.mxu0 %v2244
    %6679 = vmatpush.msra.mxu0 %v2243
    %6680 = vmatpush.msra.mxu0 %v2242
    %6681 = vmatpush.msra.mxu0 %v2241
    %6682 = vmatpush.msra.mxu0 %v2240
    %6683 = vmatmul.f32.gmra.mxu0 %v3851
    %v6684 = vpop.f32.mrf.mxu0
    %v6685 = vadd.f32 %v6665, %v6684
    %6686 = vdwg.mxu0
    %6687 = vmatpush.msra.mxu0 %v2271
    %6688 = vmatpush.msra.mxu0 %v2270
    %6689 = vmatpush.msra.mxu0 %v2269
    %6690 = vmatpush.msra.mxu0 %v2268
    %6691 = vmatpush.msra.mxu0 %v2267
    %6692 = vmatpush.msra.mxu0 %v2266
    %6693 = vmatpush.msra.mxu0 %v2265
    %6694 = vmatpush.msra.mxu0 %v2264
    %6695 = vmatpush.msra.mxu0 %v2263
    %6696 = vmatpush.msra.mxu0 %v2262
    %6697 = vmatpush.msra.mxu0 %v2261
    %6698 = vmatpush.msra.mxu0 %v2260
    %6699 = vmatpush.msra.mxu0 %v2259
    %6700 = vmatpush.msra.mxu0 %v2258
    %6701 = vmatpush.msra.mxu0 %v2257
    %6702 = vmatpush.msra.mxu0 %v2256
    %6703 = vmatmul.f32.gmra.mxu0 %v3852
    %v6704 = vpop.f32.mrf.mxu0
    %v6705 = vadd.f32 %v6685, %v6704
    %6706 = vdwg.mxu0
    %6707 = vmatpush.msra.mxu0 %v2287
    %6708 = vmatpush.msra.mxu0 %v2286
    %6709 = vmatpush.msra.mxu0 %v2285
    %6710 = vmatpush.msra.mxu0 %v2284
    %6711 = vmatpush.msra.mxu0 %v2283
    %6712 = vmatpush.msra.mxu0 %v2282
    %6713 = vmatpush.msra.mxu0 %v2281
    %6714 = vmatpush.msra.mxu0 %v2280
    %6715 = vmatpush.msra.mxu0 %v2279
    %6716 = vmatpush.msra.mxu0 %v2278
    %6717 = vmatpush.msra.mxu0 %v2277
    %6718 = vmatpush.msra.mxu0 %v2276
    %6719 = vmatpush.msra.mxu0 %v2275
    %6720 = vmatpush.msra.mxu0 %v2274
    %6721 = vmatpush.msra.mxu0 %v2273
    %6722 = vmatpush.msra.mxu0 %v2272
    %6723 = vmatmul.f32.gmra.mxu0 %v3853
    %v6724 = vpop.f32.mrf.mxu0
    %v6725 = vadd.f32 %v6705, %v6724
    %6726 = vdwg.mxu0
    %6727 = vmatpush.msra.mxu0 %v2303
    %6728 = vmatpush.msra.mxu0 %v2302
    %6729 = vmatpush.msra.mxu0 %v2301
    %6730 = vmatpush.msra.mxu0 %v2300
    %6731 = vmatpush.msra.mxu0 %v2299
    %6732 = vmatpush.msra.mxu0 %v2298
    %6733 = vmatpush.msra.mxu0 %v2297
    %6734 = vmatpush.msra.mxu0 %v2296
    %6735 = vmatpush.msra.mxu0 %v2295
    %6736 = vmatpush.msra.mxu0 %v2294
    %6737 = vmatpush.msra.mxu0 %v2293
    %6738 = vmatpush.msra.mxu0 %v2292
    %6739 = vmatpush.msra.mxu0 %v2291
    %6740 = vmatpush.msra.mxu0 %v2290
    %6741 = vmatpush.msra.mxu0 %v2289
    %6742 = vmatpush.msra.mxu0 %v2288
    %6743 = vmatmul.f32.gmra.mxu0 %v3854
    %v6744 = vpop.f32.mrf.mxu0
    %v6745 = vadd.f32 %v6725, %v6744
    %6746 = vdwg.mxu0
    %6747 = vmatpush.msra.mxu0 %v2319
    %6748 = vmatpush.msra.mxu0 %v2318
    %6749 = vmatpush.msra.mxu0 %v2317
    %6750 = vmatpush.msra.mxu0 %v2316
    %6751 = vmatpush.msra.mxu0 %v2315
    %6752 = vmatpush.msra.mxu0 %v2314
    %6753 = vmatpush.msra.mxu0 %v2313
    %6754 = vmatpush.msra.mxu0 %v2312
    %6755 = vmatpush.msra.mxu0 %v2311
    %6756 = vmatpush.msra.mxu0 %v2310
    %6757 = vmatpush.msra.mxu0 %v2309
    %6758 = vmatpush.msra.mxu0 %v2308
    %6759 = vmatpush.msra.mxu0 %v2307
    %6760 = vmatpush.msra.mxu0 %v2306
    %6761 = vmatpush.msra.mxu0 %v2305
    %6762 = vmatpush.msra.mxu0 %v2304
    %6763 = vmatmul.f32.gmra.mxu0 %v3863
    %v6764 = vpop.f32.mrf.mxu0
    %v6765 = vadd.f32 %v6745, %v6764
    %6766 = vdwg.mxu0
    %6767 = vmatpush.msra.mxu0 %v2335
    %6768 = vmatpush.msra.mxu0 %v2334
    %6769 = vmatpush.msra.mxu0 %v2333
    %6770 = vmatpush.msra.mxu0 %v2332
    %6771 = vmatpush.msra.mxu0 %v2331
    %6772 = vmatpush.msra.mxu0 %v2330
    %6773 = vmatpush.msra.mxu0 %v2329
    %6774 = vmatpush.msra.mxu0 %v2328
    %6775 = vmatpush.msra.mxu0 %v2327
    %6776 = vmatpush.msra.mxu0 %v2326
    %6777 = vmatpush.msra.mxu0 %v2325
    %6778 = vmatpush.msra.mxu0 %v2324
    %6779 = vmatpush.msra.mxu0 %v2323
    %6780 = vmatpush.msra.mxu0 %v2322
    %6781 = vmatpush.msra.mxu0 %v2321
    %6782 = vmatpush.msra.mxu0 %v2320
    %6783 = vmatmul.f32.gmra.mxu0 %v3864
    %v6784 = vpop.f32.mrf.mxu0
    %v6785 = vadd.f32 %v6765, %v6784
    %6786 = vdwg.mxu0
    %6787 = vmatpush.msra.mxu0 %v2351
    %6788 = vmatpush.msra.mxu0 %v2350
    %6789 = vmatpush.msra.mxu0 %v2349
    %6790 = vmatpush.msra.mxu0 %v2348
    %6791 = vmatpush.msra.mxu0 %v2347
    %6792 = vmatpush.msra.mxu0 %v2346
    %6793 = vmatpush.msra.mxu0 %v2345
    %6794 = vmatpush.msra.mxu0 %v2344
    %6795 = vmatpush.msra.mxu0 %v2343
    %6796 = vmatpush.msra.mxu0 %v2342
    %6797 = vmatpush.msra.mxu0 %v2341
    %6798 = vmatpush.msra.mxu0 %v2340
    %6799 = vmatpush.msra.mxu0 %v2339
    %6800 = vmatpush.msra.mxu0 %v2338
    %6801 = vmatpush.msra.mxu0 %v2337
    %6802 = vmatpush.msra.mxu0 %v2336
    %6803 = vmatmul.f32.gmra.mxu0 %v3865
    %v6804 = vpop.f32.mrf.mxu0
    %v6805 = vadd.f32 %v6785, %v6804
    %6806 = vdwg.mxu0
    %6807 = vmatpush.msra.mxu0 %v2367
    %6808 = vmatpush.msra.mxu0 %v2366
    %6809 = vmatpush.msra.mxu0 %v2365
    %6810 = vmatpush.msra.mxu0 %v2364
    %6811 = vmatpush.msra.mxu0 %v2363
    %6812 = vmatpush.msra.mxu0 %v2362
    %6813 = vmatpush.msra.mxu0 %v2361
    %6814 = vmatpush.msra.mxu0 %v2360
    %6815 = vmatpush.msra.mxu0 %v2359
    %6816 = vmatpush.msra.mxu0 %v2358
    %6817 = vmatpush.msra.mxu0 %v2357
    %6818 = vmatpush.msra.mxu0 %v2356
    %6819 = vmatpush.msra.mxu0 %v2355
    %6820 = vmatpush.msra.mxu0 %v2354
    %6821 = vmatpush.msra.mxu0 %v2353
    %6822 = vmatpush.msra.mxu0 %v2352
    %6823 = vmatmul.f32.gmra.mxu0 %v3866
    %v6824 = vpop.f32.mrf.mxu0
    %v6825 = vadd.f32 %v6805, %v6824
    %6826 = vdwg.mxu0
    %6827 = vmatpush.msra.mxu0 %v2383
    %6828 = vmatpush.msra.mxu0 %v2382
    %6829 = vmatpush.msra.mxu0 %v2381
    %6830 = vmatpush.msra.mxu0 %v2380
    %6831 = vmatpush.msra.mxu0 %v2379
    %6832 = vmatpush.msra.mxu0 %v2378
    %6833 = vmatpush.msra.mxu0 %v2377
    %6834 = vmatpush.msra.mxu0 %v2376
    %6835 = vmatpush.msra.mxu0 %v2375
    %6836 = vmatpush.msra.mxu0 %v2374
    %6837 = vmatpush.msra.mxu0 %v2373
    %6838 = vmatpush.msra.mxu0 %v2372
    %6839 = vmatpush.msra.mxu0 %v2371
    %6840 = vmatpush.msra.mxu0 %v2370
    %6841 = vmatpush.msra.mxu0 %v2369
    %6842 = vmatpush.msra.mxu0 %v2368
    %6843 = vmatmul.f32.gmra.mxu0 %v3867
    %v6844 = vpop.f32.mrf.mxu0
    %v6845 = vadd.f32 %v6825, %v6844
    %6846 = vdwg.mxu0
    %6847 = vmatpush.msra.mxu0 %v2399
    %6848 = vmatpush.msra.mxu0 %v2398
    %6849 = vmatpush.msra.mxu0 %v2397
    %6850 = vmatpush.msra.mxu0 %v2396
    %6851 = vmatpush.msra.mxu0 %v2395
    %6852 = vmatpush.msra.mxu0 %v2394
    %6853 = vmatpush.msra.mxu0 %v2393
    %6854 = vmatpush.msra.mxu0 %v2392
    %6855 = vmatpush.msra.mxu0 %v2391
    %6856 = vmatpush.msra.mxu0 %v2390
    %6857 = vmatpush.msra.mxu0 %v2389
    %6858 = vmatpush.msra.mxu0 %v2388
    %6859 = vmatpush.msra.mxu0 %v2387
    %6860 = vmatpush.msra.mxu0 %v2386
    %6861 = vmatpush.msra.mxu0 %v2385
    %6862 = vmatpush.msra.mxu0 %v2384
    %6863 = vmatmul.f32.gmra.mxu0 %v3868
    %v6864 = vpop.f32.mrf.mxu0
    %v6865 = vadd.f32 %v6845, %v6864
    %6866 = vdwg.mxu0
    %6867 = vmatpush.msra.mxu0 %v2415
    %6868 = vmatpush.msra.mxu0 %v2414
    %6869 = vmatpush.msra.mxu0 %v2413
    %6870 = vmatpush.msra.mxu0 %v2412
    %6871 = vmatpush.msra.mxu0 %v2411
    %6872 = vmatpush.msra.mxu0 %v2410
    %6873 = vmatpush.msra.mxu0 %v2409
    %6874 = vmatpush.msra.mxu0 %v2408
    %6875 = vmatpush.msra.mxu0 %v2407
    %6876 = vmatpush.msra.mxu0 %v2406
    %6877 = vmatpush.msra.mxu0 %v2405
    %6878 = vmatpush.msra.mxu0 %v2404
    %6879 = vmatpush.msra.mxu0 %v2403
    %6880 = vmatpush.msra.mxu0 %v2402
    %6881 = vmatpush.msra.mxu0 %v2401
    %6882 = vmatpush.msra.mxu0 %v2400
    %6883 = vmatmul.f32.gmra.mxu0 %v3869
    %v6884 = vpop.f32.mrf.mxu0
    %v6885 = vadd.f32 %v6865, %v6884
    %6886 = vdwg.mxu0
    %6887 = vmatpush.msra.mxu0 %v2431
    %6888 = vmatpush.msra.mxu0 %v2430
    %6889 = vmatpush.msra.mxu0 %v2429
    %6890 = vmatpush.msra.mxu0 %v2428
    %6891 = vmatpush.msra.mxu0 %v2427
    %6892 = vmatpush.msra.mxu0 %v2426
    %6893 = vmatpush.msra.mxu0 %v2425
    %6894 = vmatpush.msra.mxu0 %v2424
    %6895 = vmatpush.msra.mxu0 %v2423
    %6896 = vmatpush.msra.mxu0 %v2422
    %6897 = vmatpush.msra.mxu0 %v2421
    %6898 = vmatpush.msra.mxu0 %v2420
    %6899 = vmatpush.msra.mxu0 %v2419
    %6900 = vmatpush.msra.mxu0 %v2418
    %6901 = vmatpush.msra.mxu0 %v2417
    %6902 = vmatpush.msra.mxu0 %v2416
    %6903 = vmatmul.f32.gmra.mxu0 %v3870
    %v6904 = vpop.f32.mrf.mxu0
    %v6905 = vadd.f32 %v6885, %v6904
    %6906 = vdwg.mxu0
    %6907 = vmatpush.msra.mxu0 %v2447
    %6908 = vmatpush.msra.mxu0 %v2446
    %6909 = vmatpush.msra.mxu0 %v2445
    %6910 = vmatpush.msra.mxu0 %v2444
    %6911 = vmatpush.msra.mxu0 %v2443
    %6912 = vmatpush.msra.mxu0 %v2442
    %6913 = vmatpush.msra.mxu0 %v2441
    %6914 = vmatpush.msra.mxu0 %v2440
    %6915 = vmatpush.msra.mxu0 %v2439
    %6916 = vmatpush.msra.mxu0 %v2438
    %6917 = vmatpush.msra.mxu0 %v2437
    %6918 = vmatpush.msra.mxu0 %v2436
    %6919 = vmatpush.msra.mxu0 %v2435
    %6920 = vmatpush.msra.mxu0 %v2434
    %6921 = vmatpush.msra.mxu0 %v2433
    %6922 = vmatpush.msra.mxu0 %v2432
    %6923 = vmatmul.f32.gmra.mxu0 %v3879
    %v6924 = vpop.f32.mrf.mxu0
    %v6925 = vadd.f32 %v6905, %v6924
    %6926 = vdwg.mxu0
    %6927 = vmatpush.msra.mxu0 %v2463
    %6928 = vmatpush.msra.mxu0 %v2462
    %6929 = vmatpush.msra.mxu0 %v2461
    %6930 = vmatpush.msra.mxu0 %v2460
    %6931 = vmatpush.msra.mxu0 %v2459
    %6932 = vmatpush.msra.mxu0 %v2458
    %6933 = vmatpush.msra.mxu0 %v2457
    %6934 = vmatpush.msra.mxu0 %v2456
    %6935 = vmatpush.msra.mxu0 %v2455
    %6936 = vmatpush.msra.mxu0 %v2454
    %6937 = vmatpush.msra.mxu0 %v2453
    %6938 = vmatpush.msra.mxu0 %v2452
    %6939 = vmatpush.msra.mxu0 %v2451
    %6940 = vmatpush.msra.mxu0 %v2450
    %6941 = vmatpush.msra.mxu0 %v2449
    %6942 = vmatpush.msra.mxu0 %v2448
    %6943 = vmatmul.f32.gmra.mxu0 %v3880
    %v6944 = vpop.f32.mrf.mxu0
    %v6945 = vadd.f32 %v6925, %v6944
    %6946 = vdwg.mxu0
    %6947 = vmatpush.msra.mxu0 %v2479
    %6948 = vmatpush.msra.mxu0 %v2478
    %6949 = vmatpush.msra.mxu0 %v2477
    %6950 = vmatpush.msra.mxu0 %v2476
    %6951 = vmatpush.msra.mxu0 %v2475
    %6952 = vmatpush.msra.mxu0 %v2474
    %6953 = vmatpush.msra.mxu0 %v2473
    %6954 = vmatpush.msra.mxu0 %v2472
    %6955 = vmatpush.msra.mxu0 %v2471
    %6956 = vmatpush.msra.mxu0 %v2470
    %6957 = vmatpush.msra.mxu0 %v2469
    %6958 = vmatpush.msra.mxu0 %v2468
    %6959 = vmatpush.msra.mxu0 %v2467
    %6960 = vmatpush.msra.mxu0 %v2466
    %6961 = vmatpush.msra.mxu0 %v2465
    %6962 = vmatpush.msra.mxu0 %v2464
    %6963 = vmatmul.f32.gmra.mxu0 %v3881
    %v6964 = vpop.f32.mrf.mxu0
    %v6965 = vadd.f32 %v6945, %v6964
    %6966 = vdwg.mxu0
    %6967 = vmatpush.msra.mxu0 %v2495
    %6968 = vmatpush.msra.mxu0 %v2494
    %6969 = vmatpush.msra.mxu0 %v2493
    %6970 = vmatpush.msra.mxu0 %v2492
    %6971 = vmatpush.msra.mxu0 %v2491
    %6972 = vmatpush.msra.mxu0 %v2490
    %6973 = vmatpush.msra.mxu0 %v2489
    %6974 = vmatpush.msra.mxu0 %v2488
    %6975 = vmatpush.msra.mxu0 %v2487
    %6976 = vmatpush.msra.mxu0 %v2486
    %6977 = vmatpush.msra.mxu0 %v2485
    %6978 = vmatpush.msra.mxu0 %v2484
    %6979 = vmatpush.msra.mxu0 %v2483
    %6980 = vmatpush.msra.mxu0 %v2482
    %6981 = vmatpush.msra.mxu0 %v2481
    %6982 = vmatpush.msra.mxu0 %v2480
    %6983 = vmatmul.f32.gmra.mxu0 %v3882
    %v6984 = vpop.f32.mrf.mxu0
    %v6985 = vadd.f32 %v6965, %v6984
    %6986 = vdwg.mxu0
    %6987 = vmatpush.msra.mxu0 %v2511
    %6988 = vmatpush.msra.mxu0 %v2510
    %6989 = vmatpush.msra.mxu0 %v2509
    %6990 = vmatpush.msra.mxu0 %v2508
    %6991 = vmatpush.msra.mxu0 %v2507
    %6992 = vmatpush.msra.mxu0 %v2506
    %6993 = vmatpush.msra.mxu0 %v2505
    %6994 = vmatpush.msra.mxu0 %v2504
    %6995 = vmatpush.msra.mxu0 %v2503
    %6996 = vmatpush.msra.mxu0 %v2502
    %6997 = vmatpush.msra.mxu0 %v2501
    %6998 = vmatpush.msra.mxu0 %v2500
    %6999 = vmatpush.msra.mxu0 %v2499
    %7000 = vmatpush.msra.mxu0 %v2498
    %7001 = vmatpush.msra.mxu0 %v2497
    %7002 = vmatpush.msra.mxu0 %v2496
    %7003 = vmatmul.f32.gmra.mxu0 %v3883
    %v7004 = vpop.f32.mrf.mxu0
    %v7005 = vadd.f32 %v6985, %v7004
    %7006 = vdwg.mxu0
    %7007 = vmatpush.msra.mxu0 %v2527
    %7008 = vmatpush.msra.mxu0 %v2526
    %7009 = vmatpush.msra.mxu0 %v2525
    %7010 = vmatpush.msra.mxu0 %v2524
    %7011 = vmatpush.msra.mxu0 %v2523
    %7012 = vmatpush.msra.mxu0 %v2522
    %7013 = vmatpush.msra.mxu0 %v2521
    %7014 = vmatpush.msra.mxu0 %v2520
    %7015 = vmatpush.msra.mxu0 %v2519
    %7016 = vmatpush.msra.mxu0 %v2518
    %7017 = vmatpush.msra.mxu0 %v2517
    %7018 = vmatpush.msra.mxu0 %v2516
    %7019 = vmatpush.msra.mxu0 %v2515
    %7020 = vmatpush.msra.mxu0 %v2514
    %7021 = vmatpush.msra.mxu0 %v2513
    %7022 = vmatpush.msra.mxu0 %v2512
    %7023 = vmatmul.f32.gmra.mxu0 %v3884
    %v7024 = vpop.f32.mrf.mxu0
    %v7025 = vadd.f32 %v7005, %v7024
    %7026 = vdwg.mxu0
    %7027 = vmatpush.msra.mxu0 %v2543
    %7028 = vmatpush.msra.mxu0 %v2542
    %7029 = vmatpush.msra.mxu0 %v2541
    %7030 = vmatpush.msra.mxu0 %v2540
    %7031 = vmatpush.msra.mxu0 %v2539
    %7032 = vmatpush.msra.mxu0 %v2538
    %7033 = vmatpush.msra.mxu0 %v2537
    %7034 = vmatpush.msra.mxu0 %v2536
    %7035 = vmatpush.msra.mxu0 %v2535
    %7036 = vmatpush.msra.mxu0 %v2534
    %7037 = vmatpush.msra.mxu0 %v2533
    %7038 = vmatpush.msra.mxu0 %v2532
    %7039 = vmatpush.msra.mxu0 %v2531
    %7040 = vmatpush.msra.mxu0 %v2530
    %7041 = vmatpush.msra.mxu0 %v2529
    %7042 = vmatpush.msra.mxu0 %v2528
    %7043 = vmatmul.f32.gmra.mxu0 %v3885
    %v7044 = vpop.f32.mrf.mxu0
    %v7045 = vadd.f32 %v7025, %v7044
    %7046 = vdwg.mxu0
    %7047 = vmatpush.msra.mxu0 %v2559
    %7048 = vmatpush.msra.mxu0 %v2558
    %7049 = vmatpush.msra.mxu0 %v2557
    %7050 = vmatpush.msra.mxu0 %v2556
    %7051 = vmatpush.msra.mxu0 %v2555
    %7052 = vmatpush.msra.mxu0 %v2554
    %7053 = vmatpush.msra.mxu0 %v2553
    %7054 = vmatpush.msra.mxu0 %v2552
    %7055 = vmatpush.msra.mxu0 %v2551
    %7056 = vmatpush.msra.mxu0 %v2550
    %7057 = vmatpush.msra.mxu0 %v2549
    %7058 = vmatpush.msra.mxu0 %v2548
    %7059 = vmatpush.msra.mxu0 %v2547
    %7060 = vmatpush.msra.mxu0 %v2546
    %7061 = vmatpush.msra.mxu0 %v2545
    %7062 = vmatpush.msra.mxu0 %v2544
    %7063 = vmatmul.f32.gmra.mxu0 %v3886
    %v7064 = vpop.f32.mrf.mxu0
    %v7065 = vadd.f32 %v7045, %v7064
    %7066 = vdwg.mxu0
    %7067 = vmatpush.msra.mxu0 %v2575
    %7068 = vmatpush.msra.mxu0 %v2574
    %7069 = vmatpush.msra.mxu0 %v2573
    %7070 = vmatpush.msra.mxu0 %v2572
    %7071 = vmatpush.msra.mxu0 %v2571
    %7072 = vmatpush.msra.mxu0 %v2570
    %7073 = vmatpush.msra.mxu0 %v2569
    %7074 = vmatpush.msra.mxu0 %v2568
    %7075 = vmatpush.msra.mxu0 %v2567
    %7076 = vmatpush.msra.mxu0 %v2566
    %7077 = vmatpush.msra.mxu0 %v2565
    %7078 = vmatpush.msra.mxu0 %v2564
    %7079 = vmatpush.msra.mxu0 %v2563
    %7080 = vmatpush.msra.mxu0 %v2562
    %7081 = vmatpush.msra.mxu0 %v2561
    %7082 = vmatpush.msra.mxu0 %v2560
    %7083 = vmatmul.f32.gmra.mxu0 %v3895
    %v7084 = vpop.f32.mrf.mxu0
    %v7085 = vadd.f32 %v7065, %v7084
    %7086 = vdwg.mxu0
    %7087 = vmatpush.msra.mxu0 %v2591
    %7088 = vmatpush.msra.mxu0 %v2590
    %7089 = vmatpush.msra.mxu0 %v2589
    %7090 = vmatpush.msra.mxu0 %v2588
    %7091 = vmatpush.msra.mxu0 %v2587
    %7092 = vmatpush.msra.mxu0 %v2586
    %7093 = vmatpush.msra.mxu0 %v2585
    %7094 = vmatpush.msra.mxu0 %v2584
    %7095 = vmatpush.msra.mxu0 %v2583
    %7096 = vmatpush.msra.mxu0 %v2582
    %7097 = vmatpush.msra.mxu0 %v2581
    %7098 = vmatpush.msra.mxu0 %v2580
    %7099 = vmatpush.msra.mxu0 %v2579
    %7100 = vmatpush.msra.mxu0 %v2578
    %7101 = vmatpush.msra.mxu0 %v2577
    %7102 = vmatpush.msra.mxu0 %v2576
    %7103 = vmatmul.f32.gmra.mxu0 %v3896
    %v7104 = vpop.f32.mrf.mxu0
    %v7105 = vadd.f32 %v7085, %v7104
    %7106 = vdwg.mxu0
    %7107 = vmatpush.msra.mxu0 %v2607
    %7108 = vmatpush.msra.mxu0 %v2606
    %7109 = vmatpush.msra.mxu0 %v2605
    %7110 = vmatpush.msra.mxu0 %v2604
    %7111 = vmatpush.msra.mxu0 %v2603
    %7112 = vmatpush.msra.mxu0 %v2602
    %7113 = vmatpush.msra.mxu0 %v2601
    %7114 = vmatpush.msra.mxu0 %v2600
    %7115 = vmatpush.msra.mxu0 %v2599
    %7116 = vmatpush.msra.mxu0 %v2598
    %7117 = vmatpush.msra.mxu0 %v2597
    %7118 = vmatpush.msra.mxu0 %v2596
    %7119 = vmatpush.msra.mxu0 %v2595
    %7120 = vmatpush.msra.mxu0 %v2594
    %7121 = vmatpush.msra.mxu0 %v2593
    %7122 = vmatpush.msra.mxu0 %v2592
    %7123 = vmatmul.f32.gmra.mxu0 %v3897
    %v7124 = vpop.f32.mrf.mxu0
    %v7125 = vadd.f32 %v7105, %v7124
    %7126 = vdwg.mxu0
    %7127 = vmatpush.msra.mxu0 %v2623
    %7128 = vmatpush.msra.mxu0 %v2622
    %7129 = vmatpush.msra.mxu0 %v2621
    %7130 = vmatpush.msra.mxu0 %v2620
    %7131 = vmatpush.msra.mxu0 %v2619
    %7132 = vmatpush.msra.mxu0 %v2618
    %7133 = vmatpush.msra.mxu0 %v2617
    %7134 = vmatpush.msra.mxu0 %v2616
    %7135 = vmatpush.msra.mxu0 %v2615
    %7136 = vmatpush.msra.mxu0 %v2614
    %7137 = vmatpush.msra.mxu0 %v2613
    %7138 = vmatpush.msra.mxu0 %v2612
    %7139 = vmatpush.msra.mxu0 %v2611
    %7140 = vmatpush.msra.mxu0 %v2610
    %7141 = vmatpush.msra.mxu0 %v2609
    %7142 = vmatpush.msra.mxu0 %v2608
    %7143 = vmatmul.f32.gmra.mxu0 %v3898
    %v7144 = vpop.f32.mrf.mxu0
    %v7145 = vadd.f32 %v7125, %v7144
    %7146 = vdwg.mxu0
    %7147 = vmatpush.msra.mxu0 %v2639
    %7148 = vmatpush.msra.mxu0 %v2638
    %7149 = vmatpush.msra.mxu0 %v2637
    %7150 = vmatpush.msra.mxu0 %v2636
    %7151 = vmatpush.msra.mxu0 %v2635
    %7152 = vmatpush.msra.mxu0 %v2634
    %7153 = vmatpush.msra.mxu0 %v2633
    %7154 = vmatpush.msra.mxu0 %v2632
    %7155 = vmatpush.msra.mxu0 %v2631
    %7156 = vmatpush.msra.mxu0 %v2630
    %7157 = vmatpush.msra.mxu0 %v2629
    %7158 = vmatpush.msra.mxu0 %v2628
    %7159 = vmatpush.msra.mxu0 %v2627
    %7160 = vmatpush.msra.mxu0 %v2626
    %7161 = vmatpush.msra.mxu0 %v2625
    %7162 = vmatpush.msra.mxu0 %v2624
    %7163 = vmatmul.f32.gmra.mxu0 %v3899
    %v7164 = vpop.f32.mrf.mxu0
    %v7165 = vadd.f32 %v7145, %v7164
    %7166 = vdwg.mxu0
    %7167 = vmatpush.msra.mxu0 %v2655
    %7168 = vmatpush.msra.mxu0 %v2654
    %7169 = vmatpush.msra.mxu0 %v2653
    %7170 = vmatpush.msra.mxu0 %v2652
    %7171 = vmatpush.msra.mxu0 %v2651
    %7172 = vmatpush.msra.mxu0 %v2650
    %7173 = vmatpush.msra.mxu0 %v2649
    %7174 = vmatpush.msra.mxu0 %v2648
    %7175 = vmatpush.msra.mxu0 %v2647
    %7176 = vmatpush.msra.mxu0 %v2646
    %7177 = vmatpush.msra.mxu0 %v2645
    %7178 = vmatpush.msra.mxu0 %v2644
    %7179 = vmatpush.msra.mxu0 %v2643
    %7180 = vmatpush.msra.mxu0 %v2642
    %7181 = vmatpush.msra.mxu0 %v2641
    %7182 = vmatpush.msra.mxu0 %v2640
    %7183 = vmatmul.f32.gmra.mxu0 %v3900
    %v7184 = vpop.f32.mrf.mxu0
    %v7185 = vadd.f32 %v7165, %v7184
    %7186 = vdwg.mxu0
    %7187 = vmatpush.msra.mxu0 %v2671
    %7188 = vmatpush.msra.mxu0 %v2670
    %7189 = vmatpush.msra.mxu0 %v2669
    %7190 = vmatpush.msra.mxu0 %v2668
    %7191 = vmatpush.msra.mxu0 %v2667
    %7192 = vmatpush.msra.mxu0 %v2666
    %7193 = vmatpush.msra.mxu0 %v2665
    %7194 = vmatpush.msra.mxu0 %v2664
    %7195 = vmatpush.msra.mxu0 %v2663
    %7196 = vmatpush.msra.mxu0 %v2662
    %7197 = vmatpush.msra.mxu0 %v2661
    %7198 = vmatpush.msra.mxu0 %v2660
    %7199 = vmatpush.msra.mxu0 %v2659
    %7200 = vmatpush.msra.mxu0 %v2658
    %7201 = vmatpush.msra.mxu0 %v2657
    %7202 = vmatpush.msra.mxu0 %v2656
    %7203 = vmatmul.f32.gmra.mxu0 %v3901
    %v7204 = vpop.f32.mrf.mxu0
    %v7205 = vadd.f32 %v7185, %v7204
    %7206 = vdwg.mxu0
    %7207 = vmatpush.msra.mxu0 %v2687
    %7208 = vmatpush.msra.mxu0 %v2686
    %7209 = vmatpush.msra.mxu0 %v2685
    %7210 = vmatpush.msra.mxu0 %v2684
    %7211 = vmatpush.msra.mxu0 %v2683
    %7212 = vmatpush.msra.mxu0 %v2682
    %7213 = vmatpush.msra.mxu0 %v2681
    %7214 = vmatpush.msra.mxu0 %v2680
    %7215 = vmatpush.msra.mxu0 %v2679
    %7216 = vmatpush.msra.mxu0 %v2678
    %7217 = vmatpush.msra.mxu0 %v2677
    %7218 = vmatpush.msra.mxu0 %v2676
    %7219 = vmatpush.msra.mxu0 %v2675
    %7220 = vmatpush.msra.mxu0 %v2674
    %7221 = vmatpush.msra.mxu0 %v2673
    %7222 = vmatpush.msra.mxu0 %v2672
    %7223 = vmatmul.f32.gmra.mxu0 %v3902
    %v7224 = vpop.f32.mrf.mxu0
    %v7225 = vadd.f32 %v7205, %v7224
    %7226 = vdwg.mxu0
    %7227 = vmatpush.msra.mxu0 %v2703
    %7228 = vmatpush.msra.mxu0 %v2702
    %7229 = vmatpush.msra.mxu0 %v2701
    %7230 = vmatpush.msra.mxu0 %v2700
    %7231 = vmatpush.msra.mxu0 %v2699
    %7232 = vmatpush.msra.mxu0 %v2698
    %7233 = vmatpush.msra.mxu0 %v2697
    %7234 = vmatpush.msra.mxu0 %v2696
    %7235 = vmatpush.msra.mxu0 %v2695
    %7236 = vmatpush.msra.mxu0 %v2694
    %7237 = vmatpush.msra.mxu0 %v2693
    %7238 = vmatpush.msra.mxu0 %v2692
    %7239 = vmatpush.msra.mxu0 %v2691
    %7240 = vmatpush.msra.mxu0 %v2690
    %7241 = vmatpush.msra.mxu0 %v2689
    %7242 = vmatpush.msra.mxu0 %v2688
    %7243 = vmatmul.f32.gmra.mxu0 %v3911
    %v7244 = vpop.f32.mrf.mxu0
    %v7245 = vadd.f32 %v7225, %v7244
    %7246 = vdwg.mxu0
    %7247 = vmatpush.msra.mxu0 %v2719
    %7248 = vmatpush.msra.mxu0 %v2718
    %7249 = vmatpush.msra.mxu0 %v2717
    %7250 = vmatpush.msra.mxu0 %v2716
    %7251 = vmatpush.msra.mxu0 %v2715
    %7252 = vmatpush.msra.mxu0 %v2714
    %7253 = vmatpush.msra.mxu0 %v2713
    %7254 = vmatpush.msra.mxu0 %v2712
    %7255 = vmatpush.msra.mxu0 %v2711
    %7256 = vmatpush.msra.mxu0 %v2710
    %7257 = vmatpush.msra.mxu0 %v2709
    %7258 = vmatpush.msra.mxu0 %v2708
    %7259 = vmatpush.msra.mxu0 %v2707
    %7260 = vmatpush.msra.mxu0 %v2706
    %7261 = vmatpush.msra.mxu0 %v2705
    %7262 = vmatpush.msra.mxu0 %v2704
    %7263 = vmatmul.f32.gmra.mxu0 %v3912
    %v7264 = vpop.f32.mrf.mxu0
    %v7265 = vadd.f32 %v7245, %v7264
    %7266 = vdwg.mxu0
    %7267 = vmatpush.msra.mxu0 %v2735
    %7268 = vmatpush.msra.mxu0 %v2734
    %7269 = vmatpush.msra.mxu0 %v2733
    %7270 = vmatpush.msra.mxu0 %v2732
    %7271 = vmatpush.msra.mxu0 %v2731
    %7272 = vmatpush.msra.mxu0 %v2730
    %7273 = vmatpush.msra.mxu0 %v2729
    %7274 = vmatpush.msra.mxu0 %v2728
    %7275 = vmatpush.msra.mxu0 %v2727
    %7276 = vmatpush.msra.mxu0 %v2726
    %7277 = vmatpush.msra.mxu0 %v2725
    %7278 = vmatpush.msra.mxu0 %v2724
    %7279 = vmatpush.msra.mxu0 %v2723
    %7280 = vmatpush.msra.mxu0 %v2722
    %7281 = vmatpush.msra.mxu0 %v2721
    %7282 = vmatpush.msra.mxu0 %v2720
    %7283 = vmatmul.f32.gmra.mxu0 %v3913
    %v7284 = vpop.f32.mrf.mxu0
    %v7285 = vadd.f32 %v7265, %v7284
    %7286 = vdwg.mxu0
    %7287 = vmatpush.msra.mxu0 %v2751
    %7288 = vmatpush.msra.mxu0 %v2750
    %7289 = vmatpush.msra.mxu0 %v2749
    %7290 = vmatpush.msra.mxu0 %v2748
    %7291 = vmatpush.msra.mxu0 %v2747
    %7292 = vmatpush.msra.mxu0 %v2746
    %7293 = vmatpush.msra.mxu0 %v2745
    %7294 = vmatpush.msra.mxu0 %v2744
    %7295 = vmatpush.msra.mxu0 %v2743
    %7296 = vmatpush.msra.mxu0 %v2742
    %7297 = vmatpush.msra.mxu0 %v2741
    %7298 = vmatpush.msra.mxu0 %v2740
    %7299 = vmatpush.msra.mxu0 %v2739
    %7300 = vmatpush.msra.mxu0 %v2738
    %7301 = vmatpush.msra.mxu0 %v2737
    %7302 = vmatpush.msra.mxu0 %v2736
    %7303 = vmatmul.f32.gmra.mxu0 %v3914
    %v7304 = vpop.f32.mrf.mxu0
    %v7305 = vadd.f32 %v7285, %v7304
    %7306 = vdwg.mxu0
    %7307 = vmatpush.msra.mxu0 %v2767
    %7308 = vmatpush.msra.mxu0 %v2766
    %7309 = vmatpush.msra.mxu0 %v2765
    %7310 = vmatpush.msra.mxu0 %v2764
    %7311 = vmatpush.msra.mxu0 %v2763
    %7312 = vmatpush.msra.mxu0 %v2762
    %7313 = vmatpush.msra.mxu0 %v2761
    %7314 = vmatpush.msra.mxu0 %v2760
    %7315 = vmatpush.msra.mxu0 %v2759
    %7316 = vmatpush.msra.mxu0 %v2758
    %7317 = vmatpush.msra.mxu0 %v2757
    %7318 = vmatpush.msra.mxu0 %v2756
    %7319 = vmatpush.msra.mxu0 %v2755
    %7320 = vmatpush.msra.mxu0 %v2754
    %7321 = vmatpush.msra.mxu0 %v2753
    %7322 = vmatpush.msra.mxu0 %v2752
    %7323 = vmatmul.f32.gmra.mxu0 %v3915
    %v7324 = vpop.f32.mrf.mxu0
    %v7325 = vadd.f32 %v7305, %v7324
    %7326 = vdwg.mxu0
    %7327 = vmatpush.msra.mxu0 %v2783
    %7328 = vmatpush.msra.mxu0 %v2782
    %7329 = vmatpush.msra.mxu0 %v2781
    %7330 = vmatpush.msra.mxu0 %v2780
    %7331 = vmatpush.msra.mxu0 %v2779
    %7332 = vmatpush.msra.mxu0 %v2778
    %7333 = vmatpush.msra.mxu0 %v2777
    %7334 = vmatpush.msra.mxu0 %v2776
    %7335 = vmatpush.msra.mxu0 %v2775
    %7336 = vmatpush.msra.mxu0 %v2774
    %7337 = vmatpush.msra.mxu0 %v2773
    %7338 = vmatpush.msra.mxu0 %v2772
    %7339 = vmatpush.msra.mxu0 %v2771
    %7340 = vmatpush.msra.mxu0 %v2770
    %7341 = vmatpush.msra.mxu0 %v2769
    %7342 = vmatpush.msra.mxu0 %v2768
    %7343 = vmatmul.f32.gmra.mxu0 %v3916
    %v7344 = vpop.f32.mrf.mxu0
    %v7345 = vadd.f32 %v7325, %v7344
    %7346 = vdwg.mxu0
    %7347 = vmatpush.msra.mxu0 %v2799
    %7348 = vmatpush.msra.mxu0 %v2798
    %7349 = vmatpush.msra.mxu0 %v2797
    %7350 = vmatpush.msra.mxu0 %v2796
    %7351 = vmatpush.msra.mxu0 %v2795
    %7352 = vmatpush.msra.mxu0 %v2794
    %7353 = vmatpush.msra.mxu0 %v2793
    %7354 = vmatpush.msra.mxu0 %v2792
    %7355 = vmatpush.msra.mxu0 %v2791
    %7356 = vmatpush.msra.mxu0 %v2790
    %7357 = vmatpush.msra.mxu0 %v2789
    %7358 = vmatpush.msra.mxu0 %v2788
    %7359 = vmatpush.msra.mxu0 %v2787
    %7360 = vmatpush.msra.mxu0 %v2786
    %7361 = vmatpush.msra.mxu0 %v2785
    %7362 = vmatpush.msra.mxu0 %v2784
    %7363 = vmatmul.f32.gmra.mxu0 %v3917
    %v7364 = vpop.f32.mrf.mxu0
    %v7365 = vadd.f32 %v7345, %v7364
    %7366 = vdwg.mxu0
    %7367 = vmatpush.msra.mxu0 %v2815
    %7368 = vmatpush.msra.mxu0 %v2814
    %7369 = vmatpush.msra.mxu0 %v2813
    %7370 = vmatpush.msra.mxu0 %v2812
    %7371 = vmatpush.msra.mxu0 %v2811
    %7372 = vmatpush.msra.mxu0 %v2810
    %7373 = vmatpush.msra.mxu0 %v2809
    %7374 = vmatpush.msra.mxu0 %v2808
    %7375 = vmatpush.msra.mxu0 %v2807
    %7376 = vmatpush.msra.mxu0 %v2806
    %7377 = vmatpush.msra.mxu0 %v2805
    %7378 = vmatpush.msra.mxu0 %v2804
    %7379 = vmatpush.msra.mxu0 %v2803
    %7380 = vmatpush.msra.mxu0 %v2802
    %7381 = vmatpush.msra.mxu0 %v2801
    %7382 = vmatpush.msra.mxu0 %v2800
    %7383 = vmatmul.f32.gmra.mxu0 %v3918
    %v7384 = vpop.f32.mrf.mxu0
    %v7385 = vadd.f32 %v7365, %v7384
    %7386 = vdwg.mxu0
    %7387 = vmatpush.msra.mxu0 %v2831
    %7388 = vmatpush.msra.mxu0 %v2830
    %7389 = vmatpush.msra.mxu0 %v2829
    %7390 = vmatpush.msra.mxu0 %v2828
    %7391 = vmatpush.msra.mxu0 %v2827
    %7392 = vmatpush.msra.mxu0 %v2826
    %7393 = vmatpush.msra.mxu0 %v2825
    %7394 = vmatpush.msra.mxu0 %v2824
    %7395 = vmatpush.msra.mxu0 %v2823
    %7396 = vmatpush.msra.mxu0 %v2822
    %7397 = vmatpush.msra.mxu0 %v2821
    %7398 = vmatpush.msra.mxu0 %v2820
    %7399 = vmatpush.msra.mxu0 %v2819
    %7400 = vmatpush.msra.mxu0 %v2818
    %7401 = vmatpush.msra.mxu0 %v2817
    %7402 = vmatpush.msra.mxu0 %v2816
    %7403 = vmatmul.f32.gmra.mxu0 %v3927
    %v7404 = vpop.f32.mrf.mxu0
    %v7405 = vadd.f32 %v7385, %v7404
    %7406 = vdwg.mxu0
    %7407 = vmatpush.msra.mxu0 %v2847
    %7408 = vmatpush.msra.mxu0 %v2846
    %7409 = vmatpush.msra.mxu0 %v2845
    %7410 = vmatpush.msra.mxu0 %v2844
    %7411 = vmatpush.msra.mxu0 %v2843
    %7412 = vmatpush.msra.mxu0 %v2842
    %7413 = vmatpush.msra.mxu0 %v2841
    %7414 = vmatpush.msra.mxu0 %v2840
    %7415 = vmatpush.msra.mxu0 %v2839
    %7416 = vmatpush.msra.mxu0 %v2838
    %7417 = vmatpush.msra.mxu0 %v2837
    %7418 = vmatpush.msra.mxu0 %v2836
    %7419 = vmatpush.msra.mxu0 %v2835
    %7420 = vmatpush.msra.mxu0 %v2834
    %7421 = vmatpush.msra.mxu0 %v2833
    %7422 = vmatpush.msra.mxu0 %v2832
    %7423 = vmatmul.f32.gmra.mxu0 %v3928
    %v7424 = vpop.f32.mrf.mxu0
    %v7425 = vadd.f32 %v7405, %v7424
    %7426 = vdwg.mxu0
    %7427 = vmatpush.msra.mxu0 %v2863
    %7428 = vmatpush.msra.mxu0 %v2862
    %7429 = vmatpush.msra.mxu0 %v2861
    %7430 = vmatpush.msra.mxu0 %v2860
    %7431 = vmatpush.msra.mxu0 %v2859
    %7432 = vmatpush.msra.mxu0 %v2858
    %7433 = vmatpush.msra.mxu0 %v2857
    %7434 = vmatpush.msra.mxu0 %v2856
    %7435 = vmatpush.msra.mxu0 %v2855
    %7436 = vmatpush.msra.mxu0 %v2854
    %7437 = vmatpush.msra.mxu0 %v2853
    %7438 = vmatpush.msra.mxu0 %v2852
    %7439 = vmatpush.msra.mxu0 %v2851
    %7440 = vmatpush.msra.mxu0 %v2850
    %7441 = vmatpush.msra.mxu0 %v2849
    %7442 = vmatpush.msra.mxu0 %v2848
    %7443 = vmatmul.f32.gmra.mxu0 %v3929
    %v7444 = vpop.f32.mrf.mxu0
    %v7445 = vadd.f32 %v7425, %v7444
    %7446 = vdwg.mxu0
    %7447 = vmatpush.msra.mxu0 %v2879
    %7448 = vmatpush.msra.mxu0 %v2878
    %7449 = vmatpush.msra.mxu0 %v2877
    %7450 = vmatpush.msra.mxu0 %v2876
    %7451 = vmatpush.msra.mxu0 %v2875
    %7452 = vmatpush.msra.mxu0 %v2874
    %7453 = vmatpush.msra.mxu0 %v2873
    %7454 = vmatpush.msra.mxu0 %v2872
    %7455 = vmatpush.msra.mxu0 %v2871
    %7456 = vmatpush.msra.mxu0 %v2870
    %7457 = vmatpush.msra.mxu0 %v2869
    %7458 = vmatpush.msra.mxu0 %v2868
    %7459 = vmatpush.msra.mxu0 %v2867
    %7460 = vmatpush.msra.mxu0 %v2866
    %7461 = vmatpush.msra.mxu0 %v2865
    %7462 = vmatpush.msra.mxu0 %v2864
    %7463 = vmatmul.f32.gmra.mxu0 %v3930
    %v7464 = vpop.f32.mrf.mxu0
    %v7465 = vadd.f32 %v7445, %v7464
    %7466 = vdwg.mxu0
    %7467 = vmatpush.msra.mxu0 %v2895
    %7468 = vmatpush.msra.mxu0 %v2894
    %7469 = vmatpush.msra.mxu0 %v2893
    %7470 = vmatpush.msra.mxu0 %v2892
    %7471 = vmatpush.msra.mxu0 %v2891
    %7472 = vmatpush.msra.mxu0 %v2890
    %7473 = vmatpush.msra.mxu0 %v2889
    %7474 = vmatpush.msra.mxu0 %v2888
    %7475 = vmatpush.msra.mxu0 %v2887
    %7476 = vmatpush.msra.mxu0 %v2886
    %7477 = vmatpush.msra.mxu0 %v2885
    %7478 = vmatpush.msra.mxu0 %v2884
    %7479 = vmatpush.msra.mxu0 %v2883
    %7480 = vmatpush.msra.mxu0 %v2882
    %7481 = vmatpush.msra.mxu0 %v2881
    %7482 = vmatpush.msra.mxu0 %v2880
    %7483 = vmatmul.f32.gmra.mxu0 %v3931
    %v7484 = vpop.f32.mrf.mxu0
    %v7485 = vadd.f32 %v7465, %v7484
    %7486 = vdwg.mxu0
    %7487 = vmatpush.msra.mxu0 %v2911
    %7488 = vmatpush.msra.mxu0 %v2910
    %7489 = vmatpush.msra.mxu0 %v2909
    %7490 = vmatpush.msra.mxu0 %v2908
    %7491 = vmatpush.msra.mxu0 %v2907
    %7492 = vmatpush.msra.mxu0 %v2906
    %7493 = vmatpush.msra.mxu0 %v2905
    %7494 = vmatpush.msra.mxu0 %v2904
    %7495 = vmatpush.msra.mxu0 %v2903
    %7496 = vmatpush.msra.mxu0 %v2902
    %7497 = vmatpush.msra.mxu0 %v2901
    %7498 = vmatpush.msra.mxu0 %v2900
    %7499 = vmatpush.msra.mxu0 %v2899
    %7500 = vmatpush.msra.mxu0 %v2898
    %7501 = vmatpush.msra.mxu0 %v2897
    %7502 = vmatpush.msra.mxu0 %v2896
    %7503 = vmatmul.f32.gmra.mxu0 %v3932
    %v7504 = vpop.f32.mrf.mxu0
    %v7505 = vadd.f32 %v7485, %v7504
    %7506 = vdwg.mxu0
    %7507 = vmatpush.msra.mxu0 %v2927
    %7508 = vmatpush.msra.mxu0 %v2926
    %7509 = vmatpush.msra.mxu0 %v2925
    %7510 = vmatpush.msra.mxu0 %v2924
    %7511 = vmatpush.msra.mxu0 %v2923
    %7512 = vmatpush.msra.mxu0 %v2922
    %7513 = vmatpush.msra.mxu0 %v2921
    %7514 = vmatpush.msra.mxu0 %v2920
    %7515 = vmatpush.msra.mxu0 %v2919
    %7516 = vmatpush.msra.mxu0 %v2918
    %7517 = vmatpush.msra.mxu0 %v2917
    %7518 = vmatpush.msra.mxu0 %v2916
    %7519 = vmatpush.msra.mxu0 %v2915
    %7520 = vmatpush.msra.mxu0 %v2914
    %7521 = vmatpush.msra.mxu0 %v2913
    %7522 = vmatpush.msra.mxu0 %v2912
    %7523 = vmatmul.f32.gmra.mxu0 %v3933
    %v7524 = vpop.f32.mrf.mxu0
    %v7525 = vadd.f32 %v7505, %v7524
    %7526 = vdwg.mxu0
    %7527 = vmatpush.msra.mxu0 %v2943
    %7528 = vmatpush.msra.mxu0 %v2942
    %7529 = vmatpush.msra.mxu0 %v2941
    %7530 = vmatpush.msra.mxu0 %v2940
    %7531 = vmatpush.msra.mxu0 %v2939
    %7532 = vmatpush.msra.mxu0 %v2938
    %7533 = vmatpush.msra.mxu0 %v2937
    %7534 = vmatpush.msra.mxu0 %v2936
    %7535 = vmatpush.msra.mxu0 %v2935
    %7536 = vmatpush.msra.mxu0 %v2934
    %7537 = vmatpush.msra.mxu0 %v2933
    %7538 = vmatpush.msra.mxu0 %v2932
    %7539 = vmatpush.msra.mxu0 %v2931
    %7540 = vmatpush.msra.mxu0 %v2930
    %7541 = vmatpush.msra.mxu0 %v2929
    %7542 = vmatpush.msra.mxu0 %v2928
    %7543 = vmatmul.f32.gmra.mxu0 %v3934
    %v7544 = vpop.f32.mrf.mxu0
    %v7545 = vadd.f32 %v7525, %v7544
    %7546 = vdwg.mxu0
    %7547 = vmatpush.msra.mxu0 %v2959
    %7548 = vmatpush.msra.mxu0 %v2958
    %7549 = vmatpush.msra.mxu0 %v2957
    %7550 = vmatpush.msra.mxu0 %v2956
    %7551 = vmatpush.msra.mxu0 %v2955
    %7552 = vmatpush.msra.mxu0 %v2954
    %7553 = vmatpush.msra.mxu0 %v2953
    %7554 = vmatpush.msra.mxu0 %v2952
    %7555 = vmatpush.msra.mxu0 %v2951
    %7556 = vmatpush.msra.mxu0 %v2950
    %7557 = vmatpush.msra.mxu0 %v2949
    %7558 = vmatpush.msra.mxu0 %v2948
    %7559 = vmatpush.msra.mxu0 %v2947
    %7560 = vmatpush.msra.mxu0 %v2946
    %7561 = vmatpush.msra.mxu0 %v2945
    %7562 = vmatpush.msra.mxu0 %v2944
    %7563 = vmatmul.f32.gmra.mxu0 %v3943
    %v7564 = vpop.f32.mrf.mxu0
    %v7565 = vadd.f32 %v7545, %v7564
    %7566 = vdwg.mxu0
    %7567 = vmatpush.msra.mxu0 %v2975
    %7568 = vmatpush.msra.mxu0 %v2974
    %7569 = vmatpush.msra.mxu0 %v2973
    %7570 = vmatpush.msra.mxu0 %v2972
    %7571 = vmatpush.msra.mxu0 %v2971
    %7572 = vmatpush.msra.mxu0 %v2970
    %7573 = vmatpush.msra.mxu0 %v2969
    %7574 = vmatpush.msra.mxu0 %v2968
    %7575 = vmatpush.msra.mxu0 %v2967
    %7576 = vmatpush.msra.mxu0 %v2966
    %7577 = vmatpush.msra.mxu0 %v2965
    %7578 = vmatpush.msra.mxu0 %v2964
    %7579 = vmatpush.msra.mxu0 %v2963
    %7580 = vmatpush.msra.mxu0 %v2962
    %7581 = vmatpush.msra.mxu0 %v2961
    %7582 = vmatpush.msra.mxu0 %v2960
    %7583 = vmatmul.f32.gmra.mxu0 %v3944
    %v7584 = vpop.f32.mrf.mxu0
    %v7585 = vadd.f32 %v7565, %v7584
    %7586 = vdwg.mxu0
    %7587 = vmatpush.msra.mxu0 %v2991
    %7588 = vmatpush.msra.mxu0 %v2990
    %7589 = vmatpush.msra.mxu0 %v2989
    %7590 = vmatpush.msra.mxu0 %v2988
    %7591 = vmatpush.msra.mxu0 %v2987
    %7592 = vmatpush.msra.mxu0 %v2986
    %7593 = vmatpush.msra.mxu0 %v2985
    %7594 = vmatpush.msra.mxu0 %v2984
    %7595 = vmatpush.msra.mxu0 %v2983
    %7596 = vmatpush.msra.mxu0 %v2982
    %7597 = vmatpush.msra.mxu0 %v2981
    %7598 = vmatpush.msra.mxu0 %v2980
    %7599 = vmatpush.msra.mxu0 %v2979
    %7600 = vmatpush.msra.mxu0 %v2978
    %7601 = vmatpush.msra.mxu0 %v2977
    %7602 = vmatpush.msra.mxu0 %v2976
    %7603 = vmatmul.f32.gmra.mxu0 %v3945
    %v7604 = vpop.f32.mrf.mxu0
    %v7605 = vadd.f32 %v7585, %v7604
    %7606 = vdwg.mxu0
    %7607 = vmatpush.msra.mxu0 %v3007
    %7608 = vmatpush.msra.mxu0 %v3006
    %7609 = vmatpush.msra.mxu0 %v3005
    %7610 = vmatpush.msra.mxu0 %v3004
    %7611 = vmatpush.msra.mxu0 %v3003
    %7612 = vmatpush.msra.mxu0 %v3002
    %7613 = vmatpush.msra.mxu0 %v3001
    %7614 = vmatpush.msra.mxu0 %v3000
    %7615 = vmatpush.msra.mxu0 %v2999
    %7616 = vmatpush.msra.mxu0 %v2998
    %7617 = vmatpush.msra.mxu0 %v2997
    %7618 = vmatpush.msra.mxu0 %v2996
    %7619 = vmatpush.msra.mxu0 %v2995
    %7620 = vmatpush.msra.mxu0 %v2994
    %7621 = vmatpush.msra.mxu0 %v2993
    %7622 = vmatpush.msra.mxu0 %v2992
    %7623 = vmatmul.f32.gmra.mxu0 %v3946
    %v7624 = vpop.f32.mrf.mxu0
    %v7625 = vadd.f32 %v7605, %v7624
    %7626 = vdwg.mxu0
    %7627 = vmatpush.msra.mxu0 %v3023
    %7628 = vmatpush.msra.mxu0 %v3022
    %7629 = vmatpush.msra.mxu0 %v3021
    %7630 = vmatpush.msra.mxu0 %v3020
    %7631 = vmatpush.msra.mxu0 %v3019
    %7632 = vmatpush.msra.mxu0 %v3018
    %7633 = vmatpush.msra.mxu0 %v3017
    %7634 = vmatpush.msra.mxu0 %v3016
    %7635 = vmatpush.msra.mxu0 %v3015
    %7636 = vmatpush.msra.mxu0 %v3014
    %7637 = vmatpush.msra.mxu0 %v3013
    %7638 = vmatpush.msra.mxu0 %v3012
    %7639 = vmatpush.msra.mxu0 %v3011
    %7640 = vmatpush.msra.mxu0 %v3010
    %7641 = vmatpush.msra.mxu0 %v3009
    %7642 = vmatpush.msra.mxu0 %v3008
    %7643 = vmatmul.f32.gmra.mxu0 %v3947
    %v7644 = vpop.f32.mrf.mxu0
    %v7645 = vadd.f32 %v7625, %v7644
    %7646 = vdwg.mxu0
    %7647 = vmatpush.msra.mxu0 %v3039
    %7648 = vmatpush.msra.mxu0 %v3038
    %7649 = vmatpush.msra.mxu0 %v3037
    %7650 = vmatpush.msra.mxu0 %v3036
    %7651 = vmatpush.msra.mxu0 %v3035
    %7652 = vmatpush.msra.mxu0 %v3034
    %7653 = vmatpush.msra.mxu0 %v3033
    %7654 = vmatpush.msra.mxu0 %v3032
    %7655 = vmatpush.msra.mxu0 %v3031
    %7656 = vmatpush.msra.mxu0 %v3030
    %7657 = vmatpush.msra.mxu0 %v3029
    %7658 = vmatpush.msra.mxu0 %v3028
    %7659 = vmatpush.msra.mxu0 %v3027
    %7660 = vmatpush.msra.mxu0 %v3026
    %7661 = vmatpush.msra.mxu0 %v3025
    %7662 = vmatpush.msra.mxu0 %v3024
    %7663 = vmatmul.f32.gmra.mxu0 %v3948
    %v7664 = vpop.f32.mrf.mxu0
    %v7665 = vadd.f32 %v7645, %v7664
    %7666 = vdwg.mxu0
    %7667 = vmatpush.msra.mxu0 %v3055
    %7668 = vmatpush.msra.mxu0 %v3054
    %7669 = vmatpush.msra.mxu0 %v3053
    %7670 = vmatpush.msra.mxu0 %v3052
    %7671 = vmatpush.msra.mxu0 %v3051
    %7672 = vmatpush.msra.mxu0 %v3050
    %7673 = vmatpush.msra.mxu0 %v3049
    %7674 = vmatpush.msra.mxu0 %v3048
    %7675 = vmatpush.msra.mxu0 %v3047
    %7676 = vmatpush.msra.mxu0 %v3046
    %7677 = vmatpush.msra.mxu0 %v3045
    %7678 = vmatpush.msra.mxu0 %v3044
    %7679 = vmatpush.msra.mxu0 %v3043
    %7680 = vmatpush.msra.mxu0 %v3042
    %7681 = vmatpush.msra.mxu0 %v3041
    %7682 = vmatpush.msra.mxu0 %v3040
    %7683 = vmatmul.f32.gmra.mxu0 %v3949
    %v7684 = vpop.f32.mrf.mxu0
    %v7685 = vadd.f32 %v7665, %v7684
    %7686 = vdwg.mxu0
    %7687 = vmatpush.msra.mxu0 %v3071
    %7688 = vmatpush.msra.mxu0 %v3070
    %7689 = vmatpush.msra.mxu0 %v3069
    %7690 = vmatpush.msra.mxu0 %v3068
    %7691 = vmatpush.msra.mxu0 %v3067
    %7692 = vmatpush.msra.mxu0 %v3066
    %7693 = vmatpush.msra.mxu0 %v3065
    %7694 = vmatpush.msra.mxu0 %v3064
    %7695 = vmatpush.msra.mxu0 %v3063
    %7696 = vmatpush.msra.mxu0 %v3062
    %7697 = vmatpush.msra.mxu0 %v3061
    %7698 = vmatpush.msra.mxu0 %v3060
    %7699 = vmatpush.msra.mxu0 %v3059
    %7700 = vmatpush.msra.mxu0 %v3058
    %7701 = vmatpush.msra.mxu0 %v3057
    %7702 = vmatpush.msra.mxu0 %v3056
    %7703 = vmatmul.f32.gmra.mxu0 %v3950
    %v7704 = vpop.f32.mrf.mxu0
    %v7705 = vadd.f32 %v7685, %v7704
    %7706 = vdwg.mxu0
    %7707 = vmatpush.msra.mxu0 %v3087
    %7708 = vmatpush.msra.mxu0 %v3086
    %7709 = vmatpush.msra.mxu0 %v3085
    %7710 = vmatpush.msra.mxu0 %v3084
    %7711 = vmatpush.msra.mxu0 %v3083
    %7712 = vmatpush.msra.mxu0 %v3082
    %7713 = vmatpush.msra.mxu0 %v3081
    %7714 = vmatpush.msra.mxu0 %v3080
    %7715 = vmatpush.msra.mxu0 %v3079
    %7716 = vmatpush.msra.mxu0 %v3078
    %7717 = vmatpush.msra.mxu0 %v3077
    %7718 = vmatpush.msra.mxu0 %v3076
    %7719 = vmatpush.msra.mxu0 %v3075
    %7720 = vmatpush.msra.mxu0 %v3074
    %7721 = vmatpush.msra.mxu0 %v3073
    %7722 = vmatpush.msra.mxu0 %v3072
    %7723 = vmatmul.f32.gmra.mxu0 %v3959
    %v7724 = vpop.f32.mrf.mxu0
    %v7725 = vadd.f32 %v7705, %v7724
    %7726 = vdwg.mxu0
    %7727 = vmatpush.msra.mxu0 %v3103
    %7728 = vmatpush.msra.mxu0 %v3102
    %7729 = vmatpush.msra.mxu0 %v3101
    %7730 = vmatpush.msra.mxu0 %v3100
    %7731 = vmatpush.msra.mxu0 %v3099
    %7732 = vmatpush.msra.mxu0 %v3098
    %7733 = vmatpush.msra.mxu0 %v3097
    %7734 = vmatpush.msra.mxu0 %v3096
    %7735 = vmatpush.msra.mxu0 %v3095
    %7736 = vmatpush.msra.mxu0 %v3094
    %7737 = vmatpush.msra.mxu0 %v3093
    %7738 = vmatpush.msra.mxu0 %v3092
    %7739 = vmatpush.msra.mxu0 %v3091
    %7740 = vmatpush.msra.mxu0 %v3090
    %7741 = vmatpush.msra.mxu0 %v3089
    %7742 = vmatpush.msra.mxu0 %v3088
    %7743 = vmatmul.f32.gmra.mxu0 %v3960
    %v7744 = vpop.f32.mrf.mxu0
    %v7745 = vadd.f32 %v7725, %v7744
    %7746 = vdwg.mxu0
    %7747 = vmatpush.msra.mxu0 %v3119
    %7748 = vmatpush.msra.mxu0 %v3118
    %7749 = vmatpush.msra.mxu0 %v3117
    %7750 = vmatpush.msra.mxu0 %v3116
    %7751 = vmatpush.msra.mxu0 %v3115
    %7752 = vmatpush.msra.mxu0 %v3114
    %7753 = vmatpush.msra.mxu0 %v3113
    %7754 = vmatpush.msra.mxu0 %v3112
    %7755 = vmatpush.msra.mxu0 %v3111
    %7756 = vmatpush.msra.mxu0 %v3110
    %7757 = vmatpush.msra.mxu0 %v3109
    %7758 = vmatpush.msra.mxu0 %v3108
    %7759 = vmatpush.msra.mxu0 %v3107
    %7760 = vmatpush.msra.mxu0 %v3106
    %7761 = vmatpush.msra.mxu0 %v3105
    %7762 = vmatpush.msra.mxu0 %v3104
    %7763 = vmatmul.f32.gmra.mxu0 %v3961
    %v7764 = vpop.f32.mrf.mxu0
    %v7765 = vadd.f32 %v7745, %v7764
    %7766 = vdwg.mxu0
    %7767 = vmatpush.msra.mxu0 %v3135
    %7768 = vmatpush.msra.mxu0 %v3134
    %7769 = vmatpush.msra.mxu0 %v3133
    %7770 = vmatpush.msra.mxu0 %v3132
    %7771 = vmatpush.msra.mxu0 %v3131
    %7772 = vmatpush.msra.mxu0 %v3130
    %7773 = vmatpush.msra.mxu0 %v3129
    %7774 = vmatpush.msra.mxu0 %v3128
    %7775 = vmatpush.msra.mxu0 %v3127
    %7776 = vmatpush.msra.mxu0 %v3126
    %7777 = vmatpush.msra.mxu0 %v3125
    %7778 = vmatpush.msra.mxu0 %v3124
    %7779 = vmatpush.msra.mxu0 %v3123
    %7780 = vmatpush.msra.mxu0 %v3122
    %7781 = vmatpush.msra.mxu0 %v3121
    %7782 = vmatpush.msra.mxu0 %v3120
    %7783 = vmatmul.f32.gmra.mxu0 %v3962
    %v7784 = vpop.f32.mrf.mxu0
    %v7785 = vadd.f32 %v7765, %v7784
    %7786 = vdwg.mxu0
    %7787 = vmatpush.msra.mxu0 %v3151
    %7788 = vmatpush.msra.mxu0 %v3150
    %7789 = vmatpush.msra.mxu0 %v3149
    %7790 = vmatpush.msra.mxu0 %v3148
    %7791 = vmatpush.msra.mxu0 %v3147
    %7792 = vmatpush.msra.mxu0 %v3146
    %7793 = vmatpush.msra.mxu0 %v3145
    %7794 = vmatpush.msra.mxu0 %v3144
    %7795 = vmatpush.msra.mxu0 %v3143
    %7796 = vmatpush.msra.mxu0 %v3142
    %7797 = vmatpush.msra.mxu0 %v3141
    %7798 = vmatpush.msra.mxu0 %v3140
    %7799 = vmatpush.msra.mxu0 %v3139
    %7800 = vmatpush.msra.mxu0 %v3138
    %7801 = vmatpush.msra.mxu0 %v3137
    %7802 = vmatpush.msra.mxu0 %v3136
    %7803 = vmatmul.f32.gmra.mxu0 %v3963
    %v7804 = vpop.f32.mrf.mxu0
    %v7805 = vadd.f32 %v7785, %v7804
    %7806 = vdwg.mxu0
    %7807 = vmatpush.msra.mxu0 %v3167
    %7808 = vmatpush.msra.mxu0 %v3166
    %7809 = vmatpush.msra.mxu0 %v3165
    %7810 = vmatpush.msra.mxu0 %v3164
    %7811 = vmatpush.msra.mxu0 %v3163
    %7812 = vmatpush.msra.mxu0 %v3162
    %7813 = vmatpush.msra.mxu0 %v3161
    %7814 = vmatpush.msra.mxu0 %v3160
    %7815 = vmatpush.msra.mxu0 %v3159
    %7816 = vmatpush.msra.mxu0 %v3158
    %7817 = vmatpush.msra.mxu0 %v3157
    %7818 = vmatpush.msra.mxu0 %v3156
    %7819 = vmatpush.msra.mxu0 %v3155
    %7820 = vmatpush.msra.mxu0 %v3154
    %7821 = vmatpush.msra.mxu0 %v3153
    %7822 = vmatpush.msra.mxu0 %v3152
    %7823 = vmatmul.f32.gmra.mxu0 %v3964
    %v7824 = vpop.f32.mrf.mxu0
    %v7825 = vadd.f32 %v7805, %v7824
    %7826 = vdwg.mxu0
    %7827 = vmatpush.msra.mxu0 %v3183
    %7828 = vmatpush.msra.mxu0 %v3182
    %7829 = vmatpush.msra.mxu0 %v3181
    %7830 = vmatpush.msra.mxu0 %v3180
    %7831 = vmatpush.msra.mxu0 %v3179
    %7832 = vmatpush.msra.mxu0 %v3178
    %7833 = vmatpush.msra.mxu0 %v3177
    %7834 = vmatpush.msra.mxu0 %v3176
    %7835 = vmatpush.msra.mxu0 %v3175
    %7836 = vmatpush.msra.mxu0 %v3174
    %7837 = vmatpush.msra.mxu0 %v3173
    %7838 = vmatpush.msra.mxu0 %v3172
    %7839 = vmatpush.msra.mxu0 %v3171
    %7840 = vmatpush.msra.mxu0 %v3170
    %7841 = vmatpush.msra.mxu0 %v3169
    %7842 = vmatpush.msra.mxu0 %v3168
    %7843 = vmatmul.f32.gmra.mxu0 %v3965
    %v7844 = vpop.f32.mrf.mxu0
    %v7845 = vadd.f32 %v7825, %v7844
    %7846 = vdwg.mxu0
    %7847 = vmatpush.msra.mxu0 %v3199
    %7848 = vmatpush.msra.mxu0 %v3198
    %7849 = vmatpush.msra.mxu0 %v3197
    %7850 = vmatpush.msra.mxu0 %v3196
    %7851 = vmatpush.msra.mxu0 %v3195
    %7852 = vmatpush.msra.mxu0 %v3194
    %7853 = vmatpush.msra.mxu0 %v3193
    %7854 = vmatpush.msra.mxu0 %v3192
    %7855 = vmatpush.msra.mxu0 %v3191
    %7856 = vmatpush.msra.mxu0 %v3190
    %7857 = vmatpush.msra.mxu0 %v3189
    %7858 = vmatpush.msra.mxu0 %v3188
    %7859 = vmatpush.msra.mxu0 %v3187
    %7860 = vmatpush.msra.mxu0 %v3186
    %7861 = vmatpush.msra.mxu0 %v3185
    %7862 = vmatpush.msra.mxu0 %v3184
    %7863 = vmatmul.f32.gmra.mxu0 %v3966
    %v7864 = vpop.f32.mrf.mxu0
    %v7865 = vadd.f32 %v7845, %v7864
    %7866 = vdwg.mxu0
    %7867 = vmatpush.msra.mxu0 %v3215
    %7868 = vmatpush.msra.mxu0 %v3214
    %7869 = vmatpush.msra.mxu0 %v3213
    %7870 = vmatpush.msra.mxu0 %v3212
    %7871 = vmatpush.msra.mxu0 %v3211
    %7872 = vmatpush.msra.mxu0 %v3210
    %7873 = vmatpush.msra.mxu0 %v3209
    %7874 = vmatpush.msra.mxu0 %v3208
    %7875 = vmatpush.msra.mxu0 %v3207
    %7876 = vmatpush.msra.mxu0 %v3206
    %7877 = vmatpush.msra.mxu0 %v3205
    %7878 = vmatpush.msra.mxu0 %v3204
    %7879 = vmatpush.msra.mxu0 %v3203
    %7880 = vmatpush.msra.mxu0 %v3202
    %7881 = vmatpush.msra.mxu0 %v3201
    %7882 = vmatpush.msra.mxu0 %v3200
    %7883 = vmatmul.f32.gmra.mxu0 %v3975
    %v7884 = vpop.f32.mrf.mxu0
    %v7885 = vadd.f32 %v7865, %v7884
    %7886 = vdwg.mxu0
    %7887 = vmatpush.msra.mxu0 %v3231
    %7888 = vmatpush.msra.mxu0 %v3230
    %7889 = vmatpush.msra.mxu0 %v3229
    %7890 = vmatpush.msra.mxu0 %v3228
    %7891 = vmatpush.msra.mxu0 %v3227
    %7892 = vmatpush.msra.mxu0 %v3226
    %7893 = vmatpush.msra.mxu0 %v3225
    %7894 = vmatpush.msra.mxu0 %v3224
    %7895 = vmatpush.msra.mxu0 %v3223
    %7896 = vmatpush.msra.mxu0 %v3222
    %7897 = vmatpush.msra.mxu0 %v3221
    %7898 = vmatpush.msra.mxu0 %v3220
    %7899 = vmatpush.msra.mxu0 %v3219
    %7900 = vmatpush.msra.mxu0 %v3218
    %7901 = vmatpush.msra.mxu0 %v3217
    %7902 = vmatpush.msra.mxu0 %v3216
    %7903 = vmatmul.f32.gmra.mxu0 %v3976
    %v7904 = vpop.f32.mrf.mxu0
    %v7905 = vadd.f32 %v7885, %v7904
    %7906 = vdwg.mxu0
    %7907 = vmatpush.msra.mxu0 %v3247
    %7908 = vmatpush.msra.mxu0 %v3246
    %7909 = vmatpush.msra.mxu0 %v3245
    %7910 = vmatpush.msra.mxu0 %v3244
    %7911 = vmatpush.msra.mxu0 %v3243
    %7912 = vmatpush.msra.mxu0 %v3242
    %7913 = vmatpush.msra.mxu0 %v3241
    %7914 = vmatpush.msra.mxu0 %v3240
    %7915 = vmatpush.msra.mxu0 %v3239
    %7916 = vmatpush.msra.mxu0 %v3238
    %7917 = vmatpush.msra.mxu0 %v3237
    %7918 = vmatpush.msra.mxu0 %v3236
    %7919 = vmatpush.msra.mxu0 %v3235
    %7920 = vmatpush.msra.mxu0 %v3234
    %7921 = vmatpush.msra.mxu0 %v3233
    %7922 = vmatpush.msra.mxu0 %v3232
    %7923 = vmatmul.f32.gmra.mxu0 %v3977
    %v7924 = vpop.f32.mrf.mxu0
    %v7925 = vadd.f32 %v7905, %v7924
    %7926 = vdwg.mxu0
    %7927 = vmatpush.msra.mxu0 %v3263
    %7928 = vmatpush.msra.mxu0 %v3262
    %7929 = vmatpush.msra.mxu0 %v3261
    %7930 = vmatpush.msra.mxu0 %v3260
    %7931 = vmatpush.msra.mxu0 %v3259
    %7932 = vmatpush.msra.mxu0 %v3258
    %7933 = vmatpush.msra.mxu0 %v3257
    %7934 = vmatpush.msra.mxu0 %v3256
    %7935 = vmatpush.msra.mxu0 %v3255
    %7936 = vmatpush.msra.mxu0 %v3254
    %7937 = vmatpush.msra.mxu0 %v3253
    %7938 = vmatpush.msra.mxu0 %v3252
    %7939 = vmatpush.msra.mxu0 %v3251
    %7940 = vmatpush.msra.mxu0 %v3250
    %7941 = vmatpush.msra.mxu0 %v3249
    %7942 = vmatpush.msra.mxu0 %v3248
    %7943 = vmatmul.f32.gmra.mxu0 %v3978
    %v7944 = vpop.f32.mrf.mxu0
    %v7945 = vadd.f32 %v7925, %v7944
    %7946 = vdwg.mxu0
    %7947 = vmatpush.msra.mxu0 %v3279
    %7948 = vmatpush.msra.mxu0 %v3278
    %7949 = vmatpush.msra.mxu0 %v3277
    %7950 = vmatpush.msra.mxu0 %v3276
    %7951 = vmatpush.msra.mxu0 %v3275
    %7952 = vmatpush.msra.mxu0 %v3274
    %7953 = vmatpush.msra.mxu0 %v3273
    %7954 = vmatpush.msra.mxu0 %v3272
    %7955 = vmatpush.msra.mxu0 %v3271
    %7956 = vmatpush.msra.mxu0 %v3270
    %7957 = vmatpush.msra.mxu0 %v3269
    %7958 = vmatpush.msra.mxu0 %v3268
    %7959 = vmatpush.msra.mxu0 %v3267
    %7960 = vmatpush.msra.mxu0 %v3266
    %7961 = vmatpush.msra.mxu0 %v3265
    %7962 = vmatpush.msra.mxu0 %v3264
    %7963 = vmatmul.f32.gmra.mxu0 %v3979
    %v7964 = vpop.f32.mrf.mxu0
    %v7965 = vadd.f32 %v7945, %v7964
    %7966 = vdwg.mxu0
    %7967 = vmatpush.msra.mxu0 %v3295
    %7968 = vmatpush.msra.mxu0 %v3294
    %7969 = vmatpush.msra.mxu0 %v3293
    %7970 = vmatpush.msra.mxu0 %v3292
    %7971 = vmatpush.msra.mxu0 %v3291
    %7972 = vmatpush.msra.mxu0 %v3290
    %7973 = vmatpush.msra.mxu0 %v3289
    %7974 = vmatpush.msra.mxu0 %v3288
    %7975 = vmatpush.msra.mxu0 %v3287
    %7976 = vmatpush.msra.mxu0 %v3286
    %7977 = vmatpush.msra.mxu0 %v3285
    %7978 = vmatpush.msra.mxu0 %v3284
    %7979 = vmatpush.msra.mxu0 %v3283
    %7980 = vmatpush.msra.mxu0 %v3282
    %7981 = vmatpush.msra.mxu0 %v3281
    %7982 = vmatpush.msra.mxu0 %v3280
    %7983 = vmatmul.f32.gmra.mxu0 %v3980
    %v7984 = vpop.f32.mrf.mxu0
    %v7985 = vadd.f32 %v7965, %v7984
    %7986 = vdwg.mxu0
    %7987 = vmatpush.msra.mxu0 %v3311
    %7988 = vmatpush.msra.mxu0 %v3310
    %7989 = vmatpush.msra.mxu0 %v3309
    %7990 = vmatpush.msra.mxu0 %v3308
    %7991 = vmatpush.msra.mxu0 %v3307
    %7992 = vmatpush.msra.mxu0 %v3306
    %7993 = vmatpush.msra.mxu0 %v3305
    %7994 = vmatpush.msra.mxu0 %v3304
    %7995 = vmatpush.msra.mxu0 %v3303
    %7996 = vmatpush.msra.mxu0 %v3302
    %7997 = vmatpush.msra.mxu0 %v3301
    %7998 = vmatpush.msra.mxu0 %v3300
    %7999 = vmatpush.msra.mxu0 %v3299
    %8000 = vmatpush.msra.mxu0 %v3298
    %8001 = vmatpush.msra.mxu0 %v3297
    %8002 = vmatpush.msra.mxu0 %v3296
    %8003 = vmatmul.f32.gmra.mxu0 %v3981
    %v8004 = vpop.f32.mrf.mxu0
    %v8005 = vadd.f32 %v7985, %v8004
    %8006 = vdwg.mxu0
    %8007 = vmatpush.msra.mxu0 %v3327
    %8008 = vmatpush.msra.mxu0 %v3326
    %8009 = vmatpush.msra.mxu0 %v3325
    %8010 = vmatpush.msra.mxu0 %v3324
    %8011 = vmatpush.msra.mxu0 %v3323
    %8012 = vmatpush.msra.mxu0 %v3322
    %8013 = vmatpush.msra.mxu0 %v3321
    %8014 = vmatpush.msra.mxu0 %v3320
    %8015 = vmatpush.msra.mxu0 %v3319
    %8016 = vmatpush.msra.mxu0 %v3318
    %8017 = vmatpush.msra.mxu0 %v3317
    %8018 = vmatpush.msra.mxu0 %v3316
    %8019 = vmatpush.msra.mxu0 %v3315
    %8020 = vmatpush.msra.mxu0 %v3314
    %8021 = vmatpush.msra.mxu0 %v3313
    %8022 = vmatpush.msra.mxu0 %v3312
    %8023 = vmatmul.f32.gmra.mxu0 %v3982
    %v8024 = vpop.f32.mrf.mxu0
    %v8025 = vadd.f32 %v8005, %v8024
    %8026 = vdwg.mxu0
    %8027 = vmatpush.msra.mxu0 %v3343
    %8028 = vmatpush.msra.mxu0 %v3342
    %8029 = vmatpush.msra.mxu0 %v3341
    %8030 = vmatpush.msra.mxu0 %v3340
    %8031 = vmatpush.msra.mxu0 %v3339
    %8032 = vmatpush.msra.mxu0 %v3338
    %8033 = vmatpush.msra.mxu0 %v3337
    %8034 = vmatpush.msra.mxu0 %v3336
    %8035 = vmatpush.msra.mxu0 %v3335
    %8036 = vmatpush.msra.mxu0 %v3334
    %8037 = vmatpush.msra.mxu0 %v3333
    %8038 = vmatpush.msra.mxu0 %v3332
    %8039 = vmatpush.msra.mxu0 %v3331
    %8040 = vmatpush.msra.mxu0 %v3330
    %8041 = vmatpush.msra.mxu0 %v3329
    %8042 = vmatpush.msra.mxu0 %v3328
    %8043 = vmatmul.f32.gmra.mxu0 %v3987
    %v8044 = vpop.f32.mrf.mxu0
    %v8045 = vadd.f32 %v8025, %v8044
    %8046 = vdwg.mxu0
    %8047 = vmatpush.msra.mxu0 %v3359
    %8048 = vmatpush.msra.mxu0 %v3358
    %8049 = vmatpush.msra.mxu0 %v3357
    %8050 = vmatpush.msra.mxu0 %v3356
    %8051 = vmatpush.msra.mxu0 %v3355
    %8052 = vmatpush.msra.mxu0 %v3354
    %8053 = vmatpush.msra.mxu0 %v3353
    %8054 = vmatpush.msra.mxu0 %v3352
    %8055 = vmatpush.msra.mxu0 %v3351
    %8056 = vmatpush.msra.mxu0 %v3350
    %8057 = vmatpush.msra.mxu0 %v3349
    %8058 = vmatpush.msra.mxu0 %v3348
    %8059 = vmatpush.msra.mxu0 %v3347
    %8060 = vmatpush.msra.mxu0 %v3346
    %8061 = vmatpush.msra.mxu0 %v3345
    %8062 = vmatpush.msra.mxu0 %v3344
    %8063 = vmatmul.f32.gmra.mxu0 %v3988
    %v8064 = vpop.f32.mrf.mxu0
    %v8065 = vadd.f32 %v8045, %v8064
    %8066 = vdwg.mxu0
    %8067 = vmatpush.msra.mxu0 %v3375
    %8068 = vmatpush.msra.mxu0 %v3374
    %8069 = vmatpush.msra.mxu0 %v3373
    %8070 = vmatpush.msra.mxu0 %v3372
    %8071 = vmatpush.msra.mxu0 %v3371
    %8072 = vmatpush.msra.mxu0 %v3370
    %8073 = vmatpush.msra.mxu0 %v3369
    %8074 = vmatpush.msra.mxu0 %v3368
    %8075 = vmatpush.msra.mxu0 %v3367
    %8076 = vmatpush.msra.mxu0 %v3366
    %8077 = vmatpush.msra.mxu0 %v3365
    %8078 = vmatpush.msra.mxu0 %v3364
    %8079 = vmatpush.msra.mxu0 %v3363
    %8080 = vmatpush.msra.mxu0 %v3362
    %8081 = vmatpush.msra.mxu0 %v3361
    %8082 = vmatpush.msra.mxu0 %v3360
    %8083 = vmatmul.f32.gmra.mxu0 %v3989
    %v8084 = vpop.f32.mrf.mxu0
    %v8085 = vadd.f32 %v8065, %v8084
    %8086 = vdwg.mxu0
    %8087 = vmatpush.msra.mxu0 %v3391
    %8088 = vmatpush.msra.mxu0 %v3390
    %8089 = vmatpush.msra.mxu0 %v3389
    %8090 = vmatpush.msra.mxu0 %v3388
    %8091 = vmatpush.msra.mxu0 %v3387
    %8092 = vmatpush.msra.mxu0 %v3386
    %8093 = vmatpush.msra.mxu0 %v3385
    %8094 = vmatpush.msra.mxu0 %v3384
    %8095 = vmatpush.msra.mxu0 %v3383
    %8096 = vmatpush.msra.mxu0 %v3382
    %8097 = vmatpush.msra.mxu0 %v3381
    %8098 = vmatpush.msra.mxu0 %v3380
    %8099 = vmatpush.msra.mxu0 %v3379
    %8100 = vmatpush.msra.mxu0 %v3378
    %8101 = vmatpush.msra.mxu0 %v3377
    %8102 = vmatpush.msra.mxu0 %v3376
    %8103 = vmatmul.f32.gmra.mxu0 %v3990
    %v8104 = vpop.f32.mrf.mxu0
    %v8105 = vadd.f32 %v8085, %v8104
    %8106 = vdwg.mxu0
    %8107 = vst [vmem:[#allocation8] sm:$0xff] %v8105
    // Predicated region
    $region26: #{tpu_custom_call.1} parent=1 // pred_check
      _
    $region27: #{tpu_custom_call.1} parent=1 // pred_check_branch
      %8109 = sbr.rel (0) target = $region29
    $region28: #{tpu_custom_call.1} parent=1 // pred_region
      %8111 = vsyncadd [#allocation4], 96
      %s8112 = sshll.u32 [#allocation8], 4
      %s8113 = int_to_ptr.vmem [resolvable:$true] %s8112
      %s8114 = sshll.u32 %s3, 4
      %s8115 = int_to_ptr.hbm [resolvable:$true] %s8114
      %8120 = dma.vmem_to_hbm [thread:$0]  %s8113, 32, %s8115, [#allocation4], 32, 32, 2
    $region29: #{tpu_custom_call.1} parent=1 // pred_fallthru
      _
    // Predicated region
    $region30: #{tpu_custom_call.1} parent=1 // pred_check
      _
    $region31: #{tpu_custom_call.1} parent=1 // pred_check_branch
      %8122 = sbr.rel (0) target = $region33
    $region32: #{tpu_custom_call.1} parent=1 // pred_region
      %8124 = dma.done [#allocation4], 128
    $region33: #{tpu_custom_call.1} parent=1 // pred_fallthru
      _
    %8125 = vsyncpa [#allocation3], 1
    %8126 = vsyncpa [#allocation6], 1
    %8127 = vsyncpa [#allocation4], 1

</llo_original>
